<compile_context>
chip_gen: v5e
topology: v5e:2x2
jax: 0.10.0
libtpu: 0.0.40
codegen_flags: <defaults>
</compile_context>

<pallas_src>
import functools

import jax
import jax.numpy as jnp
from jax.experimental import pallas as pl
from jax.experimental.pallas import tpu as pltpu

INPUT_DIM = 500
HIDDEN_DIM = 256
OUTPUT_DIM = 1
OUT_PAD = 128  # lane-dense output slab; sliced to OUTPUT_DIM in the wrapper


def bigru_fc_kernel(x_ref, wih_ref, bgi_ref, bhhn_ref, bfc_ref,
                    whhf_hbm, whhb_hbm, wfc_hbm,
                    o_ref,
                    gi_ref, whhf_v, whhb_v, wfc_v, sem, *, T, BP, H):
    G3 = 3 * H

    # ---- (1) Kick off recurrence/epilogue weight DMAs ------------------------
    # These operands are not needed until after the hoisted projection, so their
    # HBM->VMEM transfer hides behind the big MXU matmul below.
    cp_whhf = pltpu.make_async_copy(whhf_hbm, whhf_v, sem.at[0]); cp_whhf.start()
    cp_whhb = pltpu.make_async_copy(whhb_hbm, whhb_v, sem.at[1]); cp_whhb.start()
    cp_wfc = pltpu.make_async_copy(wfc_hbm, wfc_v, sem.at[2]); cp_wfc.start()

    # ---- (2) Hoisted input projection ----------------------------------------
    # One MXU-friendly bf16 matmul covering every timestep and BOTH directions:
    #   (T*BP, Dp) @ (Dp, 6H) -> (T*BP, 6H), f32 accumulation.
    # Input biases (and bhh_r / bhh_z) are pre-folded into bgi, so inside the
    # recurrence only the h @ W_hh dependency chain remains.  Stored bf16.
    gi = jnp.dot(x_ref[...], wih_ref[...], preferred_element_type=jnp.float32)
    gi_ref[...] = (gi + bgi_ref[...]).astype(jnp.bfloat16)

    # ---- (3) Recurrence -------------------------------------------------------
    cp_whhf.wait()
    cp_whhb.wait()
    whh_f = whhf_v[...]                                    # (H, 3H) bf16, per-direction
    whh_b = whhb_v[...]
    bhh_n_f = jnp.broadcast_to(bhhn_ref[:, 0:H], (BP, H))  # hoisted broadcasts
    bhh_n_b = jnp.broadcast_to(bhhn_ref[:, H:2 * H], (BP, H))

    # Hidden states carried in registers, one per direction (no concatenate,
    # no zero-filled block-diagonal weight: half the per-step MXU tile pushes).
    h_f = jnp.zeros((BP, H), jnp.float32)
    h_b = jnp.zeros((BP, H), jnp.float32)

    # Fully unrolled recurrence (T is small & static) so the scheduler can
    # interleave EUP (sigmoid/tanh), VPU gate math and the MXU pushes of the two
    # independent per-direction matmuls.
    # TODO(synk): for larger T switch to lax.fori_loop(..., unroll=2-4) to cap
    #             vreg live ranges, and stream gi over a T-chunk grid axis once
    #             (T*BP,6H) no longer fits v7x's 64 MiB VMEM.
    for t in range(T):
        g_f = gi_ref[t * BP:(t + 1) * BP, 0:G3].astype(jnp.float32)        # fwd, time t
        g_b = gi_ref[(T - 1 - t) * BP:(T - t) * BP, G3:2 * G3].astype(jnp.float32)  # bwd

        # Two independent per-direction hidden matmuls (VLIW interleaves them).
        gh_f = jnp.dot(h_f.astype(jnp.bfloat16), whh_f,
                       preferred_element_type=jnp.float32)
        gh_b = jnp.dot(h_b.astype(jnp.bfloat16), whh_b,
                       preferred_element_type=jnp.float32)

        # PyTorch GRU gate order [r, z, n]; gate math stays in f32 (v5e-safe).
        r_f = jax.nn.sigmoid(g_f[:, 0:H] + gh_f[:, 0:H])
        z_f = jax.nn.sigmoid(g_f[:, H:2 * H] + gh_f[:, H:2 * H])
        n_f = jnp.tanh(g_f[:, 2 * H:] + r_f * (gh_f[:, 2 * H:] + bhh_n_f))

        r_b = jax.nn.sigmoid(g_b[:, 0:H] + gh_b[:, 0:H])
        z_b = jax.nn.sigmoid(g_b[:, H:2 * H] + gh_b[:, H:2 * H])
        n_b = jnp.tanh(g_b[:, 2 * H:] + r_b * (gh_b[:, 2 * H:] + bhh_n_b))

        h_f = (1.0 - z_f) * n_f + z_f * h_f
        h_b = (1.0 - z_b) * n_b + z_b * h_b

    # TODO(synk): on v7x, split the two directions across the 2 TensorCores
    #             (grid axis of size 2, "parallel", or pl.core_map) — kept fused
    #             here because v5e/v6e have a single TC and a sequential 2-point
    #             grid would double the serial recurrence wall-clock there.
    # TODO(synk): evaluate weight-stationary MXU driving (matmul_push_rhs /
    #             matmul_acc_lhs / matmul_pop) per direction on v6e once bundle
    #             dumps confirm the 3x256^2 RHS tiles fit the staging registers.

    # ---- (4) Epilogue: (h_fwd_final + h_bwd_final)/2 -> FC -> sigmoid --------
    # (matches out[:, -1, :H] and out[:, 0, H:] of the PyTorch bi-GRU output)
    avg = ((h_f + h_b) * 0.5).astype(jnp.bfloat16)
    cp_wfc.wait()
    z1 = jnp.dot(avg, wfc_v[...], preferred_element_type=jnp.float32) + bfc_ref[...]
    o_ref[...] = jax.nn.sigmoid(z1)


def _prepare_kernel_operands(params, d_pad):
    """Pack / pad weights for the kernel. gi column layout: [fwd r,z,n | bwd r,z,n]."""
    H, D = HIDDEN_DIM, INPUT_DIM

    # Input-projection weights, padded on K (500 -> 512), bf16 MXU operands.
    wih = jnp.concatenate([params["wih_f"], params["wih_b"]], axis=1)   # (D, 6H)
    wih = jnp.pad(wih, ((0, d_pad - D), (0, 0))).astype(jnp.bfloat16)

    # Per-direction hidden weights (no zero-filled block-diagonal), bf16.
    whh_f = params["whh_f"].astype(jnp.bfloat16)                         # (H, 3H)
    whh_b = params["whh_b"].astype(jnp.bfloat16)                         # (H, 3H)

    # Biases folded into the precomputed input projection: bih + [bhh_r, bhh_z, 0].
    def fold(bih, bhh):
        return bih + jnp.concatenate(
            [bhh[:, :2 * H], jnp.zeros((1, H), jnp.float32)], axis=1)

    bgi = jnp.concatenate([fold(params["bih_f"], params["bhh_f"]),
                           fold(params["bih_b"], params["bhh_b"])], axis=1)  # (1, 6H)
    bhhn = jnp.concatenate([params["bhh_f"][:, 2 * H:],
                            params["bhh_b"][:, 2 * H:]], axis=1)             # (1, 2H)

    # FC weights padded to a lane-dense 128-wide output; bf16 MXU operand,
    # f32 accumulation + f32 bias keep the final precision.
    wfc = jnp.pad(params["wfc"], ((0, 0), (0, OUT_PAD - OUTPUT_DIM))).astype(jnp.bfloat16)
    bfc = jnp.pad(params["bfc"], ((0, 0), (0, OUT_PAD - OUTPUT_DIM)))
    return wih, whh_f, whh_b, bgi, bhhn, wfc, bfc


@jax.jit
def context_rnn_forward(inputs, params):
    """inputs: (B, T, INPUT_DIM) float32, batch-first like the PyTorch module."""
    B, T, D = inputs.shape
    H = HIDDEN_DIM
    BP = ((B + 7) // 8) * 8          # pad batch to full sublanes
    Dp = ((D + 127) // 128) * 128    # pad contraction dim 500 -> 512

    wih, whh_f, whh_b, bgi, bhhn, wfc, bfc = _prepare_kernel_operands(params, Dp)

    x_tm = jnp.transpose(inputs, (1, 0, 2))                       # (T, B, D)
    x_pad = jnp.pad(x_tm, ((0, 0), (0, BP - B), (0, Dp - D))).astype(jnp.bfloat16)
    x2d = x_pad.reshape(T * BP, Dp)                               # (T*BP, Dp)

    vmem = pl.BlockSpec(memory_space=pltpu.MemorySpace.VMEM)
    hbm = pl.BlockSpec(memory_space=pl.ANY)   # manual DMA, overlapped with compute
    kernel = functools.partial(bigru_fc_kernel, T=T, BP=BP, H=H)

    out = pl.pallas_call(
        kernel,
        out_shape=jax.ShapeDtypeStruct((BP, OUT_PAD), jnp.float32),
        in_specs=[vmem, vmem, vmem, vmem, vmem, hbm, hbm, hbm],
        out_specs=vmem,
        scratch_shapes=[
            pltpu.VMEM((T * BP, 6 * H), jnp.bfloat16),   # gi (precomputed gates)
            pltpu.VMEM((H, 3 * H), jnp.bfloat16),        # whh_f landing buffer
            pltpu.VMEM((H, 3 * H), jnp.bfloat16),        # whh_b landing buffer
            pltpu.VMEM((H, OUT_PAD), jnp.bfloat16),      # wfc landing buffer
            pltpu.SemaphoreType.DMA((3,)),
        ],
    )(x2d, wih, bgi, bhhn, bfc, whh_f, whh_b, wfc)

    return out[:B, :OUTPUT_DIM]


def init_params(key):
    """Deterministic synthetic init mirroring PyTorch's uniform(-1/sqrt(H), 1/sqrt(H))."""
    H, D = HIDDEN_DIM, INPUT_DIM
    k = 1.0 / (H ** 0.5)
    keys = jax.random.split(key, 12)
    u = lambda kk, shape: jax.random.uniform(kk, shape, jnp.float32, minval=-k, maxval=k)
    return {
        # stored pre-transposed: (D, 3H) / (H, 3H), gate order [r, z, n]
        "wih_f": u(keys[0], (D, 3 * H)),
        "whh_f": u(keys[1], (H, 3 * H)),
        "bih_f": u(keys[2], (1, 3 * H)),
        "bhh_f": u(keys[3], (1, 3 * H)),
        "wih_b": u(keys[4], (D, 3 * H)),
        "whh_b": u(keys[5], (H, 3 * H)),
        "bih_b": u(keys[6], (1, 3 * H)),
        "bhh_b": u(keys[7], (1, 3 * H)),
        "wfc":   u(keys[8], (H, OUTPUT_DIM)),
        "bfc":   u(keys[9], (1, OUTPUT_DIM)),
    }


def reference_forward(inputs, params):
    """Pure-JAX reference of the PyTorch forward (for sanity checking)."""
    B, T, D = inputs.shape
    H = HIDDEN_DIM
    hp = jax.lax.Precision.HIGHEST

    def run(x_seq, wih, whh, bih, bhh):
        def step(h, xt):
            gi = jnp.dot(xt, wih, precision=hp) + bih
            gh = jnp.dot(h, whh, precision=hp) + bhh
            r = jax.nn.sigmoid(gi[:, :H] + gh[:, :H])
            z = jax.nn.sigmoid(gi[:, H:2 * H] + gh[:, H:2 * H])
            n = jnp.tanh(gi[:, 2 * H:] + r * gh[:, 2 * H:])
            return (1.0 - z) * n + z * h, None

        h0 = jnp.zeros((B, H), jnp.float32)
        hT, _ = jax.lax.scan(step, h0, jnp.transpose(x_seq, (1, 0, 2)))
        return hT

    hf = run(inputs, params["wih_f"], params["whh_f"], params["bih_f"], params["bhh_f"])
    hb = run(inputs[:, ::-1, :], params["wih_b"], params["whh_b"],
             params["bih_b"], params["bhh_b"])
    avg = (hf + hb) * 0.5
    return jax.nn.sigmoid(jnp.dot(avg, params["wfc"], precision=hp) + params["bfc"])


if __name__ == "__main__":
    key = jax.random.PRNGKey(0)
    k_x, k_p = jax.random.split(key)

    B, T = 2, 8  # small batch / sequence; feature dims fixed by the module (500 -> 2x256 -> 1)
    x = jax.random.normal(k_x, (B, T, INPUT_DIM), dtype=jnp.float32)
    params = init_params(k_p)

    out = context_rnn_forward(x, params)
    out = jax.block_until_ready(out)

    ref = reference_forward(x, params)
    assert out.shape == (B, OUTPUT_DIM)
    # Tolerance accounts for bf16 MXU operands / bf16 gi storage (f32 accumulation
    # and f32 gate math) vs the f32 HIGHEST-precision reference.
    assert jnp.allclose(out, ref, atol=1e-2, rtol=1e-2), (out, ref)

    print("KERNEL_OK")
</pallas_src>

<mosaic_0001>
module attributes {stable_mosaic.version = 11 : i64} {
  func.func @bigru_fc_kernel(%arg0: memref<64x512xbf16, #tpu.memory_space<vmem>>, %arg1: memref<512x1536xbf16, #tpu.memory_space<vmem>>, %arg2: memref<1x1536xf32, #tpu.memory_space<vmem>>, %arg3: memref<1x512xf32, #tpu.memory_space<vmem>>, %arg4: memref<1x128xf32, #tpu.memory_space<vmem>>, %arg5: memref<256x768xbf16, #tpu.memory_space<any>>, %arg6: memref<256x768xbf16, #tpu.memory_space<any>>, %arg7: memref<256x128xbf16, #tpu.memory_space<any>>, %arg8: memref<8x128xf32, #tpu.memory_space<vmem>>, %arg9: memref<64x1536xbf16, #tpu.memory_space<vmem>>, %arg10: memref<256x768xbf16, #tpu.memory_space<vmem>>, %arg11: memref<256x768xbf16, #tpu.memory_space<vmem>>, %arg12: memref<256x128xbf16, #tpu.memory_space<vmem>>, %arg13: memref<3x!tpu.dma_semaphore, #tpu.memory_space<semaphore_mem>>) attributes {dimension_semantics = [], scalar_prefetch = 0 : i64, scratch_operands = 5 : i64, tpu.core_type = #tpu.core_type<tc>} {
    %c0_i32 = arith.constant 0 : i32
    %0 = tpu.memref_slice %arg13[%c0_i32] : memref<3x!tpu.dma_semaphore, #tpu.memory_space<semaphore_mem>> -> memref<1x!tpu.dma_semaphore, #tpu.memory_space<semaphore_mem>>
    %1 = tpu.memref_squeeze %0 : memref<1x!tpu.dma_semaphore, #tpu.memory_space<semaphore_mem>> -> memref<!tpu.dma_semaphore, #tpu.memory_space<semaphore_mem>>
    tpu.enqueue_dma source(%arg5 : memref<256x768xbf16, #tpu.memory_space<any>>) target(%arg10 : memref<256x768xbf16, #tpu.memory_space<vmem>>) target_semaphore(%1 : memref<!tpu.dma_semaphore, #tpu.memory_space<semaphore_mem>>)
    %c1_i32 = arith.constant 1 : i32
    %2 = tpu.memref_slice %arg13[%c1_i32] : memref<3x!tpu.dma_semaphore, #tpu.memory_space<semaphore_mem>> -> memref<1x!tpu.dma_semaphore, #tpu.memory_space<semaphore_mem>>
    %3 = tpu.memref_squeeze %2 : memref<1x!tpu.dma_semaphore, #tpu.memory_space<semaphore_mem>> -> memref<!tpu.dma_semaphore, #tpu.memory_space<semaphore_mem>>
    tpu.enqueue_dma source(%arg6 : memref<256x768xbf16, #tpu.memory_space<any>>) target(%arg11 : memref<256x768xbf16, #tpu.memory_space<vmem>>) target_semaphore(%3 : memref<!tpu.dma_semaphore, #tpu.memory_space<semaphore_mem>>)
    %c2_i32 = arith.constant 2 : i32
    %4 = tpu.memref_slice %arg13[%c2_i32] : memref<3x!tpu.dma_semaphore, #tpu.memory_space<semaphore_mem>> -> memref<1x!tpu.dma_semaphore, #tpu.memory_space<semaphore_mem>>
    %5 = tpu.memref_squeeze %4 : memref<1x!tpu.dma_semaphore, #tpu.memory_space<semaphore_mem>> -> memref<!tpu.dma_semaphore, #tpu.memory_space<semaphore_mem>>
    tpu.enqueue_dma source(%arg7 : memref<256x128xbf16, #tpu.memory_space<any>>) target(%arg12 : memref<256x128xbf16, #tpu.memory_space<vmem>>) target_semaphore(%5 : memref<!tpu.dma_semaphore, #tpu.memory_space<semaphore_mem>>)
    %c0 = arith.constant 0 : index
    %c0_0 = arith.constant 0 : index
    %6 = vector.load %arg0[%c0, %c0_0] : memref<64x512xbf16, #tpu.memory_space<vmem>>, vector<64x512xbf16>
    %c0_1 = arith.constant 0 : index
    %c0_2 = arith.constant 0 : index
    %7 = vector.load %arg1[%c0_1, %c0_2] : memref<512x1536xbf16, #tpu.memory_space<vmem>>, vector<512x1536xbf16>
    %cst = arith.constant dense<0.000000e+00> : vector<64x1536xf32>
    %8 = tpu.matmul %6, %7, %cst {dimension_numbers = #tpu.dot_dimension_numbers<[1], [0], [0], [1], [0, 0, 1, 1], [], []>} : vector<64x512xbf16>, vector<512x1536xbf16>, vector<64x1536xf32> -> vector<64x1536xf32>
    %c0_3 = arith.constant 0 : index
    %c0_4 = arith.constant 0 : index
    %9 = vector.load %arg2[%c0_3, %c0_4] : memref<1x1536xf32, #tpu.memory_space<vmem>>, vector<1x1536xf32>
    %10 = vector.broadcast %9 : vector<1x1536xf32> to vector<64x1536xf32>
    %11 = arith.addf %8, %10 : vector<64x1536xf32>
    %12 = arith.truncf %11 : vector<64x1536xf32> to vector<64x1536xbf16>
    %c0_5 = arith.constant 0 : index
    %c0_6 = arith.constant 0 : index
    %13 = vector.load %arg9[%c0_5, %c0_6] : memref<64x1536xbf16, #tpu.memory_space<vmem>>, vector<64x1536xbf16>
    tpu.vector_store %arg9[%c0_5, %c0_6], %12 {strides = array<i32>} : memref<64x1536xbf16, #tpu.memory_space<vmem>>, vector<64x1536xbf16>,
    %c0_i32_7 = arith.constant 0 : i32
    %14 = tpu.memref_slice %arg13[%c0_i32_7] : memref<3x!tpu.dma_semaphore, #tpu.memory_space<semaphore_mem>> -> memref<1x!tpu.dma_semaphore, #tpu.memory_space<semaphore_mem>>
    %15 = tpu.memref_squeeze %14 : memref<1x!tpu.dma_semaphore, #tpu.memory_space<semaphore_mem>> -> memref<!tpu.dma_semaphore, #tpu.memory_space<semaphore_mem>>
    tpu.wait_dma2 semaphore(%15 : memref<!tpu.dma_semaphore, #tpu.memory_space<semaphore_mem>>) src(%arg5 : memref<256x768xbf16, #tpu.memory_space<any>>) dst(%arg10 : memref<256x768xbf16, #tpu.memory_space<vmem>>)
    %c1_i32_8 = arith.constant 1 : i32
    %16 = tpu.memref_slice %arg13[%c1_i32_8] : memref<3x!tpu.dma_semaphore, #tpu.memory_space<semaphore_mem>> -> memref<1x!tpu.dma_semaphore, #tpu.memory_space<semaphore_mem>>
    %17 = tpu.memref_squeeze %16 : memref<1x!tpu.dma_semaphore, #tpu.memory_space<semaphore_mem>> -> memref<!tpu.dma_semaphore, #tpu.memory_space<semaphore_mem>>
    tpu.wait_dma2 semaphore(%17 : memref<!tpu.dma_semaphore, #tpu.memory_space<semaphore_mem>>) src(%arg6 : memref<256x768xbf16, #tpu.memory_space<any>>) dst(%arg11 : memref<256x768xbf16, #tpu.memory_space<vmem>>)
    %c0_9 = arith.constant 0 : index
    %c0_10 = arith.constant 0 : index
    %18 = vector.load %arg10[%c0_9, %c0_10] : memref<256x768xbf16, #tpu.memory_space<vmem>>, vector<256x768xbf16>
    %c0_11 = arith.constant 0 : index
    %c0_12 = arith.constant 0 : index
    %19 = vector.load %arg11[%c0_11, %c0_12] : memref<256x768xbf16, #tpu.memory_space<vmem>>, vector<256x768xbf16>
    %c0_13 = arith.constant 0 : index
    %c0_14 = arith.constant 0 : index
    %20 = vector.load %arg3[%c0_13, %c0_14] : memref<1x512xf32, #tpu.memory_space<vmem>>, vector<1x256xf32>
    %21 = vector.shape_cast %20 : vector<1x256xf32> to vector<1x256xf32>
    %22 = vector.broadcast %21 : vector<1x256xf32> to vector<8x256xf32>
    %c0_15 = arith.constant 0 : index
    %c256 = arith.constant 256 : index
    %23 = vector.load %arg3[%c0_15, %c256] : memref<1x512xf32, #tpu.memory_space<vmem>>, vector<1x256xf32>
    %24 = vector.shape_cast %23 : vector<1x256xf32> to vector<1x256xf32>
    %25 = vector.broadcast %24 : vector<1x256xf32> to vector<8x256xf32>
    %cst_16 = arith.constant 0.000000e+00 : f32
    %26 = vector.broadcast %cst_16 : f32 to vector<8x256xf32>
    %cst_17 = arith.constant 0.000000e+00 : f32
    %27 = vector.broadcast %cst_17 : f32 to vector<8x256xf32>
    %c0_18 = arith.constant 0 : index
    %c0_19 = arith.constant 0 : index
    %28 = vector.load %arg9[%c0_18, %c0_19] : memref<64x1536xbf16, #tpu.memory_space<vmem>>, vector<8x768xbf16>
    %29 = arith.extf %28 : vector<8x768xbf16> to vector<8x768xf32>
    %c56 = arith.constant 56 : index
    %c768 = arith.constant 768 : index
    %30 = vector.load %arg9[%c56, %c768] : memref<64x1536xbf16, #tpu.memory_space<vmem>>, vector<8x768xbf16>
    %31 = arith.extf %30 : vector<8x768xbf16> to vector<8x768xf32>
    %32 = arith.truncf %26 : vector<8x256xf32> to vector<8x256xbf16>
    %cst_20 = arith.constant dense<0.000000e+00> : vector<8x768xf32>
    %33 = tpu.matmul %32, %18, %cst_20 {dimension_numbers = #tpu.dot_dimension_numbers<[1], [0], [0], [1], [0, 0, 1, 1], [], []>} : vector<8x256xbf16>, vector<256x768xbf16>, vector<8x768xf32> -> vector<8x768xf32>
    %34 = arith.truncf %27 : vector<8x256xf32> to vector<8x256xbf16>
    %cst_21 = arith.constant dense<0.000000e+00> : vector<8x768xf32>
    %35 = tpu.matmul %34, %19, %cst_21 {dimension_numbers = #tpu.dot_dimension_numbers<[1], [0], [0], [1], [0, 0, 1, 1], [], []>} : vector<8x256xbf16>, vector<256x768xbf16>, vector<8x768xf32> -> vector<8x768xf32>
    %36 = vector.extract_strided_slice %29 {offsets = [0, 0], sizes = [8, 256], strides = [1, 1]} : vector<8x768xf32> to vector<8x256xf32>
    %37 = vector.extract_strided_slice %33 {offsets = [0, 0], sizes = [8, 256], strides = [1, 1]} : vector<8x768xf32> to vector<8x256xf32>
    %38 = arith.addf %36, %37 : vector<8x256xf32>
    %39 = arith.negf %38 : vector<8x256xf32>
    %40 = math.exp %39 : vector<8x256xf32>
    %cst_22 = arith.constant 1.000000e+00 : f32
    %41 = vector.broadcast %cst_22 : f32 to vector<8x256xf32>
    %42 = arith.addf %41, %40 : vector<8x256xf32>
    %43 = arith.divf %41, %42 : vector<8x256xf32>
    %44 = vector.extract_strided_slice %29 {offsets = [0, 256], sizes = [8, 256], strides = [1, 1]} : vector<8x768xf32> to vector<8x256xf32>
    %45 = vector.extract_strided_slice %33 {offsets = [0, 256], sizes = [8, 256], strides = [1, 1]} : vector<8x768xf32> to vector<8x256xf32>
    %46 = arith.addf %44, %45 : vector<8x256xf32>
    %47 = arith.negf %46 : vector<8x256xf32>
    %48 = math.exp %47 : vector<8x256xf32>
    %cst_23 = arith.constant 1.000000e+00 : f32
    %49 = vector.broadcast %cst_23 : f32 to vector<8x256xf32>
    %50 = arith.addf %49, %48 : vector<8x256xf32>
    %51 = arith.divf %49, %50 : vector<8x256xf32>
    %52 = vector.extract_strided_slice %29 {offsets = [0, 512], sizes = [8, 256], strides = [1, 1]} : vector<8x768xf32> to vector<8x256xf32>
    %53 = vector.extract_strided_slice %33 {offsets = [0, 512], sizes = [8, 256], strides = [1, 1]} : vector<8x768xf32> to vector<8x256xf32>
    %54 = arith.addf %53, %22 : vector<8x256xf32>
    %55 = arith.mulf %43, %54 : vector<8x256xf32>
    %56 = arith.addf %52, %55 : vector<8x256xf32>
    %57 = math.tanh %56 : vector<8x256xf32>
    %58 = vector.extract_strided_slice %31 {offsets = [0, 0], sizes = [8, 256], strides = [1, 1]} : vector<8x768xf32> to vector<8x256xf32>
    %59 = vector.extract_strided_slice %35 {offsets = [0, 0], sizes = [8, 256], strides = [1, 1]} : vector<8x768xf32> to vector<8x256xf32>
    %60 = arith.addf %58, %59 : vector<8x256xf32>
    %61 = arith.negf %60 : vector<8x256xf32>
    %62 = math.exp %61 : vector<8x256xf32>
    %cst_24 = arith.constant 1.000000e+00 : f32
    %63 = vector.broadcast %cst_24 : f32 to vector<8x256xf32>
    %64 = arith.addf %63, %62 : vector<8x256xf32>
    %65 = arith.divf %63, %64 : vector<8x256xf32>
    %66 = vector.extract_strided_slice %31 {offsets = [0, 256], sizes = [8, 256], strides = [1, 1]} : vector<8x768xf32> to vector<8x256xf32>
    %67 = vector.extract_strided_slice %35 {offsets = [0, 256], sizes = [8, 256], strides = [1, 1]} : vector<8x768xf32> to vector<8x256xf32>
    %68 = arith.addf %66, %67 : vector<8x256xf32>
    %69 = arith.negf %68 : vector<8x256xf32>
    %70 = math.exp %69 : vector<8x256xf32>
    %cst_25 = arith.constant 1.000000e+00 : f32
    %71 = vector.broadcast %cst_25 : f32 to vector<8x256xf32>
    %72 = arith.addf %71, %70 : vector<8x256xf32>
    %73 = arith.divf %71, %72 : vector<8x256xf32>
    %74 = vector.extract_strided_slice %31 {offsets = [0, 512], sizes = [8, 256], strides = [1, 1]} : vector<8x768xf32> to vector<8x256xf32>
    %75 = vector.extract_strided_slice %35 {offsets = [0, 512], sizes = [8, 256], strides = [1, 1]} : vector<8x768xf32> to vector<8x256xf32>
    %76 = arith.addf %75, %25 : vector<8x256xf32>
    %77 = arith.mulf %65, %76 : vector<8x256xf32>
    %78 = arith.addf %74, %77 : vector<8x256xf32>
    %79 = math.tanh %78 : vector<8x256xf32>
    %cst_26 = arith.constant 1.000000e+00 : f32
    %80 = vector.broadcast %cst_26 : f32 to vector<8x256xf32>
    %81 = arith.subf %80, %51 : vector<8x256xf32>
    %82 = arith.mulf %81, %57 : vector<8x256xf32>
    %83 = arith.mulf %51, %26 : vector<8x256xf32>
    %84 = arith.addf %82, %83 : vector<8x256xf32>
    %cst_27 = arith.constant 1.000000e+00 : f32
    %85 = vector.broadcast %cst_27 : f32 to vector<8x256xf32>
    %86 = arith.subf %85, %73 : vector<8x256xf32>
    %87 = arith.mulf %86, %79 : vector<8x256xf32>
    %88 = arith.mulf %73, %27 : vector<8x256xf32>
    %89 = arith.addf %87, %88 : vector<8x256xf32>
    %c8 = arith.constant 8 : index
    %c0_28 = arith.constant 0 : index
    %90 = vector.load %arg9[%c8, %c0_28] : memref<64x1536xbf16, #tpu.memory_space<vmem>>, vector<8x768xbf16>
    %91 = arith.extf %90 : vector<8x768xbf16> to vector<8x768xf32>
    %c48 = arith.constant 48 : index
    %c768_29 = arith.constant 768 : index
    %92 = vector.load %arg9[%c48, %c768_29] : memref<64x1536xbf16, #tpu.memory_space<vmem>>, vector<8x768xbf16>
    %93 = arith.extf %92 : vector<8x768xbf16> to vector<8x768xf32>
    %94 = arith.truncf %84 : vector<8x256xf32> to vector<8x256xbf16>
    %cst_30 = arith.constant dense<0.000000e+00> : vector<8x768xf32>
    %95 = tpu.matmul %94, %18, %cst_30 {dimension_numbers = #tpu.dot_dimension_numbers<[1], [0], [0], [1], [0, 0, 1, 1], [], []>} : vector<8x256xbf16>, vector<256x768xbf16>, vector<8x768xf32> -> vector<8x768xf32>
    %96 = arith.truncf %89 : vector<8x256xf32> to vector<8x256xbf16>
    %cst_31 = arith.constant dense<0.000000e+00> : vector<8x768xf32>
    %97 = tpu.matmul %96, %19, %cst_31 {dimension_numbers = #tpu.dot_dimension_numbers<[1], [0], [0], [1], [0, 0, 1, 1], [], []>} : vector<8x256xbf16>, vector<256x768xbf16>, vector<8x768xf32> -> vector<8x768xf32>
    %98 = vector.extract_strided_slice %91 {offsets = [0, 0], sizes = [8, 256], strides = [1, 1]} : vector<8x768xf32> to vector<8x256xf32>
    %99 = vector.extract_strided_slice %95 {offsets = [0, 0], sizes = [8, 256], strides = [1, 1]} : vector<8x768xf32> to vector<8x256xf32>
    %100 = arith.addf %98, %99 : vector<8x256xf32>
    %101 = arith.negf %100 : vector<8x256xf32>
    %102 = math.exp %101 : vector<8x256xf32>
    %cst_32 = arith.constant 1.000000e+00 : f32
    %103 = vector.broadcast %cst_32 : f32 to vector<8x256xf32>
    %104 = arith.addf %103, %102 : vector<8x256xf32>
    %105 = arith.divf %103, %104 : vector<8x256xf32>
    %106 = vector.extract_strided_slice %91 {offsets = [0, 256], sizes = [8, 256], strides = [1, 1]} : vector<8x768xf32> to vector<8x256xf32>
    %107 = vector.extract_strided_slice %95 {offsets = [0, 256], sizes = [8, 256], strides = [1, 1]} : vector<8x768xf32> to vector<8x256xf32>
    %108 = arith.addf %106, %107 : vector<8x256xf32>
    %109 = arith.negf %108 : vector<8x256xf32>
    %110 = math.exp %109 : vector<8x256xf32>
    %cst_33 = arith.constant 1.000000e+00 : f32
    %111 = vector.broadcast %cst_33 : f32 to vector<8x256xf32>
    %112 = arith.addf %111, %110 : vector<8x256xf32>
    %113 = arith.divf %111, %112 : vector<8x256xf32>
    %114 = vector.extract_strided_slice %91 {offsets = [0, 512], sizes = [8, 256], strides = [1, 1]} : vector<8x768xf32> to vector<8x256xf32>
    %115 = vector.extract_strided_slice %95 {offsets = [0, 512], sizes = [8, 256], strides = [1, 1]} : vector<8x768xf32> to vector<8x256xf32>
    %116 = arith.addf %115, %22 : vector<8x256xf32>
    %117 = arith.mulf %105, %116 : vector<8x256xf32>
    %118 = arith.addf %114, %117 : vector<8x256xf32>
    %119 = math.tanh %118 : vector<8x256xf32>
    %120 = vector.extract_strided_slice %93 {offsets = [0, 0], sizes = [8, 256], strides = [1, 1]} : vector<8x768xf32> to vector<8x256xf32>
    %121 = vector.extract_strided_slice %97 {offsets = [0, 0], sizes = [8, 256], strides = [1, 1]} : vector<8x768xf32> to vector<8x256xf32>
    %122 = arith.addf %120, %121 : vector<8x256xf32>
    %123 = arith.negf %122 : vector<8x256xf32>
    %124 = math.exp %123 : vector<8x256xf32>
    %cst_34 = arith.constant 1.000000e+00 : f32
    %125 = vector.broadcast %cst_34 : f32 to vector<8x256xf32>
    %126 = arith.addf %125, %124 : vector<8x256xf32>
    %127 = arith.divf %125, %126 : vector<8x256xf32>
    %128 = vector.extract_strided_slice %93 {offsets = [0, 256], sizes = [8, 256], strides = [1, 1]} : vector<8x768xf32> to vector<8x256xf32>
    %129 = vector.extract_strided_slice %97 {offsets = [0, 256], sizes = [8, 256], strides = [1, 1]} : vector<8x768xf32> to vector<8x256xf32>
    %130 = arith.addf %128, %129 : vector<8x256xf32>
    %131 = arith.negf %130 : vector<8x256xf32>
    %132 = math.exp %131 : vector<8x256xf32>
    %cst_35 = arith.constant 1.000000e+00 : f32
    %133 = vector.broadcast %cst_35 : f32 to vector<8x256xf32>
    %134 = arith.addf %133, %132 : vector<8x256xf32>
    %135 = arith.divf %133, %134 : vector<8x256xf32>
    %136 = vector.extract_strided_slice %93 {offsets = [0, 512], sizes = [8, 256], strides = [1, 1]} : vector<8x768xf32> to vector<8x256xf32>
    %137 = vector.extract_strided_slice %97 {offsets = [0, 512], sizes = [8, 256], strides = [1, 1]} : vector<8x768xf32> to vector<8x256xf32>
    %138 = arith.addf %137, %25 : vector<8x256xf32>
    %139 = arith.mulf %127, %138 : vector<8x256xf32>
    %140 = arith.addf %136, %139 : vector<8x256xf32>
    %141 = math.tanh %140 : vector<8x256xf32>
    %cst_36 = arith.constant 1.000000e+00 : f32
    %142 = vector.broadcast %cst_36 : f32 to vector<8x256xf32>
    %143 = arith.subf %142, %113 : vector<8x256xf32>
    %144 = arith.mulf %143, %119 : vector<8x256xf32>
    %145 = arith.mulf %113, %84 : vector<8x256xf32>
    %146 = arith.addf %144, %145 : vector<8x256xf32>
    %cst_37 = arith.constant 1.000000e+00 : f32
    %147 = vector.broadcast %cst_37 : f32 to vector<8x256xf32>
    %148 = arith.subf %147, %135 : vector<8x256xf32>
    %149 = arith.mulf %148, %141 : vector<8x256xf32>
    %150 = arith.mulf %135, %89 : vector<8x256xf32>
    %151 = arith.addf %149, %150 : vector<8x256xf32>
    %c16 = arith.constant 16 : index
    %c0_38 = arith.constant 0 : index
    %152 = vector.load %arg9[%c16, %c0_38] : memref<64x1536xbf16, #tpu.memory_space<vmem>>, vector<8x768xbf16>
    %153 = arith.extf %152 : vector<8x768xbf16> to vector<8x768xf32>
    %c40 = arith.constant 40 : index
    %c768_39 = arith.constant 768 : index
    %154 = vector.load %arg9[%c40, %c768_39] : memref<64x1536xbf16, #tpu.memory_space<vmem>>, vector<8x768xbf16>
    %155 = arith.extf %154 : vector<8x768xbf16> to vector<8x768xf32>
    %156 = arith.truncf %146 : vector<8x256xf32> to vector<8x256xbf16>
    %cst_40 = arith.constant dense<0.000000e+00> : vector<8x768xf32>
    %157 = tpu.matmul %156, %18, %cst_40 {dimension_numbers = #tpu.dot_dimension_numbers<[1], [0], [0], [1], [0, 0, 1, 1], [], []>} : vector<8x256xbf16>, vector<256x768xbf16>, vector<8x768xf32> -> vector<8x768xf32>
    %158 = arith.truncf %151 : vector<8x256xf32> to vector<8x256xbf16>
    %cst_41 = arith.constant dense<0.000000e+00> : vector<8x768xf32>
    %159 = tpu.matmul %158, %19, %cst_41 {dimension_numbers = #tpu.dot_dimension_numbers<[1], [0], [0], [1], [0, 0, 1, 1], [], []>} : vector<8x256xbf16>, vector<256x768xbf16>, vector<8x768xf32> -> vector<8x768xf32>
    %160 = vector.extract_strided_slice %153 {offsets = [0, 0], sizes = [8, 256], strides = [1, 1]} : vector<8x768xf32> to vector<8x256xf32>
    %161 = vector.extract_strided_slice %157 {offsets = [0, 0], sizes = [8, 256], strides = [1, 1]} : vector<8x768xf32> to vector<8x256xf32>
    %162 = arith.addf %160, %161 : vector<8x256xf32>
    %163 = arith.negf %162 : vector<8x256xf32>
    %164 = math.exp %163 : vector<8x256xf32>
    %cst_42 = arith.constant 1.000000e+00 : f32
    %165 = vector.broadcast %cst_42 : f32 to vector<8x256xf32>
    %166 = arith.addf %165, %164 : vector<8x256xf32>
    %167 = arith.divf %165, %166 : vector<8x256xf32>
    %168 = vector.extract_strided_slice %153 {offsets = [0, 256], sizes = [8, 256], strides = [1, 1]} : vector<8x768xf32> to vector<8x256xf32>
    %169 = vector.extract_strided_slice %157 {offsets = [0, 256], sizes = [8, 256], strides = [1, 1]} : vector<8x768xf32> to vector<8x256xf32>
    %170 = arith.addf %168, %169 : vector<8x256xf32>
    %171 = arith.negf %170 : vector<8x256xf32>
    %172 = math.exp %171 : vector<8x256xf32>
    %cst_43 = arith.constant 1.000000e+00 : f32
    %173 = vector.broadcast %cst_43 : f32 to vector<8x256xf32>
    %174 = arith.addf %173, %172 : vector<8x256xf32>
    %175 = arith.divf %173, %174 : vector<8x256xf32>
    %176 = vector.extract_strided_slice %153 {offsets = [0, 512], sizes = [8, 256], strides = [1, 1]} : vector<8x768xf32> to vector<8x256xf32>
    %177 = vector.extract_strided_slice %157 {offsets = [0, 512], sizes = [8, 256], strides = [1, 1]} : vector<8x768xf32> to vector<8x256xf32>
    %178 = arith.addf %177, %22 : vector<8x256xf32>
    %179 = arith.mulf %167, %178 : vector<8x256xf32>
    %180 = arith.addf %176, %179 : vector<8x256xf32>
    %181 = math.tanh %180 : vector<8x256xf32>
    %182 = vector.extract_strided_slice %155 {offsets = [0, 0], sizes = [8, 256], strides = [1, 1]} : vector<8x768xf32> to vector<8x256xf32>
    %183 = vector.extract_strided_slice %159 {offsets = [0, 0], sizes = [8, 256], strides = [1, 1]} : vector<8x768xf32> to vector<8x256xf32>
    %184 = arith.addf %182, %183 : vector<8x256xf32>
    %185 = arith.negf %184 : vector<8x256xf32>
    %186 = math.exp %185 : vector<8x256xf32>
    %cst_44 = arith.constant 1.000000e+00 : f32
    %187 = vector.broadcast %cst_44 : f32 to vector<8x256xf32>
    %188 = arith.addf %187, %186 : vector<8x256xf32>
    %189 = arith.divf %187, %188 : vector<8x256xf32>
    %190 = vector.extract_strided_slice %155 {offsets = [0, 256], sizes = [8, 256], strides = [1, 1]} : vector<8x768xf32> to vector<8x256xf32>
    %191 = vector.extract_strided_slice %159 {offsets = [0, 256], sizes = [8, 256], strides = [1, 1]} : vector<8x768xf32> to vector<8x256xf32>
    %192 = arith.addf %190, %191 : vector<8x256xf32>
    %193 = arith.negf %192 : vector<8x256xf32>
    %194 = math.exp %193 : vector<8x256xf32>
    %cst_45 = arith.constant 1.000000e+00 : f32
    %195 = vector.broadcast %cst_45 : f32 to vector<8x256xf32>
    %196 = arith.addf %195, %194 : vector<8x256xf32>
    %197 = arith.divf %195, %196 : vector<8x256xf32>
    %198 = vector.extract_strided_slice %155 {offsets = [0, 512], sizes = [8, 256], strides = [1, 1]} : vector<8x768xf32> to vector<8x256xf32>
    %199 = vector.extract_strided_slice %159 {offsets = [0, 512], sizes = [8, 256], strides = [1, 1]} : vector<8x768xf32> to vector<8x256xf32>
    %200 = arith.addf %199, %25 : vector<8x256xf32>
    %201 = arith.mulf %189, %200 : vector<8x256xf32>
    %202 = arith.addf %198, %201 : vector<8x256xf32>
    %203 = math.tanh %202 : vector<8x256xf32>
    %cst_46 = arith.constant 1.000000e+00 : f32
    %204 = vector.broadcast %cst_46 : f32 to vector<8x256xf32>
    %205 = arith.subf %204, %175 : vector<8x256xf32>
    %206 = arith.mulf %205, %181 : vector<8x256xf32>
    %207 = arith.mulf %175, %146 : vector<8x256xf32>
    %208 = arith.addf %206, %207 : vector<8x256xf32>
    %cst_47 = arith.constant 1.000000e+00 : f32
    %209 = vector.broadcast %cst_47 : f32 to vector<8x256xf32>
    %210 = arith.subf %209, %197 : vector<8x256xf32>
    %211 = arith.mulf %210, %203 : vector<8x256xf32>
    %212 = arith.mulf %197, %151 : vector<8x256xf32>
    %213 = arith.addf %211, %212 : vector<8x256xf32>
    %c24 = arith.constant 24 : index
    %c0_48 = arith.constant 0 : index
    %214 = vector.load %arg9[%c24, %c0_48] : memref<64x1536xbf16, #tpu.memory_space<vmem>>, vector<8x768xbf16>
    %215 = arith.extf %214 : vector<8x768xbf16> to vector<8x768xf32>
    %c32 = arith.constant 32 : index
    %c768_49 = arith.constant 768 : index
    %216 = vector.load %arg9[%c32, %c768_49] : memref<64x1536xbf16, #tpu.memory_space<vmem>>, vector<8x768xbf16>
    %217 = arith.extf %216 : vector<8x768xbf16> to vector<8x768xf32>
    %218 = arith.truncf %208 : vector<8x256xf32> to vector<8x256xbf16>
    %cst_50 = arith.constant dense<0.000000e+00> : vector<8x768xf32>
    %219 = tpu.matmul %218, %18, %cst_50 {dimension_numbers = #tpu.dot_dimension_numbers<[1], [0], [0], [1], [0, 0, 1, 1], [], []>} : vector<8x256xbf16>, vector<256x768xbf16>, vector<8x768xf32> -> vector<8x768xf32>
    %220 = arith.truncf %213 : vector<8x256xf32> to vector<8x256xbf16>
    %cst_51 = arith.constant dense<0.000000e+00> : vector<8x768xf32>
    %221 = tpu.matmul %220, %19, %cst_51 {dimension_numbers = #tpu.dot_dimension_numbers<[1], [0], [0], [1], [0, 0, 1, 1], [], []>} : vector<8x256xbf16>, vector<256x768xbf16>, vector<8x768xf32> -> vector<8x768xf32>
    %222 = vector.extract_strided_slice %215 {offsets = [0, 0], sizes = [8, 256], strides = [1, 1]} : vector<8x768xf32> to vector<8x256xf32>
    %223 = vector.extract_strided_slice %219 {offsets = [0, 0], sizes = [8, 256], strides = [1, 1]} : vector<8x768xf32> to vector<8x256xf32>
    %224 = arith.addf %222, %223 : vector<8x256xf32>
    %225 = arith.negf %224 : vector<8x256xf32>
    %226 = math.exp %225 : vector<8x256xf32>
    %cst_52 = arith.constant 1.000000e+00 : f32
    %227 = vector.broadcast %cst_52 : f32 to vector<8x256xf32>
    %228 = arith.addf %227, %226 : vector<8x256xf32>
    %229 = arith.divf %227, %228 : vector<8x256xf32>
    %230 = vector.extract_strided_slice %215 {offsets = [0, 256], sizes = [8, 256], strides = [1, 1]} : vector<8x768xf32> to vector<8x256xf32>
    %231 = vector.extract_strided_slice %219 {offsets = [0, 256], sizes = [8, 256], strides = [1, 1]} : vector<8x768xf32> to vector<8x256xf32>
    %232 = arith.addf %230, %231 : vector<8x256xf32>
    %233 = arith.negf %232 : vector<8x256xf32>
    %234 = math.exp %233 : vector<8x256xf32>
    %cst_53 = arith.constant 1.000000e+00 : f32
    %235 = vector.broadcast %cst_53 : f32 to vector<8x256xf32>
    %236 = arith.addf %235, %234 : vector<8x256xf32>
    %237 = arith.divf %235, %236 : vector<8x256xf32>
    %238 = vector.extract_strided_slice %215 {offsets = [0, 512], sizes = [8, 256], strides = [1, 1]} : vector<8x768xf32> to vector<8x256xf32>
    %239 = vector.extract_strided_slice %219 {offsets = [0, 512], sizes = [8, 256], strides = [1, 1]} : vector<8x768xf32> to vector<8x256xf32>
    %240 = arith.addf %239, %22 : vector<8x256xf32>
    %241 = arith.mulf %229, %240 : vector<8x256xf32>
    %242 = arith.addf %238, %241 : vector<8x256xf32>
    %243 = math.tanh %242 : vector<8x256xf32>
    %244 = vector.extract_strided_slice %217 {offsets = [0, 0], sizes = [8, 256], strides = [1, 1]} : vector<8x768xf32> to vector<8x256xf32>
    %245 = vector.extract_strided_slice %221 {offsets = [0, 0], sizes = [8, 256], strides = [1, 1]} : vector<8x768xf32> to vector<8x256xf32>
    %246 = arith.addf %244, %245 : vector<8x256xf32>
    %247 = arith.negf %246 : vector<8x256xf32>
    %248 = math.exp %247 : vector<8x256xf32>
    %cst_54 = arith.constant 1.000000e+00 : f32
    %249 = vector.broadcast %cst_54 : f32 to vector<8x256xf32>
    %250 = arith.addf %249, %248 : vector<8x256xf32>
    %251 = arith.divf %249, %250 : vector<8x256xf32>
    %252 = vector.extract_strided_slice %217 {offsets = [0, 256], sizes = [8, 256], strides = [1, 1]} : vector<8x768xf32> to vector<8x256xf32>
    %253 = vector.extract_strided_slice %221 {offsets = [0, 256], sizes = [8, 256], strides = [1, 1]} : vector<8x768xf32> to vector<8x256xf32>
    %254 = arith.addf %252, %253 : vector<8x256xf32>
    %255 = arith.negf %254 : vector<8x256xf32>
    %256 = math.exp %255 : vector<8x256xf32>
    %cst_55 = arith.constant 1.000000e+00 : f32
    %257 = vector.broadcast %cst_55 : f32 to vector<8x256xf32>
    %258 = arith.addf %257, %256 : vector<8x256xf32>
    %259 = arith.divf %257, %258 : vector<8x256xf32>
    %260 = vector.extract_strided_slice %217 {offsets = [0, 512], sizes = [8, 256], strides = [1, 1]} : vector<8x768xf32> to vector<8x256xf32>
    %261 = vector.extract_strided_slice %221 {offsets = [0, 512], sizes = [8, 256], strides = [1, 1]} : vector<8x768xf32> to vector<8x256xf32>
    %262 = arith.addf %261, %25 : vector<8x256xf32>
    %263 = arith.mulf %251, %262 : vector<8x256xf32>
    %264 = arith.addf %260, %263 : vector<8x256xf32>
    %265 = math.tanh %264 : vector<8x256xf32>
    %cst_56 = arith.constant 1.000000e+00 : f32
    %266 = vector.broadcast %cst_56 : f32 to vector<8x256xf32>
    %267 = arith.subf %266, %237 : vector<8x256xf32>
    %268 = arith.mulf %267, %243 : vector<8x256xf32>
    %269 = arith.mulf %237, %208 : vector<8x256xf32>
    %270 = arith.addf %268, %269 : vector<8x256xf32>
    %cst_57 = arith.constant 1.000000e+00 : f32
    %271 = vector.broadcast %cst_57 : f32 to vector<8x256xf32>
    %272 = arith.subf %271, %259 : vector<8x256xf32>
    %273 = arith.mulf %272, %265 : vector<8x256xf32>
    %274 = arith.mulf %259, %213 : vector<8x256xf32>
    %275 = arith.addf %273, %274 : vector<8x256xf32>
    %c32_58 = arith.constant 32 : index
    %c0_59 = arith.constant 0 : index
    %276 = vector.load %arg9[%c32_58, %c0_59] : memref<64x1536xbf16, #tpu.memory_space<vmem>>, vector<8x768xbf16>
    %277 = arith.extf %276 : vector<8x768xbf16> to vector<8x768xf32>
    %c24_60 = arith.constant 24 : index
    %c768_61 = arith.constant 768 : index
    %278 = vector.load %arg9[%c24_60, %c768_61] : memref<64x1536xbf16, #tpu.memory_space<vmem>>, vector<8x768xbf16>
    %279 = arith.extf %278 : vector<8x768xbf16> to vector<8x768xf32>
    %280 = arith.truncf %270 : vector<8x256xf32> to vector<8x256xbf16>
    %cst_62 = arith.constant dense<0.000000e+00> : vector<8x768xf32>
    %281 = tpu.matmul %280, %18, %cst_62 {dimension_numbers = #tpu.dot_dimension_numbers<[1], [0], [0], [1], [0, 0, 1, 1], [], []>} : vector<8x256xbf16>, vector<256x768xbf16>, vector<8x768xf32> -> vector<8x768xf32>
    %282 = arith.truncf %275 : vector<8x256xf32> to vector<8x256xbf16>
    %cst_63 = arith.constant dense<0.000000e+00> : vector<8x768xf32>
    %283 = tpu.matmul %282, %19, %cst_63 {dimension_numbers = #tpu.dot_dimension_numbers<[1], [0], [0], [1], [0, 0, 1, 1], [], []>} : vector<8x256xbf16>, vector<256x768xbf16>, vector<8x768xf32> -> vector<8x768xf32>
    %284 = vector.extract_strided_slice %277 {offsets = [0, 0], sizes = [8, 256], strides = [1, 1]} : vector<8x768xf32> to vector<8x256xf32>
    %285 = vector.extract_strided_slice %281 {offsets = [0, 0], sizes = [8, 256], strides = [1, 1]} : vector<8x768xf32> to vector<8x256xf32>
    %286 = arith.addf %284, %285 : vector<8x256xf32>
    %287 = arith.negf %286 : vector<8x256xf32>
    %288 = math.exp %287 : vector<8x256xf32>
    %cst_64 = arith.constant 1.000000e+00 : f32
    %289 = vector.broadcast %cst_64 : f32 to vector<8x256xf32>
    %290 = arith.addf %289, %288 : vector<8x256xf32>
    %291 = arith.divf %289, %290 : vector<8x256xf32>
    %292 = vector.extract_strided_slice %277 {offsets = [0, 256], sizes = [8, 256], strides = [1, 1]} : vector<8x768xf32> to vector<8x256xf32>
    %293 = vector.extract_strided_slice %281 {offsets = [0, 256], sizes = [8, 256], strides = [1, 1]} : vector<8x768xf32> to vector<8x256xf32>
    %294 = arith.addf %292, %293 : vector<8x256xf32>
    %295 = arith.negf %294 : vector<8x256xf32>
    %296 = math.exp %295 : vector<8x256xf32>
    %cst_65 = arith.constant 1.000000e+00 : f32
    %297 = vector.broadcast %cst_65 : f32 to vector<8x256xf32>
    %298 = arith.addf %297, %296 : vector<8x256xf32>
    %299 = arith.divf %297, %298 : vector<8x256xf32>
    %300 = vector.extract_strided_slice %277 {offsets = [0, 512], sizes = [8, 256], strides = [1, 1]} : vector<8x768xf32> to vector<8x256xf32>
    %301 = vector.extract_strided_slice %281 {offsets = [0, 512], sizes = [8, 256], strides = [1, 1]} : vector<8x768xf32> to vector<8x256xf32>
    %302 = arith.addf %301, %22 : vector<8x256xf32>
    %303 = arith.mulf %291, %302 : vector<8x256xf32>
    %304 = arith.addf %300, %303 : vector<8x256xf32>
    %305 = math.tanh %304 : vector<8x256xf32>
    %306 = vector.extract_strided_slice %279 {offsets = [0, 0], sizes = [8, 256], strides = [1, 1]} : vector<8x768xf32> to vector<8x256xf32>
    %307 = vector.extract_strided_slice %283 {offsets = [0, 0], sizes = [8, 256], strides = [1, 1]} : vector<8x768xf32> to vector<8x256xf32>
    %308 = arith.addf %306, %307 : vector<8x256xf32>
    %309 = arith.negf %308 : vector<8x256xf32>
    %310 = math.exp %309 : vector<8x256xf32>
    %cst_66 = arith.constant 1.000000e+00 : f32
    %311 = vector.broadcast %cst_66 : f32 to vector<8x256xf32>
    %312 = arith.addf %311, %310 : vector<8x256xf32>
    %313 = arith.divf %311, %312 : vector<8x256xf32>
    %314 = vector.extract_strided_slice %279 {offsets = [0, 256], sizes = [8, 256], strides = [1, 1]} : vector<8x768xf32> to vector<8x256xf32>
    %315 = vector.extract_strided_slice %283 {offsets = [0, 256], sizes = [8, 256], strides = [1, 1]} : vector<8x768xf32> to vector<8x256xf32>
    %316 = arith.addf %314, %315 : vector<8x256xf32>
    %317 = arith.negf %316 : vector<8x256xf32>
    %318 = math.exp %317 : vector<8x256xf32>
    %cst_67 = arith.constant 1.000000e+00 : f32
    %319 = vector.broadcast %cst_67 : f32 to vector<8x256xf32>
    %320 = arith.addf %319, %318 : vector<8x256xf32>
    %321 = arith.divf %319, %320 : vector<8x256xf32>
    %322 = vector.extract_strided_slice %279 {offsets = [0, 512], sizes = [8, 256], strides = [1, 1]} : vector<8x768xf32> to vector<8x256xf32>
    %323 = vector.extract_strided_slice %283 {offsets = [0, 512], sizes = [8, 256], strides = [1, 1]} : vector<8x768xf32> to vector<8x256xf32>
    %324 = arith.addf %323, %25 : vector<8x256xf32>
    %325 = arith.mulf %313, %324 : vector<8x256xf32>
    %326 = arith.addf %322, %325 : vector<8x256xf32>
    %327 = math.tanh %326 : vector<8x256xf32>
    %cst_68 = arith.constant 1.000000e+00 : f32
    %328 = vector.broadcast %cst_68 : f32 to vector<8x256xf32>
    %329 = arith.subf %328, %299 : vector<8x256xf32>
    %330 = arith.mulf %329, %305 : vector<8x256xf32>
    %331 = arith.mulf %299, %270 : vector<8x256xf32>
    %332 = arith.addf %330, %331 : vector<8x256xf32>
    %cst_69 = arith.constant 1.000000e+00 : f32
    %333 = vector.broadcast %cst_69 : f32 to vector<8x256xf32>
    %334 = arith.subf %333, %321 : vector<8x256xf32>
    %335 = arith.mulf %334, %327 : vector<8x256xf32>
    %336 = arith.mulf %321, %275 : vector<8x256xf32>
    %337 = arith.addf %335, %336 : vector<8x256xf32>
    %c40_70 = arith.constant 40 : index
    %c0_71 = arith.constant 0 : index
    %338 = vector.load %arg9[%c40_70, %c0_71] : memref<64x1536xbf16, #tpu.memory_space<vmem>>, vector<8x768xbf16>
    %339 = arith.extf %338 : vector<8x768xbf16> to vector<8x768xf32>
    %c16_72 = arith.constant 16 : index
    %c768_73 = arith.constant 768 : index
    %340 = vector.load %arg9[%c16_72, %c768_73] : memref<64x1536xbf16, #tpu.memory_space<vmem>>, vector<8x768xbf16>
    %341 = arith.extf %340 : vector<8x768xbf16> to vector<8x768xf32>
    %342 = arith.truncf %332 : vector<8x256xf32> to vector<8x256xbf16>
    %cst_74 = arith.constant dense<0.000000e+00> : vector<8x768xf32>
    %343 = tpu.matmul %342, %18, %cst_74 {dimension_numbers = #tpu.dot_dimension_numbers<[1], [0], [0], [1], [0, 0, 1, 1], [], []>} : vector<8x256xbf16>, vector<256x768xbf16>, vector<8x768xf32> -> vector<8x768xf32>
    %344 = arith.truncf %337 : vector<8x256xf32> to vector<8x256xbf16>
    %cst_75 = arith.constant dense<0.000000e+00> : vector<8x768xf32>
    %345 = tpu.matmul %344, %19, %cst_75 {dimension_numbers = #tpu.dot_dimension_numbers<[1], [0], [0], [1], [0, 0, 1, 1], [], []>} : vector<8x256xbf16>, vector<256x768xbf16>, vector<8x768xf32> -> vector<8x768xf32>
    %346 = vector.extract_strided_slice %339 {offsets = [0, 0], sizes = [8, 256], strides = [1, 1]} : vector<8x768xf32> to vector<8x256xf32>
    %347 = vector.extract_strided_slice %343 {offsets = [0, 0], sizes = [8, 256], strides = [1, 1]} : vector<8x768xf32> to vector<8x256xf32>
    %348 = arith.addf %346, %347 : vector<8x256xf32>
    %349 = arith.negf %348 : vector<8x256xf32>
    %350 = math.exp %349 : vector<8x256xf32>
    %cst_76 = arith.constant 1.000000e+00 : f32
    %351 = vector.broadcast %cst_76 : f32 to vector<8x256xf32>
    %352 = arith.addf %351, %350 : vector<8x256xf32>
    %353 = arith.divf %351, %352 : vector<8x256xf32>
    %354 = vector.extract_strided_slice %339 {offsets = [0, 256], sizes = [8, 256], strides = [1, 1]} : vector<8x768xf32> to vector<8x256xf32>
    %355 = vector.extract_strided_slice %343 {offsets = [0, 256], sizes = [8, 256], strides = [1, 1]} : vector<8x768xf32> to vector<8x256xf32>
    %356 = arith.addf %354, %355 : vector<8x256xf32>
    %357 = arith.negf %356 : vector<8x256xf32>
    %358 = math.exp %357 : vector<8x256xf32>
    %cst_77 = arith.constant 1.000000e+00 : f32
    %359 = vector.broadcast %cst_77 : f32 to vector<8x256xf32>
    %360 = arith.addf %359, %358 : vector<8x256xf32>
    %361 = arith.divf %359, %360 : vector<8x256xf32>
    %362 = vector.extract_strided_slice %339 {offsets = [0, 512], sizes = [8, 256], strides = [1, 1]} : vector<8x768xf32> to vector<8x256xf32>
    %363 = vector.extract_strided_slice %343 {offsets = [0, 512], sizes = [8, 256], strides = [1, 1]} : vector<8x768xf32> to vector<8x256xf32>
    %364 = arith.addf %363, %22 : vector<8x256xf32>
    %365 = arith.mulf %353, %364 : vector<8x256xf32>
    %366 = arith.addf %362, %365 : vector<8x256xf32>
    %367 = math.tanh %366 : vector<8x256xf32>
    %368 = vector.extract_strided_slice %341 {offsets = [0, 0], sizes = [8, 256], strides = [1, 1]} : vector<8x768xf32> to vector<8x256xf32>
    %369 = vector.extract_strided_slice %345 {offsets = [0, 0], sizes = [8, 256], strides = [1, 1]} : vector<8x768xf32> to vector<8x256xf32>
    %370 = arith.addf %368, %369 : vector<8x256xf32>
    %371 = arith.negf %370 : vector<8x256xf32>
    %372 = math.exp %371 : vector<8x256xf32>
    %cst_78 = arith.constant 1.000000e+00 : f32
    %373 = vector.broadcast %cst_78 : f32 to vector<8x256xf32>
    %374 = arith.addf %373, %372 : vector<8x256xf32>
    %375 = arith.divf %373, %374 : vector<8x256xf32>
    %376 = vector.extract_strided_slice %341 {offsets = [0, 256], sizes = [8, 256], strides = [1, 1]} : vector<8x768xf32> to vector<8x256xf32>
    %377 = vector.extract_strided_slice %345 {offsets = [0, 256], sizes = [8, 256], strides = [1, 1]} : vector<8x768xf32> to vector<8x256xf32>
    %378 = arith.addf %376, %377 : vector<8x256xf32>
    %379 = arith.negf %378 : vector<8x256xf32>
    %380 = math.exp %379 : vector<8x256xf32>
    %cst_79 = arith.constant 1.000000e+00 : f32
    %381 = vector.broadcast %cst_79 : f32 to vector<8x256xf32>
    %382 = arith.addf %381, %380 : vector<8x256xf32>
    %383 = arith.divf %381, %382 : vector<8x256xf32>
    %384 = vector.extract_strided_slice %341 {offsets = [0, 512], sizes = [8, 256], strides = [1, 1]} : vector<8x768xf32> to vector<8x256xf32>
    %385 = vector.extract_strided_slice %345 {offsets = [0, 512], sizes = [8, 256], strides = [1, 1]} : vector<8x768xf32> to vector<8x256xf32>
    %386 = arith.addf %385, %25 : vector<8x256xf32>
    %387 = arith.mulf %375, %386 : vector<8x256xf32>
    %388 = arith.addf %384, %387 : vector<8x256xf32>
    %389 = math.tanh %388 : vector<8x256xf32>
    %cst_80 = arith.constant 1.000000e+00 : f32
    %390 = vector.broadcast %cst_80 : f32 to vector<8x256xf32>
    %391 = arith.subf %390, %361 : vector<8x256xf32>
    %392 = arith.mulf %391, %367 : vector<8x256xf32>
    %393 = arith.mulf %361, %332 : vector<8x256xf32>
    %394 = arith.addf %392, %393 : vector<8x256xf32>
    %cst_81 = arith.constant 1.000000e+00 : f32
    %395 = vector.broadcast %cst_81 : f32 to vector<8x256xf32>
    %396 = arith.subf %395, %383 : vector<8x256xf32>
    %397 = arith.mulf %396, %389 : vector<8x256xf32>
    %398 = arith.mulf %383, %337 : vector<8x256xf32>
    %399 = arith.addf %397, %398 : vector<8x256xf32>
    %c48_82 = arith.constant 48 : index
    %c0_83 = arith.constant 0 : index
    %400 = vector.load %arg9[%c48_82, %c0_83] : memref<64x1536xbf16, #tpu.memory_space<vmem>>, vector<8x768xbf16>
    %401 = arith.extf %400 : vector<8x768xbf16> to vector<8x768xf32>
    %c8_84 = arith.constant 8 : index
    %c768_85 = arith.constant 768 : index
    %402 = vector.load %arg9[%c8_84, %c768_85] : memref<64x1536xbf16, #tpu.memory_space<vmem>>, vector<8x768xbf16>
    %403 = arith.extf %402 : vector<8x768xbf16> to vector<8x768xf32>
    %404 = arith.truncf %394 : vector<8x256xf32> to vector<8x256xbf16>
    %cst_86 = arith.constant dense<0.000000e+00> : vector<8x768xf32>
    %405 = tpu.matmul %404, %18, %cst_86 {dimension_numbers = #tpu.dot_dimension_numbers<[1], [0], [0], [1], [0, 0, 1, 1], [], []>} : vector<8x256xbf16>, vector<256x768xbf16>, vector<8x768xf32> -> vector<8x768xf32>
    %406 = arith.truncf %399 : vector<8x256xf32> to vector<8x256xbf16>
    %cst_87 = arith.constant dense<0.000000e+00> : vector<8x768xf32>
    %407 = tpu.matmul %406, %19, %cst_87 {dimension_numbers = #tpu.dot_dimension_numbers<[1], [0], [0], [1], [0, 0, 1, 1], [], []>} : vector<8x256xbf16>, vector<256x768xbf16>, vector<8x768xf32> -> vector<8x768xf32>
    %408 = vector.extract_strided_slice %401 {offsets = [0, 0], sizes = [8, 256], strides = [1, 1]} : vector<8x768xf32> to vector<8x256xf32>
    %409 = vector.extract_strided_slice %405 {offsets = [0, 0], sizes = [8, 256], strides = [1, 1]} : vector<8x768xf32> to vector<8x256xf32>
    %410 = arith.addf %408, %409 : vector<8x256xf32>
    %411 = arith.negf %410 : vector<8x256xf32>
    %412 = math.exp %411 : vector<8x256xf32>
    %cst_88 = arith.constant 1.000000e+00 : f32
    %413 = vector.broadcast %cst_88 : f32 to vector<8x256xf32>
    %414 = arith.addf %413, %412 : vector<8x256xf32>
    %415 = arith.divf %413, %414 : vector<8x256xf32>
    %416 = vector.extract_strided_slice %401 {offsets = [0, 256], sizes = [8, 256], strides = [1, 1]} : vector<8x768xf32> to vector<8x256xf32>
    %417 = vector.extract_strided_slice %405 {offsets = [0, 256], sizes = [8, 256], strides = [1, 1]} : vector<8x768xf32> to vector<8x256xf32>
    %418 = arith.addf %416, %417 : vector<8x256xf32>
    %419 = arith.negf %418 : vector<8x256xf32>
    %420 = math.exp %419 : vector<8x256xf32>
    %cst_89 = arith.constant 1.000000e+00 : f32
    %421 = vector.broadcast %cst_89 : f32 to vector<8x256xf32>
    %422 = arith.addf %421, %420 : vector<8x256xf32>
    %423 = arith.divf %421, %422 : vector<8x256xf32>
    %424 = vector.extract_strided_slice %401 {offsets = [0, 512], sizes = [8, 256], strides = [1, 1]} : vector<8x768xf32> to vector<8x256xf32>
    %425 = vector.extract_strided_slice %405 {offsets = [0, 512], sizes = [8, 256], strides = [1, 1]} : vector<8x768xf32> to vector<8x256xf32>
    %426 = arith.addf %425, %22 : vector<8x256xf32>
    %427 = arith.mulf %415, %426 : vector<8x256xf32>
    %428 = arith.addf %424, %427 : vector<8x256xf32>
    %429 = math.tanh %428 : vector<8x256xf32>
    %430 = vector.extract_strided_slice %403 {offsets = [0, 0], sizes = [8, 256], strides = [1, 1]} : vector<8x768xf32> to vector<8x256xf32>
    %431 = vector.extract_strided_slice %407 {offsets = [0, 0], sizes = [8, 256], strides = [1, 1]} : vector<8x768xf32> to vector<8x256xf32>
    %432 = arith.addf %430, %431 : vector<8x256xf32>
    %433 = arith.negf %432 : vector<8x256xf32>
    %434 = math.exp %433 : vector<8x256xf32>
    %cst_90 = arith.constant 1.000000e+00 : f32
    %435 = vector.broadcast %cst_90 : f32 to vector<8x256xf32>
    %436 = arith.addf %435, %434 : vector<8x256xf32>
    %437 = arith.divf %435, %436 : vector<8x256xf32>
    %438 = vector.extract_strided_slice %403 {offsets = [0, 256], sizes = [8, 256], strides = [1, 1]} : vector<8x768xf32> to vector<8x256xf32>
    %439 = vector.extract_strided_slice %407 {offsets = [0, 256], sizes = [8, 256], strides = [1, 1]} : vector<8x768xf32> to vector<8x256xf32>
    %440 = arith.addf %438, %439 : vector<8x256xf32>
    %441 = arith.negf %440 : vector<8x256xf32>
    %442 = math.exp %441 : vector<8x256xf32>
    %cst_91 = arith.constant 1.000000e+00 : f32
    %443 = vector.broadcast %cst_91 : f32 to vector<8x256xf32>
    %444 = arith.addf %443, %442 : vector<8x256xf32>
    %445 = arith.divf %443, %444 : vector<8x256xf32>
    %446 = vector.extract_strided_slice %403 {offsets = [0, 512], sizes = [8, 256], strides = [1, 1]} : vector<8x768xf32> to vector<8x256xf32>
    %447 = vector.extract_strided_slice %407 {offsets = [0, 512], sizes = [8, 256], strides = [1, 1]} : vector<8x768xf32> to vector<8x256xf32>
    %448 = arith.addf %447, %25 : vector<8x256xf32>
    %449 = arith.mulf %437, %448 : vector<8x256xf32>
    %450 = arith.addf %446, %449 : vector<8x256xf32>
    %451 = math.tanh %450 : vector<8x256xf32>
    %cst_92 = arith.constant 1.000000e+00 : f32
    %452 = vector.broadcast %cst_92 : f32 to vector<8x256xf32>
    %453 = arith.subf %452, %423 : vector<8x256xf32>
    %454 = arith.mulf %453, %429 : vector<8x256xf32>
    %455 = arith.mulf %423, %394 : vector<8x256xf32>
    %456 = arith.addf %454, %455 : vector<8x256xf32>
    %cst_93 = arith.constant 1.000000e+00 : f32
    %457 = vector.broadcast %cst_93 : f32 to vector<8x256xf32>
    %458 = arith.subf %457, %445 : vector<8x256xf32>
    %459 = arith.mulf %458, %451 : vector<8x256xf32>
    %460 = arith.mulf %445, %399 : vector<8x256xf32>
    %461 = arith.addf %459, %460 : vector<8x256xf32>
    %c56_94 = arith.constant 56 : index
    %c0_95 = arith.constant 0 : index
    %462 = vector.load %arg9[%c56_94, %c0_95] : memref<64x1536xbf16, #tpu.memory_space<vmem>>, vector<8x768xbf16>
    %463 = arith.extf %462 : vector<8x768xbf16> to vector<8x768xf32>
    %c0_96 = arith.constant 0 : index
    %c768_97 = arith.constant 768 : index
    %464 = vector.load %arg9[%c0_96, %c768_97] : memref<64x1536xbf16, #tpu.memory_space<vmem>>, vector<8x768xbf16>
    %465 = arith.extf %464 : vector<8x768xbf16> to vector<8x768xf32>
    %466 = arith.truncf %456 : vector<8x256xf32> to vector<8x256xbf16>
    %cst_98 = arith.constant dense<0.000000e+00> : vector<8x768xf32>
    %467 = tpu.matmul %466, %18, %cst_98 {dimension_numbers = #tpu.dot_dimension_numbers<[1], [0], [0], [1], [0, 0, 1, 1], [], []>} : vector<8x256xbf16>, vector<256x768xbf16>, vector<8x768xf32> -> vector<8x768xf32>
    %468 = arith.truncf %461 : vector<8x256xf32> to vector<8x256xbf16>
    %cst_99 = arith.constant dense<0.000000e+00> : vector<8x768xf32>
    %469 = tpu.matmul %468, %19, %cst_99 {dimension_numbers = #tpu.dot_dimension_numbers<[1], [0], [0], [1], [0, 0, 1, 1], [], []>} : vector<8x256xbf16>, vector<256x768xbf16>, vector<8x768xf32> -> vector<8x768xf32>
    %470 = vector.extract_strided_slice %463 {offsets = [0, 0], sizes = [8, 256], strides = [1, 1]} : vector<8x768xf32> to vector<8x256xf32>
    %471 = vector.extract_strided_slice %467 {offsets = [0, 0], sizes = [8, 256], strides = [1, 1]} : vector<8x768xf32> to vector<8x256xf32>
    %472 = arith.addf %470, %471 : vector<8x256xf32>
    %473 = arith.negf %472 : vector<8x256xf32>
    %474 = math.exp %473 : vector<8x256xf32>
    %cst_100 = arith.constant 1.000000e+00 : f32
    %475 = vector.broadcast %cst_100 : f32 to vector<8x256xf32>
    %476 = arith.addf %475, %474 : vector<8x256xf32>
    %477 = arith.divf %475, %476 : vector<8x256xf32>
    %478 = vector.extract_strided_slice %463 {offsets = [0, 256], sizes = [8, 256], strides = [1, 1]} : vector<8x768xf32> to vector<8x256xf32>
    %479 = vector.extract_strided_slice %467 {offsets = [0, 256], sizes = [8, 256], strides = [1, 1]} : vector<8x768xf32> to vector<8x256xf32>
    %480 = arith.addf %478, %479 : vector<8x256xf32>
    %481 = arith.negf %480 : vector<8x256xf32>
    %482 = math.exp %481 : vector<8x256xf32>
    %cst_101 = arith.constant 1.000000e+00 : f32
    %483 = vector.broadcast %cst_101 : f32 to vector<8x256xf32>
    %484 = arith.addf %483, %482 : vector<8x256xf32>
    %485 = arith.divf %483, %484 : vector<8x256xf32>
    %486 = vector.extract_strided_slice %463 {offsets = [0, 512], sizes = [8, 256], strides = [1, 1]} : vector<8x768xf32> to vector<8x256xf32>
    %487 = vector.extract_strided_slice %467 {offsets = [0, 512], sizes = [8, 256], strides = [1, 1]} : vector<8x768xf32> to vector<8x256xf32>
    %488 = arith.addf %487, %22 : vector<8x256xf32>
    %489 = arith.mulf %477, %488 : vector<8x256xf32>
    %490 = arith.addf %486, %489 : vector<8x256xf32>
    %491 = math.tanh %490 : vector<8x256xf32>
    %492 = vector.extract_strided_slice %465 {offsets = [0, 0], sizes = [8, 256], strides = [1, 1]} : vector<8x768xf32> to vector<8x256xf32>
    %493 = vector.extract_strided_slice %469 {offsets = [0, 0], sizes = [8, 256], strides = [1, 1]} : vector<8x768xf32> to vector<8x256xf32>
    %494 = arith.addf %492, %493 : vector<8x256xf32>
    %495 = arith.negf %494 : vector<8x256xf32>
    %496 = math.exp %495 : vector<8x256xf32>
    %cst_102 = arith.constant 1.000000e+00 : f32
    %497 = vector.broadcast %cst_102 : f32 to vector<8x256xf32>
    %498 = arith.addf %497, %496 : vector<8x256xf32>
    %499 = arith.divf %497, %498 : vector<8x256xf32>
    %500 = vector.extract_strided_slice %465 {offsets = [0, 256], sizes = [8, 256], strides = [1, 1]} : vector<8x768xf32> to vector<8x256xf32>
    %501 = vector.extract_strided_slice %469 {offsets = [0, 256], sizes = [8, 256], strides = [1, 1]} : vector<8x768xf32> to vector<8x256xf32>
    %502 = arith.addf %500, %501 : vector<8x256xf32>
    %503 = arith.negf %502 : vector<8x256xf32>
    %504 = math.exp %503 : vector<8x256xf32>
    %cst_103 = arith.constant 1.000000e+00 : f32
    %505 = vector.broadcast %cst_103 : f32 to vector<8x256xf32>
    %506 = arith.addf %505, %504 : vector<8x256xf32>
    %507 = arith.divf %505, %506 : vector<8x256xf32>
    %508 = vector.extract_strided_slice %465 {offsets = [0, 512], sizes = [8, 256], strides = [1, 1]} : vector<8x768xf32> to vector<8x256xf32>
    %509 = vector.extract_strided_slice %469 {offsets = [0, 512], sizes = [8, 256], strides = [1, 1]} : vector<8x768xf32> to vector<8x256xf32>
    %510 = arith.addf %509, %25 : vector<8x256xf32>
    %511 = arith.mulf %499, %510 : vector<8x256xf32>
    %512 = arith.addf %508, %511 : vector<8x256xf32>
    %513 = math.tanh %512 : vector<8x256xf32>
    %cst_104 = arith.constant 1.000000e+00 : f32
    %514 = vector.broadcast %cst_104 : f32 to vector<8x256xf32>
    %515 = arith.subf %514, %485 : vector<8x256xf32>
    %516 = arith.mulf %515, %491 : vector<8x256xf32>
    %517 = arith.mulf %485, %456 : vector<8x256xf32>
    %518 = arith.addf %516, %517 : vector<8x256xf32>
    %cst_105 = arith.constant 1.000000e+00 : f32
    %519 = vector.broadcast %cst_105 : f32 to vector<8x256xf32>
    %520 = arith.subf %519, %507 : vector<8x256xf32>
    %521 = arith.mulf %520, %513 : vector<8x256xf32>
    %522 = arith.mulf %507, %461 : vector<8x256xf32>
    %523 = arith.addf %521, %522 : vector<8x256xf32>
    %524 = arith.addf %518, %523 : vector<8x256xf32>
    %cst_106 = arith.constant 5.000000e-01 : f32
    %525 = vector.broadcast %cst_106 : f32 to vector<8x256xf32>
    %526 = arith.mulf %524, %525 : vector<8x256xf32>
    %527 = arith.truncf %526 : vector<8x256xf32> to vector<8x256xbf16>
    %c2_i32_107 = arith.constant 2 : i32
    %528 = tpu.memref_slice %arg13[%c2_i32_107] : memref<3x!tpu.dma_semaphore, #tpu.memory_space<semaphore_mem>> -> memref<1x!tpu.dma_semaphore, #tpu.memory_space<semaphore_mem>>
    %529 = tpu.memref_squeeze %528 : memref<1x!tpu.dma_semaphore, #tpu.memory_space<semaphore_mem>> -> memref<!tpu.dma_semaphore, #tpu.memory_space<semaphore_mem>>
    tpu.wait_dma2 semaphore(%529 : memref<!tpu.dma_semaphore, #tpu.memory_space<semaphore_mem>>) src(%arg7 : memref<256x128xbf16, #tpu.memory_space<any>>) dst(%arg12 : memref<256x128xbf16, #tpu.memory_space<vmem>>)
    %c0_108 = arith.constant 0 : index
    %c0_109 = arith.constant 0 : index
    %530 = vector.load %arg12[%c0_108, %c0_109] : memref<256x128xbf16, #tpu.memory_space<vmem>>, vector<256x128xbf16>
    %cst_110 = arith.constant dense<0.000000e+00> : vector<8x128xf32>
    %531 = tpu.matmul %527, %530, %cst_110 {dimension_numbers = #tpu.dot_dimension_numbers<[1], [0], [0], [1], [0, 0, 1, 1], [], []>} : vector<8x256xbf16>, vector<256x128xbf16>, vector<8x128xf32> -> vector<8x128xf32>
    %c0_111 = arith.constant 0 : index
    %c0_112 = arith.constant 0 : index
    %532 = vector.load %arg4[%c0_111, %c0_112] : memref<1x128xf32, #tpu.memory_space<vmem>>, vector<1x128xf32>
    %533 = vector.broadcast %532 : vector<1x128xf32> to vector<8x128xf32>
    %534 = arith.addf %531, %533 : vector<8x128xf32>
    %535 = arith.negf %534 : vector<8x128xf32>
    %536 = math.exp %535 : vector<8x128xf32>
    %cst_113 = arith.constant 1.000000e+00 : f32
    %537 = vector.broadcast %cst_113 : f32 to vector<8x128xf32>
    %538 = arith.addf %537, %536 : vector<8x128xf32>
    %539 = arith.divf %537, %538 : vector<8x128xf32>
    %c0_114 = arith.constant 0 : index
    %c0_115 = arith.constant 0 : index
    %540 = vector.load %arg8[%c0_114, %c0_115] : memref<8x128xf32, #tpu.memory_space<vmem>>, vector<8x128xf32>
    tpu.vector_store %arg8[%c0_114, %c0_115], %539 {strides = array<i32>} : memref<8x128xf32, #tpu.memory_space<vmem>>, vector<8x128xf32>,
    return
  }
}

</mosaic_0001>

<llo_original>
// kernel: context_rnn_forward.1
$region0: #{context_rnn_forward.1}
  #allocation0 [shape = 'u32[]', space=smem, size = 0x4, offset = 0x4, fixed_abs, tag = 'smem constant byte address 0x4 - core index']
  #allocation1 [shape = 'u32[72,128]{1,0:T(1,128)}', space=vmem, size = 0x9000, scoped, tag = 'internal scratch']
  #allocation2 [shape = 'bf16[64,1536]{1,0:T(8,128)(2,1)}', space=vmem, size = 0x30000, scoped, tag = 'scratch operand']
  #allocation3 [shape = 'bf16[256,768]{1,0:T(8,128)(2,1)}', space=vmem, size = 0x60000, scoped, tag = 'scratch operand']
  #allocation4 [shape = 'bf16[256,768]{1,0:T(8,128)(2,1)}', space=vmem, size = 0x60000, scoped, tag = 'scratch operand']
  #allocation5 [shape = 'bf16[256,128]{1,0:T(8,128)(2,1)}', space=vmem, size = 0x10000, scoped, tag = 'scratch operand']
  #allocation6 [shape = 's32[3]{0}', space=sflag, size = 0xc, scoped, tag = 'scratch operand']
  #allocation7 [shape = 's32[]', space=sflag, size = 0x4, offset = 0, fixed_abs, tag = 'sflag constant byte address 0x0 - dummy sync flag']
  #allocation8 [shape = 's32[]', space=sflag, size = 0x4, offset = 0, fixed_abs, tag = 'sflag constant byte address 0x0 - dummy sync flag']
  #allocation9 [shape = 's32[]', space=sflag, size = 0x4, offset = 0, fixed_abs, tag = 'sflag constant byte address 0x0 - dummy sync flag']
  %s0 = inlined_call_operand.vmem [shape: bf16[64,512], index: 0, kind: input, shape index: {}]
  %s1 = inlined_call_operand.vmem [shape: bf16[512,1536], index: 1, kind: input, shape index: {}]
  %s2 = inlined_call_operand.vmem [shape: f32[1,1536], index: 2, kind: input, shape index: {}]
  %s3 = inlined_call_operand.vmem [shape: f32[1,512], index: 3, kind: input, shape index: {}]
  %s4 = inlined_call_operand.vmem [shape: f32[1,128], index: 4, kind: input, shape index: {}]
  %s5 = inlined_call_operand.vmem [shape: bf16[256,768], index: 5, kind: input, shape index: {}]
  %s6 = inlined_call_operand.vmem [shape: bf16[256,768], index: 6, kind: input, shape index: {}]
  %s7 = inlined_call_operand.vmem [shape: bf16[256,128], index: 7, kind: input, shape index: {}]
  %s8 = inlined_call_operand.vmem [shape: f32[8,128], index: 8, kind: output, shape index: {}]
  %s9 = sld [smem:[#allocation0]]
  $region87: #{context_rnn_forward.1} parent=0
    _
  %s11 = ssub.s32 1, %s9
  %s12 = scalar_select 0, %s11, %s9
  // Predicated region
  $region2: #{context_rnn_forward.1} parent=0 // pred_check
    _
  $region3: #{context_rnn_forward.1} parent=0 // pred_check_branch
    %14 = sbr.rel (0) target = $region5
  $region4: #{context_rnn_forward.1} parent=0 // pred_region
    _
  $region5: #{context_rnn_forward.1} parent=0 // pred_fallthru
    _
  // Predicated region
  $region6: #{context_rnn_forward.1} parent=0 // pred_check
    _
  $region7: #{context_rnn_forward.1} parent=0 // pred_check_branch
    %16 = sbr.rel (0) target = $region9
  $region8: #{context_rnn_forward.1} parent=0 // pred_region
    _
  $region9: #{context_rnn_forward.1} parent=0 // pred_fallthru
    _
  // Predicated region
  $region10: #{context_rnn_forward.1} parent=0 // pred_check
    _
  $region11: #{context_rnn_forward.1} parent=0 // pred_check_branch
    %18 = sbr.rel (0) target = $region13
  $region12: #{context_rnn_forward.1} parent=0 // pred_region
    _
  $region13: #{context_rnn_forward.1} parent=0 // pred_fallthru
    _
  // Predicated region
  $region14: #{context_rnn_forward.1} parent=0 // pred_check
    _
  $region15: #{context_rnn_forward.1} parent=0 // pred_check_branch
    %20 = sbr.rel (0) target = $region17
  $region16: #{context_rnn_forward.1} parent=0 // pred_region
    _
  $region17: #{context_rnn_forward.1} parent=0 // pred_fallthru
    _
  // Predicated region
  $region18: #{context_rnn_forward.1} parent=0 // pred_check
    _
  $region19: #{context_rnn_forward.1} parent=0 // pred_check_branch
    %22 = sbr.rel (0) target = $region21
  $region20: #{context_rnn_forward.1} parent=0 // pred_region
    _
  $region21: #{context_rnn_forward.1} parent=0 // pred_fallthru
    _
  // Predicated region
  $region22: #{context_rnn_forward.1} parent=0 // pred_check
    _
  $region23: #{context_rnn_forward.1} parent=0 // pred_check_branch
    %25 = sbr.rel (0) target = $region25
  $region24: #{context_rnn_forward.1} parent=0 // pred_region
    loop: start=0, step=1, limit=1
    $region26: #{context_rnn_forward.1} parent=24 // loop_pre_header
      _
    $region27: #{context_rnn_forward.1} parent=24 // loop_header
      %s27 = sphi 0, %s31
      %p28 = scmp.ge.s32.totalorder %s27, 1
      %s32 = sphi %s5, %s5
      %s33 = sphi [#allocation3], [#allocation3]
    $region28: #{context_rnn_forward.1} parent=24 // loop_header_branch
      %30 = sbr.rel (%p28) target = $region32
    $region29: #{context_rnn_forward.1} parent=24 // loop_body
      %v34 = vld [vmem:[%s32] sm:$0xff]
      %35 = vst [vmem:[%s33] sm:$0xff] %v34
      %v36 = vld [vmem:[%s32 + $0x8] sm:$0xff]
      %37 = vst [vmem:[%s33 + $0x8] sm:$0xff] %v36
      %v38 = vld [vmem:[%s32 + $0x10] sm:$0xff]
      %39 = vst [vmem:[%s33 + $0x10] sm:$0xff] %v38
      %v40 = vld [vmem:[%s32 + $0x18] sm:$0xff]
      %41 = vst [vmem:[%s33 + $0x18] sm:$0xff] %v40
      %v42 = vld [vmem:[%s32 + $0x20] sm:$0xff]
      %43 = vst [vmem:[%s33 + $0x20] sm:$0xff] %v42
      %v44 = vld [vmem:[%s32 + $0x28] sm:$0xff]
      %45 = vst [vmem:[%s33 + $0x28] sm:$0xff] %v44
      %v46 = vld [vmem:[%s32 + $0x30] sm:$0xff]
      %47 = vst [vmem:[%s33 + $0x30] sm:$0xff] %v46
      %v48 = vld [vmem:[%s32 + $0x38] sm:$0xff]
      %49 = vst [vmem:[%s33 + $0x38] sm:$0xff] %v48
      %v50 = vld [vmem:[%s32 + $0x40] sm:$0xff]
      %51 = vst [vmem:[%s33 + $0x40] sm:$0xff] %v50
      %v52 = vld [vmem:[%s32 + $0x48] sm:$0xff]
      %53 = vst [vmem:[%s33 + $0x48] sm:$0xff] %v52
      %v54 = vld [vmem:[%s32 + $0x50] sm:$0xff]
      %55 = vst [vmem:[%s33 + $0x50] sm:$0xff] %v54
      %v56 = vld [vmem:[%s32 + $0x58] sm:$0xff]
      %57 = vst [vmem:[%s33 + $0x58] sm:$0xff] %v56
      %v58 = vld [vmem:[%s32 + $0x60] sm:$0xff]
      %59 = vst [vmem:[%s33 + $0x60] sm:$0xff] %v58
      %v60 = vld [vmem:[%s32 + $0x68] sm:$0xff]
      %61 = vst [vmem:[%s33 + $0x68] sm:$0xff] %v60
      %v62 = vld [vmem:[%s32 + $0x70] sm:$0xff]
      %63 = vst [vmem:[%s33 + $0x70] sm:$0xff] %v62
      %v64 = vld [vmem:[%s32 + $0x78] sm:$0xff]
      %65 = vst [vmem:[%s33 + $0x78] sm:$0xff] %v64
      %v66 = vld [vmem:[%s32 + $0x80] sm:$0xff]
      %67 = vst [vmem:[%s33 + $0x80] sm:$0xff] %v66
      %v68 = vld [vmem:[%s32 + $0x88] sm:$0xff]
      %69 = vst [vmem:[%s33 + $0x88] sm:$0xff] %v68
      %v70 = vld [vmem:[%s32 + $0x90] sm:$0xff]
      %71 = vst [vmem:[%s33 + $0x90] sm:$0xff] %v70
      %v72 = vld [vmem:[%s32 + $0x98] sm:$0xff]
      %73 = vst [vmem:[%s33 + $0x98] sm:$0xff] %v72
      %v74 = vld [vmem:[%s32 + $0xa0] sm:$0xff]
      %75 = vst [vmem:[%s33 + $0xa0] sm:$0xff] %v74
      %v76 = vld [vmem:[%s32 + $0xa8] sm:$0xff]
      %77 = vst [vmem:[%s33 + $0xa8] sm:$0xff] %v76
      %v78 = vld [vmem:[%s32 + $0xb0] sm:$0xff]
      %79 = vst [vmem:[%s33 + $0xb0] sm:$0xff] %v78
      %v80 = vld [vmem:[%s32 + $0xb8] sm:$0xff]
      %81 = vst [vmem:[%s33 + $0xb8] sm:$0xff] %v80
      %v82 = vld [vmem:[%s32 + $0xc0] sm:$0xff]
      %83 = vst [vmem:[%s33 + $0xc0] sm:$0xff] %v82
      %v84 = vld [vmem:[%s32 + $0xc8] sm:$0xff]
      %85 = vst [vmem:[%s33 + $0xc8] sm:$0xff] %v84
      %v86 = vld [vmem:[%s32 + $0xd0] sm:$0xff]
      %87 = vst [vmem:[%s33 + $0xd0] sm:$0xff] %v86
      %v88 = vld [vmem:[%s32 + $0xd8] sm:$0xff]
      %89 = vst [vmem:[%s33 + $0xd8] sm:$0xff] %v88
      %v90 = vld [vmem:[%s32 + $0xe0] sm:$0xff]
      %91 = vst [vmem:[%s33 + $0xe0] sm:$0xff] %v90
      %v92 = vld [vmem:[%s32 + $0xe8] sm:$0xff]
      %93 = vst [vmem:[%s33 + $0xe8] sm:$0xff] %v92
      %v94 = vld [vmem:[%s32 + $0xf0] sm:$0xff]
      %95 = vst [vmem:[%s33 + $0xf0] sm:$0xff] %v94
      %v96 = vld [vmem:[%s32 + $0xf8] sm:$0xff]
      %97 = vst [vmem:[%s33 + $0xf8] sm:$0xff] %v96
      %v98 = vld [vmem:[%s32 + $0x100] sm:$0xff]
      %99 = vst [vmem:[%s33 + $0x100] sm:$0xff] %v98
      %v100 = vld [vmem:[%s32 + $0x108] sm:$0xff]
      %101 = vst [vmem:[%s33 + $0x108] sm:$0xff] %v100
      %v102 = vld [vmem:[%s32 + $0x110] sm:$0xff]
      %103 = vst [vmem:[%s33 + $0x110] sm:$0xff] %v102
      %v104 = vld [vmem:[%s32 + $0x118] sm:$0xff]
      %105 = vst [vmem:[%s33 + $0x118] sm:$0xff] %v104
      %v106 = vld [vmem:[%s32 + $0x120] sm:$0xff]
      %107 = vst [vmem:[%s33 + $0x120] sm:$0xff] %v106
      %v108 = vld [vmem:[%s32 + $0x128] sm:$0xff]
      %109 = vst [vmem:[%s33 + $0x128] sm:$0xff] %v108
      %v110 = vld [vmem:[%s32 + $0x130] sm:$0xff]
      %111 = vst [vmem:[%s33 + $0x130] sm:$0xff] %v110
      %v112 = vld [vmem:[%s32 + $0x138] sm:$0xff]
      %113 = vst [vmem:[%s33 + $0x138] sm:$0xff] %v112
      %v114 = vld [vmem:[%s32 + $0x140] sm:$0xff]
      %115 = vst [vmem:[%s33 + $0x140] sm:$0xff] %v114
      %v116 = vld [vmem:[%s32 + $0x148] sm:$0xff]
      %117 = vst [vmem:[%s33 + $0x148] sm:$0xff] %v116
      %v118 = vld [vmem:[%s32 + $0x150] sm:$0xff]
      %119 = vst [vmem:[%s33 + $0x150] sm:$0xff] %v118
      %v120 = vld [vmem:[%s32 + $0x158] sm:$0xff]
      %121 = vst [vmem:[%s33 + $0x158] sm:$0xff] %v120
      %v122 = vld [vmem:[%s32 + $0x160] sm:$0xff]
      %123 = vst [vmem:[%s33 + $0x160] sm:$0xff] %v122
      %v124 = vld [vmem:[%s32 + $0x168] sm:$0xff]
      %125 = vst [vmem:[%s33 + $0x168] sm:$0xff] %v124
      %v126 = vld [vmem:[%s32 + $0x170] sm:$0xff]
      %127 = vst [vmem:[%s33 + $0x170] sm:$0xff] %v126
      %v128 = vld [vmem:[%s32 + $0x178] sm:$0xff]
      %129 = vst [vmem:[%s33 + $0x178] sm:$0xff] %v128
      %v130 = vld [vmem:[%s32 + $0x180] sm:$0xff]
      %131 = vst [vmem:[%s33 + $0x180] sm:$0xff] %v130
      %v132 = vld [vmem:[%s32 + $0x188] sm:$0xff]
      %133 = vst [vmem:[%s33 + $0x188] sm:$0xff] %v132
      %v134 = vld [vmem:[%s32 + $0x190] sm:$0xff]
      %135 = vst [vmem:[%s33 + $0x190] sm:$0xff] %v134
      %v136 = vld [vmem:[%s32 + $0x198] sm:$0xff]
      %137 = vst [vmem:[%s33 + $0x198] sm:$0xff] %v136
      %v138 = vld [vmem:[%s32 + $0x1a0] sm:$0xff]
      %139 = vst [vmem:[%s33 + $0x1a0] sm:$0xff] %v138
      %v140 = vld [vmem:[%s32 + $0x1a8] sm:$0xff]
      %141 = vst [vmem:[%s33 + $0x1a8] sm:$0xff] %v140
      %v142 = vld [vmem:[%s32 + $0x1b0] sm:$0xff]
      %143 = vst [vmem:[%s33 + $0x1b0] sm:$0xff] %v142
      %v144 = vld [vmem:[%s32 + $0x1b8] sm:$0xff]
      %145 = vst [vmem:[%s33 + $0x1b8] sm:$0xff] %v144
      %v146 = vld [vmem:[%s32 + $0x1c0] sm:$0xff]
      %147 = vst [vmem:[%s33 + $0x1c0] sm:$0xff] %v146
      %v148 = vld [vmem:[%s32 + $0x1c8] sm:$0xff]
      %149 = vst [vmem:[%s33 + $0x1c8] sm:$0xff] %v148
      %v150 = vld [vmem:[%s32 + $0x1d0] sm:$0xff]
      %151 = vst [vmem:[%s33 + $0x1d0] sm:$0xff] %v150
      %v152 = vld [vmem:[%s32 + $0x1d8] sm:$0xff]
      %153 = vst [vmem:[%s33 + $0x1d8] sm:$0xff] %v152
      %v154 = vld [vmem:[%s32 + $0x1e0] sm:$0xff]
      %155 = vst [vmem:[%s33 + $0x1e0] sm:$0xff] %v154
      %v156 = vld [vmem:[%s32 + $0x1e8] sm:$0xff]
      %157 = vst [vmem:[%s33 + $0x1e8] sm:$0xff] %v156
      %v158 = vld [vmem:[%s32 + $0x1f0] sm:$0xff]
      %159 = vst [vmem:[%s33 + $0x1f0] sm:$0xff] %v158
      %v160 = vld [vmem:[%s32 + $0x1f8] sm:$0xff]
      %161 = vst [vmem:[%s33 + $0x1f8] sm:$0xff] %v160
      %v162 = vld [vmem:[%s32 + $0x200] sm:$0xff]
      %163 = vst [vmem:[%s33 + $0x200] sm:$0xff] %v162
      %v164 = vld [vmem:[%s32 + $0x208] sm:$0xff]
      %165 = vst [vmem:[%s33 + $0x208] sm:$0xff] %v164
      %v166 = vld [vmem:[%s32 + $0x210] sm:$0xff]
      %167 = vst [vmem:[%s33 + $0x210] sm:$0xff] %v166
      %v168 = vld [vmem:[%s32 + $0x218] sm:$0xff]
      %169 = vst [vmem:[%s33 + $0x218] sm:$0xff] %v168
      %v170 = vld [vmem:[%s32 + $0x220] sm:$0xff]
      %171 = vst [vmem:[%s33 + $0x220] sm:$0xff] %v170
      %v172 = vld [vmem:[%s32 + $0x228] sm:$0xff]
      %173 = vst [vmem:[%s33 + $0x228] sm:$0xff] %v172
      %v174 = vld [vmem:[%s32 + $0x230] sm:$0xff]
      %175 = vst [vmem:[%s33 + $0x230] sm:$0xff] %v174
      %v176 = vld [vmem:[%s32 + $0x238] sm:$0xff]
      %177 = vst [vmem:[%s33 + $0x238] sm:$0xff] %v176
      %v178 = vld [vmem:[%s32 + $0x240] sm:$0xff]
      %179 = vst [vmem:[%s33 + $0x240] sm:$0xff] %v178
      %v180 = vld [vmem:[%s32 + $0x248] sm:$0xff]
      %181 = vst [vmem:[%s33 + $0x248] sm:$0xff] %v180
      %v182 = vld [vmem:[%s32 + $0x250] sm:$0xff]
      %183 = vst [vmem:[%s33 + $0x250] sm:$0xff] %v182
      %v184 = vld [vmem:[%s32 + $0x258] sm:$0xff]
      %185 = vst [vmem:[%s33 + $0x258] sm:$0xff] %v184
      %v186 = vld [vmem:[%s32 + $0x260] sm:$0xff]
      %187 = vst [vmem:[%s33 + $0x260] sm:$0xff] %v186
      %v188 = vld [vmem:[%s32 + $0x268] sm:$0xff]
      %189 = vst [vmem:[%s33 + $0x268] sm:$0xff] %v188
      %v190 = vld [vmem:[%s32 + $0x270] sm:$0xff]
      %191 = vst [vmem:[%s33 + $0x270] sm:$0xff] %v190
      %v192 = vld [vmem:[%s32 + $0x278] sm:$0xff]
      %193 = vst [vmem:[%s33 + $0x278] sm:$0xff] %v192
      %v194 = vld [vmem:[%s32 + $0x280] sm:$0xff]
      %195 = vst [vmem:[%s33 + $0x280] sm:$0xff] %v194
      %v196 = vld [vmem:[%s32 + $0x288] sm:$0xff]
      %197 = vst [vmem:[%s33 + $0x288] sm:$0xff] %v196
      %v198 = vld [vmem:[%s32 + $0x290] sm:$0xff]
      %199 = vst [vmem:[%s33 + $0x290] sm:$0xff] %v198
      %v200 = vld [vmem:[%s32 + $0x298] sm:$0xff]
      %201 = vst [vmem:[%s33 + $0x298] sm:$0xff] %v200
      %v202 = vld [vmem:[%s32 + $0x2a0] sm:$0xff]
      %203 = vst [vmem:[%s33 + $0x2a0] sm:$0xff] %v202
      %v204 = vld [vmem:[%s32 + $0x2a8] sm:$0xff]
      %205 = vst [vmem:[%s33 + $0x2a8] sm:$0xff] %v204
      %v206 = vld [vmem:[%s32 + $0x2b0] sm:$0xff]
      %207 = vst [vmem:[%s33 + $0x2b0] sm:$0xff] %v206
      %v208 = vld [vmem:[%s32 + $0x2b8] sm:$0xff]
      %209 = vst [vmem:[%s33 + $0x2b8] sm:$0xff] %v208
      %v210 = vld [vmem:[%s32 + $0x2c0] sm:$0xff]
      %211 = vst [vmem:[%s33 + $0x2c0] sm:$0xff] %v210
      %v212 = vld [vmem:[%s32 + $0x2c8] sm:$0xff]
      %213 = vst [vmem:[%s33 + $0x2c8] sm:$0xff] %v212
      %v214 = vld [vmem:[%s32 + $0x2d0] sm:$0xff]
      %215 = vst [vmem:[%s33 + $0x2d0] sm:$0xff] %v214
      %v216 = vld [vmem:[%s32 + $0x2d8] sm:$0xff]
      %217 = vst [vmem:[%s33 + $0x2d8] sm:$0xff] %v216
      %v218 = vld [vmem:[%s32 + $0x2e0] sm:$0xff]
      %219 = vst [vmem:[%s33 + $0x2e0] sm:$0xff] %v218
      %v220 = vld [vmem:[%s32 + $0x2e8] sm:$0xff]
      %221 = vst [vmem:[%s33 + $0x2e8] sm:$0xff] %v220
      %v222 = vld [vmem:[%s32 + $0x2f0] sm:$0xff]
      %223 = vst [vmem:[%s33 + $0x2f0] sm:$0xff] %v222
      %v224 = vld [vmem:[%s32 + $0x2f8] sm:$0xff]
      %225 = vst [vmem:[%s33 + $0x2f8] sm:$0xff] %v224
    $region30: #{context_rnn_forward.1} parent=24 // loop_footer
      %s31 = sadd.s32 1, %s27
    $region31: #{context_rnn_forward.1} parent=24 // loop_footer_branch
      %26 = sbr.rel target = $region27
    $region32: #{context_rnn_forward.1} parent=24 // loop_exit
      _
  $region25: #{context_rnn_forward.1} parent=0 // pred_fallthru
    _
  // Predicated region
  $region33: #{context_rnn_forward.1} parent=0 // pred_check
    _
  $region34: #{context_rnn_forward.1} parent=0 // pred_check_branch
    %227 = sbr.rel target = $region36
  $region35: #{context_rnn_forward.1} parent=0 // pred_region
    _
  $region36: #{context_rnn_forward.1} parent=0 // pred_fallthru
    _
  // Predicated region
  $region37: #{context_rnn_forward.1} parent=0 // pred_check
    _
  $region38: #{context_rnn_forward.1} parent=0 // pred_check_branch
    %230 = sbr.rel (0) target = $region40
  $region39: #{context_rnn_forward.1} parent=0 // pred_region
    %231 = vsyncadd [#allocation6], 12288
  $region40: #{context_rnn_forward.1} parent=0 // pred_fallthru
    _
  %s232 = scalar_lea.sflag [#allocation6], 1
  // Predicated region
  $region41: #{context_rnn_forward.1} parent=0 // pred_check
    _
  $region42: #{context_rnn_forward.1} parent=0 // pred_check_branch
    %234 = sbr.rel (0) target = $region44
  $region43: #{context_rnn_forward.1} parent=0 // pred_region
    loop: start=0, step=1, limit=1
    $region45: #{context_rnn_forward.1} parent=43 // loop_pre_header
      _
    $region46: #{context_rnn_forward.1} parent=43 // loop_header
      %s236 = sphi 0, %s240
      %p237 = scmp.ge.s32.totalorder %s236, 1
      %s241 = sphi %s6, %s6
      %s242 = sphi [#allocation4], [#allocation4]
    $region47: #{context_rnn_forward.1} parent=43 // loop_header_branch
      %239 = sbr.rel (%p237) target = $region51
    $region48: #{context_rnn_forward.1} parent=43 // loop_body
      %v243 = vld [vmem:[%s241] sm:$0xff]
      %244 = vst [vmem:[%s242] sm:$0xff] %v243
      %v245 = vld [vmem:[%s241 + $0x8] sm:$0xff]
      %246 = vst [vmem:[%s242 + $0x8] sm:$0xff] %v245
      %v247 = vld [vmem:[%s241 + $0x10] sm:$0xff]
      %248 = vst [vmem:[%s242 + $0x10] sm:$0xff] %v247
      %v249 = vld [vmem:[%s241 + $0x18] sm:$0xff]
      %250 = vst [vmem:[%s242 + $0x18] sm:$0xff] %v249
      %v251 = vld [vmem:[%s241 + $0x20] sm:$0xff]
      %252 = vst [vmem:[%s242 + $0x20] sm:$0xff] %v251
      %v253 = vld [vmem:[%s241 + $0x28] sm:$0xff]
      %254 = vst [vmem:[%s242 + $0x28] sm:$0xff] %v253
      %v255 = vld [vmem:[%s241 + $0x30] sm:$0xff]
      %256 = vst [vmem:[%s242 + $0x30] sm:$0xff] %v255
      %v257 = vld [vmem:[%s241 + $0x38] sm:$0xff]
      %258 = vst [vmem:[%s242 + $0x38] sm:$0xff] %v257
      %v259 = vld [vmem:[%s241 + $0x40] sm:$0xff]
      %260 = vst [vmem:[%s242 + $0x40] sm:$0xff] %v259
      %v261 = vld [vmem:[%s241 + $0x48] sm:$0xff]
      %262 = vst [vmem:[%s242 + $0x48] sm:$0xff] %v261
      %v263 = vld [vmem:[%s241 + $0x50] sm:$0xff]
      %264 = vst [vmem:[%s242 + $0x50] sm:$0xff] %v263
      %v265 = vld [vmem:[%s241 + $0x58] sm:$0xff]
      %266 = vst [vmem:[%s242 + $0x58] sm:$0xff] %v265
      %v267 = vld [vmem:[%s241 + $0x60] sm:$0xff]
      %268 = vst [vmem:[%s242 + $0x60] sm:$0xff] %v267
      %v269 = vld [vmem:[%s241 + $0x68] sm:$0xff]
      %270 = vst [vmem:[%s242 + $0x68] sm:$0xff] %v269
      %v271 = vld [vmem:[%s241 + $0x70] sm:$0xff]
      %272 = vst [vmem:[%s242 + $0x70] sm:$0xff] %v271
      %v273 = vld [vmem:[%s241 + $0x78] sm:$0xff]
      %274 = vst [vmem:[%s242 + $0x78] sm:$0xff] %v273
      %v275 = vld [vmem:[%s241 + $0x80] sm:$0xff]
      %276 = vst [vmem:[%s242 + $0x80] sm:$0xff] %v275
      %v277 = vld [vmem:[%s241 + $0x88] sm:$0xff]
      %278 = vst [vmem:[%s242 + $0x88] sm:$0xff] %v277
      %v279 = vld [vmem:[%s241 + $0x90] sm:$0xff]
      %280 = vst [vmem:[%s242 + $0x90] sm:$0xff] %v279
      %v281 = vld [vmem:[%s241 + $0x98] sm:$0xff]
      %282 = vst [vmem:[%s242 + $0x98] sm:$0xff] %v281
      %v283 = vld [vmem:[%s241 + $0xa0] sm:$0xff]
      %284 = vst [vmem:[%s242 + $0xa0] sm:$0xff] %v283
      %v285 = vld [vmem:[%s241 + $0xa8] sm:$0xff]
      %286 = vst [vmem:[%s242 + $0xa8] sm:$0xff] %v285
      %v287 = vld [vmem:[%s241 + $0xb0] sm:$0xff]
      %288 = vst [vmem:[%s242 + $0xb0] sm:$0xff] %v287
      %v289 = vld [vmem:[%s241 + $0xb8] sm:$0xff]
      %290 = vst [vmem:[%s242 + $0xb8] sm:$0xff] %v289
      %v291 = vld [vmem:[%s241 + $0xc0] sm:$0xff]
      %292 = vst [vmem:[%s242 + $0xc0] sm:$0xff] %v291
      %v293 = vld [vmem:[%s241 + $0xc8] sm:$0xff]
      %294 = vst [vmem:[%s242 + $0xc8] sm:$0xff] %v293
      %v295 = vld [vmem:[%s241 + $0xd0] sm:$0xff]
      %296 = vst [vmem:[%s242 + $0xd0] sm:$0xff] %v295
      %v297 = vld [vmem:[%s241 + $0xd8] sm:$0xff]
      %298 = vst [vmem:[%s242 + $0xd8] sm:$0xff] %v297
      %v299 = vld [vmem:[%s241 + $0xe0] sm:$0xff]
      %300 = vst [vmem:[%s242 + $0xe0] sm:$0xff] %v299
      %v301 = vld [vmem:[%s241 + $0xe8] sm:$0xff]
      %302 = vst [vmem:[%s242 + $0xe8] sm:$0xff] %v301
      %v303 = vld [vmem:[%s241 + $0xf0] sm:$0xff]
      %304 = vst [vmem:[%s242 + $0xf0] sm:$0xff] %v303
      %v305 = vld [vmem:[%s241 + $0xf8] sm:$0xff]
      %306 = vst [vmem:[%s242 + $0xf8] sm:$0xff] %v305
      %v307 = vld [vmem:[%s241 + $0x100] sm:$0xff]
      %308 = vst [vmem:[%s242 + $0x100] sm:$0xff] %v307
      %v309 = vld [vmem:[%s241 + $0x108] sm:$0xff]
      %310 = vst [vmem:[%s242 + $0x108] sm:$0xff] %v309
      %v311 = vld [vmem:[%s241 + $0x110] sm:$0xff]
      %312 = vst [vmem:[%s242 + $0x110] sm:$0xff] %v311
      %v313 = vld [vmem:[%s241 + $0x118] sm:$0xff]
      %314 = vst [vmem:[%s242 + $0x118] sm:$0xff] %v313
      %v315 = vld [vmem:[%s241 + $0x120] sm:$0xff]
      %316 = vst [vmem:[%s242 + $0x120] sm:$0xff] %v315
      %v317 = vld [vmem:[%s241 + $0x128] sm:$0xff]
      %318 = vst [vmem:[%s242 + $0x128] sm:$0xff] %v317
      %v319 = vld [vmem:[%s241 + $0x130] sm:$0xff]
      %320 = vst [vmem:[%s242 + $0x130] sm:$0xff] %v319
      %v321 = vld [vmem:[%s241 + $0x138] sm:$0xff]
      %322 = vst [vmem:[%s242 + $0x138] sm:$0xff] %v321
      %v323 = vld [vmem:[%s241 + $0x140] sm:$0xff]
      %324 = vst [vmem:[%s242 + $0x140] sm:$0xff] %v323
      %v325 = vld [vmem:[%s241 + $0x148] sm:$0xff]
      %326 = vst [vmem:[%s242 + $0x148] sm:$0xff] %v325
      %v327 = vld [vmem:[%s241 + $0x150] sm:$0xff]
      %328 = vst [vmem:[%s242 + $0x150] sm:$0xff] %v327
      %v329 = vld [vmem:[%s241 + $0x158] sm:$0xff]
      %330 = vst [vmem:[%s242 + $0x158] sm:$0xff] %v329
      %v331 = vld [vmem:[%s241 + $0x160] sm:$0xff]
      %332 = vst [vmem:[%s242 + $0x160] sm:$0xff] %v331
      %v333 = vld [vmem:[%s241 + $0x168] sm:$0xff]
      %334 = vst [vmem:[%s242 + $0x168] sm:$0xff] %v333
      %v335 = vld [vmem:[%s241 + $0x170] sm:$0xff]
      %336 = vst [vmem:[%s242 + $0x170] sm:$0xff] %v335
      %v337 = vld [vmem:[%s241 + $0x178] sm:$0xff]
      %338 = vst [vmem:[%s242 + $0x178] sm:$0xff] %v337
      %v339 = vld [vmem:[%s241 + $0x180] sm:$0xff]
      %340 = vst [vmem:[%s242 + $0x180] sm:$0xff] %v339
      %v341 = vld [vmem:[%s241 + $0x188] sm:$0xff]
      %342 = vst [vmem:[%s242 + $0x188] sm:$0xff] %v341
      %v343 = vld [vmem:[%s241 + $0x190] sm:$0xff]
      %344 = vst [vmem:[%s242 + $0x190] sm:$0xff] %v343
      %v345 = vld [vmem:[%s241 + $0x198] sm:$0xff]
      %346 = vst [vmem:[%s242 + $0x198] sm:$0xff] %v345
      %v347 = vld [vmem:[%s241 + $0x1a0] sm:$0xff]
      %348 = vst [vmem:[%s242 + $0x1a0] sm:$0xff] %v347
      %v349 = vld [vmem:[%s241 + $0x1a8] sm:$0xff]
      %350 = vst [vmem:[%s242 + $0x1a8] sm:$0xff] %v349
      %v351 = vld [vmem:[%s241 + $0x1b0] sm:$0xff]
      %352 = vst [vmem:[%s242 + $0x1b0] sm:$0xff] %v351
      %v353 = vld [vmem:[%s241 + $0x1b8] sm:$0xff]
      %354 = vst [vmem:[%s242 + $0x1b8] sm:$0xff] %v353
      %v355 = vld [vmem:[%s241 + $0x1c0] sm:$0xff]
      %356 = vst [vmem:[%s242 + $0x1c0] sm:$0xff] %v355
      %v357 = vld [vmem:[%s241 + $0x1c8] sm:$0xff]
      %358 = vst [vmem:[%s242 + $0x1c8] sm:$0xff] %v357
      %v359 = vld [vmem:[%s241 + $0x1d0] sm:$0xff]
      %360 = vst [vmem:[%s242 + $0x1d0] sm:$0xff] %v359
      %v361 = vld [vmem:[%s241 + $0x1d8] sm:$0xff]
      %362 = vst [vmem:[%s242 + $0x1d8] sm:$0xff] %v361
      %v363 = vld [vmem:[%s241 + $0x1e0] sm:$0xff]
      %364 = vst [vmem:[%s242 + $0x1e0] sm:$0xff] %v363
      %v365 = vld [vmem:[%s241 + $0x1e8] sm:$0xff]
      %366 = vst [vmem:[%s242 + $0x1e8] sm:$0xff] %v365
      %v367 = vld [vmem:[%s241 + $0x1f0] sm:$0xff]
      %368 = vst [vmem:[%s242 + $0x1f0] sm:$0xff] %v367
      %v369 = vld [vmem:[%s241 + $0x1f8] sm:$0xff]
      %370 = vst [vmem:[%s242 + $0x1f8] sm:$0xff] %v369
      %v371 = vld [vmem:[%s241 + $0x200] sm:$0xff]
      %372 = vst [vmem:[%s242 + $0x200] sm:$0xff] %v371
      %v373 = vld [vmem:[%s241 + $0x208] sm:$0xff]
      %374 = vst [vmem:[%s242 + $0x208] sm:$0xff] %v373
      %v375 = vld [vmem:[%s241 + $0x210] sm:$0xff]
      %376 = vst [vmem:[%s242 + $0x210] sm:$0xff] %v375
      %v377 = vld [vmem:[%s241 + $0x218] sm:$0xff]
      %378 = vst [vmem:[%s242 + $0x218] sm:$0xff] %v377
      %v379 = vld [vmem:[%s241 + $0x220] sm:$0xff]
      %380 = vst [vmem:[%s242 + $0x220] sm:$0xff] %v379
      %v381 = vld [vmem:[%s241 + $0x228] sm:$0xff]
      %382 = vst [vmem:[%s242 + $0x228] sm:$0xff] %v381
      %v383 = vld [vmem:[%s241 + $0x230] sm:$0xff]
      %384 = vst [vmem:[%s242 + $0x230] sm:$0xff] %v383
      %v385 = vld [vmem:[%s241 + $0x238] sm:$0xff]
      %386 = vst [vmem:[%s242 + $0x238] sm:$0xff] %v385
      %v387 = vld [vmem:[%s241 + $0x240] sm:$0xff]
      %388 = vst [vmem:[%s242 + $0x240] sm:$0xff] %v387
      %v389 = vld [vmem:[%s241 + $0x248] sm:$0xff]
      %390 = vst [vmem:[%s242 + $0x248] sm:$0xff] %v389
      %v391 = vld [vmem:[%s241 + $0x250] sm:$0xff]
      %392 = vst [vmem:[%s242 + $0x250] sm:$0xff] %v391
      %v393 = vld [vmem:[%s241 + $0x258] sm:$0xff]
      %394 = vst [vmem:[%s242 + $0x258] sm:$0xff] %v393
      %v395 = vld [vmem:[%s241 + $0x260] sm:$0xff]
      %396 = vst [vmem:[%s242 + $0x260] sm:$0xff] %v395
      %v397 = vld [vmem:[%s241 + $0x268] sm:$0xff]
      %398 = vst [vmem:[%s242 + $0x268] sm:$0xff] %v397
      %v399 = vld [vmem:[%s241 + $0x270] sm:$0xff]
      %400 = vst [vmem:[%s242 + $0x270] sm:$0xff] %v399
      %v401 = vld [vmem:[%s241 + $0x278] sm:$0xff]
      %402 = vst [vmem:[%s242 + $0x278] sm:$0xff] %v401
      %v403 = vld [vmem:[%s241 + $0x280] sm:$0xff]
      %404 = vst [vmem:[%s242 + $0x280] sm:$0xff] %v403
      %v405 = vld [vmem:[%s241 + $0x288] sm:$0xff]
      %406 = vst [vmem:[%s242 + $0x288] sm:$0xff] %v405
      %v407 = vld [vmem:[%s241 + $0x290] sm:$0xff]
      %408 = vst [vmem:[%s242 + $0x290] sm:$0xff] %v407
      %v409 = vld [vmem:[%s241 + $0x298] sm:$0xff]
      %410 = vst [vmem:[%s242 + $0x298] sm:$0xff] %v409
      %v411 = vld [vmem:[%s241 + $0x2a0] sm:$0xff]
      %412 = vst [vmem:[%s242 + $0x2a0] sm:$0xff] %v411
      %v413 = vld [vmem:[%s241 + $0x2a8] sm:$0xff]
      %414 = vst [vmem:[%s242 + $0x2a8] sm:$0xff] %v413
      %v415 = vld [vmem:[%s241 + $0x2b0] sm:$0xff]
      %416 = vst [vmem:[%s242 + $0x2b0] sm:$0xff] %v415
      %v417 = vld [vmem:[%s241 + $0x2b8] sm:$0xff]
      %418 = vst [vmem:[%s242 + $0x2b8] sm:$0xff] %v417
      %v419 = vld [vmem:[%s241 + $0x2c0] sm:$0xff]
      %420 = vst [vmem:[%s242 + $0x2c0] sm:$0xff] %v419
      %v421 = vld [vmem:[%s241 + $0x2c8] sm:$0xff]
      %422 = vst [vmem:[%s242 + $0x2c8] sm:$0xff] %v421
      %v423 = vld [vmem:[%s241 + $0x2d0] sm:$0xff]
      %424 = vst [vmem:[%s242 + $0x2d0] sm:$0xff] %v423
      %v425 = vld [vmem:[%s241 + $0x2d8] sm:$0xff]
      %426 = vst [vmem:[%s242 + $0x2d8] sm:$0xff] %v425
      %v427 = vld [vmem:[%s241 + $0x2e0] sm:$0xff]
      %428 = vst [vmem:[%s242 + $0x2e0] sm:$0xff] %v427
      %v429 = vld [vmem:[%s241 + $0x2e8] sm:$0xff]
      %430 = vst [vmem:[%s242 + $0x2e8] sm:$0xff] %v429
      %v431 = vld [vmem:[%s241 + $0x2f0] sm:$0xff]
      %432 = vst [vmem:[%s242 + $0x2f0] sm:$0xff] %v431
      %v433 = vld [vmem:[%s241 + $0x2f8] sm:$0xff]
      %434 = vst [vmem:[%s242 + $0x2f8] sm:$0xff] %v433
    $region49: #{context_rnn_forward.1} parent=43 // loop_footer
      %s240 = sadd.s32 1, %s236
    $region50: #{context_rnn_forward.1} parent=43 // loop_footer_branch
      %235 = sbr.rel target = $region46
    $region51: #{context_rnn_forward.1} parent=43 // loop_exit
      _
  $region44: #{context_rnn_forward.1} parent=0 // pred_fallthru
    _
  // Predicated region
  $region52: #{context_rnn_forward.1} parent=0 // pred_check
    _
  $region53: #{context_rnn_forward.1} parent=0 // pred_check_branch
    %436 = sbr.rel target = $region55
  $region54: #{context_rnn_forward.1} parent=0 // pred_region
    _
  $region55: #{context_rnn_forward.1} parent=0 // pred_fallthru
    _
  // Predicated region
  $region56: #{context_rnn_forward.1} parent=0 // pred_check
    _
  $region57: #{context_rnn_forward.1} parent=0 // pred_check_branch
    %439 = sbr.rel (0) target = $region59
  $region58: #{context_rnn_forward.1} parent=0 // pred_region
    %440 = vsyncadd %s232, 12288
  $region59: #{context_rnn_forward.1} parent=0 // pred_fallthru
    _
  %s441 = scalar_lea.sflag [#allocation6], 2
  // Predicated region
  $region60: #{context_rnn_forward.1} parent=0 // pred_check
    _
  $region61: #{context_rnn_forward.1} parent=0 // pred_check_branch
    %443 = sbr.rel (0) target = $region63
  $region62: #{context_rnn_forward.1} parent=0 // pred_region
    loop: start=0, step=1, limit=1
    $region64: #{context_rnn_forward.1} parent=62 // loop_pre_header
      _
    $region65: #{context_rnn_forward.1} parent=62 // loop_header
      %s445 = sphi 0, %s449
      %p446 = scmp.ge.s32.totalorder %s445, 1
      %s450 = sphi %s7, %s7
      %s451 = sphi [#allocation5], [#allocation5]
    $region66: #{context_rnn_forward.1} parent=62 // loop_header_branch
      %448 = sbr.rel (%p446) target = $region70
    $region67: #{context_rnn_forward.1} parent=62 // loop_body
      %v452 = vld [vmem:[%s450] sm:$0xff]
      %453 = vst [vmem:[%s451] sm:$0xff] %v452
      %v454 = vld [vmem:[%s450 + $0x8] sm:$0xff]
      %455 = vst [vmem:[%s451 + $0x8] sm:$0xff] %v454
      %v456 = vld [vmem:[%s450 + $0x10] sm:$0xff]
      %457 = vst [vmem:[%s451 + $0x10] sm:$0xff] %v456
      %v458 = vld [vmem:[%s450 + $0x18] sm:$0xff]
      %459 = vst [vmem:[%s451 + $0x18] sm:$0xff] %v458
      %v460 = vld [vmem:[%s450 + $0x20] sm:$0xff]
      %461 = vst [vmem:[%s451 + $0x20] sm:$0xff] %v460
      %v462 = vld [vmem:[%s450 + $0x28] sm:$0xff]
      %463 = vst [vmem:[%s451 + $0x28] sm:$0xff] %v462
      %v464 = vld [vmem:[%s450 + $0x30] sm:$0xff]
      %465 = vst [vmem:[%s451 + $0x30] sm:$0xff] %v464
      %v466 = vld [vmem:[%s450 + $0x38] sm:$0xff]
      %467 = vst [vmem:[%s451 + $0x38] sm:$0xff] %v466
      %v468 = vld [vmem:[%s450 + $0x40] sm:$0xff]
      %469 = vst [vmem:[%s451 + $0x40] sm:$0xff] %v468
      %v470 = vld [vmem:[%s450 + $0x48] sm:$0xff]
      %471 = vst [vmem:[%s451 + $0x48] sm:$0xff] %v470
      %v472 = vld [vmem:[%s450 + $0x50] sm:$0xff]
      %473 = vst [vmem:[%s451 + $0x50] sm:$0xff] %v472
      %v474 = vld [vmem:[%s450 + $0x58] sm:$0xff]
      %475 = vst [vmem:[%s451 + $0x58] sm:$0xff] %v474
      %v476 = vld [vmem:[%s450 + $0x60] sm:$0xff]
      %477 = vst [vmem:[%s451 + $0x60] sm:$0xff] %v476
      %v478 = vld [vmem:[%s450 + $0x68] sm:$0xff]
      %479 = vst [vmem:[%s451 + $0x68] sm:$0xff] %v478
      %v480 = vld [vmem:[%s450 + $0x70] sm:$0xff]
      %481 = vst [vmem:[%s451 + $0x70] sm:$0xff] %v480
      %v482 = vld [vmem:[%s450 + $0x78] sm:$0xff]
      %483 = vst [vmem:[%s451 + $0x78] sm:$0xff] %v482
    $region68: #{context_rnn_forward.1} parent=62 // loop_footer
      %s449 = sadd.s32 1, %s445
    $region69: #{context_rnn_forward.1} parent=62 // loop_footer_branch
      %444 = sbr.rel target = $region65
    $region70: #{context_rnn_forward.1} parent=62 // loop_exit
      _
  $region63: #{context_rnn_forward.1} parent=0 // pred_fallthru
    _
  // Predicated region
  $region71: #{context_rnn_forward.1} parent=0 // pred_check
    _
  $region72: #{context_rnn_forward.1} parent=0 // pred_check_branch
    %485 = sbr.rel target = $region74
  $region73: #{context_rnn_forward.1} parent=0 // pred_region
    _
  $region74: #{context_rnn_forward.1} parent=0 // pred_fallthru
    _
  // Predicated region
  $region75: #{context_rnn_forward.1} parent=0 // pred_check
    _
  $region76: #{context_rnn_forward.1} parent=0 // pred_check_branch
    %488 = sbr.rel (0) target = $region78
  $region77: #{context_rnn_forward.1} parent=0 // pred_region
    %489 = vsyncadd %s441, 2048
  $region78: #{context_rnn_forward.1} parent=0 // pred_fallthru
    _
  %v490 = vld [vmem:[%s0] sm:$0xff]
  %v491 = vld [vmem:[%s0 + $0x8] sm:$0xff]
  %v492 = vld [vmem:[%s0 + $0x10] sm:$0xff]
  %v493 = vld [vmem:[%s0 + $0x18] sm:$0xff]
  %v494 = vld [vmem:[%s0 + $0x20] sm:$0xff]
  %v495 = vld [vmem:[%s0 + $0x28] sm:$0xff]
  %v496 = vld [vmem:[%s0 + $0x30] sm:$0xff]
  %v497 = vld [vmem:[%s0 + $0x38] sm:$0xff]
  %v498 = vld [vmem:[%s0 + $0x40] sm:$0xff]
  %v499 = vld [vmem:[%s0 + $0x48] sm:$0xff]
  %v500 = vld [vmem:[%s0 + $0x50] sm:$0xff]
  %v501 = vld [vmem:[%s0 + $0x58] sm:$0xff]
  %v502 = vld [vmem:[%s0 + $0x60] sm:$0xff]
  %v503 = vld [vmem:[%s0 + $0x68] sm:$0xff]
  %v504 = vld [vmem:[%s0 + $0x70] sm:$0xff]
  %v505 = vld [vmem:[%s0 + $0x78] sm:$0xff]
  %v506 = vld [vmem:[%s1] sm:$0xff]
  %v507 = vld [vmem:[%s1 + $0x8] sm:$0xff]
  %v508 = vld [vmem:[%s1 + $0x10] sm:$0xff]
  %v509 = vld [vmem:[%s1 + $0x18] sm:$0xff]
  %v510 = vld [vmem:[%s1 + $0x20] sm:$0xff]
  %v511 = vld [vmem:[%s1 + $0x28] sm:$0xff]
  %v512 = vld [vmem:[%s1 + $0x30] sm:$0xff]
  %v513 = vld [vmem:[%s1 + $0x38] sm:$0xff]
  %v514 = vld [vmem:[%s1 + $0x40] sm:$0xff]
  %v515 = vld [vmem:[%s1 + $0x48] sm:$0xff]
  %v516 = vld [vmem:[%s1 + $0x50] sm:$0xff]
  %v517 = vld [vmem:[%s1 + $0x58] sm:$0xff]
  %v518 = vld [vmem:[%s1 + $0x60] sm:$0xff]
  %v519 = vld [vmem:[%s1 + $0x68] sm:$0xff]
  %v520 = vld [vmem:[%s1 + $0x70] sm:$0xff]
  %v521 = vld [vmem:[%s1 + $0x78] sm:$0xff]
  %v522 = vld [vmem:[%s1 + $0x80] sm:$0xff]
  %v523 = vld [vmem:[%s1 + $0x88] sm:$0xff]
  %v524 = vld [vmem:[%s1 + $0x90] sm:$0xff]
  %v525 = vld [vmem:[%s1 + $0x98] sm:$0xff]
  %v526 = vld [vmem:[%s1 + $0xa0] sm:$0xff]
  %v527 = vld [vmem:[%s1 + $0xa8] sm:$0xff]
  %v528 = vld [vmem:[%s1 + $0xb0] sm:$0xff]
  %v529 = vld [vmem:[%s1 + $0xb8] sm:$0xff]
  %v530 = vld [vmem:[%s1 + $0xc0] sm:$0xff]
  %v531 = vld [vmem:[%s1 + $0xc8] sm:$0xff]
  %v532 = vld [vmem:[%s1 + $0xd0] sm:$0xff]
  %v533 = vld [vmem:[%s1 + $0xd8] sm:$0xff]
  %v534 = vld [vmem:[%s1 + $0xe0] sm:$0xff]
  %v535 = vld [vmem:[%s1 + $0xe8] sm:$0xff]
  %v536 = vld [vmem:[%s1 + $0xf0] sm:$0xff]
  %v537 = vld [vmem:[%s1 + $0xf8] sm:$0xff]
  %v538 = vld [vmem:[%s1 + $0x100] sm:$0xff]
  %v539 = vld [vmem:[%s1 + $0x108] sm:$0xff]
  %v540 = vld [vmem:[%s1 + $0x110] sm:$0xff]
  %v541 = vld [vmem:[%s1 + $0x118] sm:$0xff]
  %v542 = vld [vmem:[%s1 + $0x120] sm:$0xff]
  %v543 = vld [vmem:[%s1 + $0x128] sm:$0xff]
  %v544 = vld [vmem:[%s1 + $0x130] sm:$0xff]
  %v545 = vld [vmem:[%s1 + $0x138] sm:$0xff]
  %v546 = vld [vmem:[%s1 + $0x140] sm:$0xff]
  %v547 = vld [vmem:[%s1 + $0x148] sm:$0xff]
  %v548 = vld [vmem:[%s1 + $0x150] sm:$0xff]
  %v549 = vld [vmem:[%s1 + $0x158] sm:$0xff]
  %v550 = vld [vmem:[%s1 + $0x160] sm:$0xff]
  %v551 = vld [vmem:[%s1 + $0x168] sm:$0xff]
  %v552 = vld [vmem:[%s1 + $0x170] sm:$0xff]
  %v553 = vld [vmem:[%s1 + $0x178] sm:$0xff]
  %v554 = vld [vmem:[%s1 + $0x180] sm:$0xff]
  %v555 = vld [vmem:[%s1 + $0x188] sm:$0xff]
  %v556 = vld [vmem:[%s1 + $0x190] sm:$0xff]
  %v557 = vld [vmem:[%s1 + $0x198] sm:$0xff]
  %v558 = vld [vmem:[%s1 + $0x1a0] sm:$0xff]
  %v559 = vld [vmem:[%s1 + $0x1a8] sm:$0xff]
  %v560 = vld [vmem:[%s1 + $0x1b0] sm:$0xff]
  %v561 = vld [vmem:[%s1 + $0x1b8] sm:$0xff]
  %v562 = vld [vmem:[%s1 + $0x1c0] sm:$0xff]
  %v563 = vld [vmem:[%s1 + $0x1c8] sm:$0xff]
  %v564 = vld [vmem:[%s1 + $0x1d0] sm:$0xff]
  %v565 = vld [vmem:[%s1 + $0x1d8] sm:$0xff]
  %v566 = vld [vmem:[%s1 + $0x1e0] sm:$0xff]
  %v567 = vld [vmem:[%s1 + $0x1e8] sm:$0xff]
  %v568 = vld [vmem:[%s1 + $0x1f0] sm:$0xff]
  %v569 = vld [vmem:[%s1 + $0x1f8] sm:$0xff]
  %v570 = vld [vmem:[%s1 + $0x200] sm:$0xff]
  %v571 = vld [vmem:[%s1 + $0x208] sm:$0xff]
  %v572 = vld [vmem:[%s1 + $0x210] sm:$0xff]
  %v573 = vld [vmem:[%s1 + $0x218] sm:$0xff]
  %v574 = vld [vmem:[%s1 + $0x220] sm:$0xff]
  %v575 = vld [vmem:[%s1 + $0x228] sm:$0xff]
  %v576 = vld [vmem:[%s1 + $0x230] sm:$0xff]
  %v577 = vld [vmem:[%s1 + $0x238] sm:$0xff]
  %v578 = vld [vmem:[%s1 + $0x240] sm:$0xff]
  %v579 = vld [vmem:[%s1 + $0x248] sm:$0xff]
  %v580 = vld [vmem:[%s1 + $0x250] sm:$0xff]
  %v581 = vld [vmem:[%s1 + $0x258] sm:$0xff]
  %v582 = vld [vmem:[%s1 + $0x260] sm:$0xff]
  %v583 = vld [vmem:[%s1 + $0x268] sm:$0xff]
  %v584 = vld [vmem:[%s1 + $0x270] sm:$0xff]
  %v585 = vld [vmem:[%s1 + $0x278] sm:$0xff]
  %v586 = vld [vmem:[%s1 + $0x280] sm:$0xff]
  %v587 = vld [vmem:[%s1 + $0x288] sm:$0xff]
  %v588 = vld [vmem:[%s1 + $0x290] sm:$0xff]
  %v589 = vld [vmem:[%s1 + $0x298] sm:$0xff]
  %v590 = vld [vmem:[%s1 + $0x2a0] sm:$0xff]
  %v591 = vld [vmem:[%s1 + $0x2a8] sm:$0xff]
  %v592 = vld [vmem:[%s1 + $0x2b0] sm:$0xff]
  %v593 = vld [vmem:[%s1 + $0x2b8] sm:$0xff]
  %v594 = vld [vmem:[%s1 + $0x2c0] sm:$0xff]
  %v595 = vld [vmem:[%s1 + $0x2c8] sm:$0xff]
  %v596 = vld [vmem:[%s1 + $0x2d0] sm:$0xff]
  %v597 = vld [vmem:[%s1 + $0x2d8] sm:$0xff]
  %v598 = vld [vmem:[%s1 + $0x2e0] sm:$0xff]
  %v599 = vld [vmem:[%s1 + $0x2e8] sm:$0xff]
  %v600 = vld [vmem:[%s1 + $0x2f0] sm:$0xff]
  %v601 = vld [vmem:[%s1 + $0x2f8] sm:$0xff]
  %v602 = vld [vmem:[%s1 + $0x300] sm:$0xff]
  %v603 = vld [vmem:[%s1 + $0x308] sm:$0xff]
  %v604 = vld [vmem:[%s1 + $0x310] sm:$0xff]
  %v605 = vld [vmem:[%s1 + $0x318] sm:$0xff]
  %v606 = vld [vmem:[%s1 + $0x320] sm:$0xff]
  %v607 = vld [vmem:[%s1 + $0x328] sm:$0xff]
  %v608 = vld [vmem:[%s1 + $0x330] sm:$0xff]
  %v609 = vld [vmem:[%s1 + $0x338] sm:$0xff]
  %v610 = vld [vmem:[%s1 + $0x340] sm:$0xff]
  %v611 = vld [vmem:[%s1 + $0x348] sm:$0xff]
  %v612 = vld [vmem:[%s1 + $0x350] sm:$0xff]
  %v613 = vld [vmem:[%s1 + $0x358] sm:$0xff]
  %v614 = vld [vmem:[%s1 + $0x360] sm:$0xff]
  %v615 = vld [vmem:[%s1 + $0x368] sm:$0xff]
  %v616 = vld [vmem:[%s1 + $0x370] sm:$0xff]
  %v617 = vld [vmem:[%s1 + $0x378] sm:$0xff]
  %v618 = vld [vmem:[%s1 + $0x380] sm:$0xff]
  %v619 = vld [vmem:[%s1 + $0x388] sm:$0xff]
  %v620 = vld [vmem:[%s1 + $0x390] sm:$0xff]
  %v621 = vld [vmem:[%s1 + $0x398] sm:$0xff]
  %v622 = vld [vmem:[%s1 + $0x3a0] sm:$0xff]
  %v623 = vld [vmem:[%s1 + $0x3a8] sm:$0xff]
  %v624 = vld [vmem:[%s1 + $0x3b0] sm:$0xff]
  %v625 = vld [vmem:[%s1 + $0x3b8] sm:$0xff]
  %v626 = vld [vmem:[%s1 + $0x3c0] sm:$0xff]
  %v627 = vld [vmem:[%s1 + $0x3c8] sm:$0xff]
  %v628 = vld [vmem:[%s1 + $0x3d0] sm:$0xff]
  %v629 = vld [vmem:[%s1 + $0x3d8] sm:$0xff]
  %v630 = vld [vmem:[%s1 + $0x3e0] sm:$0xff]
  %v631 = vld [vmem:[%s1 + $0x3e8] sm:$0xff]
  %v632 = vld [vmem:[%s1 + $0x3f0] sm:$0xff]
  %v633 = vld [vmem:[%s1 + $0x3f8] sm:$0xff]
  %v634 = vld [vmem:[%s1 + $0x400] sm:$0xff]
  %v635 = vld [vmem:[%s1 + $0x408] sm:$0xff]
  %v636 = vld [vmem:[%s1 + $0x410] sm:$0xff]
  %v637 = vld [vmem:[%s1 + $0x418] sm:$0xff]
  %v638 = vld [vmem:[%s1 + $0x420] sm:$0xff]
  %v639 = vld [vmem:[%s1 + $0x428] sm:$0xff]
  %v640 = vld [vmem:[%s1 + $0x430] sm:$0xff]
  %v641 = vld [vmem:[%s1 + $0x438] sm:$0xff]
  %v642 = vld [vmem:[%s1 + $0x440] sm:$0xff]
  %v643 = vld [vmem:[%s1 + $0x448] sm:$0xff]
  %v644 = vld [vmem:[%s1 + $0x450] sm:$0xff]
  %v645 = vld [vmem:[%s1 + $0x458] sm:$0xff]
  %v646 = vld [vmem:[%s1 + $0x460] sm:$0xff]
  %v647 = vld [vmem:[%s1 + $0x468] sm:$0xff]
  %v648 = vld [vmem:[%s1 + $0x470] sm:$0xff]
  %v649 = vld [vmem:[%s1 + $0x478] sm:$0xff]
  %v650 = vld [vmem:[%s1 + $0x480] sm:$0xff]
  %v651 = vld [vmem:[%s1 + $0x488] sm:$0xff]
  %v652 = vld [vmem:[%s1 + $0x490] sm:$0xff]
  %v653 = vld [vmem:[%s1 + $0x498] sm:$0xff]
  %v654 = vld [vmem:[%s1 + $0x4a0] sm:$0xff]
  %v655 = vld [vmem:[%s1 + $0x4a8] sm:$0xff]
  %v656 = vld [vmem:[%s1 + $0x4b0] sm:$0xff]
  %v657 = vld [vmem:[%s1 + $0x4b8] sm:$0xff]
  %v658 = vld [vmem:[%s1 + $0x4c0] sm:$0xff]
  %v659 = vld [vmem:[%s1 + $0x4c8] sm:$0xff]
  %v660 = vld [vmem:[%s1 + $0x4d0] sm:$0xff]
  %v661 = vld [vmem:[%s1 + $0x4d8] sm:$0xff]
  %v662 = vld [vmem:[%s1 + $0x4e0] sm:$0xff]
  %v663 = vld [vmem:[%s1 + $0x4e8] sm:$0xff]
  %v664 = vld [vmem:[%s1 + $0x4f0] sm:$0xff]
  %v665 = vld [vmem:[%s1 + $0x4f8] sm:$0xff]
  %v666 = vld [vmem:[%s1 + $0x500] sm:$0xff]
  %v667 = vld [vmem:[%s1 + $0x508] sm:$0xff]
  %v668 = vld [vmem:[%s1 + $0x510] sm:$0xff]
  %v669 = vld [vmem:[%s1 + $0x518] sm:$0xff]
  %v670 = vld [vmem:[%s1 + $0x520] sm:$0xff]
  %v671 = vld [vmem:[%s1 + $0x528] sm:$0xff]
  %v672 = vld [vmem:[%s1 + $0x530] sm:$0xff]
  %v673 = vld [vmem:[%s1 + $0x538] sm:$0xff]
  %v674 = vld [vmem:[%s1 + $0x540] sm:$0xff]
  %v675 = vld [vmem:[%s1 + $0x548] sm:$0xff]
  %v676 = vld [vmem:[%s1 + $0x550] sm:$0xff]
  %v677 = vld [vmem:[%s1 + $0x558] sm:$0xff]
  %v678 = vld [vmem:[%s1 + $0x560] sm:$0xff]
  %v679 = vld [vmem:[%s1 + $0x568] sm:$0xff]
  %v680 = vld [vmem:[%s1 + $0x570] sm:$0xff]
  %v681 = vld [vmem:[%s1 + $0x578] sm:$0xff]
  %v682 = vld [vmem:[%s1 + $0x580] sm:$0xff]
  %v683 = vld [vmem:[%s1 + $0x588] sm:$0xff]
  %v684 = vld [vmem:[%s1 + $0x590] sm:$0xff]
  %v685 = vld [vmem:[%s1 + $0x598] sm:$0xff]
  %v686 = vld [vmem:[%s1 + $0x5a0] sm:$0xff]
  %v687 = vld [vmem:[%s1 + $0x5a8] sm:$0xff]
  %v688 = vld [vmem:[%s1 + $0x5b0] sm:$0xff]
  %v689 = vld [vmem:[%s1 + $0x5b8] sm:$0xff]
  %v690 = vld [vmem:[%s1 + $0x5c0] sm:$0xff]
  %v691 = vld [vmem:[%s1 + $0x5c8] sm:$0xff]
  %v692 = vld [vmem:[%s1 + $0x5d0] sm:$0xff]
  %v693 = vld [vmem:[%s1 + $0x5d8] sm:$0xff]
  %v694 = vld [vmem:[%s1 + $0x5e0] sm:$0xff]
  %v695 = vld [vmem:[%s1 + $0x5e8] sm:$0xff]
  %v696 = vld [vmem:[%s1 + $0x5f0] sm:$0xff]
  %v697 = vld [vmem:[%s1 + $0x5f8] sm:$0xff]
  %v698 = vld [vmem:[%s1 + $0x600] sm:$0xff]
  %v699 = vld [vmem:[%s1 + $0x608] sm:$0xff]
  %v700 = vld [vmem:[%s1 + $0x610] sm:$0xff]
  %v701 = vld [vmem:[%s1 + $0x618] sm:$0xff]
  %v702 = vld [vmem:[%s1 + $0x620] sm:$0xff]
  %v703 = vld [vmem:[%s1 + $0x628] sm:$0xff]
  %v704 = vld [vmem:[%s1 + $0x630] sm:$0xff]
  %v705 = vld [vmem:[%s1 + $0x638] sm:$0xff]
  %v706 = vld [vmem:[%s1 + $0x640] sm:$0xff]
  %v707 = vld [vmem:[%s1 + $0x648] sm:$0xff]
  %v708 = vld [vmem:[%s1 + $0x650] sm:$0xff]
  %v709 = vld [vmem:[%s1 + $0x658] sm:$0xff]
  %v710 = vld [vmem:[%s1 + $0x660] sm:$0xff]
  %v711 = vld [vmem:[%s1 + $0x668] sm:$0xff]
  %v712 = vld [vmem:[%s1 + $0x670] sm:$0xff]
  %v713 = vld [vmem:[%s1 + $0x678] sm:$0xff]
  %v714 = vld [vmem:[%s1 + $0x680] sm:$0xff]
  %v715 = vld [vmem:[%s1 + $0x688] sm:$0xff]
  %v716 = vld [vmem:[%s1 + $0x690] sm:$0xff]
  %v717 = vld [vmem:[%s1 + $0x698] sm:$0xff]
  %v718 = vld [vmem:[%s1 + $0x6a0] sm:$0xff]
  %v719 = vld [vmem:[%s1 + $0x6a8] sm:$0xff]
  %v720 = vld [vmem:[%s1 + $0x6b0] sm:$0xff]
  %v721 = vld [vmem:[%s1 + $0x6b8] sm:$0xff]
  %v722 = vld [vmem:[%s1 + $0x6c0] sm:$0xff]
  %v723 = vld [vmem:[%s1 + $0x6c8] sm:$0xff]
  %v724 = vld [vmem:[%s1 + $0x6d0] sm:$0xff]
  %v725 = vld [vmem:[%s1 + $0x6d8] sm:$0xff]
  %v726 = vld [vmem:[%s1 + $0x6e0] sm:$0xff]
  %v727 = vld [vmem:[%s1 + $0x6e8] sm:$0xff]
  %v728 = vld [vmem:[%s1 + $0x6f0] sm:$0xff]
  %v729 = vld [vmem:[%s1 + $0x6f8] sm:$0xff]
  %v730 = vld [vmem:[%s1 + $0x700] sm:$0xff]
  %v731 = vld [vmem:[%s1 + $0x708] sm:$0xff]
  %v732 = vld [vmem:[%s1 + $0x710] sm:$0xff]
  %v733 = vld [vmem:[%s1 + $0x718] sm:$0xff]
  %v734 = vld [vmem:[%s1 + $0x720] sm:$0xff]
  %v735 = vld [vmem:[%s1 + $0x728] sm:$0xff]
  %v736 = vld [vmem:[%s1 + $0x730] sm:$0xff]
  %v737 = vld [vmem:[%s1 + $0x738] sm:$0xff]
  %v738 = vld [vmem:[%s1 + $0x740] sm:$0xff]
  %v739 = vld [vmem:[%s1 + $0x748] sm:$0xff]
  %v740 = vld [vmem:[%s1 + $0x750] sm:$0xff]
  %v741 = vld [vmem:[%s1 + $0x758] sm:$0xff]
  %v742 = vld [vmem:[%s1 + $0x760] sm:$0xff]
  %v743 = vld [vmem:[%s1 + $0x768] sm:$0xff]
  %v744 = vld [vmem:[%s1 + $0x770] sm:$0xff]
  %v745 = vld [vmem:[%s1 + $0x778] sm:$0xff]
  %v746 = vld [vmem:[%s1 + $0x780] sm:$0xff]
  %v747 = vld [vmem:[%s1 + $0x788] sm:$0xff]
  %v748 = vld [vmem:[%s1 + $0x790] sm:$0xff]
  %v749 = vld [vmem:[%s1 + $0x798] sm:$0xff]
  %v750 = vld [vmem:[%s1 + $0x7a0] sm:$0xff]
  %v751 = vld [vmem:[%s1 + $0x7a8] sm:$0xff]
  %v752 = vld [vmem:[%s1 + $0x7b0] sm:$0xff]
  %v753 = vld [vmem:[%s1 + $0x7b8] sm:$0xff]
  %v754 = vld [vmem:[%s1 + $0x7c0] sm:$0xff]
  %v755 = vld [vmem:[%s1 + $0x7c8] sm:$0xff]
  %v756 = vld [vmem:[%s1 + $0x7d0] sm:$0xff]
  %v757 = vld [vmem:[%s1 + $0x7d8] sm:$0xff]
  %v758 = vld [vmem:[%s1 + $0x7e0] sm:$0xff]
  %v759 = vld [vmem:[%s1 + $0x7e8] sm:$0xff]
  %v760 = vld [vmem:[%s1 + $0x7f0] sm:$0xff]
  %v761 = vld [vmem:[%s1 + $0x7f8] sm:$0xff]
  %v762 = vld [vmem:[%s1 + $0x800] sm:$0xff]
  %v763 = vld [vmem:[%s1 + $0x808] sm:$0xff]
  %v764 = vld [vmem:[%s1 + $0x810] sm:$0xff]
  %v765 = vld [vmem:[%s1 + $0x818] sm:$0xff]
  %v766 = vld [vmem:[%s1 + $0x820] sm:$0xff]
  %v767 = vld [vmem:[%s1 + $0x828] sm:$0xff]
  %v768 = vld [vmem:[%s1 + $0x830] sm:$0xff]
  %v769 = vld [vmem:[%s1 + $0x838] sm:$0xff]
  %v770 = vld [vmem:[%s1 + $0x840] sm:$0xff]
  %v771 = vld [vmem:[%s1 + $0x848] sm:$0xff]
  %v772 = vld [vmem:[%s1 + $0x850] sm:$0xff]
  %v773 = vld [vmem:[%s1 + $0x858] sm:$0xff]
  %v774 = vld [vmem:[%s1 + $0x860] sm:$0xff]
  %v775 = vld [vmem:[%s1 + $0x868] sm:$0xff]
  %v776 = vld [vmem:[%s1 + $0x870] sm:$0xff]
  %v777 = vld [vmem:[%s1 + $0x878] sm:$0xff]
  %v778 = vld [vmem:[%s1 + $0x880] sm:$0xff]
  %v779 = vld [vmem:[%s1 + $0x888] sm:$0xff]
  %v780 = vld [vmem:[%s1 + $0x890] sm:$0xff]
  %v781 = vld [vmem:[%s1 + $0x898] sm:$0xff]
  %v782 = vld [vmem:[%s1 + $0x8a0] sm:$0xff]
  %v783 = vld [vmem:[%s1 + $0x8a8] sm:$0xff]
  %v784 = vld [vmem:[%s1 + $0x8b0] sm:$0xff]
  %v785 = vld [vmem:[%s1 + $0x8b8] sm:$0xff]
  %v786 = vld [vmem:[%s1 + $0x8c0] sm:$0xff]
  %v787 = vld [vmem:[%s1 + $0x8c8] sm:$0xff]
  %v788 = vld [vmem:[%s1 + $0x8d0] sm:$0xff]
  %v789 = vld [vmem:[%s1 + $0x8d8] sm:$0xff]
  %v790 = vld [vmem:[%s1 + $0x8e0] sm:$0xff]
  %v791 = vld [vmem:[%s1 + $0x8e8] sm:$0xff]
  %v792 = vld [vmem:[%s1 + $0x8f0] sm:$0xff]
  %v793 = vld [vmem:[%s1 + $0x8f8] sm:$0xff]
  %v794 = vld [vmem:[%s1 + $0x900] sm:$0xff]
  %v795 = vld [vmem:[%s1 + $0x908] sm:$0xff]
  %v796 = vld [vmem:[%s1 + $0x910] sm:$0xff]
  %v797 = vld [vmem:[%s1 + $0x918] sm:$0xff]
  %v798 = vld [vmem:[%s1 + $0x920] sm:$0xff]
  %v799 = vld [vmem:[%s1 + $0x928] sm:$0xff]
  %v800 = vld [vmem:[%s1 + $0x930] sm:$0xff]
  %v801 = vld [vmem:[%s1 + $0x938] sm:$0xff]
  %v802 = vld [vmem:[%s1 + $0x940] sm:$0xff]
  %v803 = vld [vmem:[%s1 + $0x948] sm:$0xff]
  %v804 = vld [vmem:[%s1 + $0x950] sm:$0xff]
  %v805 = vld [vmem:[%s1 + $0x958] sm:$0xff]
  %v806 = vld [vmem:[%s1 + $0x960] sm:$0xff]
  %v807 = vld [vmem:[%s1 + $0x968] sm:$0xff]
  %v808 = vld [vmem:[%s1 + $0x970] sm:$0xff]
  %v809 = vld [vmem:[%s1 + $0x978] sm:$0xff]
  %v810 = vld [vmem:[%s1 + $0x980] sm:$0xff]
  %v811 = vld [vmem:[%s1 + $0x988] sm:$0xff]
  %v812 = vld [vmem:[%s1 + $0x990] sm:$0xff]
  %v813 = vld [vmem:[%s1 + $0x998] sm:$0xff]
  %v814 = vld [vmem:[%s1 + $0x9a0] sm:$0xff]
  %v815 = vld [vmem:[%s1 + $0x9a8] sm:$0xff]
  %v816 = vld [vmem:[%s1 + $0x9b0] sm:$0xff]
  %v817 = vld [vmem:[%s1 + $0x9b8] sm:$0xff]
  %v818 = vld [vmem:[%s1 + $0x9c0] sm:$0xff]
  %v819 = vld [vmem:[%s1 + $0x9c8] sm:$0xff]
  %v820 = vld [vmem:[%s1 + $0x9d0] sm:$0xff]
  %v821 = vld [vmem:[%s1 + $0x9d8] sm:$0xff]
  %v822 = vld [vmem:[%s1 + $0x9e0] sm:$0xff]
  %v823 = vld [vmem:[%s1 + $0x9e8] sm:$0xff]
  %v824 = vld [vmem:[%s1 + $0x9f0] sm:$0xff]
  %v825 = vld [vmem:[%s1 + $0x9f8] sm:$0xff]
  %v826 = vld [vmem:[%s1 + $0xa00] sm:$0xff]
  %v827 = vld [vmem:[%s1 + $0xa08] sm:$0xff]
  %v828 = vld [vmem:[%s1 + $0xa10] sm:$0xff]
  %v829 = vld [vmem:[%s1 + $0xa18] sm:$0xff]
  %v830 = vld [vmem:[%s1 + $0xa20] sm:$0xff]
  %v831 = vld [vmem:[%s1 + $0xa28] sm:$0xff]
  %v832 = vld [vmem:[%s1 + $0xa30] sm:$0xff]
  %v833 = vld [vmem:[%s1 + $0xa38] sm:$0xff]
  %v834 = vld [vmem:[%s1 + $0xa40] sm:$0xff]
  %v835 = vld [vmem:[%s1 + $0xa48] sm:$0xff]
  %v836 = vld [vmem:[%s1 + $0xa50] sm:$0xff]
  %v837 = vld [vmem:[%s1 + $0xa58] sm:$0xff]
  %v838 = vld [vmem:[%s1 + $0xa60] sm:$0xff]
  %v839 = vld [vmem:[%s1 + $0xa68] sm:$0xff]
  %v840 = vld [vmem:[%s1 + $0xa70] sm:$0xff]
  %v841 = vld [vmem:[%s1 + $0xa78] sm:$0xff]
  %v842 = vld [vmem:[%s1 + $0xa80] sm:$0xff]
  %v843 = vld [vmem:[%s1 + $0xa88] sm:$0xff]
  %v844 = vld [vmem:[%s1 + $0xa90] sm:$0xff]
  %v845 = vld [vmem:[%s1 + $0xa98] sm:$0xff]
  %v846 = vld [vmem:[%s1 + $0xaa0] sm:$0xff]
  %v847 = vld [vmem:[%s1 + $0xaa8] sm:$0xff]
  %v848 = vld [vmem:[%s1 + $0xab0] sm:$0xff]
  %v849 = vld [vmem:[%s1 + $0xab8] sm:$0xff]
  %v850 = vld [vmem:[%s1 + $0xac0] sm:$0xff]
  %v851 = vld [vmem:[%s1 + $0xac8] sm:$0xff]
  %v852 = vld [vmem:[%s1 + $0xad0] sm:$0xff]
  %v853 = vld [vmem:[%s1 + $0xad8] sm:$0xff]
  %v854 = vld [vmem:[%s1 + $0xae0] sm:$0xff]
  %v855 = vld [vmem:[%s1 + $0xae8] sm:$0xff]
  %v856 = vld [vmem:[%s1 + $0xaf0] sm:$0xff]
  %v857 = vld [vmem:[%s1 + $0xaf8] sm:$0xff]
  %v858 = vld [vmem:[%s1 + $0xb00] sm:$0xff]
  %v859 = vld [vmem:[%s1 + $0xb08] sm:$0xff]
  %v860 = vld [vmem:[%s1 + $0xb10] sm:$0xff]
  %v861 = vld [vmem:[%s1 + $0xb18] sm:$0xff]
  %v862 = vld [vmem:[%s1 + $0xb20] sm:$0xff]
  %v863 = vld [vmem:[%s1 + $0xb28] sm:$0xff]
  %v864 = vld [vmem:[%s1 + $0xb30] sm:$0xff]
  %v865 = vld [vmem:[%s1 + $0xb38] sm:$0xff]
  %v866 = vld [vmem:[%s1 + $0xb40] sm:$0xff]
  %v867 = vld [vmem:[%s1 + $0xb48] sm:$0xff]
  %v868 = vld [vmem:[%s1 + $0xb50] sm:$0xff]
  %v869 = vld [vmem:[%s1 + $0xb58] sm:$0xff]
  %v870 = vld [vmem:[%s1 + $0xb60] sm:$0xff]
  %v871 = vld [vmem:[%s1 + $0xb68] sm:$0xff]
  %v872 = vld [vmem:[%s1 + $0xb70] sm:$0xff]
  %v873 = vld [vmem:[%s1 + $0xb78] sm:$0xff]
  %v874 = vld [vmem:[%s1 + $0xb80] sm:$0xff]
  %v875 = vld [vmem:[%s1 + $0xb88] sm:$0xff]
  %v876 = vld [vmem:[%s1 + $0xb90] sm:$0xff]
  %v877 = vld [vmem:[%s1 + $0xb98] sm:$0xff]
  %v878 = vld [vmem:[%s1 + $0xba0] sm:$0xff]
  %v879 = vld [vmem:[%s1 + $0xba8] sm:$0xff]
  %v880 = vld [vmem:[%s1 + $0xbb0] sm:$0xff]
  %v881 = vld [vmem:[%s1 + $0xbb8] sm:$0xff]
  %v882 = vld [vmem:[%s1 + $0xbc0] sm:$0xff]
  %v883 = vld [vmem:[%s1 + $0xbc8] sm:$0xff]
  %v884 = vld [vmem:[%s1 + $0xbd0] sm:$0xff]
  %v885 = vld [vmem:[%s1 + $0xbd8] sm:$0xff]
  %v886 = vld [vmem:[%s1 + $0xbe0] sm:$0xff]
  %v887 = vld [vmem:[%s1 + $0xbe8] sm:$0xff]
  %v888 = vld [vmem:[%s1 + $0xbf0] sm:$0xff]
  %v889 = vld [vmem:[%s1 + $0xbf8] sm:$0xff]
  %v890 = vld [vmem:[%s2] sm:$0xff]
  %v891 = vld [vmem:[%s2 + $0x8] sm:$0xf]
  %v894 = vperm.slane %v890, 0
  %v895 = vperm.slane %v890, 1
  %v896 = vperm.slane %v890, 2
  %v897 = vperm.slane %v890, 3
  %v898 = vperm.slane %v890, 4
  %v899 = vperm.slane %v890, 5
  %v900 = vperm.slane %v890, 6
  %v901 = vperm.slane %v890, 7
  %v902 = vperm.slane %v891, 0
  %v903 = vperm.slane %v891, 1
  %v904 = vperm.slane %v891, 2
  %v905 = vperm.slane %v891, 3
  %v934 = vunpack.c.l.b16 %v490
  %v935 = vunpack.c.h.b16 %v490
  %v936 = vunpack.c.l.b16 %v491
  %v937 = vunpack.c.h.b16 %v491
  %v938 = vunpack.c.l.b16 %v492
  %v939 = vunpack.c.h.b16 %v492
  %v940 = vunpack.c.l.b16 %v493
  %v941 = vunpack.c.h.b16 %v493
  %v942 = vunpack.c.l.b16 %v494
  %v943 = vunpack.c.h.b16 %v494
  %v944 = vunpack.c.l.b16 %v495
  %v945 = vunpack.c.h.b16 %v495
  %v946 = vunpack.c.l.b16 %v496
  %v947 = vunpack.c.h.b16 %v496
  %v948 = vunpack.c.l.b16 %v497
  %v949 = vunpack.c.h.b16 %v497
  %v950 = vunpack.c.l.b16 %v498
  %v951 = vunpack.c.h.b16 %v498
  %v952 = vunpack.c.l.b16 %v499
  %v953 = vunpack.c.h.b16 %v499
  %v954 = vunpack.c.l.b16 %v500
  %v955 = vunpack.c.h.b16 %v500
  %v956 = vunpack.c.l.b16 %v501
  %v957 = vunpack.c.h.b16 %v501
  %v958 = vunpack.c.l.b16 %v502
  %v959 = vunpack.c.h.b16 %v502
  %v960 = vunpack.c.l.b16 %v503
  %v961 = vunpack.c.h.b16 %v503
  %v962 = vunpack.c.l.b16 %v504
  %v963 = vunpack.c.h.b16 %v504
  %v964 = vunpack.c.l.b16 %v505
  %v965 = vunpack.c.h.b16 %v505
  %v966 = vpack.c.b16 %v938, %v934
  %v967 = vpack.c.b16 %v939, %v935
  %v968 = vpack.c.b16 %v940, %v936
  %v969 = vpack.c.b16 %v941, %v937
  %v970 = vpack.c.b16 %v946, %v942
  %v971 = vpack.c.b16 %v947, %v943
  %v972 = vpack.c.b16 %v948, %v944
  %v973 = vpack.c.b16 %v949, %v945
  %v974 = vpack.c.b16 %v954, %v950
  %v975 = vpack.c.b16 %v955, %v951
  %v976 = vpack.c.b16 %v956, %v952
  %v977 = vpack.c.b16 %v957, %v953
  %v978 = vpack.c.b16 %v962, %v958
  %v979 = vpack.c.b16 %v963, %v959
  %v980 = vpack.c.b16 %v964, %v960
  %v981 = vpack.c.b16 %v965, %v961
  %v1382 = vunpack.c.l.b16 %v506
  %v1383 = vunpack.c.h.b16 %v506
  %v1384 = vunpack.c.l.b16 %v507
  %v1385 = vunpack.c.h.b16 %v507
  %v1386 = vunpack.c.l.b16 %v508
  %v1387 = vunpack.c.h.b16 %v508
  %v1388 = vunpack.c.l.b16 %v509
  %v1389 = vunpack.c.h.b16 %v509
  %v1390 = vunpack.c.l.b16 %v510
  %v1391 = vunpack.c.h.b16 %v510
  %v1392 = vunpack.c.l.b16 %v511
  %v1393 = vunpack.c.h.b16 %v511
  %v1394 = vunpack.c.l.b16 %v512
  %v1395 = vunpack.c.h.b16 %v512
  %v1396 = vunpack.c.l.b16 %v513
  %v1397 = vunpack.c.h.b16 %v513
  %v1398 = vunpack.c.l.b16 %v514
  %v1399 = vunpack.c.h.b16 %v514
  %v1400 = vunpack.c.l.b16 %v515
  %v1401 = vunpack.c.h.b16 %v515
  %v1402 = vunpack.c.l.b16 %v516
  %v1403 = vunpack.c.h.b16 %v516
  %v1404 = vunpack.c.l.b16 %v517
  %v1405 = vunpack.c.h.b16 %v517
  %v1406 = vunpack.c.l.b16 %v518
  %v1407 = vunpack.c.h.b16 %v518
  %v1408 = vunpack.c.l.b16 %v519
  %v1409 = vunpack.c.h.b16 %v519
  %v1410 = vunpack.c.l.b16 %v520
  %v1411 = vunpack.c.h.b16 %v520
  %v1412 = vunpack.c.l.b16 %v521
  %v1413 = vunpack.c.h.b16 %v521
  %v1414 = vunpack.c.l.b16 %v522
  %v1415 = vunpack.c.h.b16 %v522
  %v1416 = vunpack.c.l.b16 %v523
  %v1417 = vunpack.c.h.b16 %v523
  %v1418 = vunpack.c.l.b16 %v524
  %v1419 = vunpack.c.h.b16 %v524
  %v1420 = vunpack.c.l.b16 %v525
  %v1421 = vunpack.c.h.b16 %v525
  %v1422 = vunpack.c.l.b16 %v526
  %v1423 = vunpack.c.h.b16 %v526
  %v1424 = vunpack.c.l.b16 %v527
  %v1425 = vunpack.c.h.b16 %v527
  %v1426 = vunpack.c.l.b16 %v528
  %v1427 = vunpack.c.h.b16 %v528
  %v1428 = vunpack.c.l.b16 %v529
  %v1429 = vunpack.c.h.b16 %v529
  %v1430 = vunpack.c.l.b16 %v530
  %v1431 = vunpack.c.h.b16 %v530
  %v1432 = vunpack.c.l.b16 %v531
  %v1433 = vunpack.c.h.b16 %v531
  %v1434 = vunpack.c.l.b16 %v532
  %v1435 = vunpack.c.h.b16 %v532
  %v1436 = vunpack.c.l.b16 %v533
  %v1437 = vunpack.c.h.b16 %v533
  %v1438 = vunpack.c.l.b16 %v534
  %v1439 = vunpack.c.h.b16 %v534
  %v1440 = vunpack.c.l.b16 %v535
  %v1441 = vunpack.c.h.b16 %v535
  %v1442 = vunpack.c.l.b16 %v536
  %v1443 = vunpack.c.h.b16 %v536
  %v1444 = vunpack.c.l.b16 %v537
  %v1445 = vunpack.c.h.b16 %v537
  %v1446 = vunpack.c.l.b16 %v538
  %v1447 = vunpack.c.h.b16 %v538
  %v1448 = vunpack.c.l.b16 %v539
  %v1449 = vunpack.c.h.b16 %v539
  %v1450 = vunpack.c.l.b16 %v540
  %v1451 = vunpack.c.h.b16 %v540
  %v1452 = vunpack.c.l.b16 %v541
  %v1453 = vunpack.c.h.b16 %v541
  %v1454 = vunpack.c.l.b16 %v542
  %v1455 = vunpack.c.h.b16 %v542
  %v1456 = vunpack.c.l.b16 %v543
  %v1457 = vunpack.c.h.b16 %v543
  %v1458 = vunpack.c.l.b16 %v544
  %v1459 = vunpack.c.h.b16 %v544
  %v1460 = vunpack.c.l.b16 %v545
  %v1461 = vunpack.c.h.b16 %v545
  %v1462 = vunpack.c.l.b16 %v546
  %v1463 = vunpack.c.h.b16 %v546
  %v1464 = vunpack.c.l.b16 %v547
  %v1465 = vunpack.c.h.b16 %v547
  %v1466 = vunpack.c.l.b16 %v548
  %v1467 = vunpack.c.h.b16 %v548
  %v1468 = vunpack.c.l.b16 %v549
  %v1469 = vunpack.c.h.b16 %v549
  %v1470 = vunpack.c.l.b16 %v550
  %v1471 = vunpack.c.h.b16 %v550
  %v1472 = vunpack.c.l.b16 %v551
  %v1473 = vunpack.c.h.b16 %v551
  %v1474 = vunpack.c.l.b16 %v552
  %v1475 = vunpack.c.h.b16 %v552
  %v1476 = vunpack.c.l.b16 %v553
  %v1477 = vunpack.c.h.b16 %v553
  %v1478 = vunpack.c.l.b16 %v554
  %v1479 = vunpack.c.h.b16 %v554
  %v1480 = vunpack.c.l.b16 %v555
  %v1481 = vunpack.c.h.b16 %v555
  %v1482 = vunpack.c.l.b16 %v556
  %v1483 = vunpack.c.h.b16 %v556
  %v1484 = vunpack.c.l.b16 %v557
  %v1485 = vunpack.c.h.b16 %v557
  %v1486 = vunpack.c.l.b16 %v558
  %v1487 = vunpack.c.h.b16 %v558
  %v1488 = vunpack.c.l.b16 %v559
  %v1489 = vunpack.c.h.b16 %v559
  %v1490 = vunpack.c.l.b16 %v560
  %v1491 = vunpack.c.h.b16 %v560
  %v1492 = vunpack.c.l.b16 %v561
  %v1493 = vunpack.c.h.b16 %v561
  %v1494 = vunpack.c.l.b16 %v562
  %v1495 = vunpack.c.h.b16 %v562
  %v1496 = vunpack.c.l.b16 %v563
  %v1497 = vunpack.c.h.b16 %v563
  %v1498 = vunpack.c.l.b16 %v564
  %v1499 = vunpack.c.h.b16 %v564
  %v1500 = vunpack.c.l.b16 %v565
  %v1501 = vunpack.c.h.b16 %v565
  %v1502 = vunpack.c.l.b16 %v566
  %v1503 = vunpack.c.h.b16 %v566
  %v1504 = vunpack.c.l.b16 %v567
  %v1505 = vunpack.c.h.b16 %v567
  %v1506 = vunpack.c.l.b16 %v568
  %v1507 = vunpack.c.h.b16 %v568
  %v1508 = vunpack.c.l.b16 %v569
  %v1509 = vunpack.c.h.b16 %v569
  %v1510 = vunpack.c.l.b16 %v570
  %v1511 = vunpack.c.h.b16 %v570
  %v1512 = vunpack.c.l.b16 %v571
  %v1513 = vunpack.c.h.b16 %v571
  %v1514 = vunpack.c.l.b16 %v572
  %v1515 = vunpack.c.h.b16 %v572
  %v1516 = vunpack.c.l.b16 %v573
  %v1517 = vunpack.c.h.b16 %v573
  %v1518 = vunpack.c.l.b16 %v574
  %v1519 = vunpack.c.h.b16 %v574
  %v1520 = vunpack.c.l.b16 %v575
  %v1521 = vunpack.c.h.b16 %v575
  %v1522 = vunpack.c.l.b16 %v576
  %v1523 = vunpack.c.h.b16 %v576
  %v1524 = vunpack.c.l.b16 %v577
  %v1525 = vunpack.c.h.b16 %v577
  %v1526 = vunpack.c.l.b16 %v578
  %v1527 = vunpack.c.h.b16 %v578
  %v1528 = vunpack.c.l.b16 %v579
  %v1529 = vunpack.c.h.b16 %v579
  %v1530 = vunpack.c.l.b16 %v580
  %v1531 = vunpack.c.h.b16 %v580
  %v1532 = vunpack.c.l.b16 %v581
  %v1533 = vunpack.c.h.b16 %v581
  %v1534 = vunpack.c.l.b16 %v582
  %v1535 = vunpack.c.h.b16 %v582
  %v1536 = vunpack.c.l.b16 %v583
  %v1537 = vunpack.c.h.b16 %v583
  %v1538 = vunpack.c.l.b16 %v584
  %v1539 = vunpack.c.h.b16 %v584
  %v1540 = vunpack.c.l.b16 %v585
  %v1541 = vunpack.c.h.b16 %v585
  %v1542 = vunpack.c.l.b16 %v586
  %v1543 = vunpack.c.h.b16 %v586
  %v1544 = vunpack.c.l.b16 %v587
  %v1545 = vunpack.c.h.b16 %v587
  %v1546 = vunpack.c.l.b16 %v588
  %v1547 = vunpack.c.h.b16 %v588
  %v1548 = vunpack.c.l.b16 %v589
  %v1549 = vunpack.c.h.b16 %v589
  %v1550 = vunpack.c.l.b16 %v590
  %v1551 = vunpack.c.h.b16 %v590
  %v1552 = vunpack.c.l.b16 %v591
  %v1553 = vunpack.c.h.b16 %v591
  %v1554 = vunpack.c.l.b16 %v592
  %v1555 = vunpack.c.h.b16 %v592
  %v1556 = vunpack.c.l.b16 %v593
  %v1557 = vunpack.c.h.b16 %v593
  %v1558 = vunpack.c.l.b16 %v594
  %v1559 = vunpack.c.h.b16 %v594
  %v1560 = vunpack.c.l.b16 %v595
  %v1561 = vunpack.c.h.b16 %v595
  %v1562 = vunpack.c.l.b16 %v596
  %v1563 = vunpack.c.h.b16 %v596
  %v1564 = vunpack.c.l.b16 %v597
  %v1565 = vunpack.c.h.b16 %v597
  %v1566 = vunpack.c.l.b16 %v598
  %v1567 = vunpack.c.h.b16 %v598
  %v1568 = vunpack.c.l.b16 %v599
  %v1569 = vunpack.c.h.b16 %v599
  %v1570 = vunpack.c.l.b16 %v600
  %v1571 = vunpack.c.h.b16 %v600
  %v1572 = vunpack.c.l.b16 %v601
  %v1573 = vunpack.c.h.b16 %v601
  %v1574 = vunpack.c.l.b16 %v602
  %v1575 = vunpack.c.h.b16 %v602
  %v1576 = vunpack.c.l.b16 %v603
  %v1577 = vunpack.c.h.b16 %v603
  %v1578 = vunpack.c.l.b16 %v604
  %v1579 = vunpack.c.h.b16 %v604
  %v1580 = vunpack.c.l.b16 %v605
  %v1581 = vunpack.c.h.b16 %v605
  %v1582 = vunpack.c.l.b16 %v606
  %v1583 = vunpack.c.h.b16 %v606
  %v1584 = vunpack.c.l.b16 %v607
  %v1585 = vunpack.c.h.b16 %v607
  %v1586 = vunpack.c.l.b16 %v608
  %v1587 = vunpack.c.h.b16 %v608
  %v1588 = vunpack.c.l.b16 %v609
  %v1589 = vunpack.c.h.b16 %v609
  %v1590 = vunpack.c.l.b16 %v610
  %v1591 = vunpack.c.h.b16 %v610
  %v1592 = vunpack.c.l.b16 %v611
  %v1593 = vunpack.c.h.b16 %v611
  %v1594 = vunpack.c.l.b16 %v612
  %v1595 = vunpack.c.h.b16 %v612
  %v1596 = vunpack.c.l.b16 %v613
  %v1597 = vunpack.c.h.b16 %v613
  %v1598 = vunpack.c.l.b16 %v614
  %v1599 = vunpack.c.h.b16 %v614
  %v1600 = vunpack.c.l.b16 %v615
  %v1601 = vunpack.c.h.b16 %v615
  %v1602 = vunpack.c.l.b16 %v616
  %v1603 = vunpack.c.h.b16 %v616
  %v1604 = vunpack.c.l.b16 %v617
  %v1605 = vunpack.c.h.b16 %v617
  %v1606 = vunpack.c.l.b16 %v618
  %v1607 = vunpack.c.h.b16 %v618
  %v1608 = vunpack.c.l.b16 %v619
  %v1609 = vunpack.c.h.b16 %v619
  %v1610 = vunpack.c.l.b16 %v620
  %v1611 = vunpack.c.h.b16 %v620
  %v1612 = vunpack.c.l.b16 %v621
  %v1613 = vunpack.c.h.b16 %v621
  %v1614 = vunpack.c.l.b16 %v622
  %v1615 = vunpack.c.h.b16 %v622
  %v1616 = vunpack.c.l.b16 %v623
  %v1617 = vunpack.c.h.b16 %v623
  %v1618 = vunpack.c.l.b16 %v624
  %v1619 = vunpack.c.h.b16 %v624
  %v1620 = vunpack.c.l.b16 %v625
  %v1621 = vunpack.c.h.b16 %v625
  %v1622 = vunpack.c.l.b16 %v626
  %v1623 = vunpack.c.h.b16 %v626
  %v1624 = vunpack.c.l.b16 %v627
  %v1625 = vunpack.c.h.b16 %v627
  %v1626 = vunpack.c.l.b16 %v628
  %v1627 = vunpack.c.h.b16 %v628
  %v1628 = vunpack.c.l.b16 %v629
  %v1629 = vunpack.c.h.b16 %v629
  %v1630 = vunpack.c.l.b16 %v630
  %v1631 = vunpack.c.h.b16 %v630
  %v1632 = vunpack.c.l.b16 %v631
  %v1633 = vunpack.c.h.b16 %v631
  %v1634 = vunpack.c.l.b16 %v632
  %v1635 = vunpack.c.h.b16 %v632
  %v1636 = vunpack.c.l.b16 %v633
  %v1637 = vunpack.c.h.b16 %v633
  %v1638 = vunpack.c.l.b16 %v634
  %v1639 = vunpack.c.h.b16 %v634
  %v1640 = vunpack.c.l.b16 %v635
  %v1641 = vunpack.c.h.b16 %v635
  %v1642 = vunpack.c.l.b16 %v636
  %v1643 = vunpack.c.h.b16 %v636
  %v1644 = vunpack.c.l.b16 %v637
  %v1645 = vunpack.c.h.b16 %v637
  %v1646 = vunpack.c.l.b16 %v638
  %v1647 = vunpack.c.h.b16 %v638
  %v1648 = vunpack.c.l.b16 %v639
  %v1649 = vunpack.c.h.b16 %v639
  %v1650 = vunpack.c.l.b16 %v640
  %v1651 = vunpack.c.h.b16 %v640
  %v1652 = vunpack.c.l.b16 %v641
  %v1653 = vunpack.c.h.b16 %v641
  %v1654 = vunpack.c.l.b16 %v642
  %v1655 = vunpack.c.h.b16 %v642
  %v1656 = vunpack.c.l.b16 %v643
  %v1657 = vunpack.c.h.b16 %v643
  %v1658 = vunpack.c.l.b16 %v644
  %v1659 = vunpack.c.h.b16 %v644
  %v1660 = vunpack.c.l.b16 %v645
  %v1661 = vunpack.c.h.b16 %v645
  %v1662 = vunpack.c.l.b16 %v646
  %v1663 = vunpack.c.h.b16 %v646
  %v1664 = vunpack.c.l.b16 %v647
  %v1665 = vunpack.c.h.b16 %v647
  %v1666 = vunpack.c.l.b16 %v648
  %v1667 = vunpack.c.h.b16 %v648
  %v1668 = vunpack.c.l.b16 %v649
  %v1669 = vunpack.c.h.b16 %v649
  %v1670 = vunpack.c.l.b16 %v650
  %v1671 = vunpack.c.h.b16 %v650
  %v1672 = vunpack.c.l.b16 %v651
  %v1673 = vunpack.c.h.b16 %v651
  %v1674 = vunpack.c.l.b16 %v652
  %v1675 = vunpack.c.h.b16 %v652
  %v1676 = vunpack.c.l.b16 %v653
  %v1677 = vunpack.c.h.b16 %v653
  %v1678 = vunpack.c.l.b16 %v654
  %v1679 = vunpack.c.h.b16 %v654
  %v1680 = vunpack.c.l.b16 %v655
  %v1681 = vunpack.c.h.b16 %v655
  %v1682 = vunpack.c.l.b16 %v656
  %v1683 = vunpack.c.h.b16 %v656
  %v1684 = vunpack.c.l.b16 %v657
  %v1685 = vunpack.c.h.b16 %v657
  %v1686 = vunpack.c.l.b16 %v658
  %v1687 = vunpack.c.h.b16 %v658
  %v1688 = vunpack.c.l.b16 %v659
  %v1689 = vunpack.c.h.b16 %v659
  %v1690 = vunpack.c.l.b16 %v660
  %v1691 = vunpack.c.h.b16 %v660
  %v1692 = vunpack.c.l.b16 %v661
  %v1693 = vunpack.c.h.b16 %v661
  %v1694 = vunpack.c.l.b16 %v662
  %v1695 = vunpack.c.h.b16 %v662
  %v1696 = vunpack.c.l.b16 %v663
  %v1697 = vunpack.c.h.b16 %v663
  %v1698 = vunpack.c.l.b16 %v664
  %v1699 = vunpack.c.h.b16 %v664
  %v1700 = vunpack.c.l.b16 %v665
  %v1701 = vunpack.c.h.b16 %v665
  %v1702 = vunpack.c.l.b16 %v666
  %v1703 = vunpack.c.h.b16 %v666
  %v1704 = vunpack.c.l.b16 %v667
  %v1705 = vunpack.c.h.b16 %v667
  %v1706 = vunpack.c.l.b16 %v668
  %v1707 = vunpack.c.h.b16 %v668
  %v1708 = vunpack.c.l.b16 %v669
  %v1709 = vunpack.c.h.b16 %v669
  %v1710 = vunpack.c.l.b16 %v670
  %v1711 = vunpack.c.h.b16 %v670
  %v1712 = vunpack.c.l.b16 %v671
  %v1713 = vunpack.c.h.b16 %v671
  %v1714 = vunpack.c.l.b16 %v672
  %v1715 = vunpack.c.h.b16 %v672
  %v1716 = vunpack.c.l.b16 %v673
  %v1717 = vunpack.c.h.b16 %v673
  %v1718 = vunpack.c.l.b16 %v674
  %v1719 = vunpack.c.h.b16 %v674
  %v1720 = vunpack.c.l.b16 %v675
  %v1721 = vunpack.c.h.b16 %v675
  %v1722 = vunpack.c.l.b16 %v676
  %v1723 = vunpack.c.h.b16 %v676
  %v1724 = vunpack.c.l.b16 %v677
  %v1725 = vunpack.c.h.b16 %v677
  %v1726 = vunpack.c.l.b16 %v678
  %v1727 = vunpack.c.h.b16 %v678
  %v1728 = vunpack.c.l.b16 %v679
  %v1729 = vunpack.c.h.b16 %v679
  %v1730 = vunpack.c.l.b16 %v680
  %v1731 = vunpack.c.h.b16 %v680
  %v1732 = vunpack.c.l.b16 %v681
  %v1733 = vunpack.c.h.b16 %v681
  %v1734 = vunpack.c.l.b16 %v682
  %v1735 = vunpack.c.h.b16 %v682
  %v1736 = vunpack.c.l.b16 %v683
  %v1737 = vunpack.c.h.b16 %v683
  %v1738 = vunpack.c.l.b16 %v684
  %v1739 = vunpack.c.h.b16 %v684
  %v1740 = vunpack.c.l.b16 %v685
  %v1741 = vunpack.c.h.b16 %v685
  %v1742 = vunpack.c.l.b16 %v686
  %v1743 = vunpack.c.h.b16 %v686
  %v1744 = vunpack.c.l.b16 %v687
  %v1745 = vunpack.c.h.b16 %v687
  %v1746 = vunpack.c.l.b16 %v688
  %v1747 = vunpack.c.h.b16 %v688
  %v1748 = vunpack.c.l.b16 %v689
  %v1749 = vunpack.c.h.b16 %v689
  %v1750 = vunpack.c.l.b16 %v690
  %v1751 = vunpack.c.h.b16 %v690
  %v1752 = vunpack.c.l.b16 %v691
  %v1753 = vunpack.c.h.b16 %v691
  %v1754 = vunpack.c.l.b16 %v692
  %v1755 = vunpack.c.h.b16 %v692
  %v1756 = vunpack.c.l.b16 %v693
  %v1757 = vunpack.c.h.b16 %v693
  %v1758 = vunpack.c.l.b16 %v694
  %v1759 = vunpack.c.h.b16 %v694
  %v1760 = vunpack.c.l.b16 %v695
  %v1761 = vunpack.c.h.b16 %v695
  %v1762 = vunpack.c.l.b16 %v696
  %v1763 = vunpack.c.h.b16 %v696
  %v1764 = vunpack.c.l.b16 %v697
  %v1765 = vunpack.c.h.b16 %v697
  %v1766 = vunpack.c.l.b16 %v698
  %v1767 = vunpack.c.h.b16 %v698
  %v1768 = vunpack.c.l.b16 %v699
  %v1769 = vunpack.c.h.b16 %v699
  %v1770 = vunpack.c.l.b16 %v700
  %v1771 = vunpack.c.h.b16 %v700
  %v1772 = vunpack.c.l.b16 %v701
  %v1773 = vunpack.c.h.b16 %v701
  %v1774 = vunpack.c.l.b16 %v702
  %v1775 = vunpack.c.h.b16 %v702
  %v1776 = vunpack.c.l.b16 %v703
  %v1777 = vunpack.c.h.b16 %v703
  %v1778 = vunpack.c.l.b16 %v704
  %v1779 = vunpack.c.h.b16 %v704
  %v1780 = vunpack.c.l.b16 %v705
  %v1781 = vunpack.c.h.b16 %v705
  %v1782 = vunpack.c.l.b16 %v706
  %v1783 = vunpack.c.h.b16 %v706
  %v1784 = vunpack.c.l.b16 %v707
  %v1785 = vunpack.c.h.b16 %v707
  %v1786 = vunpack.c.l.b16 %v708
  %v1787 = vunpack.c.h.b16 %v708
  %v1788 = vunpack.c.l.b16 %v709
  %v1789 = vunpack.c.h.b16 %v709
  %v1790 = vunpack.c.l.b16 %v710
  %v1791 = vunpack.c.h.b16 %v710
  %v1792 = vunpack.c.l.b16 %v711
  %v1793 = vunpack.c.h.b16 %v711
  %v1794 = vunpack.c.l.b16 %v712
  %v1795 = vunpack.c.h.b16 %v712
  %v1796 = vunpack.c.l.b16 %v713
  %v1797 = vunpack.c.h.b16 %v713
  %v1798 = vunpack.c.l.b16 %v714
  %v1799 = vunpack.c.h.b16 %v714
  %v1800 = vunpack.c.l.b16 %v715
  %v1801 = vunpack.c.h.b16 %v715
  %v1802 = vunpack.c.l.b16 %v716
  %v1803 = vunpack.c.h.b16 %v716
  %v1804 = vunpack.c.l.b16 %v717
  %v1805 = vunpack.c.h.b16 %v717
  %v1806 = vunpack.c.l.b16 %v718
  %v1807 = vunpack.c.h.b16 %v718
  %v1808 = vunpack.c.l.b16 %v719
  %v1809 = vunpack.c.h.b16 %v719
  %v1810 = vunpack.c.l.b16 %v720
  %v1811 = vunpack.c.h.b16 %v720
  %v1812 = vunpack.c.l.b16 %v721
  %v1813 = vunpack.c.h.b16 %v721
  %v1814 = vunpack.c.l.b16 %v722
  %v1815 = vunpack.c.h.b16 %v722
  %v1816 = vunpack.c.l.b16 %v723
  %v1817 = vunpack.c.h.b16 %v723
  %v1818 = vunpack.c.l.b16 %v724
  %v1819 = vunpack.c.h.b16 %v724
  %v1820 = vunpack.c.l.b16 %v725
  %v1821 = vunpack.c.h.b16 %v725
  %v1822 = vunpack.c.l.b16 %v726
  %v1823 = vunpack.c.h.b16 %v726
  %v1824 = vunpack.c.l.b16 %v727
  %v1825 = vunpack.c.h.b16 %v727
  %v1826 = vunpack.c.l.b16 %v728
  %v1827 = vunpack.c.h.b16 %v728
  %v1828 = vunpack.c.l.b16 %v729
  %v1829 = vunpack.c.h.b16 %v729
  %v1830 = vunpack.c.l.b16 %v730
  %v1831 = vunpack.c.h.b16 %v730
  %v1832 = vunpack.c.l.b16 %v731
  %v1833 = vunpack.c.h.b16 %v731
  %v1834 = vunpack.c.l.b16 %v732
  %v1835 = vunpack.c.h.b16 %v732
  %v1836 = vunpack.c.l.b16 %v733
  %v1837 = vunpack.c.h.b16 %v733
  %v1838 = vunpack.c.l.b16 %v734
  %v1839 = vunpack.c.h.b16 %v734
  %v1840 = vunpack.c.l.b16 %v735
  %v1841 = vunpack.c.h.b16 %v735
  %v1842 = vunpack.c.l.b16 %v736
  %v1843 = vunpack.c.h.b16 %v736
  %v1844 = vunpack.c.l.b16 %v737
  %v1845 = vunpack.c.h.b16 %v737
  %v1846 = vunpack.c.l.b16 %v738
  %v1847 = vunpack.c.h.b16 %v738
  %v1848 = vunpack.c.l.b16 %v739
  %v1849 = vunpack.c.h.b16 %v739
  %v1850 = vunpack.c.l.b16 %v740
  %v1851 = vunpack.c.h.b16 %v740
  %v1852 = vunpack.c.l.b16 %v741
  %v1853 = vunpack.c.h.b16 %v741
  %v1854 = vunpack.c.l.b16 %v742
  %v1855 = vunpack.c.h.b16 %v742
  %v1856 = vunpack.c.l.b16 %v743
  %v1857 = vunpack.c.h.b16 %v743
  %v1858 = vunpack.c.l.b16 %v744
  %v1859 = vunpack.c.h.b16 %v744
  %v1860 = vunpack.c.l.b16 %v745
  %v1861 = vunpack.c.h.b16 %v745
  %v1862 = vunpack.c.l.b16 %v746
  %v1863 = vunpack.c.h.b16 %v746
  %v1864 = vunpack.c.l.b16 %v747
  %v1865 = vunpack.c.h.b16 %v747
  %v1866 = vunpack.c.l.b16 %v748
  %v1867 = vunpack.c.h.b16 %v748
  %v1868 = vunpack.c.l.b16 %v749
  %v1869 = vunpack.c.h.b16 %v749
  %v1870 = vunpack.c.l.b16 %v750
  %v1871 = vunpack.c.h.b16 %v750
  %v1872 = vunpack.c.l.b16 %v751
  %v1873 = vunpack.c.h.b16 %v751
  %v1874 = vunpack.c.l.b16 %v752
  %v1875 = vunpack.c.h.b16 %v752
  %v1876 = vunpack.c.l.b16 %v753
  %v1877 = vunpack.c.h.b16 %v753
  %v1878 = vunpack.c.l.b16 %v754
  %v1879 = vunpack.c.h.b16 %v754
  %v1880 = vunpack.c.l.b16 %v755
  %v1881 = vunpack.c.h.b16 %v755
  %v1882 = vunpack.c.l.b16 %v756
  %v1883 = vunpack.c.h.b16 %v756
  %v1884 = vunpack.c.l.b16 %v757
  %v1885 = vunpack.c.h.b16 %v757
  %v1886 = vunpack.c.l.b16 %v758
  %v1887 = vunpack.c.h.b16 %v758
  %v1888 = vunpack.c.l.b16 %v759
  %v1889 = vunpack.c.h.b16 %v759
  %v1890 = vunpack.c.l.b16 %v760
  %v1891 = vunpack.c.h.b16 %v760
  %v1892 = vunpack.c.l.b16 %v761
  %v1893 = vunpack.c.h.b16 %v761
  %v1894 = vunpack.c.l.b16 %v762
  %v1895 = vunpack.c.h.b16 %v762
  %v1896 = vunpack.c.l.b16 %v763
  %v1897 = vunpack.c.h.b16 %v763
  %v1898 = vunpack.c.l.b16 %v764
  %v1899 = vunpack.c.h.b16 %v764
  %v1900 = vunpack.c.l.b16 %v765
  %v1901 = vunpack.c.h.b16 %v765
  %v1902 = vunpack.c.l.b16 %v766
  %v1903 = vunpack.c.h.b16 %v766
  %v1904 = vunpack.c.l.b16 %v767
  %v1905 = vunpack.c.h.b16 %v767
  %v1906 = vunpack.c.l.b16 %v768
  %v1907 = vunpack.c.h.b16 %v768
  %v1908 = vunpack.c.l.b16 %v769
  %v1909 = vunpack.c.h.b16 %v769
  %v1910 = vunpack.c.l.b16 %v770
  %v1911 = vunpack.c.h.b16 %v770
  %v1912 = vunpack.c.l.b16 %v771
  %v1913 = vunpack.c.h.b16 %v771
  %v1914 = vunpack.c.l.b16 %v772
  %v1915 = vunpack.c.h.b16 %v772
  %v1916 = vunpack.c.l.b16 %v773
  %v1917 = vunpack.c.h.b16 %v773
  %v1918 = vunpack.c.l.b16 %v774
  %v1919 = vunpack.c.h.b16 %v774
  %v1920 = vunpack.c.l.b16 %v775
  %v1921 = vunpack.c.h.b16 %v775
  %v1922 = vunpack.c.l.b16 %v776
  %v1923 = vunpack.c.h.b16 %v776
  %v1924 = vunpack.c.l.b16 %v777
  %v1925 = vunpack.c.h.b16 %v777
  %v1926 = vunpack.c.l.b16 %v778
  %v1927 = vunpack.c.h.b16 %v778
  %v1928 = vunpack.c.l.b16 %v779
  %v1929 = vunpack.c.h.b16 %v779
  %v1930 = vunpack.c.l.b16 %v780
  %v1931 = vunpack.c.h.b16 %v780
  %v1932 = vunpack.c.l.b16 %v781
  %v1933 = vunpack.c.h.b16 %v781
  %v1934 = vunpack.c.l.b16 %v782
  %v1935 = vunpack.c.h.b16 %v782
  %v1936 = vunpack.c.l.b16 %v783
  %v1937 = vunpack.c.h.b16 %v783
  %v1938 = vunpack.c.l.b16 %v784
  %v1939 = vunpack.c.h.b16 %v784
  %v1940 = vunpack.c.l.b16 %v785
  %v1941 = vunpack.c.h.b16 %v785
  %v1942 = vunpack.c.l.b16 %v786
  %v1943 = vunpack.c.h.b16 %v786
  %v1944 = vunpack.c.l.b16 %v787
  %v1945 = vunpack.c.h.b16 %v787
  %v1946 = vunpack.c.l.b16 %v788
  %v1947 = vunpack.c.h.b16 %v788
  %v1948 = vunpack.c.l.b16 %v789
  %v1949 = vunpack.c.h.b16 %v789
  %v1950 = vunpack.c.l.b16 %v790
  %v1951 = vunpack.c.h.b16 %v790
  %v1952 = vunpack.c.l.b16 %v791
  %v1953 = vunpack.c.h.b16 %v791
  %v1954 = vunpack.c.l.b16 %v792
  %v1955 = vunpack.c.h.b16 %v792
  %v1956 = vunpack.c.l.b16 %v793
  %v1957 = vunpack.c.h.b16 %v793
  %v1958 = vunpack.c.l.b16 %v794
  %v1959 = vunpack.c.h.b16 %v794
  %v1960 = vunpack.c.l.b16 %v795
  %v1961 = vunpack.c.h.b16 %v795
  %v1962 = vunpack.c.l.b16 %v796
  %v1963 = vunpack.c.h.b16 %v796
  %v1964 = vunpack.c.l.b16 %v797
  %v1965 = vunpack.c.h.b16 %v797
  %v1966 = vunpack.c.l.b16 %v798
  %v1967 = vunpack.c.h.b16 %v798
  %v1968 = vunpack.c.l.b16 %v799
  %v1969 = vunpack.c.h.b16 %v799
  %v1970 = vunpack.c.l.b16 %v800
  %v1971 = vunpack.c.h.b16 %v800
  %v1972 = vunpack.c.l.b16 %v801
  %v1973 = vunpack.c.h.b16 %v801
  %v1974 = vunpack.c.l.b16 %v802
  %v1975 = vunpack.c.h.b16 %v802
  %v1976 = vunpack.c.l.b16 %v803
  %v1977 = vunpack.c.h.b16 %v803
  %v1978 = vunpack.c.l.b16 %v804
  %v1979 = vunpack.c.h.b16 %v804
  %v1980 = vunpack.c.l.b16 %v805
  %v1981 = vunpack.c.h.b16 %v805
  %v1982 = vunpack.c.l.b16 %v806
  %v1983 = vunpack.c.h.b16 %v806
  %v1984 = vunpack.c.l.b16 %v807
  %v1985 = vunpack.c.h.b16 %v807
  %v1986 = vunpack.c.l.b16 %v808
  %v1987 = vunpack.c.h.b16 %v808
  %v1988 = vunpack.c.l.b16 %v809
  %v1989 = vunpack.c.h.b16 %v809
  %v1990 = vunpack.c.l.b16 %v810
  %v1991 = vunpack.c.h.b16 %v810
  %v1992 = vunpack.c.l.b16 %v811
  %v1993 = vunpack.c.h.b16 %v811
  %v1994 = vunpack.c.l.b16 %v812
  %v1995 = vunpack.c.h.b16 %v812
  %v1996 = vunpack.c.l.b16 %v813
  %v1997 = vunpack.c.h.b16 %v813
  %v1998 = vunpack.c.l.b16 %v814
  %v1999 = vunpack.c.h.b16 %v814
  %v2000 = vunpack.c.l.b16 %v815
  %v2001 = vunpack.c.h.b16 %v815
  %v2002 = vunpack.c.l.b16 %v816
  %v2003 = vunpack.c.h.b16 %v816
  %v2004 = vunpack.c.l.b16 %v817
  %v2005 = vunpack.c.h.b16 %v817
  %v2006 = vunpack.c.l.b16 %v818
  %v2007 = vunpack.c.h.b16 %v818
  %v2008 = vunpack.c.l.b16 %v819
  %v2009 = vunpack.c.h.b16 %v819
  %v2010 = vunpack.c.l.b16 %v820
  %v2011 = vunpack.c.h.b16 %v820
  %v2012 = vunpack.c.l.b16 %v821
  %v2013 = vunpack.c.h.b16 %v821
  %v2014 = vunpack.c.l.b16 %v822
  %v2015 = vunpack.c.h.b16 %v822
  %v2016 = vunpack.c.l.b16 %v823
  %v2017 = vunpack.c.h.b16 %v823
  %v2018 = vunpack.c.l.b16 %v824
  %v2019 = vunpack.c.h.b16 %v824
  %v2020 = vunpack.c.l.b16 %v825
  %v2021 = vunpack.c.h.b16 %v825
  %v2022 = vunpack.c.l.b16 %v826
  %v2023 = vunpack.c.h.b16 %v826
  %v2024 = vunpack.c.l.b16 %v827
  %v2025 = vunpack.c.h.b16 %v827
  %v2026 = vunpack.c.l.b16 %v828
  %v2027 = vunpack.c.h.b16 %v828
  %v2028 = vunpack.c.l.b16 %v829
  %v2029 = vunpack.c.h.b16 %v829
  %v2030 = vunpack.c.l.b16 %v830
  %v2031 = vunpack.c.h.b16 %v830
  %v2032 = vunpack.c.l.b16 %v831
  %v2033 = vunpack.c.h.b16 %v831
  %v2034 = vunpack.c.l.b16 %v832
  %v2035 = vunpack.c.h.b16 %v832
  %v2036 = vunpack.c.l.b16 %v833
  %v2037 = vunpack.c.h.b16 %v833
  %v2038 = vunpack.c.l.b16 %v834
  %v2039 = vunpack.c.h.b16 %v834
  %v2040 = vunpack.c.l.b16 %v835
  %v2041 = vunpack.c.h.b16 %v835
  %v2042 = vunpack.c.l.b16 %v836
  %v2043 = vunpack.c.h.b16 %v836
  %v2044 = vunpack.c.l.b16 %v837
  %v2045 = vunpack.c.h.b16 %v837
  %v2046 = vunpack.c.l.b16 %v838
  %v2047 = vunpack.c.h.b16 %v838
  %v2048 = vunpack.c.l.b16 %v839
  %v2049 = vunpack.c.h.b16 %v839
  %v2050 = vunpack.c.l.b16 %v840
  %v2051 = vunpack.c.h.b16 %v840
  %v2052 = vunpack.c.l.b16 %v841
  %v2053 = vunpack.c.h.b16 %v841
  %v2054 = vunpack.c.l.b16 %v842
  %v2055 = vunpack.c.h.b16 %v842
  %v2056 = vunpack.c.l.b16 %v843
  %v2057 = vunpack.c.h.b16 %v843
  %v2058 = vunpack.c.l.b16 %v844
  %v2059 = vunpack.c.h.b16 %v844
  %v2060 = vunpack.c.l.b16 %v845
  %v2061 = vunpack.c.h.b16 %v845
  %v2062 = vunpack.c.l.b16 %v846
  %v2063 = vunpack.c.h.b16 %v846
  %v2064 = vunpack.c.l.b16 %v847
  %v2065 = vunpack.c.h.b16 %v847
  %v2066 = vunpack.c.l.b16 %v848
  %v2067 = vunpack.c.h.b16 %v848
  %v2068 = vunpack.c.l.b16 %v849
  %v2069 = vunpack.c.h.b16 %v849
  %v2070 = vunpack.c.l.b16 %v850
  %v2071 = vunpack.c.h.b16 %v850
  %v2072 = vunpack.c.l.b16 %v851
  %v2073 = vunpack.c.h.b16 %v851
  %v2074 = vunpack.c.l.b16 %v852
  %v2075 = vunpack.c.h.b16 %v852
  %v2076 = vunpack.c.l.b16 %v853
  %v2077 = vunpack.c.h.b16 %v853
  %v2078 = vunpack.c.l.b16 %v854
  %v2079 = vunpack.c.h.b16 %v854
  %v2080 = vunpack.c.l.b16 %v855
  %v2081 = vunpack.c.h.b16 %v855
  %v2082 = vunpack.c.l.b16 %v856
  %v2083 = vunpack.c.h.b16 %v856
  %v2084 = vunpack.c.l.b16 %v857
  %v2085 = vunpack.c.h.b16 %v857
  %v2086 = vunpack.c.l.b16 %v858
  %v2087 = vunpack.c.h.b16 %v858
  %v2088 = vunpack.c.l.b16 %v859
  %v2089 = vunpack.c.h.b16 %v859
  %v2090 = vunpack.c.l.b16 %v860
  %v2091 = vunpack.c.h.b16 %v860
  %v2092 = vunpack.c.l.b16 %v861
  %v2093 = vunpack.c.h.b16 %v861
  %v2094 = vunpack.c.l.b16 %v862
  %v2095 = vunpack.c.h.b16 %v862
  %v2096 = vunpack.c.l.b16 %v863
  %v2097 = vunpack.c.h.b16 %v863
  %v2098 = vunpack.c.l.b16 %v864
  %v2099 = vunpack.c.h.b16 %v864
  %v2100 = vunpack.c.l.b16 %v865
  %v2101 = vunpack.c.h.b16 %v865
  %v2102 = vunpack.c.l.b16 %v866
  %v2103 = vunpack.c.h.b16 %v866
  %v2104 = vunpack.c.l.b16 %v867
  %v2105 = vunpack.c.h.b16 %v867
  %v2106 = vunpack.c.l.b16 %v868
  %v2107 = vunpack.c.h.b16 %v868
  %v2108 = vunpack.c.l.b16 %v869
  %v2109 = vunpack.c.h.b16 %v869
  %v2110 = vunpack.c.l.b16 %v870
  %v2111 = vunpack.c.h.b16 %v870
  %v2112 = vunpack.c.l.b16 %v871
  %v2113 = vunpack.c.h.b16 %v871
  %v2114 = vunpack.c.l.b16 %v872
  %v2115 = vunpack.c.h.b16 %v872
  %v2116 = vunpack.c.l.b16 %v873
  %v2117 = vunpack.c.h.b16 %v873
  %v2118 = vunpack.c.l.b16 %v874
  %v2119 = vunpack.c.h.b16 %v874
  %v2120 = vunpack.c.l.b16 %v875
  %v2121 = vunpack.c.h.b16 %v875
  %v2122 = vunpack.c.l.b16 %v876
  %v2123 = vunpack.c.h.b16 %v876
  %v2124 = vunpack.c.l.b16 %v877
  %v2125 = vunpack.c.h.b16 %v877
  %v2126 = vunpack.c.l.b16 %v878
  %v2127 = vunpack.c.h.b16 %v878
  %v2128 = vunpack.c.l.b16 %v879
  %v2129 = vunpack.c.h.b16 %v879
  %v2130 = vunpack.c.l.b16 %v880
  %v2131 = vunpack.c.h.b16 %v880
  %v2132 = vunpack.c.l.b16 %v881
  %v2133 = vunpack.c.h.b16 %v881
  %v2134 = vunpack.c.l.b16 %v882
  %v2135 = vunpack.c.h.b16 %v882
  %v2136 = vunpack.c.l.b16 %v883
  %v2137 = vunpack.c.h.b16 %v883
  %v2138 = vunpack.c.l.b16 %v884
  %v2139 = vunpack.c.h.b16 %v884
  %v2140 = vunpack.c.l.b16 %v885
  %v2141 = vunpack.c.h.b16 %v885
  %v2142 = vunpack.c.l.b16 %v886
  %v2143 = vunpack.c.h.b16 %v886
  %v2144 = vunpack.c.l.b16 %v887
  %v2145 = vunpack.c.h.b16 %v887
  %v2146 = vunpack.c.l.b16 %v888
  %v2147 = vunpack.c.h.b16 %v888
  %v2148 = vunpack.c.l.b16 %v889
  %v2149 = vunpack.c.h.b16 %v889
  %v2150 = vpack.c.b16 %v1394, %v1382
  %v2151 = vpack.c.b16 %v1395, %v1383
  %v2152 = vpack.c.b16 %v1396, %v1384
  %v2153 = vpack.c.b16 %v1397, %v1385
  %v2154 = vpack.c.b16 %v1398, %v1386
  %v2155 = vpack.c.b16 %v1399, %v1387
  %v2156 = vpack.c.b16 %v1400, %v1388
  %v2157 = vpack.c.b16 %v1401, %v1389
  %v2158 = vpack.c.b16 %v1402, %v1390
  %v2159 = vpack.c.b16 %v1403, %v1391
  %v2160 = vpack.c.b16 %v1404, %v1392
  %v2161 = vpack.c.b16 %v1405, %v1393
  %v2162 = vpack.c.b16 %v1418, %v1406
  %v2163 = vpack.c.b16 %v1419, %v1407
  %v2164 = vpack.c.b16 %v1420, %v1408
  %v2165 = vpack.c.b16 %v1421, %v1409
  %v2166 = vpack.c.b16 %v1422, %v1410
  %v2167 = vpack.c.b16 %v1423, %v1411
  %v2168 = vpack.c.b16 %v1424, %v1412
  %v2169 = vpack.c.b16 %v1425, %v1413
  %v2170 = vpack.c.b16 %v1426, %v1414
  %v2171 = vpack.c.b16 %v1427, %v1415
  %v2172 = vpack.c.b16 %v1428, %v1416
  %v2173 = vpack.c.b16 %v1429, %v1417
  %v2174 = vpack.c.b16 %v1442, %v1430
  %v2175 = vpack.c.b16 %v1443, %v1431
  %v2176 = vpack.c.b16 %v1444, %v1432
  %v2177 = vpack.c.b16 %v1445, %v1433
  %v2178 = vpack.c.b16 %v1446, %v1434
  %v2179 = vpack.c.b16 %v1447, %v1435
  %v2180 = vpack.c.b16 %v1448, %v1436
  %v2181 = vpack.c.b16 %v1449, %v1437
  %v2182 = vpack.c.b16 %v1450, %v1438
  %v2183 = vpack.c.b16 %v1451, %v1439
  %v2184 = vpack.c.b16 %v1452, %v1440
  %v2185 = vpack.c.b16 %v1453, %v1441
  %v2186 = vpack.c.b16 %v1466, %v1454
  %v2187 = vpack.c.b16 %v1467, %v1455
  %v2188 = vpack.c.b16 %v1468, %v1456
  %v2189 = vpack.c.b16 %v1469, %v1457
  %v2190 = vpack.c.b16 %v1470, %v1458
  %v2191 = vpack.c.b16 %v1471, %v1459
  %v2192 = vpack.c.b16 %v1472, %v1460
  %v2193 = vpack.c.b16 %v1473, %v1461
  %v2194 = vpack.c.b16 %v1474, %v1462
  %v2195 = vpack.c.b16 %v1475, %v1463
  %v2196 = vpack.c.b16 %v1476, %v1464
  %v2197 = vpack.c.b16 %v1477, %v1465
  %v2198 = vpack.c.b16 %v1490, %v1478
  %v2199 = vpack.c.b16 %v1491, %v1479
  %v2200 = vpack.c.b16 %v1492, %v1480
  %v2201 = vpack.c.b16 %v1493, %v1481
  %v2202 = vpack.c.b16 %v1494, %v1482
  %v2203 = vpack.c.b16 %v1495, %v1483
  %v2204 = vpack.c.b16 %v1496, %v1484
  %v2205 = vpack.c.b16 %v1497, %v1485
  %v2206 = vpack.c.b16 %v1498, %v1486
  %v2207 = vpack.c.b16 %v1499, %v1487
  %v2208 = vpack.c.b16 %v1500, %v1488
  %v2209 = vpack.c.b16 %v1501, %v1489
  %v2210 = vpack.c.b16 %v1514, %v1502
  %v2211 = vpack.c.b16 %v1515, %v1503
  %v2212 = vpack.c.b16 %v1516, %v1504
  %v2213 = vpack.c.b16 %v1517, %v1505
  %v2214 = vpack.c.b16 %v1518, %v1506
  %v2215 = vpack.c.b16 %v1519, %v1507
  %v2216 = vpack.c.b16 %v1520, %v1508
  %v2217 = vpack.c.b16 %v1521, %v1509
  %v2218 = vpack.c.b16 %v1522, %v1510
  %v2219 = vpack.c.b16 %v1523, %v1511
  %v2220 = vpack.c.b16 %v1524, %v1512
  %v2221 = vpack.c.b16 %v1525, %v1513
  %v2222 = vpack.c.b16 %v1538, %v1526
  %v2223 = vpack.c.b16 %v1539, %v1527
  %v2224 = vpack.c.b16 %v1540, %v1528
  %v2225 = vpack.c.b16 %v1541, %v1529
  %v2226 = vpack.c.b16 %v1542, %v1530
  %v2227 = vpack.c.b16 %v1543, %v1531
  %v2228 = vpack.c.b16 %v1544, %v1532
  %v2229 = vpack.c.b16 %v1545, %v1533
  %v2230 = vpack.c.b16 %v1546, %v1534
  %v2231 = vpack.c.b16 %v1547, %v1535
  %v2232 = vpack.c.b16 %v1548, %v1536
  %v2233 = vpack.c.b16 %v1549, %v1537
  %v2234 = vpack.c.b16 %v1562, %v1550
  %v2235 = vpack.c.b16 %v1563, %v1551
  %v2236 = vpack.c.b16 %v1564, %v1552
  %v2237 = vpack.c.b16 %v1565, %v1553
  %v2238 = vpack.c.b16 %v1566, %v1554
  %v2239 = vpack.c.b16 %v1567, %v1555
  %v2240 = vpack.c.b16 %v1568, %v1556
  %v2241 = vpack.c.b16 %v1569, %v1557
  %v2242 = vpack.c.b16 %v1570, %v1558
  %v2243 = vpack.c.b16 %v1571, %v1559
  %v2244 = vpack.c.b16 %v1572, %v1560
  %v2245 = vpack.c.b16 %v1573, %v1561
  %v2246 = vpack.c.b16 %v1586, %v1574
  %v2247 = vpack.c.b16 %v1587, %v1575
  %v2248 = vpack.c.b16 %v1588, %v1576
  %v2249 = vpack.c.b16 %v1589, %v1577
  %v2250 = vpack.c.b16 %v1590, %v1578
  %v2251 = vpack.c.b16 %v1591, %v1579
  %v2252 = vpack.c.b16 %v1592, %v1580
  %v2253 = vpack.c.b16 %v1593, %v1581
  %v2254 = vpack.c.b16 %v1594, %v1582
  %v2255 = vpack.c.b16 %v1595, %v1583
  %v2256 = vpack.c.b16 %v1596, %v1584
  %v2257 = vpack.c.b16 %v1597, %v1585
  %v2258 = vpack.c.b16 %v1610, %v1598
  %v2259 = vpack.c.b16 %v1611, %v1599
  %v2260 = vpack.c.b16 %v1612, %v1600
  %v2261 = vpack.c.b16 %v1613, %v1601
  %v2262 = vpack.c.b16 %v1614, %v1602
  %v2263 = vpack.c.b16 %v1615, %v1603
  %v2264 = vpack.c.b16 %v1616, %v1604
  %v2265 = vpack.c.b16 %v1617, %v1605
  %v2266 = vpack.c.b16 %v1618, %v1606
  %v2267 = vpack.c.b16 %v1619, %v1607
  %v2268 = vpack.c.b16 %v1620, %v1608
  %v2269 = vpack.c.b16 %v1621, %v1609
  %v2270 = vpack.c.b16 %v1634, %v1622
  %v2271 = vpack.c.b16 %v1635, %v1623
  %v2272 = vpack.c.b16 %v1636, %v1624
  %v2273 = vpack.c.b16 %v1637, %v1625
  %v2274 = vpack.c.b16 %v1638, %v1626
  %v2275 = vpack.c.b16 %v1639, %v1627
  %v2276 = vpack.c.b16 %v1640, %v1628
  %v2277 = vpack.c.b16 %v1641, %v1629
  %v2278 = vpack.c.b16 %v1642, %v1630
  %v2279 = vpack.c.b16 %v1643, %v1631
  %v2280 = vpack.c.b16 %v1644, %v1632
  %v2281 = vpack.c.b16 %v1645, %v1633
  %v2282 = vpack.c.b16 %v1658, %v1646
  %v2283 = vpack.c.b16 %v1659, %v1647
  %v2284 = vpack.c.b16 %v1660, %v1648
  %v2285 = vpack.c.b16 %v1661, %v1649
  %v2286 = vpack.c.b16 %v1662, %v1650
  %v2287 = vpack.c.b16 %v1663, %v1651
  %v2288 = vpack.c.b16 %v1664, %v1652
  %v2289 = vpack.c.b16 %v1665, %v1653
  %v2290 = vpack.c.b16 %v1666, %v1654
  %v2291 = vpack.c.b16 %v1667, %v1655
  %v2292 = vpack.c.b16 %v1668, %v1656
  %v2293 = vpack.c.b16 %v1669, %v1657
  %v2294 = vpack.c.b16 %v1682, %v1670
  %v2295 = vpack.c.b16 %v1683, %v1671
  %v2296 = vpack.c.b16 %v1684, %v1672
  %v2297 = vpack.c.b16 %v1685, %v1673
  %v2298 = vpack.c.b16 %v1686, %v1674
  %v2299 = vpack.c.b16 %v1687, %v1675
  %v2300 = vpack.c.b16 %v1688, %v1676
  %v2301 = vpack.c.b16 %v1689, %v1677
  %v2302 = vpack.c.b16 %v1690, %v1678
  %v2303 = vpack.c.b16 %v1691, %v1679
  %v2304 = vpack.c.b16 %v1692, %v1680
  %v2305 = vpack.c.b16 %v1693, %v1681
  %v2306 = vpack.c.b16 %v1706, %v1694
  %v2307 = vpack.c.b16 %v1707, %v1695
  %v2308 = vpack.c.b16 %v1708, %v1696
  %v2309 = vpack.c.b16 %v1709, %v1697
  %v2310 = vpack.c.b16 %v1710, %v1698
  %v2311 = vpack.c.b16 %v1711, %v1699
  %v2312 = vpack.c.b16 %v1712, %v1700
  %v2313 = vpack.c.b16 %v1713, %v1701
  %v2314 = vpack.c.b16 %v1714, %v1702
  %v2315 = vpack.c.b16 %v1715, %v1703
  %v2316 = vpack.c.b16 %v1716, %v1704
  %v2317 = vpack.c.b16 %v1717, %v1705
  %v2318 = vpack.c.b16 %v1730, %v1718
  %v2319 = vpack.c.b16 %v1731, %v1719
  %v2320 = vpack.c.b16 %v1732, %v1720
  %v2321 = vpack.c.b16 %v1733, %v1721
  %v2322 = vpack.c.b16 %v1734, %v1722
  %v2323 = vpack.c.b16 %v1735, %v1723
  %v2324 = vpack.c.b16 %v1736, %v1724
  %v2325 = vpack.c.b16 %v1737, %v1725
  %v2326 = vpack.c.b16 %v1738, %v1726
  %v2327 = vpack.c.b16 %v1739, %v1727
  %v2328 = vpack.c.b16 %v1740, %v1728
  %v2329 = vpack.c.b16 %v1741, %v1729
  %v2330 = vpack.c.b16 %v1754, %v1742
  %v2331 = vpack.c.b16 %v1755, %v1743
  %v2332 = vpack.c.b16 %v1756, %v1744
  %v2333 = vpack.c.b16 %v1757, %v1745
  %v2334 = vpack.c.b16 %v1758, %v1746
  %v2335 = vpack.c.b16 %v1759, %v1747
  %v2336 = vpack.c.b16 %v1760, %v1748
  %v2337 = vpack.c.b16 %v1761, %v1749
  %v2338 = vpack.c.b16 %v1762, %v1750
  %v2339 = vpack.c.b16 %v1763, %v1751
  %v2340 = vpack.c.b16 %v1764, %v1752
  %v2341 = vpack.c.b16 %v1765, %v1753
  %v2342 = vpack.c.b16 %v1778, %v1766
  %v2343 = vpack.c.b16 %v1779, %v1767
  %v2344 = vpack.c.b16 %v1780, %v1768
  %v2345 = vpack.c.b16 %v1781, %v1769
  %v2346 = vpack.c.b16 %v1782, %v1770
  %v2347 = vpack.c.b16 %v1783, %v1771
  %v2348 = vpack.c.b16 %v1784, %v1772
  %v2349 = vpack.c.b16 %v1785, %v1773
  %v2350 = vpack.c.b16 %v1786, %v1774
  %v2351 = vpack.c.b16 %v1787, %v1775
  %v2352 = vpack.c.b16 %v1788, %v1776
  %v2353 = vpack.c.b16 %v1789, %v1777
  %v2354 = vpack.c.b16 %v1802, %v1790
  %v2355 = vpack.c.b16 %v1803, %v1791
  %v2356 = vpack.c.b16 %v1804, %v1792
  %v2357 = vpack.c.b16 %v1805, %v1793
  %v2358 = vpack.c.b16 %v1806, %v1794
  %v2359 = vpack.c.b16 %v1807, %v1795
  %v2360 = vpack.c.b16 %v1808, %v1796
  %v2361 = vpack.c.b16 %v1809, %v1797
  %v2362 = vpack.c.b16 %v1810, %v1798
  %v2363 = vpack.c.b16 %v1811, %v1799
  %v2364 = vpack.c.b16 %v1812, %v1800
  %v2365 = vpack.c.b16 %v1813, %v1801
  %v2366 = vpack.c.b16 %v1826, %v1814
  %v2367 = vpack.c.b16 %v1827, %v1815
  %v2368 = vpack.c.b16 %v1828, %v1816
  %v2369 = vpack.c.b16 %v1829, %v1817
  %v2370 = vpack.c.b16 %v1830, %v1818
  %v2371 = vpack.c.b16 %v1831, %v1819
  %v2372 = vpack.c.b16 %v1832, %v1820
  %v2373 = vpack.c.b16 %v1833, %v1821
  %v2374 = vpack.c.b16 %v1834, %v1822
  %v2375 = vpack.c.b16 %v1835, %v1823
  %v2376 = vpack.c.b16 %v1836, %v1824
  %v2377 = vpack.c.b16 %v1837, %v1825
  %v2378 = vpack.c.b16 %v1850, %v1838
  %v2379 = vpack.c.b16 %v1851, %v1839
  %v2380 = vpack.c.b16 %v1852, %v1840
  %v2381 = vpack.c.b16 %v1853, %v1841
  %v2382 = vpack.c.b16 %v1854, %v1842
  %v2383 = vpack.c.b16 %v1855, %v1843
  %v2384 = vpack.c.b16 %v1856, %v1844
  %v2385 = vpack.c.b16 %v1857, %v1845
  %v2386 = vpack.c.b16 %v1858, %v1846
  %v2387 = vpack.c.b16 %v1859, %v1847
  %v2388 = vpack.c.b16 %v1860, %v1848
  %v2389 = vpack.c.b16 %v1861, %v1849
  %v2390 = vpack.c.b16 %v1874, %v1862
  %v2391 = vpack.c.b16 %v1875, %v1863
  %v2392 = vpack.c.b16 %v1876, %v1864
  %v2393 = vpack.c.b16 %v1877, %v1865
  %v2394 = vpack.c.b16 %v1878, %v1866
  %v2395 = vpack.c.b16 %v1879, %v1867
  %v2396 = vpack.c.b16 %v1880, %v1868
  %v2397 = vpack.c.b16 %v1881, %v1869
  %v2398 = vpack.c.b16 %v1882, %v1870
  %v2399 = vpack.c.b16 %v1883, %v1871
  %v2400 = vpack.c.b16 %v1884, %v1872
  %v2401 = vpack.c.b16 %v1885, %v1873
  %v2402 = vpack.c.b16 %v1898, %v1886
  %v2403 = vpack.c.b16 %v1899, %v1887
  %v2404 = vpack.c.b16 %v1900, %v1888
  %v2405 = vpack.c.b16 %v1901, %v1889
  %v2406 = vpack.c.b16 %v1902, %v1890
  %v2407 = vpack.c.b16 %v1903, %v1891
  %v2408 = vpack.c.b16 %v1904, %v1892
  %v2409 = vpack.c.b16 %v1905, %v1893
  %v2410 = vpack.c.b16 %v1906, %v1894
  %v2411 = vpack.c.b16 %v1907, %v1895
  %v2412 = vpack.c.b16 %v1908, %v1896
  %v2413 = vpack.c.b16 %v1909, %v1897
  %v2414 = vpack.c.b16 %v1922, %v1910
  %v2415 = vpack.c.b16 %v1923, %v1911
  %v2416 = vpack.c.b16 %v1924, %v1912
  %v2417 = vpack.c.b16 %v1925, %v1913
  %v2418 = vpack.c.b16 %v1926, %v1914
  %v2419 = vpack.c.b16 %v1927, %v1915
  %v2420 = vpack.c.b16 %v1928, %v1916
  %v2421 = vpack.c.b16 %v1929, %v1917
  %v2422 = vpack.c.b16 %v1930, %v1918
  %v2423 = vpack.c.b16 %v1931, %v1919
  %v2424 = vpack.c.b16 %v1932, %v1920
  %v2425 = vpack.c.b16 %v1933, %v1921
  %v2426 = vpack.c.b16 %v1946, %v1934
  %v2427 = vpack.c.b16 %v1947, %v1935
  %v2428 = vpack.c.b16 %v1948, %v1936
  %v2429 = vpack.c.b16 %v1949, %v1937
  %v2430 = vpack.c.b16 %v1950, %v1938
  %v2431 = vpack.c.b16 %v1951, %v1939
  %v2432 = vpack.c.b16 %v1952, %v1940
  %v2433 = vpack.c.b16 %v1953, %v1941
  %v2434 = vpack.c.b16 %v1954, %v1942
  %v2435 = vpack.c.b16 %v1955, %v1943
  %v2436 = vpack.c.b16 %v1956, %v1944
  %v2437 = vpack.c.b16 %v1957, %v1945
  %v2438 = vpack.c.b16 %v1970, %v1958
  %v2439 = vpack.c.b16 %v1971, %v1959
  %v2440 = vpack.c.b16 %v1972, %v1960
  %v2441 = vpack.c.b16 %v1973, %v1961
  %v2442 = vpack.c.b16 %v1974, %v1962
  %v2443 = vpack.c.b16 %v1975, %v1963
  %v2444 = vpack.c.b16 %v1976, %v1964
  %v2445 = vpack.c.b16 %v1977, %v1965
  %v2446 = vpack.c.b16 %v1978, %v1966
  %v2447 = vpack.c.b16 %v1979, %v1967
  %v2448 = vpack.c.b16 %v1980, %v1968
  %v2449 = vpack.c.b16 %v1981, %v1969
  %v2450 = vpack.c.b16 %v1994, %v1982
  %v2451 = vpack.c.b16 %v1995, %v1983
  %v2452 = vpack.c.b16 %v1996, %v1984
  %v2453 = vpack.c.b16 %v1997, %v1985
  %v2454 = vpack.c.b16 %v1998, %v1986
  %v2455 = vpack.c.b16 %v1999, %v1987
  %v2456 = vpack.c.b16 %v2000, %v1988
  %v2457 = vpack.c.b16 %v2001, %v1989
  %v2458 = vpack.c.b16 %v2002, %v1990
  %v2459 = vpack.c.b16 %v2003, %v1991
  %v2460 = vpack.c.b16 %v2004, %v1992
  %v2461 = vpack.c.b16 %v2005, %v1993
  %v2462 = vpack.c.b16 %v2018, %v2006
  %v2463 = vpack.c.b16 %v2019, %v2007
  %v2464 = vpack.c.b16 %v2020, %v2008
  %v2465 = vpack.c.b16 %v2021, %v2009
  %v2466 = vpack.c.b16 %v2022, %v2010
  %v2467 = vpack.c.b16 %v2023, %v2011
  %v2468 = vpack.c.b16 %v2024, %v2012
  %v2469 = vpack.c.b16 %v2025, %v2013
  %v2470 = vpack.c.b16 %v2026, %v2014
  %v2471 = vpack.c.b16 %v2027, %v2015
  %v2472 = vpack.c.b16 %v2028, %v2016
  %v2473 = vpack.c.b16 %v2029, %v2017
  %v2474 = vpack.c.b16 %v2042, %v2030
  %v2475 = vpack.c.b16 %v2043, %v2031
  %v2476 = vpack.c.b16 %v2044, %v2032
  %v2477 = vpack.c.b16 %v2045, %v2033
  %v2478 = vpack.c.b16 %v2046, %v2034
  %v2479 = vpack.c.b16 %v2047, %v2035
  %v2480 = vpack.c.b16 %v2048, %v2036
  %v2481 = vpack.c.b16 %v2049, %v2037
  %v2482 = vpack.c.b16 %v2050, %v2038
  %v2483 = vpack.c.b16 %v2051, %v2039
  %v2484 = vpack.c.b16 %v2052, %v2040
  %v2485 = vpack.c.b16 %v2053, %v2041
  %v2486 = vpack.c.b16 %v2066, %v2054
  %v2487 = vpack.c.b16 %v2067, %v2055
  %v2488 = vpack.c.b16 %v2068, %v2056
  %v2489 = vpack.c.b16 %v2069, %v2057
  %v2490 = vpack.c.b16 %v2070, %v2058
  %v2491 = vpack.c.b16 %v2071, %v2059
  %v2492 = vpack.c.b16 %v2072, %v2060
  %v2493 = vpack.c.b16 %v2073, %v2061
  %v2494 = vpack.c.b16 %v2074, %v2062
  %v2495 = vpack.c.b16 %v2075, %v2063
  %v2496 = vpack.c.b16 %v2076, %v2064
  %v2497 = vpack.c.b16 %v2077, %v2065
  %v2498 = vpack.c.b16 %v2090, %v2078
  %v2499 = vpack.c.b16 %v2091, %v2079
  %v2500 = vpack.c.b16 %v2092, %v2080
  %v2501 = vpack.c.b16 %v2093, %v2081
  %v2502 = vpack.c.b16 %v2094, %v2082
  %v2503 = vpack.c.b16 %v2095, %v2083
  %v2504 = vpack.c.b16 %v2096, %v2084
  %v2505 = vpack.c.b16 %v2097, %v2085
  %v2506 = vpack.c.b16 %v2098, %v2086
  %v2507 = vpack.c.b16 %v2099, %v2087
  %v2508 = vpack.c.b16 %v2100, %v2088
  %v2509 = vpack.c.b16 %v2101, %v2089
  %v2510 = vpack.c.b16 %v2114, %v2102
  %v2511 = vpack.c.b16 %v2115, %v2103
  %v2512 = vpack.c.b16 %v2116, %v2104
  %v2513 = vpack.c.b16 %v2117, %v2105
  %v2514 = vpack.c.b16 %v2118, %v2106
  %v2515 = vpack.c.b16 %v2119, %v2107
  %v2516 = vpack.c.b16 %v2120, %v2108
  %v2517 = vpack.c.b16 %v2121, %v2109
  %v2518 = vpack.c.b16 %v2122, %v2110
  %v2519 = vpack.c.b16 %v2123, %v2111
  %v2520 = vpack.c.b16 %v2124, %v2112
  %v2521 = vpack.c.b16 %v2125, %v2113
  %v2522 = vpack.c.b16 %v2138, %v2126
  %v2523 = vpack.c.b16 %v2139, %v2127
  %v2524 = vpack.c.b16 %v2140, %v2128
  %v2525 = vpack.c.b16 %v2141, %v2129
  %v2526 = vpack.c.b16 %v2142, %v2130
  %v2527 = vpack.c.b16 %v2143, %v2131
  %v2528 = vpack.c.b16 %v2144, %v2132
  %v2529 = vpack.c.b16 %v2145, %v2133
  %v2530 = vpack.c.b16 %v2146, %v2134
  %v2531 = vpack.c.b16 %v2147, %v2135
  %v2532 = vpack.c.b16 %v2148, %v2136
  %v2533 = vpack.c.b16 %v2149, %v2137
  %2918 = vmatpush.bf16.msra.mxu0 %v2234
  %2919 = vmatpush.bf16.msra.mxu0 %v2222
  %2920 = vmatpush.bf16.msra.mxu0 %v2210
  %2921 = vmatpush.bf16.msra.mxu0 %v2198
  %2922 = vmatpush.bf16.msra.mxu0 %v2186
  %2923 = vmatpush.bf16.msra.mxu0 %v2174
  %2924 = vmatpush.bf16.msra.mxu0 %v2162
  %2925 = vmatpush.bf16.msra.mxu0 %v2150
  %2926 = vmatmul.bf16.gmra.mxu0 %v966
  %v2927 = vpop.f32.mrf.mxu0
  %v2928 = vadd.f32 %v894, %v2927
  %v2929 = vpop.f32.mrf.mxu0
  %v2930 = vadd.f32 %v894, %v2929
  %2931 = vmatmul.bf16.gmra.mxu0 %v970
  %v2932 = vpop.f32.mrf.mxu0
  %v2933 = vadd.f32 %v894, %v2932
  %v2934 = vpop.f32.mrf.mxu0
  %v2935 = vadd.f32 %v894, %v2934
  %2936 = vmatmul.bf16.gmra.mxu0 %v974
  %v2937 = vpop.f32.mrf.mxu0
  %v2938 = vadd.f32 %v894, %v2937
  %v2939 = vpop.f32.mrf.mxu0
  %v2940 = vadd.f32 %v894, %v2939
  %2941 = vmatmul.bf16.gmra.mxu0 %v978
  %v2942 = vpop.f32.mrf.mxu0
  %v2943 = vadd.f32 %v894, %v2942
  %v2944 = vpop.f32.mrf.mxu0
  %v2945 = vadd.f32 %v894, %v2944
  %2946 = vdwg.mxu0
  %2947 = vmatpush.bf16.msra.mxu0 %v2330
  %2948 = vmatpush.bf16.msra.mxu0 %v2318
  %2949 = vmatpush.bf16.msra.mxu0 %v2306
  %2950 = vmatpush.bf16.msra.mxu0 %v2294
  %2951 = vmatpush.bf16.msra.mxu0 %v2282
  %2952 = vmatpush.bf16.msra.mxu0 %v2270
  %2953 = vmatpush.bf16.msra.mxu0 %v2258
  %2954 = vmatpush.bf16.msra.mxu0 %v2246
  %2955 = vmatmul.bf16.gmra.mxu0 %v967
  %v2956 = vpop.f32.mrf.mxu0
  %v2957 = vadd.f32 %v2928, %v2956
  %v2958 = vpop.f32.mrf.mxu0
  %v2959 = vadd.f32 %v2930, %v2958
  %2960 = vmatmul.bf16.gmra.mxu0 %v971
  %v2961 = vpop.f32.mrf.mxu0
  %v2962 = vadd.f32 %v2933, %v2961
  %v2963 = vpop.f32.mrf.mxu0
  %v2964 = vadd.f32 %v2935, %v2963
  %2965 = vmatmul.bf16.gmra.mxu0 %v975
  %v2966 = vpop.f32.mrf.mxu0
  %v2967 = vadd.f32 %v2938, %v2966
  %v2968 = vpop.f32.mrf.mxu0
  %v2969 = vadd.f32 %v2940, %v2968
  %2970 = vmatmul.bf16.gmra.mxu0 %v979
  %v2971 = vpop.f32.mrf.mxu0
  %v2972 = vadd.f32 %v2943, %v2971
  %v2973 = vpop.f32.mrf.mxu0
  %v2974 = vadd.f32 %v2945, %v2973
  %2975 = vdwg.mxu0
  %2976 = vmatpush.bf16.msra.mxu0 %v2426
  %2977 = vmatpush.bf16.msra.mxu0 %v2414
  %2978 = vmatpush.bf16.msra.mxu0 %v2402
  %2979 = vmatpush.bf16.msra.mxu0 %v2390
  %2980 = vmatpush.bf16.msra.mxu0 %v2378
  %2981 = vmatpush.bf16.msra.mxu0 %v2366
  %2982 = vmatpush.bf16.msra.mxu0 %v2354
  %2983 = vmatpush.bf16.msra.mxu0 %v2342
  %2984 = vmatmul.bf16.gmra.mxu0 %v968
  %v2985 = vpop.f32.mrf.mxu0
  %v2986 = vadd.f32 %v2957, %v2985
  %v2987 = vpop.f32.mrf.mxu0
  %v2988 = vadd.f32 %v2959, %v2987
  %2989 = vmatmul.bf16.gmra.mxu0 %v972
  %v2990 = vpop.f32.mrf.mxu0
  %v2991 = vadd.f32 %v2962, %v2990
  %v2992 = vpop.f32.mrf.mxu0
  %v2993 = vadd.f32 %v2964, %v2992
  %2994 = vmatmul.bf16.gmra.mxu0 %v976
  %v2995 = vpop.f32.mrf.mxu0
  %v2996 = vadd.f32 %v2967, %v2995
  %v2997 = vpop.f32.mrf.mxu0
  %v2998 = vadd.f32 %v2969, %v2997
  %2999 = vmatmul.bf16.gmra.mxu0 %v980
  %v3000 = vpop.f32.mrf.mxu0
  %v3001 = vadd.f32 %v2972, %v3000
  %v3002 = vpop.f32.mrf.mxu0
  %v3003 = vadd.f32 %v2974, %v3002
  %3004 = vdwg.mxu0
  %3005 = vmatpush.bf16.msra.mxu0 %v2522
  %3006 = vmatpush.bf16.msra.mxu0 %v2510
  %3007 = vmatpush.bf16.msra.mxu0 %v2498
  %3008 = vmatpush.bf16.msra.mxu0 %v2486
  %3009 = vmatpush.bf16.msra.mxu0 %v2474
  %3010 = vmatpush.bf16.msra.mxu0 %v2462
  %3011 = vmatpush.bf16.msra.mxu0 %v2450
  %3012 = vmatpush.bf16.msra.mxu0 %v2438
  %3013 = vmatmul.bf16.gmra.mxu0 %v969
  %v3014 = vpop.f32.mrf.mxu0
  %v3015 = vadd.f32 %v2986, %v3014
  %v3016 = vpop.f32.mrf.mxu0
  %v3017 = vadd.f32 %v2988, %v3016
  %3018 = vmatmul.bf16.gmra.mxu0 %v973
  %v3019 = vpop.f32.mrf.mxu0
  %v3020 = vadd.f32 %v2991, %v3019
  %v3021 = vpop.f32.mrf.mxu0
  %v3022 = vadd.f32 %v2993, %v3021
  %3023 = vmatmul.bf16.gmra.mxu0 %v977
  %v3024 = vpop.f32.mrf.mxu0
  %v3025 = vadd.f32 %v2996, %v3024
  %v3026 = vpop.f32.mrf.mxu0
  %v3027 = vadd.f32 %v2998, %v3026
  %3028 = vmatmul.bf16.gmra.mxu0 %v981
  %v3029 = vpop.f32.mrf.mxu0
  %v3030 = vadd.f32 %v3001, %v3029
  %v3031 = vpop.f32.mrf.mxu0
  %v3032 = vadd.f32 %v3003, %v3031
  %3033 = vdwg.mxu0
  %3034 = vmatpush.bf16.msra.mxu0 %v2235
  %3035 = vmatpush.bf16.msra.mxu0 %v2223
  %3036 = vmatpush.bf16.msra.mxu0 %v2211
  %3037 = vmatpush.bf16.msra.mxu0 %v2199
  %3038 = vmatpush.bf16.msra.mxu0 %v2187
  %3039 = vmatpush.bf16.msra.mxu0 %v2175
  %3040 = vmatpush.bf16.msra.mxu0 %v2163
  %3041 = vmatpush.bf16.msra.mxu0 %v2151
  %3042 = vmatmul.bf16.gmra.mxu0 %v966
  %v3043 = vpop.f32.mrf.mxu0
  %v3044 = vadd.f32 %v895, %v3043
  %v3045 = vpop.f32.mrf.mxu0
  %v3046 = vadd.f32 %v895, %v3045
  %3047 = vmatmul.bf16.gmra.mxu0 %v970
  %v3048 = vpop.f32.mrf.mxu0
  %v3049 = vadd.f32 %v895, %v3048
  %v3050 = vpop.f32.mrf.mxu0
  %v3051 = vadd.f32 %v895, %v3050
  %3052 = vmatmul.bf16.gmra.mxu0 %v974
  %v3053 = vpop.f32.mrf.mxu0
  %v3054 = vadd.f32 %v895, %v3053
  %v3055 = vpop.f32.mrf.mxu0
  %v3056 = vadd.f32 %v895, %v3055
  %3057 = vmatmul.bf16.gmra.mxu0 %v978
  %v3058 = vpop.f32.mrf.mxu0
  %v3059 = vadd.f32 %v895, %v3058
  %v3060 = vpop.f32.mrf.mxu0
  %v3061 = vadd.f32 %v895, %v3060
  %3062 = vdwg.mxu0
  %3063 = vmatpush.bf16.msra.mxu0 %v2331
  %3064 = vmatpush.bf16.msra.mxu0 %v2319
  %3065 = vmatpush.bf16.msra.mxu0 %v2307
  %3066 = vmatpush.bf16.msra.mxu0 %v2295
  %3067 = vmatpush.bf16.msra.mxu0 %v2283
  %3068 = vmatpush.bf16.msra.mxu0 %v2271
  %3069 = vmatpush.bf16.msra.mxu0 %v2259
  %3070 = vmatpush.bf16.msra.mxu0 %v2247
  %3071 = vmatmul.bf16.gmra.mxu0 %v967
  %v3072 = vpop.f32.mrf.mxu0
  %v3073 = vadd.f32 %v3044, %v3072
  %v3074 = vpop.f32.mrf.mxu0
  %v3075 = vadd.f32 %v3046, %v3074
  %3076 = vmatmul.bf16.gmra.mxu0 %v971
  %v3077 = vpop.f32.mrf.mxu0
  %v3078 = vadd.f32 %v3049, %v3077
  %v3079 = vpop.f32.mrf.mxu0
  %v3080 = vadd.f32 %v3051, %v3079
  %3081 = vmatmul.bf16.gmra.mxu0 %v975
  %v3082 = vpop.f32.mrf.mxu0
  %v3083 = vadd.f32 %v3054, %v3082
  %v3084 = vpop.f32.mrf.mxu0
  %v3085 = vadd.f32 %v3056, %v3084
  %3086 = vmatmul.bf16.gmra.mxu0 %v979
  %v3087 = vpop.f32.mrf.mxu0
  %v3088 = vadd.f32 %v3059, %v3087
  %v3089 = vpop.f32.mrf.mxu0
  %v3090 = vadd.f32 %v3061, %v3089
  %3091 = vdwg.mxu0
  %3092 = vmatpush.bf16.msra.mxu0 %v2427
  %3093 = vmatpush.bf16.msra.mxu0 %v2415
  %3094 = vmatpush.bf16.msra.mxu0 %v2403
  %3095 = vmatpush.bf16.msra.mxu0 %v2391
  %3096 = vmatpush.bf16.msra.mxu0 %v2379
  %3097 = vmatpush.bf16.msra.mxu0 %v2367
  %3098 = vmatpush.bf16.msra.mxu0 %v2355
  %3099 = vmatpush.bf16.msra.mxu0 %v2343
  %3100 = vmatmul.bf16.gmra.mxu0 %v968
  %v3101 = vpop.f32.mrf.mxu0
  %v3102 = vadd.f32 %v3073, %v3101
  %v3103 = vpop.f32.mrf.mxu0
  %v3104 = vadd.f32 %v3075, %v3103
  %3105 = vmatmul.bf16.gmra.mxu0 %v972
  %v3106 = vpop.f32.mrf.mxu0
  %v3107 = vadd.f32 %v3078, %v3106
  %v3108 = vpop.f32.mrf.mxu0
  %v3109 = vadd.f32 %v3080, %v3108
  %3110 = vmatmul.bf16.gmra.mxu0 %v976
  %v3111 = vpop.f32.mrf.mxu0
  %v3112 = vadd.f32 %v3083, %v3111
  %v3113 = vpop.f32.mrf.mxu0
  %v3114 = vadd.f32 %v3085, %v3113
  %3115 = vmatmul.bf16.gmra.mxu0 %v980
  %v3116 = vpop.f32.mrf.mxu0
  %v3117 = vadd.f32 %v3088, %v3116
  %v3118 = vpop.f32.mrf.mxu0
  %v3119 = vadd.f32 %v3090, %v3118
  %3120 = vdwg.mxu0
  %3121 = vmatpush.bf16.msra.mxu0 %v2523
  %3122 = vmatpush.bf16.msra.mxu0 %v2511
  %3123 = vmatpush.bf16.msra.mxu0 %v2499
  %3124 = vmatpush.bf16.msra.mxu0 %v2487
  %3125 = vmatpush.bf16.msra.mxu0 %v2475
  %3126 = vmatpush.bf16.msra.mxu0 %v2463
  %3127 = vmatpush.bf16.msra.mxu0 %v2451
  %3128 = vmatpush.bf16.msra.mxu0 %v2439
  %3129 = vmatmul.bf16.gmra.mxu0 %v969
  %v3130 = vpop.f32.mrf.mxu0
  %v3131 = vadd.f32 %v3102, %v3130
  %v3132 = vpop.f32.mrf.mxu0
  %v3133 = vadd.f32 %v3104, %v3132
  %3134 = vmatmul.bf16.gmra.mxu0 %v973
  %v3135 = vpop.f32.mrf.mxu0
  %v3136 = vadd.f32 %v3107, %v3135
  %v3137 = vpop.f32.mrf.mxu0
  %v3138 = vadd.f32 %v3109, %v3137
  %3139 = vmatmul.bf16.gmra.mxu0 %v977
  %v3140 = vpop.f32.mrf.mxu0
  %v3141 = vadd.f32 %v3112, %v3140
  %v3142 = vpop.f32.mrf.mxu0
  %v3143 = vadd.f32 %v3114, %v3142
  %3144 = vmatmul.bf16.gmra.mxu0 %v981
  %v3145 = vpop.f32.mrf.mxu0
  %v3146 = vadd.f32 %v3117, %v3145
  %v3147 = vpop.f32.mrf.mxu0
  %v3148 = vadd.f32 %v3119, %v3147
  %3149 = vdwg.mxu0
  %3150 = vmatpush.bf16.msra.mxu0 %v2236
  %3151 = vmatpush.bf16.msra.mxu0 %v2224
  %3152 = vmatpush.bf16.msra.mxu0 %v2212
  %3153 = vmatpush.bf16.msra.mxu0 %v2200
  %3154 = vmatpush.bf16.msra.mxu0 %v2188
  %3155 = vmatpush.bf16.msra.mxu0 %v2176
  %3156 = vmatpush.bf16.msra.mxu0 %v2164
  %3157 = vmatpush.bf16.msra.mxu0 %v2152
  %3158 = vmatmul.bf16.gmra.mxu0 %v966
  %v3159 = vpop.f32.mrf.mxu0
  %v3160 = vadd.f32 %v896, %v3159
  %v3161 = vpop.f32.mrf.mxu0
  %v3162 = vadd.f32 %v896, %v3161
  %3163 = vmatmul.bf16.gmra.mxu0 %v970
  %v3164 = vpop.f32.mrf.mxu0
  %v3165 = vadd.f32 %v896, %v3164
  %v3166 = vpop.f32.mrf.mxu0
  %v3167 = vadd.f32 %v896, %v3166
  %3168 = vmatmul.bf16.gmra.mxu0 %v974
  %v3169 = vpop.f32.mrf.mxu0
  %v3170 = vadd.f32 %v896, %v3169
  %v3171 = vpop.f32.mrf.mxu0
  %v3172 = vadd.f32 %v896, %v3171
  %3173 = vmatmul.bf16.gmra.mxu0 %v978
  %v3174 = vpop.f32.mrf.mxu0
  %v3175 = vadd.f32 %v896, %v3174
  %v3176 = vpop.f32.mrf.mxu0
  %v3177 = vadd.f32 %v896, %v3176
  %3178 = vdwg.mxu0
  %3179 = vmatpush.bf16.msra.mxu0 %v2332
  %3180 = vmatpush.bf16.msra.mxu0 %v2320
  %3181 = vmatpush.bf16.msra.mxu0 %v2308
  %3182 = vmatpush.bf16.msra.mxu0 %v2296
  %3183 = vmatpush.bf16.msra.mxu0 %v2284
  %3184 = vmatpush.bf16.msra.mxu0 %v2272
  %3185 = vmatpush.bf16.msra.mxu0 %v2260
  %3186 = vmatpush.bf16.msra.mxu0 %v2248
  %3187 = vmatmul.bf16.gmra.mxu0 %v967
  %v3188 = vpop.f32.mrf.mxu0
  %v3189 = vadd.f32 %v3160, %v3188
  %v3190 = vpop.f32.mrf.mxu0
  %v3191 = vadd.f32 %v3162, %v3190
  %3192 = vmatmul.bf16.gmra.mxu0 %v971
  %v3193 = vpop.f32.mrf.mxu0
  %v3194 = vadd.f32 %v3165, %v3193
  %v3195 = vpop.f32.mrf.mxu0
  %v3196 = vadd.f32 %v3167, %v3195
  %3197 = vmatmul.bf16.gmra.mxu0 %v975
  %v3198 = vpop.f32.mrf.mxu0
  %v3199 = vadd.f32 %v3170, %v3198
  %v3200 = vpop.f32.mrf.mxu0
  %v3201 = vadd.f32 %v3172, %v3200
  %3202 = vmatmul.bf16.gmra.mxu0 %v979
  %v3203 = vpop.f32.mrf.mxu0
  %v3204 = vadd.f32 %v3175, %v3203
  %v3205 = vpop.f32.mrf.mxu0
  %v3206 = vadd.f32 %v3177, %v3205
  %3207 = vdwg.mxu0
  %3208 = vmatpush.bf16.msra.mxu0 %v2428
  %3209 = vmatpush.bf16.msra.mxu0 %v2416
  %3210 = vmatpush.bf16.msra.mxu0 %v2404
  %3211 = vmatpush.bf16.msra.mxu0 %v2392
  %3212 = vmatpush.bf16.msra.mxu0 %v2380
  %3213 = vmatpush.bf16.msra.mxu0 %v2368
  %3214 = vmatpush.bf16.msra.mxu0 %v2356
  %3215 = vmatpush.bf16.msra.mxu0 %v2344
  %3216 = vmatmul.bf16.gmra.mxu0 %v968
  %v3217 = vpop.f32.mrf.mxu0
  %v3218 = vadd.f32 %v3189, %v3217
  %v3219 = vpop.f32.mrf.mxu0
  %v3220 = vadd.f32 %v3191, %v3219
  %3221 = vmatmul.bf16.gmra.mxu0 %v972
  %v3222 = vpop.f32.mrf.mxu0
  %v3223 = vadd.f32 %v3194, %v3222
  %v3224 = vpop.f32.mrf.mxu0
  %v3225 = vadd.f32 %v3196, %v3224
  %3226 = vmatmul.bf16.gmra.mxu0 %v976
  %v3227 = vpop.f32.mrf.mxu0
  %v3228 = vadd.f32 %v3199, %v3227
  %v3229 = vpop.f32.mrf.mxu0
  %v3230 = vadd.f32 %v3201, %v3229
  %3231 = vmatmul.bf16.gmra.mxu0 %v980
  %v3232 = vpop.f32.mrf.mxu0
  %v3233 = vadd.f32 %v3204, %v3232
  %v3234 = vpop.f32.mrf.mxu0
  %v3235 = vadd.f32 %v3206, %v3234
  %3236 = vdwg.mxu0
  %3237 = vmatpush.bf16.msra.mxu0 %v2524
  %3238 = vmatpush.bf16.msra.mxu0 %v2512
  %3239 = vmatpush.bf16.msra.mxu0 %v2500
  %3240 = vmatpush.bf16.msra.mxu0 %v2488
  %3241 = vmatpush.bf16.msra.mxu0 %v2476
  %3242 = vmatpush.bf16.msra.mxu0 %v2464
  %3243 = vmatpush.bf16.msra.mxu0 %v2452
  %3244 = vmatpush.bf16.msra.mxu0 %v2440
  %3245 = vmatmul.bf16.gmra.mxu0 %v969
  %v3246 = vpop.f32.mrf.mxu0
  %v3247 = vadd.f32 %v3218, %v3246
  %v3248 = vpop.f32.mrf.mxu0
  %v3249 = vadd.f32 %v3220, %v3248
  %3250 = vmatmul.bf16.gmra.mxu0 %v973
  %v3251 = vpop.f32.mrf.mxu0
  %v3252 = vadd.f32 %v3223, %v3251
  %v3253 = vpop.f32.mrf.mxu0
  %v3254 = vadd.f32 %v3225, %v3253
  %3255 = vmatmul.bf16.gmra.mxu0 %v977
  %v3256 = vpop.f32.mrf.mxu0
  %v3257 = vadd.f32 %v3228, %v3256
  %v3258 = vpop.f32.mrf.mxu0
  %v3259 = vadd.f32 %v3230, %v3258
  %3260 = vmatmul.bf16.gmra.mxu0 %v981
  %v3261 = vpop.f32.mrf.mxu0
  %v3262 = vadd.f32 %v3233, %v3261
  %v3263 = vpop.f32.mrf.mxu0
  %v3264 = vadd.f32 %v3235, %v3263
  %3265 = vdwg.mxu0
  %3266 = vmatpush.bf16.msra.mxu0 %v2237
  %3267 = vmatpush.bf16.msra.mxu0 %v2225
  %3268 = vmatpush.bf16.msra.mxu0 %v2213
  %3269 = vmatpush.bf16.msra.mxu0 %v2201
  %3270 = vmatpush.bf16.msra.mxu0 %v2189
  %3271 = vmatpush.bf16.msra.mxu0 %v2177
  %3272 = vmatpush.bf16.msra.mxu0 %v2165
  %3273 = vmatpush.bf16.msra.mxu0 %v2153
  %3274 = vmatmul.bf16.gmra.mxu0 %v966
  %v3275 = vpop.f32.mrf.mxu0
  %v3276 = vadd.f32 %v897, %v3275
  %v3277 = vpop.f32.mrf.mxu0
  %v3278 = vadd.f32 %v897, %v3277
  %3279 = vmatmul.bf16.gmra.mxu0 %v970
  %v3280 = vpop.f32.mrf.mxu0
  %v3281 = vadd.f32 %v897, %v3280
  %v3282 = vpop.f32.mrf.mxu0
  %v3283 = vadd.f32 %v897, %v3282
  %3284 = vmatmul.bf16.gmra.mxu0 %v974
  %v3285 = vpop.f32.mrf.mxu0
  %v3286 = vadd.f32 %v897, %v3285
  %v3287 = vpop.f32.mrf.mxu0
  %v3288 = vadd.f32 %v897, %v3287
  %3289 = vmatmul.bf16.gmra.mxu0 %v978
  %v3290 = vpop.f32.mrf.mxu0
  %v3291 = vadd.f32 %v897, %v3290
  %v3292 = vpop.f32.mrf.mxu0
  %v3293 = vadd.f32 %v897, %v3292
  %3294 = vdwg.mxu0
  %3295 = vmatpush.bf16.msra.mxu0 %v2333
  %3296 = vmatpush.bf16.msra.mxu0 %v2321
  %3297 = vmatpush.bf16.msra.mxu0 %v2309
  %3298 = vmatpush.bf16.msra.mxu0 %v2297
  %3299 = vmatpush.bf16.msra.mxu0 %v2285
  %3300 = vmatpush.bf16.msra.mxu0 %v2273
  %3301 = vmatpush.bf16.msra.mxu0 %v2261
  %3302 = vmatpush.bf16.msra.mxu0 %v2249
  %3303 = vmatmul.bf16.gmra.mxu0 %v967
  %v3304 = vpop.f32.mrf.mxu0
  %v3305 = vadd.f32 %v3276, %v3304
  %v3306 = vpop.f32.mrf.mxu0
  %v3307 = vadd.f32 %v3278, %v3306
  %3308 = vmatmul.bf16.gmra.mxu0 %v971
  %v3309 = vpop.f32.mrf.mxu0
  %v3310 = vadd.f32 %v3281, %v3309
  %v3311 = vpop.f32.mrf.mxu0
  %v3312 = vadd.f32 %v3283, %v3311
  %3313 = vmatmul.bf16.gmra.mxu0 %v975
  %v3314 = vpop.f32.mrf.mxu0
  %v3315 = vadd.f32 %v3286, %v3314
  %v3316 = vpop.f32.mrf.mxu0
  %v3317 = vadd.f32 %v3288, %v3316
  %3318 = vmatmul.bf16.gmra.mxu0 %v979
  %v3319 = vpop.f32.mrf.mxu0
  %v3320 = vadd.f32 %v3291, %v3319
  %v3321 = vpop.f32.mrf.mxu0
  %v3322 = vadd.f32 %v3293, %v3321
  %3323 = vdwg.mxu0
  %3324 = vmatpush.bf16.msra.mxu0 %v2429
  %3325 = vmatpush.bf16.msra.mxu0 %v2417
  %3326 = vmatpush.bf16.msra.mxu0 %v2405
  %3327 = vmatpush.bf16.msra.mxu0 %v2393
  %3328 = vmatpush.bf16.msra.mxu0 %v2381
  %3329 = vmatpush.bf16.msra.mxu0 %v2369
  %3330 = vmatpush.bf16.msra.mxu0 %v2357
  %3331 = vmatpush.bf16.msra.mxu0 %v2345
  %3332 = vmatmul.bf16.gmra.mxu0 %v968
  %v3333 = vpop.f32.mrf.mxu0
  %v3334 = vadd.f32 %v3305, %v3333
  %v3335 = vpop.f32.mrf.mxu0
  %v3336 = vadd.f32 %v3307, %v3335
  %3337 = vmatmul.bf16.gmra.mxu0 %v972
  %v3338 = vpop.f32.mrf.mxu0
  %v3339 = vadd.f32 %v3310, %v3338
  %v3340 = vpop.f32.mrf.mxu0
  %v3341 = vadd.f32 %v3312, %v3340
  %3342 = vmatmul.bf16.gmra.mxu0 %v976
  %v3343 = vpop.f32.mrf.mxu0
  %v3344 = vadd.f32 %v3315, %v3343
  %v3345 = vpop.f32.mrf.mxu0
  %v3346 = vadd.f32 %v3317, %v3345
  %3347 = vmatmul.bf16.gmra.mxu0 %v980
  %v3348 = vpop.f32.mrf.mxu0
  %v3349 = vadd.f32 %v3320, %v3348
  %v3350 = vpop.f32.mrf.mxu0
  %v3351 = vadd.f32 %v3322, %v3350
  %3352 = vdwg.mxu0
  %3353 = vmatpush.bf16.msra.mxu0 %v2525
  %3354 = vmatpush.bf16.msra.mxu0 %v2513
  %3355 = vmatpush.bf16.msra.mxu0 %v2501
  %3356 = vmatpush.bf16.msra.mxu0 %v2489
  %3357 = vmatpush.bf16.msra.mxu0 %v2477
  %3358 = vmatpush.bf16.msra.mxu0 %v2465
  %3359 = vmatpush.bf16.msra.mxu0 %v2453
  %3360 = vmatpush.bf16.msra.mxu0 %v2441
  %3361 = vmatmul.bf16.gmra.mxu0 %v969
  %v3362 = vpop.f32.mrf.mxu0
  %v3363 = vadd.f32 %v3334, %v3362
  %v3364 = vpop.f32.mrf.mxu0
  %v3365 = vadd.f32 %v3336, %v3364
  %3366 = vmatmul.bf16.gmra.mxu0 %v973
  %v3367 = vpop.f32.mrf.mxu0
  %v3368 = vadd.f32 %v3339, %v3367
  %v3369 = vpop.f32.mrf.mxu0
  %v3370 = vadd.f32 %v3341, %v3369
  %3371 = vmatmul.bf16.gmra.mxu0 %v977
  %v3372 = vpop.f32.mrf.mxu0
  %v3373 = vadd.f32 %v3344, %v3372
  %v3374 = vpop.f32.mrf.mxu0
  %v3375 = vadd.f32 %v3346, %v3374
  %3376 = vmatmul.bf16.gmra.mxu0 %v981
  %v3377 = vpop.f32.mrf.mxu0
  %v3378 = vadd.f32 %v3349, %v3377
  %v3379 = vpop.f32.mrf.mxu0
  %v3380 = vadd.f32 %v3351, %v3379
  %3381 = vdwg.mxu0
  %3382 = vmatpush.bf16.msra.mxu0 %v2238
  %3383 = vmatpush.bf16.msra.mxu0 %v2226
  %3384 = vmatpush.bf16.msra.mxu0 %v2214
  %3385 = vmatpush.bf16.msra.mxu0 %v2202
  %3386 = vmatpush.bf16.msra.mxu0 %v2190
  %3387 = vmatpush.bf16.msra.mxu0 %v2178
  %3388 = vmatpush.bf16.msra.mxu0 %v2166
  %3389 = vmatpush.bf16.msra.mxu0 %v2154
  %3390 = vmatmul.bf16.gmra.mxu0 %v966
  %v3391 = vpop.f32.mrf.mxu0
  %v3392 = vadd.f32 %v898, %v3391
  %v3393 = vpop.f32.mrf.mxu0
  %v3394 = vadd.f32 %v898, %v3393
  %3395 = vmatmul.bf16.gmra.mxu0 %v970
  %v3396 = vpop.f32.mrf.mxu0
  %v3397 = vadd.f32 %v898, %v3396
  %v3398 = vpop.f32.mrf.mxu0
  %v3399 = vadd.f32 %v898, %v3398
  %3400 = vmatmul.bf16.gmra.mxu0 %v974
  %v3401 = vpop.f32.mrf.mxu0
  %v3402 = vadd.f32 %v898, %v3401
  %v3403 = vpop.f32.mrf.mxu0
  %v3404 = vadd.f32 %v898, %v3403
  %3405 = vmatmul.bf16.gmra.mxu0 %v978
  %v3406 = vpop.f32.mrf.mxu0
  %v3407 = vadd.f32 %v898, %v3406
  %v3408 = vpop.f32.mrf.mxu0
  %v3409 = vadd.f32 %v898, %v3408
  %3410 = vdwg.mxu0
  %3411 = vmatpush.bf16.msra.mxu0 %v2334
  %3412 = vmatpush.bf16.msra.mxu0 %v2322
  %3413 = vmatpush.bf16.msra.mxu0 %v2310
  %3414 = vmatpush.bf16.msra.mxu0 %v2298
  %3415 = vmatpush.bf16.msra.mxu0 %v2286
  %3416 = vmatpush.bf16.msra.mxu0 %v2274
  %3417 = vmatpush.bf16.msra.mxu0 %v2262
  %3418 = vmatpush.bf16.msra.mxu0 %v2250
  %3419 = vmatmul.bf16.gmra.mxu0 %v967
  %v3420 = vpop.f32.mrf.mxu0
  %v3421 = vadd.f32 %v3392, %v3420
  %v3422 = vpop.f32.mrf.mxu0
  %v3423 = vadd.f32 %v3394, %v3422
  %3424 = vmatmul.bf16.gmra.mxu0 %v971
  %v3425 = vpop.f32.mrf.mxu0
  %v3426 = vadd.f32 %v3397, %v3425
  %v3427 = vpop.f32.mrf.mxu0
  %v3428 = vadd.f32 %v3399, %v3427
  %3429 = vmatmul.bf16.gmra.mxu0 %v975
  %v3430 = vpop.f32.mrf.mxu0
  %v3431 = vadd.f32 %v3402, %v3430
  %v3432 = vpop.f32.mrf.mxu0
  %v3433 = vadd.f32 %v3404, %v3432
  %3434 = vmatmul.bf16.gmra.mxu0 %v979
  %v3435 = vpop.f32.mrf.mxu0
  %v3436 = vadd.f32 %v3407, %v3435
  %v3437 = vpop.f32.mrf.mxu0
  %v3438 = vadd.f32 %v3409, %v3437
  %3439 = vdwg.mxu0
  %3440 = vmatpush.bf16.msra.mxu0 %v2430
  %3441 = vmatpush.bf16.msra.mxu0 %v2418
  %3442 = vmatpush.bf16.msra.mxu0 %v2406
  %3443 = vmatpush.bf16.msra.mxu0 %v2394
  %3444 = vmatpush.bf16.msra.mxu0 %v2382
  %3445 = vmatpush.bf16.msra.mxu0 %v2370
  %3446 = vmatpush.bf16.msra.mxu0 %v2358
  %3447 = vmatpush.bf16.msra.mxu0 %v2346
  %3448 = vmatmul.bf16.gmra.mxu0 %v968
  %v3449 = vpop.f32.mrf.mxu0
  %v3450 = vadd.f32 %v3421, %v3449
  %v3451 = vpop.f32.mrf.mxu0
  %v3452 = vadd.f32 %v3423, %v3451
  %3453 = vmatmul.bf16.gmra.mxu0 %v972
  %v3454 = vpop.f32.mrf.mxu0
  %v3455 = vadd.f32 %v3426, %v3454
  %v3456 = vpop.f32.mrf.mxu0
  %v3457 = vadd.f32 %v3428, %v3456
  %3458 = vmatmul.bf16.gmra.mxu0 %v976
  %v3459 = vpop.f32.mrf.mxu0
  %v3460 = vadd.f32 %v3431, %v3459
  %v3461 = vpop.f32.mrf.mxu0
  %v3462 = vadd.f32 %v3433, %v3461
  %3463 = vmatmul.bf16.gmra.mxu0 %v980
  %v3464 = vpop.f32.mrf.mxu0
  %v3465 = vadd.f32 %v3436, %v3464
  %v3466 = vpop.f32.mrf.mxu0
  %v3467 = vadd.f32 %v3438, %v3466
  %3468 = vdwg.mxu0
  %3469 = vmatpush.bf16.msra.mxu0 %v2526
  %3470 = vmatpush.bf16.msra.mxu0 %v2514
  %3471 = vmatpush.bf16.msra.mxu0 %v2502
  %3472 = vmatpush.bf16.msra.mxu0 %v2490
  %3473 = vmatpush.bf16.msra.mxu0 %v2478
  %3474 = vmatpush.bf16.msra.mxu0 %v2466
  %3475 = vmatpush.bf16.msra.mxu0 %v2454
  %3476 = vmatpush.bf16.msra.mxu0 %v2442
  %3477 = vmatmul.bf16.gmra.mxu0 %v969
  %v3478 = vpop.f32.mrf.mxu0
  %v3479 = vadd.f32 %v3450, %v3478
  %v3480 = vpop.f32.mrf.mxu0
  %v3481 = vadd.f32 %v3452, %v3480
  %3482 = vmatmul.bf16.gmra.mxu0 %v973
  %v3483 = vpop.f32.mrf.mxu0
  %v3484 = vadd.f32 %v3455, %v3483
  %v3485 = vpop.f32.mrf.mxu0
  %v3486 = vadd.f32 %v3457, %v3485
  %3487 = vmatmul.bf16.gmra.mxu0 %v977
  %v3488 = vpop.f32.mrf.mxu0
  %v3489 = vadd.f32 %v3460, %v3488
  %v3490 = vpop.f32.mrf.mxu0
  %v3491 = vadd.f32 %v3462, %v3490
  %3492 = vmatmul.bf16.gmra.mxu0 %v981
  %v3493 = vpop.f32.mrf.mxu0
  %v3494 = vadd.f32 %v3465, %v3493
  %v3495 = vpop.f32.mrf.mxu0
  %v3496 = vadd.f32 %v3467, %v3495
  %3497 = vdwg.mxu0
  %3498 = vmatpush.bf16.msra.mxu0 %v2239
  %3499 = vmatpush.bf16.msra.mxu0 %v2227
  %3500 = vmatpush.bf16.msra.mxu0 %v2215
  %3501 = vmatpush.bf16.msra.mxu0 %v2203
  %3502 = vmatpush.bf16.msra.mxu0 %v2191
  %3503 = vmatpush.bf16.msra.mxu0 %v2179
  %3504 = vmatpush.bf16.msra.mxu0 %v2167
  %3505 = vmatpush.bf16.msra.mxu0 %v2155
  %3506 = vmatmul.bf16.gmra.mxu0 %v966
  %v3507 = vpop.f32.mrf.mxu0
  %v3508 = vadd.f32 %v899, %v3507
  %v3509 = vpop.f32.mrf.mxu0
  %v3510 = vadd.f32 %v899, %v3509
  %3511 = vmatmul.bf16.gmra.mxu0 %v970
  %v3512 = vpop.f32.mrf.mxu0
  %v3513 = vadd.f32 %v899, %v3512
  %v3514 = vpop.f32.mrf.mxu0
  %v3515 = vadd.f32 %v899, %v3514
  %3516 = vmatmul.bf16.gmra.mxu0 %v974
  %v3517 = vpop.f32.mrf.mxu0
  %v3518 = vadd.f32 %v899, %v3517
  %v3519 = vpop.f32.mrf.mxu0
  %v3520 = vadd.f32 %v899, %v3519
  %3521 = vmatmul.bf16.gmra.mxu0 %v978
  %v3522 = vpop.f32.mrf.mxu0
  %v3523 = vadd.f32 %v899, %v3522
  %v3524 = vpop.f32.mrf.mxu0
  %v3525 = vadd.f32 %v899, %v3524
  %3526 = vdwg.mxu0
  %3527 = vmatpush.bf16.msra.mxu0 %v2335
  %3528 = vmatpush.bf16.msra.mxu0 %v2323
  %3529 = vmatpush.bf16.msra.mxu0 %v2311
  %3530 = vmatpush.bf16.msra.mxu0 %v2299
  %3531 = vmatpush.bf16.msra.mxu0 %v2287
  %3532 = vmatpush.bf16.msra.mxu0 %v2275
  %3533 = vmatpush.bf16.msra.mxu0 %v2263
  %3534 = vmatpush.bf16.msra.mxu0 %v2251
  %3535 = vmatmul.bf16.gmra.mxu0 %v967
  %v3536 = vpop.f32.mrf.mxu0
  %v3537 = vadd.f32 %v3508, %v3536
  %v3538 = vpop.f32.mrf.mxu0
  %v3539 = vadd.f32 %v3510, %v3538
  %3540 = vmatmul.bf16.gmra.mxu0 %v971
  %v3541 = vpop.f32.mrf.mxu0
  %v3542 = vadd.f32 %v3513, %v3541
  %v3543 = vpop.f32.mrf.mxu0
  %v3544 = vadd.f32 %v3515, %v3543
  %3545 = vmatmul.bf16.gmra.mxu0 %v975
  %v3546 = vpop.f32.mrf.mxu0
  %v3547 = vadd.f32 %v3518, %v3546
  %v3548 = vpop.f32.mrf.mxu0
  %v3549 = vadd.f32 %v3520, %v3548
  %3550 = vmatmul.bf16.gmra.mxu0 %v979
  %v3551 = vpop.f32.mrf.mxu0
  %v3552 = vadd.f32 %v3523, %v3551
  %v3553 = vpop.f32.mrf.mxu0
  %v3554 = vadd.f32 %v3525, %v3553
  %3555 = vdwg.mxu0
  %3556 = vmatpush.bf16.msra.mxu0 %v2431
  %3557 = vmatpush.bf16.msra.mxu0 %v2419
  %3558 = vmatpush.bf16.msra.mxu0 %v2407
  %3559 = vmatpush.bf16.msra.mxu0 %v2395
  %3560 = vmatpush.bf16.msra.mxu0 %v2383
  %3561 = vmatpush.bf16.msra.mxu0 %v2371
  %3562 = vmatpush.bf16.msra.mxu0 %v2359
  %3563 = vmatpush.bf16.msra.mxu0 %v2347
  %3564 = vmatmul.bf16.gmra.mxu0 %v968
  %v3565 = vpop.f32.mrf.mxu0
  %v3566 = vadd.f32 %v3537, %v3565
  %v3567 = vpop.f32.mrf.mxu0
  %v3568 = vadd.f32 %v3539, %v3567
  %3569 = vmatmul.bf16.gmra.mxu0 %v972
  %v3570 = vpop.f32.mrf.mxu0
  %v3571 = vadd.f32 %v3542, %v3570
  %v3572 = vpop.f32.mrf.mxu0
  %v3573 = vadd.f32 %v3544, %v3572
  %3574 = vmatmul.bf16.gmra.mxu0 %v976
  %v3575 = vpop.f32.mrf.mxu0
  %v3576 = vadd.f32 %v3547, %v3575
  %v3577 = vpop.f32.mrf.mxu0
  %v3578 = vadd.f32 %v3549, %v3577
  %3579 = vmatmul.bf16.gmra.mxu0 %v980
  %v3580 = vpop.f32.mrf.mxu0
  %v3581 = vadd.f32 %v3552, %v3580
  %v3582 = vpop.f32.mrf.mxu0
  %v3583 = vadd.f32 %v3554, %v3582
  %3584 = vdwg.mxu0
  %3585 = vmatpush.bf16.msra.mxu0 %v2527
  %3586 = vmatpush.bf16.msra.mxu0 %v2515
  %3587 = vmatpush.bf16.msra.mxu0 %v2503
  %3588 = vmatpush.bf16.msra.mxu0 %v2491
  %3589 = vmatpush.bf16.msra.mxu0 %v2479
  %3590 = vmatpush.bf16.msra.mxu0 %v2467
  %3591 = vmatpush.bf16.msra.mxu0 %v2455
  %3592 = vmatpush.bf16.msra.mxu0 %v2443
  %3593 = vmatmul.bf16.gmra.mxu0 %v969
  %v3594 = vpop.f32.mrf.mxu0
  %v3595 = vadd.f32 %v3566, %v3594
  %v3596 = vpop.f32.mrf.mxu0
  %v3597 = vadd.f32 %v3568, %v3596
  %3598 = vmatmul.bf16.gmra.mxu0 %v973
  %v3599 = vpop.f32.mrf.mxu0
  %v3600 = vadd.f32 %v3571, %v3599
  %v3601 = vpop.f32.mrf.mxu0
  %v3602 = vadd.f32 %v3573, %v3601
  %3603 = vmatmul.bf16.gmra.mxu0 %v977
  %v3604 = vpop.f32.mrf.mxu0
  %v3605 = vadd.f32 %v3576, %v3604
  %v3606 = vpop.f32.mrf.mxu0
  %v3607 = vadd.f32 %v3578, %v3606
  %3608 = vmatmul.bf16.gmra.mxu0 %v981
  %v3609 = vpop.f32.mrf.mxu0
  %v3610 = vadd.f32 %v3581, %v3609
  %v3611 = vpop.f32.mrf.mxu0
  %v3612 = vadd.f32 %v3583, %v3611
  %3613 = vdwg.mxu0
  %3614 = vmatpush.bf16.msra.mxu0 %v2240
  %3615 = vmatpush.bf16.msra.mxu0 %v2228
  %3616 = vmatpush.bf16.msra.mxu0 %v2216
  %3617 = vmatpush.bf16.msra.mxu0 %v2204
  %3618 = vmatpush.bf16.msra.mxu0 %v2192
  %3619 = vmatpush.bf16.msra.mxu0 %v2180
  %3620 = vmatpush.bf16.msra.mxu0 %v2168
  %3621 = vmatpush.bf16.msra.mxu0 %v2156
  %3622 = vmatmul.bf16.gmra.mxu0 %v966
  %v3623 = vpop.f32.mrf.mxu0
  %v3624 = vadd.f32 %v900, %v3623
  %v3625 = vpop.f32.mrf.mxu0
  %v3626 = vadd.f32 %v900, %v3625
  %3627 = vmatmul.bf16.gmra.mxu0 %v970
  %v3628 = vpop.f32.mrf.mxu0
  %v3629 = vadd.f32 %v900, %v3628
  %v3630 = vpop.f32.mrf.mxu0
  %v3631 = vadd.f32 %v900, %v3630
  %3632 = vmatmul.bf16.gmra.mxu0 %v974
  %v3633 = vpop.f32.mrf.mxu0
  %v3634 = vadd.f32 %v900, %v3633
  %v3635 = vpop.f32.mrf.mxu0
  %v3636 = vadd.f32 %v900, %v3635
  %3637 = vmatmul.bf16.gmra.mxu0 %v978
  %v3638 = vpop.f32.mrf.mxu0
  %v3639 = vadd.f32 %v900, %v3638
  %v3640 = vpop.f32.mrf.mxu0
  %v3641 = vadd.f32 %v900, %v3640
  %3642 = vdwg.mxu0
  %3643 = vmatpush.bf16.msra.mxu0 %v2336
  %3644 = vmatpush.bf16.msra.mxu0 %v2324
  %3645 = vmatpush.bf16.msra.mxu0 %v2312
  %3646 = vmatpush.bf16.msra.mxu0 %v2300
  %3647 = vmatpush.bf16.msra.mxu0 %v2288
  %3648 = vmatpush.bf16.msra.mxu0 %v2276
  %3649 = vmatpush.bf16.msra.mxu0 %v2264
  %3650 = vmatpush.bf16.msra.mxu0 %v2252
  %3651 = vmatmul.bf16.gmra.mxu0 %v967
  %v3652 = vpop.f32.mrf.mxu0
  %v3653 = vadd.f32 %v3624, %v3652
  %v3654 = vpop.f32.mrf.mxu0
  %v3655 = vadd.f32 %v3626, %v3654
  %3656 = vmatmul.bf16.gmra.mxu0 %v971
  %v3657 = vpop.f32.mrf.mxu0
  %v3658 = vadd.f32 %v3629, %v3657
  %v3659 = vpop.f32.mrf.mxu0
  %v3660 = vadd.f32 %v3631, %v3659
  %3661 = vmatmul.bf16.gmra.mxu0 %v975
  %v3662 = vpop.f32.mrf.mxu0
  %v3663 = vadd.f32 %v3634, %v3662
  %v3664 = vpop.f32.mrf.mxu0
  %v3665 = vadd.f32 %v3636, %v3664
  %3666 = vmatmul.bf16.gmra.mxu0 %v979
  %v3667 = vpop.f32.mrf.mxu0
  %v3668 = vadd.f32 %v3639, %v3667
  %v3669 = vpop.f32.mrf.mxu0
  %v3670 = vadd.f32 %v3641, %v3669
  %3671 = vdwg.mxu0
  %3672 = vmatpush.bf16.msra.mxu0 %v2432
  %3673 = vmatpush.bf16.msra.mxu0 %v2420
  %3674 = vmatpush.bf16.msra.mxu0 %v2408
  %3675 = vmatpush.bf16.msra.mxu0 %v2396
  %3676 = vmatpush.bf16.msra.mxu0 %v2384
  %3677 = vmatpush.bf16.msra.mxu0 %v2372
  %3678 = vmatpush.bf16.msra.mxu0 %v2360
  %3679 = vmatpush.bf16.msra.mxu0 %v2348
  %3680 = vmatmul.bf16.gmra.mxu0 %v968
  %v3681 = vpop.f32.mrf.mxu0
  %v3682 = vadd.f32 %v3653, %v3681
  %v3683 = vpop.f32.mrf.mxu0
  %v3684 = vadd.f32 %v3655, %v3683
  %3685 = vmatmul.bf16.gmra.mxu0 %v972
  %v3686 = vpop.f32.mrf.mxu0
  %v3687 = vadd.f32 %v3658, %v3686
  %v3688 = vpop.f32.mrf.mxu0
  %v3689 = vadd.f32 %v3660, %v3688
  %3690 = vmatmul.bf16.gmra.mxu0 %v976
  %v3691 = vpop.f32.mrf.mxu0
  %v3692 = vadd.f32 %v3663, %v3691
  %v3693 = vpop.f32.mrf.mxu0
  %v3694 = vadd.f32 %v3665, %v3693
  %3695 = vmatmul.bf16.gmra.mxu0 %v980
  %v3696 = vpop.f32.mrf.mxu0
  %v3697 = vadd.f32 %v3668, %v3696
  %v3698 = vpop.f32.mrf.mxu0
  %v3699 = vadd.f32 %v3670, %v3698
  %3700 = vdwg.mxu0
  %3701 = vmatpush.bf16.msra.mxu0 %v2528
  %3702 = vmatpush.bf16.msra.mxu0 %v2516
  %3703 = vmatpush.bf16.msra.mxu0 %v2504
  %3704 = vmatpush.bf16.msra.mxu0 %v2492
  %3705 = vmatpush.bf16.msra.mxu0 %v2480
  %3706 = vmatpush.bf16.msra.mxu0 %v2468
  %3707 = vmatpush.bf16.msra.mxu0 %v2456
  %3708 = vmatpush.bf16.msra.mxu0 %v2444
  %3709 = vmatmul.bf16.gmra.mxu0 %v969
  %v3710 = vpop.f32.mrf.mxu0
  %v3711 = vadd.f32 %v3682, %v3710
  %v3712 = vpop.f32.mrf.mxu0
  %v3713 = vadd.f32 %v3684, %v3712
  %3714 = vmatmul.bf16.gmra.mxu0 %v973
  %v3715 = vpop.f32.mrf.mxu0
  %v3716 = vadd.f32 %v3687, %v3715
  %v3717 = vpop.f32.mrf.mxu0
  %v3718 = vadd.f32 %v3689, %v3717
  %3719 = vmatmul.bf16.gmra.mxu0 %v977
  %v3720 = vpop.f32.mrf.mxu0
  %v3721 = vadd.f32 %v3692, %v3720
  %v3722 = vpop.f32.mrf.mxu0
  %v3723 = vadd.f32 %v3694, %v3722
  %3724 = vmatmul.bf16.gmra.mxu0 %v981
  %v3725 = vpop.f32.mrf.mxu0
  %v3726 = vadd.f32 %v3697, %v3725
  %v3727 = vpop.f32.mrf.mxu0
  %v3728 = vadd.f32 %v3699, %v3727
  %3729 = vdwg.mxu0
  %3730 = vmatpush.bf16.msra.mxu0 %v2241
  %3731 = vmatpush.bf16.msra.mxu0 %v2229
  %3732 = vmatpush.bf16.msra.mxu0 %v2217
  %3733 = vmatpush.bf16.msra.mxu0 %v2205
  %3734 = vmatpush.bf16.msra.mxu0 %v2193
  %3735 = vmatpush.bf16.msra.mxu0 %v2181
  %3736 = vmatpush.bf16.msra.mxu0 %v2169
  %3737 = vmatpush.bf16.msra.mxu0 %v2157
  %3738 = vmatmul.bf16.gmra.mxu0 %v966
  %v3739 = vpop.f32.mrf.mxu0
  %v3740 = vadd.f32 %v901, %v3739
  %v3741 = vpop.f32.mrf.mxu0
  %v3742 = vadd.f32 %v901, %v3741
  %3743 = vmatmul.bf16.gmra.mxu0 %v970
  %v3744 = vpop.f32.mrf.mxu0
  %v3745 = vadd.f32 %v901, %v3744
  %v3746 = vpop.f32.mrf.mxu0
  %v3747 = vadd.f32 %v901, %v3746
  %3748 = vmatmul.bf16.gmra.mxu0 %v974
  %v3749 = vpop.f32.mrf.mxu0
  %v3750 = vadd.f32 %v901, %v3749
  %v3751 = vpop.f32.mrf.mxu0
  %v3752 = vadd.f32 %v901, %v3751
  %3753 = vmatmul.bf16.gmra.mxu0 %v978
  %v3754 = vpop.f32.mrf.mxu0
  %v3755 = vadd.f32 %v901, %v3754
  %v3756 = vpop.f32.mrf.mxu0
  %v3757 = vadd.f32 %v901, %v3756
  %3758 = vdwg.mxu0
  %3759 = vmatpush.bf16.msra.mxu0 %v2337
  %3760 = vmatpush.bf16.msra.mxu0 %v2325
  %3761 = vmatpush.bf16.msra.mxu0 %v2313
  %3762 = vmatpush.bf16.msra.mxu0 %v2301
  %3763 = vmatpush.bf16.msra.mxu0 %v2289
  %3764 = vmatpush.bf16.msra.mxu0 %v2277
  %3765 = vmatpush.bf16.msra.mxu0 %v2265
  %3766 = vmatpush.bf16.msra.mxu0 %v2253
  %3767 = vmatmul.bf16.gmra.mxu0 %v967
  %v3768 = vpop.f32.mrf.mxu0
  %v3769 = vadd.f32 %v3740, %v3768
  %v3770 = vpop.f32.mrf.mxu0
  %v3771 = vadd.f32 %v3742, %v3770
  %3772 = vmatmul.bf16.gmra.mxu0 %v971
  %v3773 = vpop.f32.mrf.mxu0
  %v3774 = vadd.f32 %v3745, %v3773
  %v3775 = vpop.f32.mrf.mxu0
  %v3776 = vadd.f32 %v3747, %v3775
  %3777 = vmatmul.bf16.gmra.mxu0 %v975
  %v3778 = vpop.f32.mrf.mxu0
  %v3779 = vadd.f32 %v3750, %v3778
  %v3780 = vpop.f32.mrf.mxu0
  %v3781 = vadd.f32 %v3752, %v3780
  %3782 = vmatmul.bf16.gmra.mxu0 %v979
  %v3783 = vpop.f32.mrf.mxu0
  %v3784 = vadd.f32 %v3755, %v3783
  %v3785 = vpop.f32.mrf.mxu0
  %v3786 = vadd.f32 %v3757, %v3785
  %3787 = vdwg.mxu0
  %3788 = vmatpush.bf16.msra.mxu0 %v2433
  %3789 = vmatpush.bf16.msra.mxu0 %v2421
  %3790 = vmatpush.bf16.msra.mxu0 %v2409
  %3791 = vmatpush.bf16.msra.mxu0 %v2397
  %3792 = vmatpush.bf16.msra.mxu0 %v2385
  %3793 = vmatpush.bf16.msra.mxu0 %v2373
  %3794 = vmatpush.bf16.msra.mxu0 %v2361
  %3795 = vmatpush.bf16.msra.mxu0 %v2349
  %3796 = vmatmul.bf16.gmra.mxu0 %v968
  %v3797 = vpop.f32.mrf.mxu0
  %v3798 = vadd.f32 %v3769, %v3797
  %v3799 = vpop.f32.mrf.mxu0
  %v3800 = vadd.f32 %v3771, %v3799
  %3801 = vmatmul.bf16.gmra.mxu0 %v972
  %v3802 = vpop.f32.mrf.mxu0
  %v3803 = vadd.f32 %v3774, %v3802
  %v3804 = vpop.f32.mrf.mxu0
  %v3805 = vadd.f32 %v3776, %v3804
  %3806 = vmatmul.bf16.gmra.mxu0 %v976
  %v3807 = vpop.f32.mrf.mxu0
  %v3808 = vadd.f32 %v3779, %v3807
  %v3809 = vpop.f32.mrf.mxu0
  %v3810 = vadd.f32 %v3781, %v3809
  %3811 = vmatmul.bf16.gmra.mxu0 %v980
  %v3812 = vpop.f32.mrf.mxu0
  %v3813 = vadd.f32 %v3784, %v3812
  %v3814 = vpop.f32.mrf.mxu0
  %v3815 = vadd.f32 %v3786, %v3814
  %3816 = vdwg.mxu0
  %3817 = vmatpush.bf16.msra.mxu0 %v2529
  %3818 = vmatpush.bf16.msra.mxu0 %v2517
  %3819 = vmatpush.bf16.msra.mxu0 %v2505
  %3820 = vmatpush.bf16.msra.mxu0 %v2493
  %3821 = vmatpush.bf16.msra.mxu0 %v2481
  %3822 = vmatpush.bf16.msra.mxu0 %v2469
  %3823 = vmatpush.bf16.msra.mxu0 %v2457
  %3824 = vmatpush.bf16.msra.mxu0 %v2445
  %3825 = vmatmul.bf16.gmra.mxu0 %v969
  %v3826 = vpop.f32.mrf.mxu0
  %v3827 = vadd.f32 %v3798, %v3826
  %v3828 = vpop.f32.mrf.mxu0
  %v3829 = vadd.f32 %v3800, %v3828
  %3830 = vmatmul.bf16.gmra.mxu0 %v973
  %v3831 = vpop.f32.mrf.mxu0
  %v3832 = vadd.f32 %v3803, %v3831
  %v3833 = vpop.f32.mrf.mxu0
  %v3834 = vadd.f32 %v3805, %v3833
  %3835 = vmatmul.bf16.gmra.mxu0 %v977
  %v3836 = vpop.f32.mrf.mxu0
  %v3837 = vadd.f32 %v3808, %v3836
  %v3838 = vpop.f32.mrf.mxu0
  %v3839 = vadd.f32 %v3810, %v3838
  %3840 = vmatmul.bf16.gmra.mxu0 %v981
  %v3841 = vpop.f32.mrf.mxu0
  %v3842 = vadd.f32 %v3813, %v3841
  %v3843 = vpop.f32.mrf.mxu0
  %v3844 = vadd.f32 %v3815, %v3843
  %3845 = vdwg.mxu0
  %3846 = vmatpush.bf16.msra.mxu0 %v2242
  %3847 = vmatpush.bf16.msra.mxu0 %v2230
  %3848 = vmatpush.bf16.msra.mxu0 %v2218
  %3849 = vmatpush.bf16.msra.mxu0 %v2206
  %3850 = vmatpush.bf16.msra.mxu0 %v2194
  %3851 = vmatpush.bf16.msra.mxu0 %v2182
  %3852 = vmatpush.bf16.msra.mxu0 %v2170
  %3853 = vmatpush.bf16.msra.mxu0 %v2158
  %3854 = vmatmul.bf16.gmra.mxu0 %v966
  %v3855 = vpop.f32.mrf.mxu0
  %v3856 = vadd.f32 %v902, %v3855
  %v3857 = vpop.f32.mrf.mxu0
  %v3858 = vadd.f32 %v902, %v3857
  %3859 = vmatmul.bf16.gmra.mxu0 %v970
  %v3860 = vpop.f32.mrf.mxu0
  %v3861 = vadd.f32 %v902, %v3860
  %v3862 = vpop.f32.mrf.mxu0
  %v3863 = vadd.f32 %v902, %v3862
  %3864 = vmatmul.bf16.gmra.mxu0 %v974
  %v3865 = vpop.f32.mrf.mxu0
  %v3866 = vadd.f32 %v902, %v3865
  %v3867 = vpop.f32.mrf.mxu0
  %v3868 = vadd.f32 %v902, %v3867
  %3869 = vmatmul.bf16.gmra.mxu0 %v978
  %v3870 = vpop.f32.mrf.mxu0
  %v3871 = vadd.f32 %v902, %v3870
  %v3872 = vpop.f32.mrf.mxu0
  %v3873 = vadd.f32 %v902, %v3872
  %3874 = vdwg.mxu0
  %3875 = vmatpush.bf16.msra.mxu0 %v2338
  %3876 = vmatpush.bf16.msra.mxu0 %v2326
  %3877 = vmatpush.bf16.msra.mxu0 %v2314
  %3878 = vmatpush.bf16.msra.mxu0 %v2302
  %3879 = vmatpush.bf16.msra.mxu0 %v2290
  %3880 = vmatpush.bf16.msra.mxu0 %v2278
  %3881 = vmatpush.bf16.msra.mxu0 %v2266
  %3882 = vmatpush.bf16.msra.mxu0 %v2254
  %3883 = vmatmul.bf16.gmra.mxu0 %v967
  %v3884 = vpop.f32.mrf.mxu0
  %v3885 = vadd.f32 %v3856, %v3884
  %v3886 = vpop.f32.mrf.mxu0
  %v3887 = vadd.f32 %v3858, %v3886
  %3888 = vmatmul.bf16.gmra.mxu0 %v971
  %v3889 = vpop.f32.mrf.mxu0
  %v3890 = vadd.f32 %v3861, %v3889
  %v3891 = vpop.f32.mrf.mxu0
  %v3892 = vadd.f32 %v3863, %v3891
  %3893 = vmatmul.bf16.gmra.mxu0 %v975
  %v3894 = vpop.f32.mrf.mxu0
  %v3895 = vadd.f32 %v3866, %v3894
  %v3896 = vpop.f32.mrf.mxu0
  %v3897 = vadd.f32 %v3868, %v3896
  %3898 = vmatmul.bf16.gmra.mxu0 %v979
  %v3899 = vpop.f32.mrf.mxu0
  %v3900 = vadd.f32 %v3871, %v3899
  %v3901 = vpop.f32.mrf.mxu0
  %v3902 = vadd.f32 %v3873, %v3901
  %3903 = vdwg.mxu0
  %3904 = vmatpush.bf16.msra.mxu0 %v2434
  %3905 = vmatpush.bf16.msra.mxu0 %v2422
  %3906 = vmatpush.bf16.msra.mxu0 %v2410
  %3907 = vmatpush.bf16.msra.mxu0 %v2398
  %3908 = vmatpush.bf16.msra.mxu0 %v2386
  %3909 = vmatpush.bf16.msra.mxu0 %v2374
  %3910 = vmatpush.bf16.msra.mxu0 %v2362
  %3911 = vmatpush.bf16.msra.mxu0 %v2350
  %3912 = vmatmul.bf16.gmra.mxu0 %v968
  %v3913 = vpop.f32.mrf.mxu0
  %v3914 = vadd.f32 %v3885, %v3913
  %v3915 = vpop.f32.mrf.mxu0
  %v3916 = vadd.f32 %v3887, %v3915
  %3917 = vmatmul.bf16.gmra.mxu0 %v972
  %v3918 = vpop.f32.mrf.mxu0
  %v3919 = vadd.f32 %v3890, %v3918
  %v3920 = vpop.f32.mrf.mxu0
  %v3921 = vadd.f32 %v3892, %v3920
  %3922 = vmatmul.bf16.gmra.mxu0 %v976
  %v3923 = vpop.f32.mrf.mxu0
  %v3924 = vadd.f32 %v3895, %v3923
  %v3925 = vpop.f32.mrf.mxu0
  %v3926 = vadd.f32 %v3897, %v3925
  %3927 = vmatmul.bf16.gmra.mxu0 %v980
  %v3928 = vpop.f32.mrf.mxu0
  %v3929 = vadd.f32 %v3900, %v3928
  %v3930 = vpop.f32.mrf.mxu0
  %v3931 = vadd.f32 %v3902, %v3930
  %3932 = vdwg.mxu0
  %3933 = vmatpush.bf16.msra.mxu0 %v2530
  %3934 = vmatpush.bf16.msra.mxu0 %v2518
  %3935 = vmatpush.bf16.msra.mxu0 %v2506
  %3936 = vmatpush.bf16.msra.mxu0 %v2494
  %3937 = vmatpush.bf16.msra.mxu0 %v2482
  %3938 = vmatpush.bf16.msra.mxu0 %v2470
  %3939 = vmatpush.bf16.msra.mxu0 %v2458
  %3940 = vmatpush.bf16.msra.mxu0 %v2446
  %3941 = vmatmul.bf16.gmra.mxu0 %v969
  %v3942 = vpop.f32.mrf.mxu0
  %v3943 = vadd.f32 %v3914, %v3942
  %v3944 = vpop.f32.mrf.mxu0
  %v3945 = vadd.f32 %v3916, %v3944
  %3946 = vmatmul.bf16.gmra.mxu0 %v973
  %v3947 = vpop.f32.mrf.mxu0
  %v3948 = vadd.f32 %v3919, %v3947
  %v3949 = vpop.f32.mrf.mxu0
  %v3950 = vadd.f32 %v3921, %v3949
  %3951 = vmatmul.bf16.gmra.mxu0 %v977
  %v3952 = vpop.f32.mrf.mxu0
  %v3953 = vadd.f32 %v3924, %v3952
  %v3954 = vpop.f32.mrf.mxu0
  %v3955 = vadd.f32 %v3926, %v3954
  %3956 = vmatmul.bf16.gmra.mxu0 %v981
  %v3957 = vpop.f32.mrf.mxu0
  %v3958 = vadd.f32 %v3929, %v3957
  %v3959 = vpop.f32.mrf.mxu0
  %v3960 = vadd.f32 %v3931, %v3959
  %3961 = vdwg.mxu0
  %3962 = vmatpush.bf16.msra.mxu0 %v2243
  %3963 = vmatpush.bf16.msra.mxu0 %v2231
  %3964 = vmatpush.bf16.msra.mxu0 %v2219
  %3965 = vmatpush.bf16.msra.mxu0 %v2207
  %3966 = vmatpush.bf16.msra.mxu0 %v2195
  %3967 = vmatpush.bf16.msra.mxu0 %v2183
  %3968 = vmatpush.bf16.msra.mxu0 %v2171
  %3969 = vmatpush.bf16.msra.mxu0 %v2159
  %3970 = vmatmul.bf16.gmra.mxu0 %v966
  %v3971 = vpop.f32.mrf.mxu0
  %v3972 = vadd.f32 %v903, %v3971
  %v3973 = vpop.f32.mrf.mxu0
  %v3974 = vadd.f32 %v903, %v3973
  %3975 = vmatmul.bf16.gmra.mxu0 %v970
  %v3976 = vpop.f32.mrf.mxu0
  %v3977 = vadd.f32 %v903, %v3976
  %v3978 = vpop.f32.mrf.mxu0
  %v3979 = vadd.f32 %v903, %v3978
  %3980 = vmatmul.bf16.gmra.mxu0 %v974
  %v3981 = vpop.f32.mrf.mxu0
  %v3982 = vadd.f32 %v903, %v3981
  %v3983 = vpop.f32.mrf.mxu0
  %v3984 = vadd.f32 %v903, %v3983
  %3985 = vmatmul.bf16.gmra.mxu0 %v978
  %v3986 = vpop.f32.mrf.mxu0
  %v3987 = vadd.f32 %v903, %v3986
  %v3988 = vpop.f32.mrf.mxu0
  %v3989 = vadd.f32 %v903, %v3988
  %3990 = vdwg.mxu0
  %3991 = vmatpush.bf16.msra.mxu0 %v2339
  %3992 = vmatpush.bf16.msra.mxu0 %v2327
  %3993 = vmatpush.bf16.msra.mxu0 %v2315
  %3994 = vmatpush.bf16.msra.mxu0 %v2303
  %3995 = vmatpush.bf16.msra.mxu0 %v2291
  %3996 = vmatpush.bf16.msra.mxu0 %v2279
  %3997 = vmatpush.bf16.msra.mxu0 %v2267
  %3998 = vmatpush.bf16.msra.mxu0 %v2255
  %3999 = vmatmul.bf16.gmra.mxu0 %v967
  %v4000 = vpop.f32.mrf.mxu0
  %v4001 = vadd.f32 %v3972, %v4000
  %v4002 = vpop.f32.mrf.mxu0
  %v4003 = vadd.f32 %v3974, %v4002
  %4004 = vmatmul.bf16.gmra.mxu0 %v971
  %v4005 = vpop.f32.mrf.mxu0
  %v4006 = vadd.f32 %v3977, %v4005
  %v4007 = vpop.f32.mrf.mxu0
  %v4008 = vadd.f32 %v3979, %v4007
  %4009 = vmatmul.bf16.gmra.mxu0 %v975
  %v4010 = vpop.f32.mrf.mxu0
  %v4011 = vadd.f32 %v3982, %v4010
  %v4012 = vpop.f32.mrf.mxu0
  %v4013 = vadd.f32 %v3984, %v4012
  %4014 = vmatmul.bf16.gmra.mxu0 %v979
  %v4015 = vpop.f32.mrf.mxu0
  %v4016 = vadd.f32 %v3987, %v4015
  %v4017 = vpop.f32.mrf.mxu0
  %v4018 = vadd.f32 %v3989, %v4017
  %4019 = vdwg.mxu0
  %4020 = vmatpush.bf16.msra.mxu0 %v2435
  %4021 = vmatpush.bf16.msra.mxu0 %v2423
  %4022 = vmatpush.bf16.msra.mxu0 %v2411
  %4023 = vmatpush.bf16.msra.mxu0 %v2399
  %4024 = vmatpush.bf16.msra.mxu0 %v2387
  %4025 = vmatpush.bf16.msra.mxu0 %v2375
  %4026 = vmatpush.bf16.msra.mxu0 %v2363
  %4027 = vmatpush.bf16.msra.mxu0 %v2351
  %4028 = vmatmul.bf16.gmra.mxu0 %v968
  %v4029 = vpop.f32.mrf.mxu0
  %v4030 = vadd.f32 %v4001, %v4029
  %v4031 = vpop.f32.mrf.mxu0
  %v4032 = vadd.f32 %v4003, %v4031
  %4033 = vmatmul.bf16.gmra.mxu0 %v972
  %v4034 = vpop.f32.mrf.mxu0
  %v4035 = vadd.f32 %v4006, %v4034
  %v4036 = vpop.f32.mrf.mxu0
  %v4037 = vadd.f32 %v4008, %v4036
  %4038 = vmatmul.bf16.gmra.mxu0 %v976
  %v4039 = vpop.f32.mrf.mxu0
  %v4040 = vadd.f32 %v4011, %v4039
  %v4041 = vpop.f32.mrf.mxu0
  %v4042 = vadd.f32 %v4013, %v4041
  %4043 = vmatmul.bf16.gmra.mxu0 %v980
  %v4044 = vpop.f32.mrf.mxu0
  %v4045 = vadd.f32 %v4016, %v4044
  %v4046 = vpop.f32.mrf.mxu0
  %v4047 = vadd.f32 %v4018, %v4046
  %4048 = vdwg.mxu0
  %4049 = vmatpush.bf16.msra.mxu0 %v2531
  %4050 = vmatpush.bf16.msra.mxu0 %v2519
  %4051 = vmatpush.bf16.msra.mxu0 %v2507
  %4052 = vmatpush.bf16.msra.mxu0 %v2495
  %4053 = vmatpush.bf16.msra.mxu0 %v2483
  %4054 = vmatpush.bf16.msra.mxu0 %v2471
  %4055 = vmatpush.bf16.msra.mxu0 %v2459
  %4056 = vmatpush.bf16.msra.mxu0 %v2447
  %4057 = vmatmul.bf16.gmra.mxu0 %v969
  %v4058 = vpop.f32.mrf.mxu0
  %v4059 = vadd.f32 %v4030, %v4058
  %v4060 = vpop.f32.mrf.mxu0
  %v4061 = vadd.f32 %v4032, %v4060
  %4062 = vmatmul.bf16.gmra.mxu0 %v973
  %v4063 = vpop.f32.mrf.mxu0
  %v4064 = vadd.f32 %v4035, %v4063
  %v4065 = vpop.f32.mrf.mxu0
  %v4066 = vadd.f32 %v4037, %v4065
  %4067 = vmatmul.bf16.gmra.mxu0 %v977
  %v4068 = vpop.f32.mrf.mxu0
  %v4069 = vadd.f32 %v4040, %v4068
  %v4070 = vpop.f32.mrf.mxu0
  %v4071 = vadd.f32 %v4042, %v4070
  %4072 = vmatmul.bf16.gmra.mxu0 %v981
  %v4073 = vpop.f32.mrf.mxu0
  %v4074 = vadd.f32 %v4045, %v4073
  %v4075 = vpop.f32.mrf.mxu0
  %v4076 = vadd.f32 %v4047, %v4075
  %4077 = vdwg.mxu0
  %4078 = vmatpush.bf16.msra.mxu0 %v2244
  %4079 = vmatpush.bf16.msra.mxu0 %v2232
  %4080 = vmatpush.bf16.msra.mxu0 %v2220
  %4081 = vmatpush.bf16.msra.mxu0 %v2208
  %4082 = vmatpush.bf16.msra.mxu0 %v2196
  %4083 = vmatpush.bf16.msra.mxu0 %v2184
  %4084 = vmatpush.bf16.msra.mxu0 %v2172
  %4085 = vmatpush.bf16.msra.mxu0 %v2160
  %4086 = vmatmul.bf16.gmra.mxu0 %v966
  %v4087 = vpop.f32.mrf.mxu0
  %v4088 = vadd.f32 %v904, %v4087
  %v4089 = vpop.f32.mrf.mxu0
  %v4090 = vadd.f32 %v904, %v4089
  %4091 = vmatmul.bf16.gmra.mxu0 %v970
  %v4092 = vpop.f32.mrf.mxu0
  %v4093 = vadd.f32 %v904, %v4092
  %v4094 = vpop.f32.mrf.mxu0
  %v4095 = vadd.f32 %v904, %v4094
  %4096 = vmatmul.bf16.gmra.mxu0 %v974
  %v4097 = vpop.f32.mrf.mxu0
  %v4098 = vadd.f32 %v904, %v4097
  %v4099 = vpop.f32.mrf.mxu0
  %v4100 = vadd.f32 %v904, %v4099
  %4101 = vmatmul.bf16.gmra.mxu0 %v978
  %v4102 = vpop.f32.mrf.mxu0
  %v4103 = vadd.f32 %v904, %v4102
  %v4104 = vpop.f32.mrf.mxu0
  %v4105 = vadd.f32 %v904, %v4104
  %4106 = vdwg.mxu0
  %4107 = vmatpush.bf16.msra.mxu0 %v2340
  %4108 = vmatpush.bf16.msra.mxu0 %v2328
  %4109 = vmatpush.bf16.msra.mxu0 %v2316
  %4110 = vmatpush.bf16.msra.mxu0 %v2304
  %4111 = vmatpush.bf16.msra.mxu0 %v2292
  %4112 = vmatpush.bf16.msra.mxu0 %v2280
  %4113 = vmatpush.bf16.msra.mxu0 %v2268
  %4114 = vmatpush.bf16.msra.mxu0 %v2256
  %4115 = vmatmul.bf16.gmra.mxu0 %v967
  %v4116 = vpop.f32.mrf.mxu0
  %v4117 = vadd.f32 %v4088, %v4116
  %v4118 = vpop.f32.mrf.mxu0
  %v4119 = vadd.f32 %v4090, %v4118
  %4120 = vmatmul.bf16.gmra.mxu0 %v971
  %v4121 = vpop.f32.mrf.mxu0
  %v4122 = vadd.f32 %v4093, %v4121
  %v4123 = vpop.f32.mrf.mxu0
  %v4124 = vadd.f32 %v4095, %v4123
  %4125 = vmatmul.bf16.gmra.mxu0 %v975
  %v4126 = vpop.f32.mrf.mxu0
  %v4127 = vadd.f32 %v4098, %v4126
  %v4128 = vpop.f32.mrf.mxu0
  %v4129 = vadd.f32 %v4100, %v4128
  %4130 = vmatmul.bf16.gmra.mxu0 %v979
  %v4131 = vpop.f32.mrf.mxu0
  %v4132 = vadd.f32 %v4103, %v4131
  %v4133 = vpop.f32.mrf.mxu0
  %v4134 = vadd.f32 %v4105, %v4133
  %4135 = vdwg.mxu0
  %4136 = vmatpush.bf16.msra.mxu0 %v2436
  %4137 = vmatpush.bf16.msra.mxu0 %v2424
  %4138 = vmatpush.bf16.msra.mxu0 %v2412
  %4139 = vmatpush.bf16.msra.mxu0 %v2400
  %4140 = vmatpush.bf16.msra.mxu0 %v2388
  %4141 = vmatpush.bf16.msra.mxu0 %v2376
  %4142 = vmatpush.bf16.msra.mxu0 %v2364
  %4143 = vmatpush.bf16.msra.mxu0 %v2352
  %4144 = vmatmul.bf16.gmra.mxu0 %v968
  %v4145 = vpop.f32.mrf.mxu0
  %v4146 = vadd.f32 %v4117, %v4145
  %v4147 = vpop.f32.mrf.mxu0
  %v4148 = vadd.f32 %v4119, %v4147
  %4149 = vmatmul.bf16.gmra.mxu0 %v972
  %v4150 = vpop.f32.mrf.mxu0
  %v4151 = vadd.f32 %v4122, %v4150
  %v4152 = vpop.f32.mrf.mxu0
  %v4153 = vadd.f32 %v4124, %v4152
  %4154 = vmatmul.bf16.gmra.mxu0 %v976
  %v4155 = vpop.f32.mrf.mxu0
  %v4156 = vadd.f32 %v4127, %v4155
  %v4157 = vpop.f32.mrf.mxu0
  %v4158 = vadd.f32 %v4129, %v4157
  %4159 = vmatmul.bf16.gmra.mxu0 %v980
  %v4160 = vpop.f32.mrf.mxu0
  %v4161 = vadd.f32 %v4132, %v4160
  %v4162 = vpop.f32.mrf.mxu0
  %v4163 = vadd.f32 %v4134, %v4162
  %4164 = vdwg.mxu0
  %4165 = vmatpush.bf16.msra.mxu0 %v2532
  %4166 = vmatpush.bf16.msra.mxu0 %v2520
  %4167 = vmatpush.bf16.msra.mxu0 %v2508
  %4168 = vmatpush.bf16.msra.mxu0 %v2496
  %4169 = vmatpush.bf16.msra.mxu0 %v2484
  %4170 = vmatpush.bf16.msra.mxu0 %v2472
  %4171 = vmatpush.bf16.msra.mxu0 %v2460
  %4172 = vmatpush.bf16.msra.mxu0 %v2448
  %4173 = vmatmul.bf16.gmra.mxu0 %v969
  %v4174 = vpop.f32.mrf.mxu0
  %v4175 = vadd.f32 %v4146, %v4174
  %v4176 = vpop.f32.mrf.mxu0
  %v4177 = vadd.f32 %v4148, %v4176
  %4178 = vmatmul.bf16.gmra.mxu0 %v973
  %v4179 = vpop.f32.mrf.mxu0
  %v4180 = vadd.f32 %v4151, %v4179
  %v4181 = vpop.f32.mrf.mxu0
  %v4182 = vadd.f32 %v4153, %v4181
  %4183 = vmatmul.bf16.gmra.mxu0 %v977
  %v4184 = vpop.f32.mrf.mxu0
  %v4185 = vadd.f32 %v4156, %v4184
  %v4186 = vpop.f32.mrf.mxu0
  %v4187 = vadd.f32 %v4158, %v4186
  %4188 = vmatmul.bf16.gmra.mxu0 %v981
  %v4189 = vpop.f32.mrf.mxu0
  %v4190 = vadd.f32 %v4161, %v4189
  %v4191 = vpop.f32.mrf.mxu0
  %v4192 = vadd.f32 %v4163, %v4191
  %4193 = vdwg.mxu0
  %4194 = vmatpush.bf16.msra.mxu0 %v2245
  %4195 = vmatpush.bf16.msra.mxu0 %v2233
  %4196 = vmatpush.bf16.msra.mxu0 %v2221
  %4197 = vmatpush.bf16.msra.mxu0 %v2209
  %4198 = vmatpush.bf16.msra.mxu0 %v2197
  %4199 = vmatpush.bf16.msra.mxu0 %v2185
  %4200 = vmatpush.bf16.msra.mxu0 %v2173
  %4201 = vmatpush.bf16.msra.mxu0 %v2161
  %4202 = vmatmul.bf16.gmra.mxu0 %v966
  %v4203 = vpop.f32.mrf.mxu0
  %v4204 = vadd.f32 %v905, %v4203
  %v4205 = vpop.f32.mrf.mxu0
  %v4206 = vadd.f32 %v905, %v4205
  %4207 = vmatmul.bf16.gmra.mxu0 %v970
  %v4208 = vpop.f32.mrf.mxu0
  %v4209 = vadd.f32 %v905, %v4208
  %v4210 = vpop.f32.mrf.mxu0
  %v4211 = vadd.f32 %v905, %v4210
  %4212 = vmatmul.bf16.gmra.mxu0 %v974
  %v4213 = vpop.f32.mrf.mxu0
  %v4214 = vadd.f32 %v905, %v4213
  %v4215 = vpop.f32.mrf.mxu0
  %v4216 = vadd.f32 %v905, %v4215
  %4217 = vmatmul.bf16.gmra.mxu0 %v978
  %v4218 = vpop.f32.mrf.mxu0
  %v4219 = vadd.f32 %v905, %v4218
  %v4220 = vpop.f32.mrf.mxu0
  %v4221 = vadd.f32 %v905, %v4220
  %4222 = vdwg.mxu0
  %4223 = vmatpush.bf16.msra.mxu0 %v2341
  %4224 = vmatpush.bf16.msra.mxu0 %v2329
  %4225 = vmatpush.bf16.msra.mxu0 %v2317
  %4226 = vmatpush.bf16.msra.mxu0 %v2305
  %4227 = vmatpush.bf16.msra.mxu0 %v2293
  %4228 = vmatpush.bf16.msra.mxu0 %v2281
  %4229 = vmatpush.bf16.msra.mxu0 %v2269
  %4230 = vmatpush.bf16.msra.mxu0 %v2257
  %4231 = vmatmul.bf16.gmra.mxu0 %v967
  %v4232 = vpop.f32.mrf.mxu0
  %v4233 = vadd.f32 %v4204, %v4232
  %v4234 = vpop.f32.mrf.mxu0
  %v4235 = vadd.f32 %v4206, %v4234
  %4236 = vmatmul.bf16.gmra.mxu0 %v971
  %v4237 = vpop.f32.mrf.mxu0
  %v4238 = vadd.f32 %v4209, %v4237
  %v4239 = vpop.f32.mrf.mxu0
  %v4240 = vadd.f32 %v4211, %v4239
  %4241 = vmatmul.bf16.gmra.mxu0 %v975
  %v4242 = vpop.f32.mrf.mxu0
  %v4243 = vadd.f32 %v4214, %v4242
  %v4244 = vpop.f32.mrf.mxu0
  %v4245 = vadd.f32 %v4216, %v4244
  %4246 = vmatmul.bf16.gmra.mxu0 %v979
  %v4247 = vpop.f32.mrf.mxu0
  %v4248 = vadd.f32 %v4219, %v4247
  %v4249 = vpop.f32.mrf.mxu0
  %v4250 = vadd.f32 %v4221, %v4249
  %4251 = vdwg.mxu0
  %4252 = vmatpush.bf16.msra.mxu0 %v2437
  %4253 = vmatpush.bf16.msra.mxu0 %v2425
  %4254 = vmatpush.bf16.msra.mxu0 %v2413
  %4255 = vmatpush.bf16.msra.mxu0 %v2401
  %4256 = vmatpush.bf16.msra.mxu0 %v2389
  %4257 = vmatpush.bf16.msra.mxu0 %v2377
  %4258 = vmatpush.bf16.msra.mxu0 %v2365
  %4259 = vmatpush.bf16.msra.mxu0 %v2353
  %4260 = vmatmul.bf16.gmra.mxu0 %v968
  %v4261 = vpop.f32.mrf.mxu0
  %v4262 = vadd.f32 %v4233, %v4261
  %v4263 = vpop.f32.mrf.mxu0
  %v4264 = vadd.f32 %v4235, %v4263
  %4265 = vmatmul.bf16.gmra.mxu0 %v972
  %v4266 = vpop.f32.mrf.mxu0
  %v4267 = vadd.f32 %v4238, %v4266
  %v4268 = vpop.f32.mrf.mxu0
  %v4269 = vadd.f32 %v4240, %v4268
  %4270 = vmatmul.bf16.gmra.mxu0 %v976
  %v4271 = vpop.f32.mrf.mxu0
  %v4272 = vadd.f32 %v4243, %v4271
  %v4273 = vpop.f32.mrf.mxu0
  %v4274 = vadd.f32 %v4245, %v4273
  %4275 = vmatmul.bf16.gmra.mxu0 %v980
  %v4276 = vpop.f32.mrf.mxu0
  %v4277 = vadd.f32 %v4248, %v4276
  %v4278 = vpop.f32.mrf.mxu0
  %v4279 = vadd.f32 %v4250, %v4278
  %4280 = vdwg.mxu0
  %4281 = vmatpush.bf16.msra.mxu0 %v2533
  %4282 = vmatpush.bf16.msra.mxu0 %v2521
  %4283 = vmatpush.bf16.msra.mxu0 %v2509
  %4284 = vmatpush.bf16.msra.mxu0 %v2497
  %4285 = vmatpush.bf16.msra.mxu0 %v2485
  %4286 = vmatpush.bf16.msra.mxu0 %v2473
  %4287 = vmatpush.bf16.msra.mxu0 %v2461
  %4288 = vmatpush.bf16.msra.mxu0 %v2449
  %4289 = vmatmul.bf16.gmra.mxu0 %v969
  %v4290 = vpop.f32.mrf.mxu0
  %v4291 = vadd.f32 %v4262, %v4290
  %v4292 = vpop.f32.mrf.mxu0
  %v4293 = vadd.f32 %v4264, %v4292
  %4294 = vmatmul.bf16.gmra.mxu0 %v973
  %v4295 = vpop.f32.mrf.mxu0
  %v4296 = vadd.f32 %v4267, %v4295
  %v4297 = vpop.f32.mrf.mxu0
  %v4298 = vadd.f32 %v4269, %v4297
  %4299 = vmatmul.bf16.gmra.mxu0 %v977
  %v4300 = vpop.f32.mrf.mxu0
  %v4301 = vadd.f32 %v4272, %v4300
  %v4302 = vpop.f32.mrf.mxu0
  %v4303 = vadd.f32 %v4274, %v4302
  %4304 = vmatmul.bf16.gmra.mxu0 %v981
  %v4305 = vpop.f32.mrf.mxu0
  %v4306 = vadd.f32 %v4277, %v4305
  %v4307 = vpop.f32.mrf.mxu0
  %v4308 = vadd.f32 %v4279, %v4307
  %4309 = vdwg.mxu0
  %v4310 = vpack.c.bf16 %v3131, %v3015
  %v4311 = vpack.c.bf16 %v3363, %v3247
  %v4312 = vpack.c.bf16 %v3595, %v3479
  %v4313 = vpack.c.bf16 %v3827, %v3711
  %v4314 = vpack.c.bf16 %v4059, %v3943
  %v4315 = vpack.c.bf16 %v4291, %v4175
  %v4316 = vpack.c.bf16 %v3133, %v3017
  %v4317 = vpack.c.bf16 %v3365, %v3249
  %v4318 = vpack.c.bf16 %v3597, %v3481
  %v4319 = vpack.c.bf16 %v3829, %v3713
  %v4320 = vpack.c.bf16 %v4061, %v3945
  %v4321 = vpack.c.bf16 %v4293, %v4177
  %v4322 = vpack.c.bf16 %v3136, %v3020
  %v4323 = vpack.c.bf16 %v3368, %v3252
  %v4324 = vpack.c.bf16 %v3600, %v3484
  %v4325 = vpack.c.bf16 %v3832, %v3716
  %v4326 = vpack.c.bf16 %v4064, %v3948
  %v4327 = vpack.c.bf16 %v4296, %v4180
  %v4328 = vpack.c.bf16 %v3138, %v3022
  %v4329 = vpack.c.bf16 %v3370, %v3254
  %v4330 = vpack.c.bf16 %v3602, %v3486
  %v4331 = vpack.c.bf16 %v3834, %v3718
  %v4332 = vpack.c.bf16 %v4066, %v3950
  %v4333 = vpack.c.bf16 %v4298, %v4182
  %v4334 = vpack.c.bf16 %v3141, %v3025
  %v4335 = vpack.c.bf16 %v3373, %v3257
  %v4336 = vpack.c.bf16 %v3605, %v3489
  %v4337 = vpack.c.bf16 %v3837, %v3721
  %v4338 = vpack.c.bf16 %v4069, %v3953
  %v4339 = vpack.c.bf16 %v4301, %v4185
  %v4340 = vpack.c.bf16 %v3143, %v3027
  %v4341 = vpack.c.bf16 %v3375, %v3259
  %v4342 = vpack.c.bf16 %v3607, %v3491
  %v4343 = vpack.c.bf16 %v3839, %v3723
  %v4344 = vpack.c.bf16 %v4071, %v3955
  %v4345 = vpack.c.bf16 %v4303, %v4187
  %v4346 = vpack.c.bf16 %v3146, %v3030
  %v4347 = vpack.c.bf16 %v3378, %v3262
  %v4348 = vpack.c.bf16 %v3610, %v3494
  %v4349 = vpack.c.bf16 %v3842, %v3726
  %v4350 = vpack.c.bf16 %v4074, %v3958
  %v4351 = vpack.c.bf16 %v4306, %v4190
  %v4352 = vpack.c.bf16 %v3148, %v3032
  %v4353 = vpack.c.bf16 %v3380, %v3264
  %v4354 = vpack.c.bf16 %v3612, %v3496
  %v4355 = vpack.c.bf16 %v3844, %v3728
  %v4356 = vpack.c.bf16 %v4076, %v3960
  %v4357 = vpack.c.bf16 %v4308, %v4192
  %4358 = vst [vmem:[#allocation2] sm:$0xff] %v4310
  %4359 = vst [vmem:[#allocation2 + $0x8] sm:$0xff] %v4311
  %4360 = vst [vmem:[#allocation2 + $0x10] sm:$0xff] %v4312
  %4361 = vst [vmem:[#allocation2 + $0x18] sm:$0xff] %v4313
  %4362 = vst [vmem:[#allocation2 + $0x20] sm:$0xff] %v4314
  %4363 = vst [vmem:[#allocation2 + $0x28] sm:$0xff] %v4315
  %4364 = vst [vmem:[#allocation2 + $0x30] sm:$0xff] %v4316
  %4365 = vst [vmem:[#allocation2 + $0x38] sm:$0xff] %v4317
  %4366 = vst [vmem:[#allocation2 + $0x40] sm:$0xff] %v4318
  %4367 = vst [vmem:[#allocation2 + $0x48] sm:$0xff] %v4319
  %4368 = vst [vmem:[#allocation2 + $0x50] sm:$0xff] %v4320
  %4369 = vst [vmem:[#allocation2 + $0x58] sm:$0xff] %v4321
  %4370 = vst [vmem:[#allocation2 + $0x60] sm:$0xff] %v4322
  %4371 = vst [vmem:[#allocation2 + $0x68] sm:$0xff] %v4323
  %4372 = vst [vmem:[#allocation2 + $0x70] sm:$0xff] %v4324
  %4373 = vst [vmem:[#allocation2 + $0x78] sm:$0xff] %v4325
  %4374 = vst [vmem:[#allocation2 + $0x80] sm:$0xff] %v4326
  %4375 = vst [vmem:[#allocation2 + $0x88] sm:$0xff] %v4327
  %4376 = vst [vmem:[#allocation2 + $0x90] sm:$0xff] %v4328
  %4377 = vst [vmem:[#allocation2 + $0x98] sm:$0xff] %v4329
  %4378 = vst [vmem:[#allocation2 + $0xa0] sm:$0xff] %v4330
  %4379 = vst [vmem:[#allocation2 + $0xa8] sm:$0xff] %v4331
  %4380 = vst [vmem:[#allocation2 + $0xb0] sm:$0xff] %v4332
  %4381 = vst [vmem:[#allocation2 + $0xb8] sm:$0xff] %v4333
  %4382 = vst [vmem:[#allocation2 + $0xc0] sm:$0xff] %v4334
  %4383 = vst [vmem:[#allocation2 + $0xc8] sm:$0xff] %v4335
  %4384 = vst [vmem:[#allocation2 + $0xd0] sm:$0xff] %v4336
  %4385 = vst [vmem:[#allocation2 + $0xd8] sm:$0xff] %v4337
  %4386 = vst [vmem:[#allocation2 + $0xe0] sm:$0xff] %v4338
  %4387 = vst [vmem:[#allocation2 + $0xe8] sm:$0xff] %v4339
  %4388 = vst [vmem:[#allocation2 + $0xf0] sm:$0xff] %v4340
  %4389 = vst [vmem:[#allocation2 + $0xf8] sm:$0xff] %v4341
  %4390 = vst [vmem:[#allocation2 + $0x100] sm:$0xff] %v4342
  %4391 = vst [vmem:[#allocation2 + $0x108] sm:$0xff] %v4343
  %4392 = vst [vmem:[#allocation2 + $0x110] sm:$0xff] %v4344
  %4393 = vst [vmem:[#allocation2 + $0x118] sm:$0xff] %v4345
  %4394 = vst [vmem:[#allocation2 + $0x120] sm:$0xff] %v4346
  %4395 = vst [vmem:[#allocation2 + $0x128] sm:$0xff] %v4347
  %4396 = vst [vmem:[#allocation2 + $0x130] sm:$0xff] %v4348
  %4397 = vst [vmem:[#allocation2 + $0x138] sm:$0xff] %v4349
  %4398 = vst [vmem:[#allocation2 + $0x140] sm:$0xff] %v4350
  %4399 = vst [vmem:[#allocation2 + $0x148] sm:$0xff] %v4351
  %4400 = vst [vmem:[#allocation2 + $0x150] sm:$0xff] %v4352
  %4401 = vst [vmem:[#allocation2 + $0x158] sm:$0xff] %v4353
  %4402 = vst [vmem:[#allocation2 + $0x160] sm:$0xff] %v4354
  %4403 = vst [vmem:[#allocation2 + $0x168] sm:$0xff] %v4355
  %4404 = vst [vmem:[#allocation2 + $0x170] sm:$0xff] %v4356
  %4405 = vst [vmem:[#allocation2 + $0x178] sm:$0xff] %v4357
  %s4406 = smul.u32 4, 32
  %s4407 = smul.u32 %s4406, 6
  %s4408 = sshll.u32 %s4407, 4
  %4409 = dma.done [#allocation6], %s4408
  %s4410 = sshll.u32 %s4407, 4
  %4411 = dma.done %s232, %s4410
  %v4412 = vld [vmem:[#allocation3] sm:$0xff]
  %v4413 = vld [vmem:[#allocation3 + $0x8] sm:$0xff]
  %v4414 = vld [vmem:[#allocation3 + $0x10] sm:$0xff]
  %v4415 = vld [vmem:[#allocation3 + $0x18] sm:$0xff]
  %v4416 = vld [vmem:[#allocation3 + $0x20] sm:$0xff]
  %v4417 = vld [vmem:[#allocation3 + $0x28] sm:$0xff]
  %v4418 = vld [vmem:[#allocation3 + $0x30] sm:$0xff]
  %v4419 = vld [vmem:[#allocation3 + $0x38] sm:$0xff]
  %v4420 = vld [vmem:[#allocation3 + $0x40] sm:$0xff]
  %v4421 = vld [vmem:[#allocation3 + $0x48] sm:$0xff]
  %v4422 = vld [vmem:[#allocation3 + $0x50] sm:$0xff]
  %v4423 = vld [vmem:[#allocation3 + $0x58] sm:$0xff]
  %v4424 = vld [vmem:[#allocation3 + $0x60] sm:$0xff]
  %v4425 = vld [vmem:[#allocation3 + $0x68] sm:$0xff]
  %v4426 = vld [vmem:[#allocation3 + $0x70] sm:$0xff]
  %v4427 = vld [vmem:[#allocation3 + $0x78] sm:$0xff]
  %v4428 = vld [vmem:[#allocation3 + $0x80] sm:$0xff]
  %v4429 = vld [vmem:[#allocation3 + $0x88] sm:$0xff]
  %v4430 = vld [vmem:[#allocation3 + $0x90] sm:$0xff]
  %v4431 = vld [vmem:[#allocation3 + $0x98] sm:$0xff]
  %v4432 = vld [vmem:[#allocation3 + $0xa0] sm:$0xff]
  %v4433 = vld [vmem:[#allocation3 + $0xa8] sm:$0xff]
  %v4434 = vld [vmem:[#allocation3 + $0xb0] sm:$0xff]
  %v4435 = vld [vmem:[#allocation3 + $0xb8] sm:$0xff]
  %v4436 = vld [vmem:[#allocation3 + $0xc0] sm:$0xff]
  %v4437 = vld [vmem:[#allocation3 + $0xc8] sm:$0xff]
  %v4438 = vld [vmem:[#allocation3 + $0xd0] sm:$0xff]
  %v4439 = vld [vmem:[#allocation3 + $0xd8] sm:$0xff]
  %v4440 = vld [vmem:[#allocation3 + $0xe0] sm:$0xff]
  %v4441 = vld [vmem:[#allocation3 + $0xe8] sm:$0xff]
  %v4442 = vld [vmem:[#allocation3 + $0xf0] sm:$0xff]
  %v4443 = vld [vmem:[#allocation3 + $0xf8] sm:$0xff]
  %v4444 = vld [vmem:[#allocation3 + $0x100] sm:$0xff]
  %v4445 = vld [vmem:[#allocation3 + $0x108] sm:$0xff]
  %v4446 = vld [vmem:[#allocation3 + $0x110] sm:$0xff]
  %v4447 = vld [vmem:[#allocation3 + $0x118] sm:$0xff]
  %v4448 = vld [vmem:[#allocation3 + $0x120] sm:$0xff]
  %v4449 = vld [vmem:[#allocation3 + $0x128] sm:$0xff]
  %v4450 = vld [vmem:[#allocation3 + $0x130] sm:$0xff]
  %v4451 = vld [vmem:[#allocation3 + $0x138] sm:$0xff]
  %v4452 = vld [vmem:[#allocation3 + $0x140] sm:$0xff]
  %v4453 = vld [vmem:[#allocation3 + $0x148] sm:$0xff]
  %v4454 = vld [vmem:[#allocation3 + $0x150] sm:$0xff]
  %v4455 = vld [vmem:[#allocation3 + $0x158] sm:$0xff]
  %v4456 = vld [vmem:[#allocation3 + $0x160] sm:$0xff]
  %v4457 = vld [vmem:[#allocation3 + $0x168] sm:$0xff]
  %v4458 = vld [vmem:[#allocation3 + $0x170] sm:$0xff]
  %v4459 = vld [vmem:[#allocation3 + $0x178] sm:$0xff]
  %v4460 = vld [vmem:[#allocation3 + $0x180] sm:$0xff]
  %v4461 = vld [vmem:[#allocation3 + $0x188] sm:$0xff]
  %v4462 = vld [vmem:[#allocation3 + $0x190] sm:$0xff]
  %v4463 = vld [vmem:[#allocation3 + $0x198] sm:$0xff]
  %v4464 = vld [vmem:[#allocation3 + $0x1a0] sm:$0xff]
  %v4465 = vld [vmem:[#allocation3 + $0x1a8] sm:$0xff]
  %v4466 = vld [vmem:[#allocation3 + $0x1b0] sm:$0xff]
  %v4467 = vld [vmem:[#allocation3 + $0x1b8] sm:$0xff]
  %v4468 = vld [vmem:[#allocation3 + $0x1c0] sm:$0xff]
  %v4469 = vld [vmem:[#allocation3 + $0x1c8] sm:$0xff]
  %v4470 = vld [vmem:[#allocation3 + $0x1d0] sm:$0xff]
  %v4471 = vld [vmem:[#allocation3 + $0x1d8] sm:$0xff]
  %v4472 = vld [vmem:[#allocation3 + $0x1e0] sm:$0xff]
  %v4473 = vld [vmem:[#allocation3 + $0x1e8] sm:$0xff]
  %v4474 = vld [vmem:[#allocation3 + $0x1f0] sm:$0xff]
  %v4475 = vld [vmem:[#allocation3 + $0x1f8] sm:$0xff]
  %v4476 = vld [vmem:[#allocation3 + $0x200] sm:$0xff]
  %v4477 = vld [vmem:[#allocation3 + $0x208] sm:$0xff]
  %v4478 = vld [vmem:[#allocation3 + $0x210] sm:$0xff]
  %v4479 = vld [vmem:[#allocation3 + $0x218] sm:$0xff]
  %v4480 = vld [vmem:[#allocation3 + $0x220] sm:$0xff]
  %v4481 = vld [vmem:[#allocation3 + $0x228] sm:$0xff]
  %v4482 = vld [vmem:[#allocation3 + $0x230] sm:$0xff]
  %v4483 = vld [vmem:[#allocation3 + $0x238] sm:$0xff]
  %v4484 = vld [vmem:[#allocation3 + $0x240] sm:$0xff]
  %v4485 = vld [vmem:[#allocation3 + $0x248] sm:$0xff]
  %v4486 = vld [vmem:[#allocation3 + $0x250] sm:$0xff]
  %v4487 = vld [vmem:[#allocation3 + $0x258] sm:$0xff]
  %v4488 = vld [vmem:[#allocation3 + $0x260] sm:$0xff]
  %v4489 = vld [vmem:[#allocation3 + $0x268] sm:$0xff]
  %v4490 = vld [vmem:[#allocation3 + $0x270] sm:$0xff]
  %v4491 = vld [vmem:[#allocation3 + $0x278] sm:$0xff]
  %v4492 = vld [vmem:[#allocation3 + $0x280] sm:$0xff]
  %v4493 = vld [vmem:[#allocation3 + $0x288] sm:$0xff]
  %v4494 = vld [vmem:[#allocation3 + $0x290] sm:$0xff]
  %v4495 = vld [vmem:[#allocation3 + $0x298] sm:$0xff]
  %v4496 = vld [vmem:[#allocation3 + $0x2a0] sm:$0xff]
  %v4497 = vld [vmem:[#allocation3 + $0x2a8] sm:$0xff]
  %v4498 = vld [vmem:[#allocation3 + $0x2b0] sm:$0xff]
  %v4499 = vld [vmem:[#allocation3 + $0x2b8] sm:$0xff]
  %v4500 = vld [vmem:[#allocation3 + $0x2c0] sm:$0xff]
  %v4501 = vld [vmem:[#allocation3 + $0x2c8] sm:$0xff]
  %v4502 = vld [vmem:[#allocation3 + $0x2d0] sm:$0xff]
  %v4503 = vld [vmem:[#allocation3 + $0x2d8] sm:$0xff]
  %v4504 = vld [vmem:[#allocation3 + $0x2e0] sm:$0xff]
  %v4505 = vld [vmem:[#allocation3 + $0x2e8] sm:$0xff]
  %v4506 = vld [vmem:[#allocation3 + $0x2f0] sm:$0xff]
  %v4507 = vld [vmem:[#allocation3 + $0x2f8] sm:$0xff]
  %v4508 = vld [vmem:[#allocation4] sm:$0xff]
  %v4509 = vld [vmem:[#allocation4 + $0x8] sm:$0xff]
  %v4510 = vld [vmem:[#allocation4 + $0x10] sm:$0xff]
  %v4511 = vld [vmem:[#allocation4 + $0x18] sm:$0xff]
  %v4512 = vld [vmem:[#allocation4 + $0x20] sm:$0xff]
  %v4513 = vld [vmem:[#allocation4 + $0x28] sm:$0xff]
  %v4514 = vld [vmem:[#allocation4 + $0x30] sm:$0xff]
  %v4515 = vld [vmem:[#allocation4 + $0x38] sm:$0xff]
  %v4516 = vld [vmem:[#allocation4 + $0x40] sm:$0xff]
  %v4517 = vld [vmem:[#allocation4 + $0x48] sm:$0xff]
  %v4518 = vld [vmem:[#allocation4 + $0x50] sm:$0xff]
  %v4519 = vld [vmem:[#allocation4 + $0x58] sm:$0xff]
  %v4520 = vld [vmem:[#allocation4 + $0x60] sm:$0xff]
  %v4521 = vld [vmem:[#allocation4 + $0x68] sm:$0xff]
  %v4522 = vld [vmem:[#allocation4 + $0x70] sm:$0xff]
  %v4523 = vld [vmem:[#allocation4 + $0x78] sm:$0xff]
  %v4524 = vld [vmem:[#allocation4 + $0x80] sm:$0xff]
  %v4525 = vld [vmem:[#allocation4 + $0x88] sm:$0xff]
  %v4526 = vld [vmem:[#allocation4 + $0x90] sm:$0xff]
  %v4527 = vld [vmem:[#allocation4 + $0x98] sm:$0xff]
  %v4528 = vld [vmem:[#allocation4 + $0xa0] sm:$0xff]
  %v4529 = vld [vmem:[#allocation4 + $0xa8] sm:$0xff]
  %v4530 = vld [vmem:[#allocation4 + $0xb0] sm:$0xff]
  %v4531 = vld [vmem:[#allocation4 + $0xb8] sm:$0xff]
  %v4532 = vld [vmem:[#allocation4 + $0xc0] sm:$0xff]
  %v4533 = vld [vmem:[#allocation4 + $0xc8] sm:$0xff]
  %v4534 = vld [vmem:[#allocation4 + $0xd0] sm:$0xff]
  %v4535 = vld [vmem:[#allocation4 + $0xd8] sm:$0xff]
  %v4536 = vld [vmem:[#allocation4 + $0xe0] sm:$0xff]
  %v4537 = vld [vmem:[#allocation4 + $0xe8] sm:$0xff]
  %v4538 = vld [vmem:[#allocation4 + $0xf0] sm:$0xff]
  %v4539 = vld [vmem:[#allocation4 + $0xf8] sm:$0xff]
  %v4540 = vld [vmem:[#allocation4 + $0x100] sm:$0xff]
  %v4541 = vld [vmem:[#allocation4 + $0x108] sm:$0xff]
  %v4542 = vld [vmem:[#allocation4 + $0x110] sm:$0xff]
  %v4543 = vld [vmem:[#allocation4 + $0x118] sm:$0xff]
  %v4544 = vld [vmem:[#allocation4 + $0x120] sm:$0xff]
  %v4545 = vld [vmem:[#allocation4 + $0x128] sm:$0xff]
  %v4546 = vld [vmem:[#allocation4 + $0x130] sm:$0xff]
  %v4547 = vld [vmem:[#allocation4 + $0x138] sm:$0xff]
  %v4548 = vld [vmem:[#allocation4 + $0x140] sm:$0xff]
  %v4549 = vld [vmem:[#allocation4 + $0x148] sm:$0xff]
  %v4550 = vld [vmem:[#allocation4 + $0x150] sm:$0xff]
  %v4551 = vld [vmem:[#allocation4 + $0x158] sm:$0xff]
  %v4552 = vld [vmem:[#allocation4 + $0x160] sm:$0xff]
  %v4553 = vld [vmem:[#allocation4 + $0x168] sm:$0xff]
  %v4554 = vld [vmem:[#allocation4 + $0x170] sm:$0xff]
  %v4555 = vld [vmem:[#allocation4 + $0x178] sm:$0xff]
  %v4556 = vld [vmem:[#allocation4 + $0x180] sm:$0xff]
  %v4557 = vld [vmem:[#allocation4 + $0x188] sm:$0xff]
  %v4558 = vld [vmem:[#allocation4 + $0x190] sm:$0xff]
  %v4559 = vld [vmem:[#allocation4 + $0x198] sm:$0xff]
  %v4560 = vld [vmem:[#allocation4 + $0x1a0] sm:$0xff]
  %v4561 = vld [vmem:[#allocation4 + $0x1a8] sm:$0xff]
  %v4562 = vld [vmem:[#allocation4 + $0x1b0] sm:$0xff]
  %v4563 = vld [vmem:[#allocation4 + $0x1b8] sm:$0xff]
  %v4564 = vld [vmem:[#allocation4 + $0x1c0] sm:$0xff]
  %v4565 = vld [vmem:[#allocation4 + $0x1c8] sm:$0xff]
  %v4566 = vld [vmem:[#allocation4 + $0x1d0] sm:$0xff]
  %v4567 = vld [vmem:[#allocation4 + $0x1d8] sm:$0xff]
  %v4568 = vld [vmem:[#allocation4 + $0x1e0] sm:$0xff]
  %v4569 = vld [vmem:[#allocation4 + $0x1e8] sm:$0xff]
  %v4570 = vld [vmem:[#allocation4 + $0x1f0] sm:$0xff]
  %v4571 = vld [vmem:[#allocation4 + $0x1f8] sm:$0xff]
  %v4572 = vld [vmem:[#allocation4 + $0x200] sm:$0xff]
  %v4573 = vld [vmem:[#allocation4 + $0x208] sm:$0xff]
  %v4574 = vld [vmem:[#allocation4 + $0x210] sm:$0xff]
  %v4575 = vld [vmem:[#allocation4 + $0x218] sm:$0xff]
  %v4576 = vld [vmem:[#allocation4 + $0x220] sm:$0xff]
  %v4577 = vld [vmem:[#allocation4 + $0x228] sm:$0xff]
  %v4578 = vld [vmem:[#allocation4 + $0x230] sm:$0xff]
  %v4579 = vld [vmem:[#allocation4 + $0x238] sm:$0xff]
  %v4580 = vld [vmem:[#allocation4 + $0x240] sm:$0xff]
  %v4581 = vld [vmem:[#allocation4 + $0x248] sm:$0xff]
  %v4582 = vld [vmem:[#allocation4 + $0x250] sm:$0xff]
  %v4583 = vld [vmem:[#allocation4 + $0x258] sm:$0xff]
  %v4584 = vld [vmem:[#allocation4 + $0x260] sm:$0xff]
  %v4585 = vld [vmem:[#allocation4 + $0x268] sm:$0xff]
  %v4586 = vld [vmem:[#allocation4 + $0x270] sm:$0xff]
  %v4587 = vld [vmem:[#allocation4 + $0x278] sm:$0xff]
  %v4588 = vld [vmem:[#allocation4 + $0x280] sm:$0xff]
  %v4589 = vld [vmem:[#allocation4 + $0x288] sm:$0xff]
  %v4590 = vld [vmem:[#allocation4 + $0x290] sm:$0xff]
  %v4591 = vld [vmem:[#allocation4 + $0x298] sm:$0xff]
  %v4592 = vld [vmem:[#allocation4 + $0x2a0] sm:$0xff]
  %v4593 = vld [vmem:[#allocation4 + $0x2a8] sm:$0xff]
  %v4594 = vld [vmem:[#allocation4 + $0x2b0] sm:$0xff]
  %v4595 = vld [vmem:[#allocation4 + $0x2b8] sm:$0xff]
  %v4596 = vld [vmem:[#allocation4 + $0x2c0] sm:$0xff]
  %v4597 = vld [vmem:[#allocation4 + $0x2c8] sm:$0xff]
  %v4598 = vld [vmem:[#allocation4 + $0x2d0] sm:$0xff]
  %v4599 = vld [vmem:[#allocation4 + $0x2d8] sm:$0xff]
  %v4600 = vld [vmem:[#allocation4 + $0x2e0] sm:$0xff]
  %v4601 = vld [vmem:[#allocation4 + $0x2e8] sm:$0xff]
  %v4602 = vld [vmem:[#allocation4 + $0x2f0] sm:$0xff]
  %v4603 = vld [vmem:[#allocation4 + $0x2f8] sm:$0xff]
  %v4604 = vld [vmem:[%s3] sm:$0x3]
  %v4606 = vperm.slane %v4604, 0
  %v4607 = vperm.slane %v4604, 1
  %v4610 = vld [vmem:[%s3 + $0x2] sm:$0x3]
  %v4612 = vperm.slane %v4610, 0
  %v4613 = vperm.slane %v4610, 1
  %v4616 = vld [vmem:[#allocation2] sm:$0xff]
  %v4617 = vld [vmem:[#allocation2 + $0x8] sm:$0xff]
  %v4618 = vld [vmem:[#allocation2 + $0x10] sm:$0xff]
  %v4619 = vunpack.c.l.bf16 %v4616
  %v4620 = vunpack.c.h.bf16 %v4616
  %v4621 = vunpack.c.l.bf16 %v4617
  %v4622 = vunpack.c.h.bf16 %v4617
  %v4623 = vunpack.c.l.bf16 %v4618
  %v4624 = vunpack.c.h.bf16 %v4618
  %v4625 = vld [vmem:[#allocation2 + $0x168] sm:$0xff]
  %v4626 = vld [vmem:[#allocation2 + $0x170] sm:$0xff]
  %v4627 = vld [vmem:[#allocation2 + $0x178] sm:$0xff]
  %v4628 = vunpack.c.l.bf16 %v4625
  %v4629 = vunpack.c.h.bf16 %v4625
  %v4630 = vunpack.c.l.bf16 %v4626
  %v4631 = vunpack.c.h.bf16 %v4626
  %v4632 = vunpack.c.l.bf16 %v4627
  %v4633 = vunpack.c.h.bf16 %v4627
  %v4730 = vunpack.c.l.b16 %v4412
  %v4731 = vunpack.c.h.b16 %v4412
  %v4732 = vunpack.c.l.b16 %v4413
  %v4733 = vunpack.c.h.b16 %v4413
  %v4734 = vunpack.c.l.b16 %v4414
  %v4735 = vunpack.c.h.b16 %v4414
  %v4736 = vunpack.c.l.b16 %v4415
  %v4737 = vunpack.c.h.b16 %v4415
  %v4738 = vunpack.c.l.b16 %v4416
  %v4739 = vunpack.c.h.b16 %v4416
  %v4740 = vunpack.c.l.b16 %v4417
  %v4741 = vunpack.c.h.b16 %v4417
  %v4742 = vunpack.c.l.b16 %v4418
  %v4743 = vunpack.c.h.b16 %v4418
  %v4744 = vunpack.c.l.b16 %v4419
  %v4745 = vunpack.c.h.b16 %v4419
  %v4746 = vunpack.c.l.b16 %v4420
  %v4747 = vunpack.c.h.b16 %v4420
  %v4748 = vunpack.c.l.b16 %v4421
  %v4749 = vunpack.c.h.b16 %v4421
  %v4750 = vunpack.c.l.b16 %v4422
  %v4751 = vunpack.c.h.b16 %v4422
  %v4752 = vunpack.c.l.b16 %v4423
  %v4753 = vunpack.c.h.b16 %v4423
  %v4754 = vunpack.c.l.b16 %v4424
  %v4755 = vunpack.c.h.b16 %v4424
  %v4756 = vunpack.c.l.b16 %v4425
  %v4757 = vunpack.c.h.b16 %v4425
  %v4758 = vunpack.c.l.b16 %v4426
  %v4759 = vunpack.c.h.b16 %v4426
  %v4760 = vunpack.c.l.b16 %v4427
  %v4761 = vunpack.c.h.b16 %v4427
  %v4762 = vunpack.c.l.b16 %v4428
  %v4763 = vunpack.c.h.b16 %v4428
  %v4764 = vunpack.c.l.b16 %v4429
  %v4765 = vunpack.c.h.b16 %v4429
  %v4766 = vunpack.c.l.b16 %v4430
  %v4767 = vunpack.c.h.b16 %v4430
  %v4768 = vunpack.c.l.b16 %v4431
  %v4769 = vunpack.c.h.b16 %v4431
  %v4770 = vunpack.c.l.b16 %v4432
  %v4771 = vunpack.c.h.b16 %v4432
  %v4772 = vunpack.c.l.b16 %v4433
  %v4773 = vunpack.c.h.b16 %v4433
  %v4774 = vunpack.c.l.b16 %v4434
  %v4775 = vunpack.c.h.b16 %v4434
  %v4776 = vunpack.c.l.b16 %v4435
  %v4777 = vunpack.c.h.b16 %v4435
  %v4778 = vunpack.c.l.b16 %v4436
  %v4779 = vunpack.c.h.b16 %v4436
  %v4780 = vunpack.c.l.b16 %v4437
  %v4781 = vunpack.c.h.b16 %v4437
  %v4782 = vunpack.c.l.b16 %v4438
  %v4783 = vunpack.c.h.b16 %v4438
  %v4784 = vunpack.c.l.b16 %v4439
  %v4785 = vunpack.c.h.b16 %v4439
  %v4786 = vunpack.c.l.b16 %v4440
  %v4787 = vunpack.c.h.b16 %v4440
  %v4788 = vunpack.c.l.b16 %v4441
  %v4789 = vunpack.c.h.b16 %v4441
  %v4790 = vunpack.c.l.b16 %v4442
  %v4791 = vunpack.c.h.b16 %v4442
  %v4792 = vunpack.c.l.b16 %v4443
  %v4793 = vunpack.c.h.b16 %v4443
  %v4794 = vunpack.c.l.b16 %v4444
  %v4795 = vunpack.c.h.b16 %v4444
  %v4796 = vunpack.c.l.b16 %v4445
  %v4797 = vunpack.c.h.b16 %v4445
  %v4798 = vunpack.c.l.b16 %v4446
  %v4799 = vunpack.c.h.b16 %v4446
  %v4800 = vunpack.c.l.b16 %v4447
  %v4801 = vunpack.c.h.b16 %v4447
  %v4802 = vunpack.c.l.b16 %v4448
  %v4803 = vunpack.c.h.b16 %v4448
  %v4804 = vunpack.c.l.b16 %v4449
  %v4805 = vunpack.c.h.b16 %v4449
  %v4806 = vunpack.c.l.b16 %v4450
  %v4807 = vunpack.c.h.b16 %v4450
  %v4808 = vunpack.c.l.b16 %v4451
  %v4809 = vunpack.c.h.b16 %v4451
  %v4810 = vunpack.c.l.b16 %v4452
  %v4811 = vunpack.c.h.b16 %v4452
  %v4812 = vunpack.c.l.b16 %v4453
  %v4813 = vunpack.c.h.b16 %v4453
  %v4814 = vunpack.c.l.b16 %v4454
  %v4815 = vunpack.c.h.b16 %v4454
  %v4816 = vunpack.c.l.b16 %v4455
  %v4817 = vunpack.c.h.b16 %v4455
  %v4818 = vunpack.c.l.b16 %v4456
  %v4819 = vunpack.c.h.b16 %v4456
  %v4820 = vunpack.c.l.b16 %v4457
  %v4821 = vunpack.c.h.b16 %v4457
  %v4822 = vunpack.c.l.b16 %v4458
  %v4823 = vunpack.c.h.b16 %v4458
  %v4824 = vunpack.c.l.b16 %v4459
  %v4825 = vunpack.c.h.b16 %v4459
  %v4826 = vunpack.c.l.b16 %v4460
  %v4827 = vunpack.c.h.b16 %v4460
  %v4828 = vunpack.c.l.b16 %v4461
  %v4829 = vunpack.c.h.b16 %v4461
  %v4830 = vunpack.c.l.b16 %v4462
  %v4831 = vunpack.c.h.b16 %v4462
  %v4832 = vunpack.c.l.b16 %v4463
  %v4833 = vunpack.c.h.b16 %v4463
  %v4834 = vunpack.c.l.b16 %v4464
  %v4835 = vunpack.c.h.b16 %v4464
  %v4836 = vunpack.c.l.b16 %v4465
  %v4837 = vunpack.c.h.b16 %v4465
  %v4838 = vunpack.c.l.b16 %v4466
  %v4839 = vunpack.c.h.b16 %v4466
  %v4840 = vunpack.c.l.b16 %v4467
  %v4841 = vunpack.c.h.b16 %v4467
  %v4842 = vunpack.c.l.b16 %v4468
  %v4843 = vunpack.c.h.b16 %v4468
  %v4844 = vunpack.c.l.b16 %v4469
  %v4845 = vunpack.c.h.b16 %v4469
  %v4846 = vunpack.c.l.b16 %v4470
  %v4847 = vunpack.c.h.b16 %v4470
  %v4848 = vunpack.c.l.b16 %v4471
  %v4849 = vunpack.c.h.b16 %v4471
  %v4850 = vunpack.c.l.b16 %v4472
  %v4851 = vunpack.c.h.b16 %v4472
  %v4852 = vunpack.c.l.b16 %v4473
  %v4853 = vunpack.c.h.b16 %v4473
  %v4854 = vunpack.c.l.b16 %v4474
  %v4855 = vunpack.c.h.b16 %v4474
  %v4856 = vunpack.c.l.b16 %v4475
  %v4857 = vunpack.c.h.b16 %v4475
  %v4858 = vunpack.c.l.b16 %v4476
  %v4859 = vunpack.c.h.b16 %v4476
  %v4860 = vunpack.c.l.b16 %v4477
  %v4861 = vunpack.c.h.b16 %v4477
  %v4862 = vunpack.c.l.b16 %v4478
  %v4863 = vunpack.c.h.b16 %v4478
  %v4864 = vunpack.c.l.b16 %v4479
  %v4865 = vunpack.c.h.b16 %v4479
  %v4866 = vunpack.c.l.b16 %v4480
  %v4867 = vunpack.c.h.b16 %v4480
  %v4868 = vunpack.c.l.b16 %v4481
  %v4869 = vunpack.c.h.b16 %v4481
  %v4870 = vunpack.c.l.b16 %v4482
  %v4871 = vunpack.c.h.b16 %v4482
  %v4872 = vunpack.c.l.b16 %v4483
  %v4873 = vunpack.c.h.b16 %v4483
  %v4874 = vunpack.c.l.b16 %v4484
  %v4875 = vunpack.c.h.b16 %v4484
  %v4876 = vunpack.c.l.b16 %v4485
  %v4877 = vunpack.c.h.b16 %v4485
  %v4878 = vunpack.c.l.b16 %v4486
  %v4879 = vunpack.c.h.b16 %v4486
  %v4880 = vunpack.c.l.b16 %v4487
  %v4881 = vunpack.c.h.b16 %v4487
  %v4882 = vunpack.c.l.b16 %v4488
  %v4883 = vunpack.c.h.b16 %v4488
  %v4884 = vunpack.c.l.b16 %v4489
  %v4885 = vunpack.c.h.b16 %v4489
  %v4886 = vunpack.c.l.b16 %v4490
  %v4887 = vunpack.c.h.b16 %v4490
  %v4888 = vunpack.c.l.b16 %v4491
  %v4889 = vunpack.c.h.b16 %v4491
  %v4890 = vunpack.c.l.b16 %v4492
  %v4891 = vunpack.c.h.b16 %v4492
  %v4892 = vunpack.c.l.b16 %v4493
  %v4893 = vunpack.c.h.b16 %v4493
  %v4894 = vunpack.c.l.b16 %v4494
  %v4895 = vunpack.c.h.b16 %v4494
  %v4896 = vunpack.c.l.b16 %v4495
  %v4897 = vunpack.c.h.b16 %v4495
  %v4898 = vunpack.c.l.b16 %v4496
  %v4899 = vunpack.c.h.b16 %v4496
  %v4900 = vunpack.c.l.b16 %v4497
  %v4901 = vunpack.c.h.b16 %v4497
  %v4902 = vunpack.c.l.b16 %v4498
  %v4903 = vunpack.c.h.b16 %v4498
  %v4904 = vunpack.c.l.b16 %v4499
  %v4905 = vunpack.c.h.b16 %v4499
  %v4906 = vunpack.c.l.b16 %v4500
  %v4907 = vunpack.c.h.b16 %v4500
  %v4908 = vunpack.c.l.b16 %v4501
  %v4909 = vunpack.c.h.b16 %v4501
  %v4910 = vunpack.c.l.b16 %v4502
  %v4911 = vunpack.c.h.b16 %v4502
  %v4912 = vunpack.c.l.b16 %v4503
  %v4913 = vunpack.c.h.b16 %v4503
  %v4914 = vunpack.c.l.b16 %v4504
  %v4915 = vunpack.c.h.b16 %v4504
  %v4916 = vunpack.c.l.b16 %v4505
  %v4917 = vunpack.c.h.b16 %v4505
  %v4918 = vunpack.c.l.b16 %v4506
  %v4919 = vunpack.c.h.b16 %v4506
  %v4920 = vunpack.c.l.b16 %v4507
  %v4921 = vunpack.c.h.b16 %v4507
  %v4922 = vpack.c.b16 %v4736, %v4730
  %v4923 = vpack.c.b16 %v4737, %v4731
  %v4924 = vpack.c.b16 %v4738, %v4732
  %v4925 = vpack.c.b16 %v4739, %v4733
  %v4926 = vpack.c.b16 %v4740, %v4734
  %v4927 = vpack.c.b16 %v4741, %v4735
  %v4928 = vpack.c.b16 %v4748, %v4742
  %v4929 = vpack.c.b16 %v4749, %v4743
  %v4930 = vpack.c.b16 %v4750, %v4744
  %v4931 = vpack.c.b16 %v4751, %v4745
  %v4932 = vpack.c.b16 %v4752, %v4746
  %v4933 = vpack.c.b16 %v4753, %v4747
  %v4934 = vpack.c.b16 %v4760, %v4754
  %v4935 = vpack.c.b16 %v4761, %v4755
  %v4936 = vpack.c.b16 %v4762, %v4756
  %v4937 = vpack.c.b16 %v4763, %v4757
  %v4938 = vpack.c.b16 %v4764, %v4758
  %v4939 = vpack.c.b16 %v4765, %v4759
  %v4940 = vpack.c.b16 %v4772, %v4766
  %v4941 = vpack.c.b16 %v4773, %v4767
  %v4942 = vpack.c.b16 %v4774, %v4768
  %v4943 = vpack.c.b16 %v4775, %v4769
  %v4944 = vpack.c.b16 %v4776, %v4770
  %v4945 = vpack.c.b16 %v4777, %v4771
  %v4946 = vpack.c.b16 %v4784, %v4778
  %v4947 = vpack.c.b16 %v4785, %v4779
  %v4948 = vpack.c.b16 %v4786, %v4780
  %v4949 = vpack.c.b16 %v4787, %v4781
  %v4950 = vpack.c.b16 %v4788, %v4782
  %v4951 = vpack.c.b16 %v4789, %v4783
  %v4952 = vpack.c.b16 %v4796, %v4790
  %v4953 = vpack.c.b16 %v4797, %v4791
  %v4954 = vpack.c.b16 %v4798, %v4792
  %v4955 = vpack.c.b16 %v4799, %v4793
  %v4956 = vpack.c.b16 %v4800, %v4794
  %v4957 = vpack.c.b16 %v4801, %v4795
  %v4958 = vpack.c.b16 %v4808, %v4802
  %v4959 = vpack.c.b16 %v4809, %v4803
  %v4960 = vpack.c.b16 %v4810, %v4804
  %v4961 = vpack.c.b16 %v4811, %v4805
  %v4962 = vpack.c.b16 %v4812, %v4806
  %v4963 = vpack.c.b16 %v4813, %v4807
  %v4964 = vpack.c.b16 %v4820, %v4814
  %v4965 = vpack.c.b16 %v4821, %v4815
  %v4966 = vpack.c.b16 %v4822, %v4816
  %v4967 = vpack.c.b16 %v4823, %v4817
  %v4968 = vpack.c.b16 %v4824, %v4818
  %v4969 = vpack.c.b16 %v4825, %v4819
  %v4970 = vpack.c.b16 %v4832, %v4826
  %v4971 = vpack.c.b16 %v4833, %v4827
  %v4972 = vpack.c.b16 %v4834, %v4828
  %v4973 = vpack.c.b16 %v4835, %v4829
  %v4974 = vpack.c.b16 %v4836, %v4830
  %v4975 = vpack.c.b16 %v4837, %v4831
  %v4976 = vpack.c.b16 %v4844, %v4838
  %v4977 = vpack.c.b16 %v4845, %v4839
  %v4978 = vpack.c.b16 %v4846, %v4840
  %v4979 = vpack.c.b16 %v4847, %v4841
  %v4980 = vpack.c.b16 %v4848, %v4842
  %v4981 = vpack.c.b16 %v4849, %v4843
  %v4982 = vpack.c.b16 %v4856, %v4850
  %v4983 = vpack.c.b16 %v4857, %v4851
  %v4984 = vpack.c.b16 %v4858, %v4852
  %v4985 = vpack.c.b16 %v4859, %v4853
  %v4986 = vpack.c.b16 %v4860, %v4854
  %v4987 = vpack.c.b16 %v4861, %v4855
  %v4988 = vpack.c.b16 %v4868, %v4862
  %v4989 = vpack.c.b16 %v4869, %v4863
  %v4990 = vpack.c.b16 %v4870, %v4864
  %v4991 = vpack.c.b16 %v4871, %v4865
  %v4992 = vpack.c.b16 %v4872, %v4866
  %v4993 = vpack.c.b16 %v4873, %v4867
  %v4994 = vpack.c.b16 %v4880, %v4874
  %v4995 = vpack.c.b16 %v4881, %v4875
  %v4996 = vpack.c.b16 %v4882, %v4876
  %v4997 = vpack.c.b16 %v4883, %v4877
  %v4998 = vpack.c.b16 %v4884, %v4878
  %v4999 = vpack.c.b16 %v4885, %v4879
  %v5000 = vpack.c.b16 %v4892, %v4886
  %v5001 = vpack.c.b16 %v4893, %v4887
  %v5002 = vpack.c.b16 %v4894, %v4888
  %v5003 = vpack.c.b16 %v4895, %v4889
  %v5004 = vpack.c.b16 %v4896, %v4890
  %v5005 = vpack.c.b16 %v4897, %v4891
  %v5006 = vpack.c.b16 %v4904, %v4898
  %v5007 = vpack.c.b16 %v4905, %v4899
  %v5008 = vpack.c.b16 %v4906, %v4900
  %v5009 = vpack.c.b16 %v4907, %v4901
  %v5010 = vpack.c.b16 %v4908, %v4902
  %v5011 = vpack.c.b16 %v4909, %v4903
  %v5012 = vpack.c.b16 %v4916, %v4910
  %v5013 = vpack.c.b16 %v4917, %v4911
  %v5014 = vpack.c.b16 %v4918, %v4912
  %v5015 = vpack.c.b16 %v4919, %v4913
  %v5016 = vpack.c.b16 %v4920, %v4914
  %v5017 = vpack.c.b16 %v4921, %v4915
  %5114 = vmatpush.bf16.msra.mxu0 %v4964
  %5115 = vmatpush.bf16.msra.mxu0 %v4958
  %5116 = vmatpush.bf16.msra.mxu0 %v4952
  %5117 = vmatpush.bf16.msra.mxu0 %v4946
  %5118 = vmatpush.bf16.msra.mxu0 %v4940
  %5119 = vmatpush.bf16.msra.mxu0 %v4934
  %5120 = vmatpush.bf16.msra.mxu0 %v4928
  %5121 = vmatpush.bf16.msra.mxu0 %v4922
  %5122 = vmatmul.bf16.gmra.mxu0 0
  %v5123 = vpop.f32.mrf.mxu0
  %v5124 = vadd.f32 0.0, %v5123
  %v5125 = vpop.f32.mrf.mxu0
  %5126 = vdwg.mxu0
  %5127 = vmatpush.bf16.msra.mxu0 %v5012
  %5128 = vmatpush.bf16.msra.mxu0 %v5006
  %5129 = vmatpush.bf16.msra.mxu0 %v5000
  %5130 = vmatpush.bf16.msra.mxu0 %v4994
  %5131 = vmatpush.bf16.msra.mxu0 %v4988
  %5132 = vmatpush.bf16.msra.mxu0 %v4982
  %5133 = vmatpush.bf16.msra.mxu0 %v4976
  %5134 = vmatpush.bf16.msra.mxu0 %v4970
  %5135 = vmatmul.bf16.gmra.mxu0 0
  %v5136 = vpop.f32.mrf.mxu0
  %v5137 = vadd.f32 %v5124, %v5136
  %v5138 = vpop.f32.mrf.mxu0
  %5139 = vdwg.mxu0
  %5140 = vmatpush.bf16.msra.mxu0 %v4965
  %5141 = vmatpush.bf16.msra.mxu0 %v4959
  %5142 = vmatpush.bf16.msra.mxu0 %v4953
  %5143 = vmatpush.bf16.msra.mxu0 %v4947
  %5144 = vmatpush.bf16.msra.mxu0 %v4941
  %5145 = vmatpush.bf16.msra.mxu0 %v4935
  %5146 = vmatpush.bf16.msra.mxu0 %v4929
  %5147 = vmatpush.bf16.msra.mxu0 %v4923
  %5148 = vmatmul.bf16.gmra.mxu0 0
  %v5149 = vpop.f32.mrf.mxu0
  %v5150 = vadd.f32 0.0, %v5149
  %v5151 = vpop.f32.mrf.mxu0
  %5152 = vdwg.mxu0
  %5153 = vmatpush.bf16.msra.mxu0 %v5013
  %5154 = vmatpush.bf16.msra.mxu0 %v5007
  %5155 = vmatpush.bf16.msra.mxu0 %v5001
  %5156 = vmatpush.bf16.msra.mxu0 %v4995
  %5157 = vmatpush.bf16.msra.mxu0 %v4989
  %5158 = vmatpush.bf16.msra.mxu0 %v4983
  %5159 = vmatpush.bf16.msra.mxu0 %v4977
  %5160 = vmatpush.bf16.msra.mxu0 %v4971
  %5161 = vmatmul.bf16.gmra.mxu0 0
  %v5162 = vpop.f32.mrf.mxu0
  %v5163 = vadd.f32 %v5150, %v5162
  %v5164 = vpop.f32.mrf.mxu0
  %5165 = vdwg.mxu0
  %5166 = vmatpush.bf16.msra.mxu0 %v4966
  %5167 = vmatpush.bf16.msra.mxu0 %v4960
  %5168 = vmatpush.bf16.msra.mxu0 %v4954
  %5169 = vmatpush.bf16.msra.mxu0 %v4948
  %5170 = vmatpush.bf16.msra.mxu0 %v4942
  %5171 = vmatpush.bf16.msra.mxu0 %v4936
  %5172 = vmatpush.bf16.msra.mxu0 %v4930
  %5173 = vmatpush.bf16.msra.mxu0 %v4924
  %5174 = vmatmul.bf16.gmra.mxu0 0
  %v5175 = vpop.f32.mrf.mxu0
  %v5176 = vadd.f32 0.0, %v5175
  %v5177 = vpop.f32.mrf.mxu0
  %5178 = vdwg.mxu0
  %5179 = vmatpush.bf16.msra.mxu0 %v5014
  %5180 = vmatpush.bf16.msra.mxu0 %v5008
  %5181 = vmatpush.bf16.msra.mxu0 %v5002
  %5182 = vmatpush.bf16.msra.mxu0 %v4996
  %5183 = vmatpush.bf16.msra.mxu0 %v4990
  %5184 = vmatpush.bf16.msra.mxu0 %v4984
  %5185 = vmatpush.bf16.msra.mxu0 %v4978
  %5186 = vmatpush.bf16.msra.mxu0 %v4972
  %5187 = vmatmul.bf16.gmra.mxu0 0
  %v5188 = vpop.f32.mrf.mxu0
  %v5189 = vadd.f32 %v5176, %v5188
  %v5190 = vpop.f32.mrf.mxu0
  %5191 = vdwg.mxu0
  %5192 = vmatpush.bf16.msra.mxu0 %v4967
  %5193 = vmatpush.bf16.msra.mxu0 %v4961
  %5194 = vmatpush.bf16.msra.mxu0 %v4955
  %5195 = vmatpush.bf16.msra.mxu0 %v4949
  %5196 = vmatpush.bf16.msra.mxu0 %v4943
  %5197 = vmatpush.bf16.msra.mxu0 %v4937
  %5198 = vmatpush.bf16.msra.mxu0 %v4931
  %5199 = vmatpush.bf16.msra.mxu0 %v4925
  %5200 = vmatmul.bf16.gmra.mxu0 0
  %v5201 = vpop.f32.mrf.mxu0
  %v5202 = vadd.f32 0.0, %v5201
  %v5203 = vpop.f32.mrf.mxu0
  %5204 = vdwg.mxu0
  %5205 = vmatpush.bf16.msra.mxu0 %v5015
  %5206 = vmatpush.bf16.msra.mxu0 %v5009
  %5207 = vmatpush.bf16.msra.mxu0 %v5003
  %5208 = vmatpush.bf16.msra.mxu0 %v4997
  %5209 = vmatpush.bf16.msra.mxu0 %v4991
  %5210 = vmatpush.bf16.msra.mxu0 %v4985
  %5211 = vmatpush.bf16.msra.mxu0 %v4979
  %5212 = vmatpush.bf16.msra.mxu0 %v4973
  %5213 = vmatmul.bf16.gmra.mxu0 0
  %v5214 = vpop.f32.mrf.mxu0
  %v5215 = vadd.f32 %v5202, %v5214
  %v5216 = vpop.f32.mrf.mxu0
  %5217 = vdwg.mxu0
  %5218 = vmatpush.bf16.msra.mxu0 %v4968
  %5219 = vmatpush.bf16.msra.mxu0 %v4962
  %5220 = vmatpush.bf16.msra.mxu0 %v4956
  %5221 = vmatpush.bf16.msra.mxu0 %v4950
  %5222 = vmatpush.bf16.msra.mxu0 %v4944
  %5223 = vmatpush.bf16.msra.mxu0 %v4938
  %5224 = vmatpush.bf16.msra.mxu0 %v4932
  %5225 = vmatpush.bf16.msra.mxu0 %v4926
  %5226 = vmatmul.bf16.gmra.mxu0 0
  %v5227 = vpop.f32.mrf.mxu0
  %v5228 = vadd.f32 0.0, %v5227
  %v5229 = vpop.f32.mrf.mxu0
  %5230 = vdwg.mxu0
  %5231 = vmatpush.bf16.msra.mxu0 %v5016
  %5232 = vmatpush.bf16.msra.mxu0 %v5010
  %5233 = vmatpush.bf16.msra.mxu0 %v5004
  %5234 = vmatpush.bf16.msra.mxu0 %v4998
  %5235 = vmatpush.bf16.msra.mxu0 %v4992
  %5236 = vmatpush.bf16.msra.mxu0 %v4986
  %5237 = vmatpush.bf16.msra.mxu0 %v4980
  %5238 = vmatpush.bf16.msra.mxu0 %v4974
  %5239 = vmatmul.bf16.gmra.mxu0 0
  %v5240 = vpop.f32.mrf.mxu0
  %v5241 = vadd.f32 %v5228, %v5240
  %v5242 = vpop.f32.mrf.mxu0
  %5243 = vdwg.mxu0
  %5244 = vmatpush.bf16.msra.mxu0 %v4969
  %5245 = vmatpush.bf16.msra.mxu0 %v4963
  %5246 = vmatpush.bf16.msra.mxu0 %v4957
  %5247 = vmatpush.bf16.msra.mxu0 %v4951
  %5248 = vmatpush.bf16.msra.mxu0 %v4945
  %5249 = vmatpush.bf16.msra.mxu0 %v4939
  %5250 = vmatpush.bf16.msra.mxu0 %v4933
  %5251 = vmatpush.bf16.msra.mxu0 %v4927
  %5252 = vmatmul.bf16.gmra.mxu0 0
  %v5253 = vpop.f32.mrf.mxu0
  %v5254 = vadd.f32 0.0, %v5253
  %v5255 = vpop.f32.mrf.mxu0
  %5256 = vdwg.mxu0
  %5257 = vmatpush.bf16.msra.mxu0 %v5017
  %5258 = vmatpush.bf16.msra.mxu0 %v5011
  %5259 = vmatpush.bf16.msra.mxu0 %v5005
  %5260 = vmatpush.bf16.msra.mxu0 %v4999
  %5261 = vmatpush.bf16.msra.mxu0 %v4993
  %5262 = vmatpush.bf16.msra.mxu0 %v4987
  %5263 = vmatpush.bf16.msra.mxu0 %v4981
  %5264 = vmatpush.bf16.msra.mxu0 %v4975
  %5265 = vmatmul.bf16.gmra.mxu0 0
  %v5266 = vpop.f32.mrf.mxu0
  %v5267 = vadd.f32 %v5254, %v5266
  %v5268 = vpop.f32.mrf.mxu0
  %5269 = vdwg.mxu0
  %v5366 = vunpack.c.l.b16 %v4508
  %v5367 = vunpack.c.h.b16 %v4508
  %v5368 = vunpack.c.l.b16 %v4509
  %v5369 = vunpack.c.h.b16 %v4509
  %v5370 = vunpack.c.l.b16 %v4510
  %v5371 = vunpack.c.h.b16 %v4510
  %v5372 = vunpack.c.l.b16 %v4511
  %v5373 = vunpack.c.h.b16 %v4511
  %v5374 = vunpack.c.l.b16 %v4512
  %v5375 = vunpack.c.h.b16 %v4512
  %v5376 = vunpack.c.l.b16 %v4513
  %v5377 = vunpack.c.h.b16 %v4513
  %v5378 = vunpack.c.l.b16 %v4514
  %v5379 = vunpack.c.h.b16 %v4514
  %v5380 = vunpack.c.l.b16 %v4515
  %v5381 = vunpack.c.h.b16 %v4515
  %v5382 = vunpack.c.l.b16 %v4516
  %v5383 = vunpack.c.h.b16 %v4516
  %v5384 = vunpack.c.l.b16 %v4517
  %v5385 = vunpack.c.h.b16 %v4517
  %v5386 = vunpack.c.l.b16 %v4518
  %v5387 = vunpack.c.h.b16 %v4518
  %v5388 = vunpack.c.l.b16 %v4519
  %v5389 = vunpack.c.h.b16 %v4519
  %v5390 = vunpack.c.l.b16 %v4520
  %v5391 = vunpack.c.h.b16 %v4520
  %v5392 = vunpack.c.l.b16 %v4521
  %v5393 = vunpack.c.h.b16 %v4521
  %v5394 = vunpack.c.l.b16 %v4522
  %v5395 = vunpack.c.h.b16 %v4522
  %v5396 = vunpack.c.l.b16 %v4523
  %v5397 = vunpack.c.h.b16 %v4523
  %v5398 = vunpack.c.l.b16 %v4524
  %v5399 = vunpack.c.h.b16 %v4524
  %v5400 = vunpack.c.l.b16 %v4525
  %v5401 = vunpack.c.h.b16 %v4525
  %v5402 = vunpack.c.l.b16 %v4526
  %v5403 = vunpack.c.h.b16 %v4526
  %v5404 = vunpack.c.l.b16 %v4527
  %v5405 = vunpack.c.h.b16 %v4527
  %v5406 = vunpack.c.l.b16 %v4528
  %v5407 = vunpack.c.h.b16 %v4528
  %v5408 = vunpack.c.l.b16 %v4529
  %v5409 = vunpack.c.h.b16 %v4529
  %v5410 = vunpack.c.l.b16 %v4530
  %v5411 = vunpack.c.h.b16 %v4530
  %v5412 = vunpack.c.l.b16 %v4531
  %v5413 = vunpack.c.h.b16 %v4531
  %v5414 = vunpack.c.l.b16 %v4532
  %v5415 = vunpack.c.h.b16 %v4532
  %v5416 = vunpack.c.l.b16 %v4533
  %v5417 = vunpack.c.h.b16 %v4533
  %v5418 = vunpack.c.l.b16 %v4534
  %v5419 = vunpack.c.h.b16 %v4534
  %v5420 = vunpack.c.l.b16 %v4535
  %v5421 = vunpack.c.h.b16 %v4535
  %v5422 = vunpack.c.l.b16 %v4536
  %v5423 = vunpack.c.h.b16 %v4536
  %v5424 = vunpack.c.l.b16 %v4537
  %v5425 = vunpack.c.h.b16 %v4537
  %v5426 = vunpack.c.l.b16 %v4538
  %v5427 = vunpack.c.h.b16 %v4538
  %v5428 = vunpack.c.l.b16 %v4539
  %v5429 = vunpack.c.h.b16 %v4539
  %v5430 = vunpack.c.l.b16 %v4540
  %v5431 = vunpack.c.h.b16 %v4540
  %v5432 = vunpack.c.l.b16 %v4541
  %v5433 = vunpack.c.h.b16 %v4541
  %v5434 = vunpack.c.l.b16 %v4542
  %v5435 = vunpack.c.h.b16 %v4542
  %v5436 = vunpack.c.l.b16 %v4543
  %v5437 = vunpack.c.h.b16 %v4543
  %v5438 = vunpack.c.l.b16 %v4544
  %v5439 = vunpack.c.h.b16 %v4544
  %v5440 = vunpack.c.l.b16 %v4545
  %v5441 = vunpack.c.h.b16 %v4545
  %v5442 = vunpack.c.l.b16 %v4546
  %v5443 = vunpack.c.h.b16 %v4546
  %v5444 = vunpack.c.l.b16 %v4547
  %v5445 = vunpack.c.h.b16 %v4547
  %v5446 = vunpack.c.l.b16 %v4548
  %v5447 = vunpack.c.h.b16 %v4548
  %v5448 = vunpack.c.l.b16 %v4549
  %v5449 = vunpack.c.h.b16 %v4549
  %v5450 = vunpack.c.l.b16 %v4550
  %v5451 = vunpack.c.h.b16 %v4550
  %v5452 = vunpack.c.l.b16 %v4551
  %v5453 = vunpack.c.h.b16 %v4551
  %v5454 = vunpack.c.l.b16 %v4552
  %v5455 = vunpack.c.h.b16 %v4552
  %v5456 = vunpack.c.l.b16 %v4553
  %v5457 = vunpack.c.h.b16 %v4553
  %v5458 = vunpack.c.l.b16 %v4554
  %v5459 = vunpack.c.h.b16 %v4554
  %v5460 = vunpack.c.l.b16 %v4555
  %v5461 = vunpack.c.h.b16 %v4555
  %v5462 = vunpack.c.l.b16 %v4556
  %v5463 = vunpack.c.h.b16 %v4556
  %v5464 = vunpack.c.l.b16 %v4557
  %v5465 = vunpack.c.h.b16 %v4557
  %v5466 = vunpack.c.l.b16 %v4558
  %v5467 = vunpack.c.h.b16 %v4558
  %v5468 = vunpack.c.l.b16 %v4559
  %v5469 = vunpack.c.h.b16 %v4559
  %v5470 = vunpack.c.l.b16 %v4560
  %v5471 = vunpack.c.h.b16 %v4560
  %v5472 = vunpack.c.l.b16 %v4561
  %v5473 = vunpack.c.h.b16 %v4561
  %v5474 = vunpack.c.l.b16 %v4562
  %v5475 = vunpack.c.h.b16 %v4562
  %v5476 = vunpack.c.l.b16 %v4563
  %v5477 = vunpack.c.h.b16 %v4563
  %v5478 = vunpack.c.l.b16 %v4564
  %v5479 = vunpack.c.h.b16 %v4564
  %v5480 = vunpack.c.l.b16 %v4565
  %v5481 = vunpack.c.h.b16 %v4565
  %v5482 = vunpack.c.l.b16 %v4566
  %v5483 = vunpack.c.h.b16 %v4566
  %v5484 = vunpack.c.l.b16 %v4567
  %v5485 = vunpack.c.h.b16 %v4567
  %v5486 = vunpack.c.l.b16 %v4568
  %v5487 = vunpack.c.h.b16 %v4568
  %v5488 = vunpack.c.l.b16 %v4569
  %v5489 = vunpack.c.h.b16 %v4569
  %v5490 = vunpack.c.l.b16 %v4570
  %v5491 = vunpack.c.h.b16 %v4570
  %v5492 = vunpack.c.l.b16 %v4571
  %v5493 = vunpack.c.h.b16 %v4571
  %v5494 = vunpack.c.l.b16 %v4572
  %v5495 = vunpack.c.h.b16 %v4572
  %v5496 = vunpack.c.l.b16 %v4573
  %v5497 = vunpack.c.h.b16 %v4573
  %v5498 = vunpack.c.l.b16 %v4574
  %v5499 = vunpack.c.h.b16 %v4574
  %v5500 = vunpack.c.l.b16 %v4575
  %v5501 = vunpack.c.h.b16 %v4575
  %v5502 = vunpack.c.l.b16 %v4576
  %v5503 = vunpack.c.h.b16 %v4576
  %v5504 = vunpack.c.l.b16 %v4577
  %v5505 = vunpack.c.h.b16 %v4577
  %v5506 = vunpack.c.l.b16 %v4578
  %v5507 = vunpack.c.h.b16 %v4578
  %v5508 = vunpack.c.l.b16 %v4579
  %v5509 = vunpack.c.h.b16 %v4579
  %v5510 = vunpack.c.l.b16 %v4580
  %v5511 = vunpack.c.h.b16 %v4580
  %v5512 = vunpack.c.l.b16 %v4581
  %v5513 = vunpack.c.h.b16 %v4581
  %v5514 = vunpack.c.l.b16 %v4582
  %v5515 = vunpack.c.h.b16 %v4582
  %v5516 = vunpack.c.l.b16 %v4583
  %v5517 = vunpack.c.h.b16 %v4583
  %v5518 = vunpack.c.l.b16 %v4584
  %v5519 = vunpack.c.h.b16 %v4584
  %v5520 = vunpack.c.l.b16 %v4585
  %v5521 = vunpack.c.h.b16 %v4585
  %v5522 = vunpack.c.l.b16 %v4586
  %v5523 = vunpack.c.h.b16 %v4586
  %v5524 = vunpack.c.l.b16 %v4587
  %v5525 = vunpack.c.h.b16 %v4587
  %v5526 = vunpack.c.l.b16 %v4588
  %v5527 = vunpack.c.h.b16 %v4588
  %v5528 = vunpack.c.l.b16 %v4589
  %v5529 = vunpack.c.h.b16 %v4589
  %v5530 = vunpack.c.l.b16 %v4590
  %v5531 = vunpack.c.h.b16 %v4590
  %v5532 = vunpack.c.l.b16 %v4591
  %v5533 = vunpack.c.h.b16 %v4591
  %v5534 = vunpack.c.l.b16 %v4592
  %v5535 = vunpack.c.h.b16 %v4592
  %v5536 = vunpack.c.l.b16 %v4593
  %v5537 = vunpack.c.h.b16 %v4593
  %v5538 = vunpack.c.l.b16 %v4594
  %v5539 = vunpack.c.h.b16 %v4594
  %v5540 = vunpack.c.l.b16 %v4595
  %v5541 = vunpack.c.h.b16 %v4595
  %v5542 = vunpack.c.l.b16 %v4596
  %v5543 = vunpack.c.h.b16 %v4596
  %v5544 = vunpack.c.l.b16 %v4597
  %v5545 = vunpack.c.h.b16 %v4597
  %v5546 = vunpack.c.l.b16 %v4598
  %v5547 = vunpack.c.h.b16 %v4598
  %v5548 = vunpack.c.l.b16 %v4599
  %v5549 = vunpack.c.h.b16 %v4599
  %v5550 = vunpack.c.l.b16 %v4600
  %v5551 = vunpack.c.h.b16 %v4600
  %v5552 = vunpack.c.l.b16 %v4601
  %v5553 = vunpack.c.h.b16 %v4601
  %v5554 = vunpack.c.l.b16 %v4602
  %v5555 = vunpack.c.h.b16 %v4602
  %v5556 = vunpack.c.l.b16 %v4603
  %v5557 = vunpack.c.h.b16 %v4603
  %v5558 = vpack.c.b16 %v5372, %v5366
  %v5559 = vpack.c.b16 %v5373, %v5367
  %v5560 = vpack.c.b16 %v5374, %v5368
  %v5561 = vpack.c.b16 %v5375, %v5369
  %v5562 = vpack.c.b16 %v5376, %v5370
  %v5563 = vpack.c.b16 %v5377, %v5371
  %v5564 = vpack.c.b16 %v5384, %v5378
  %v5565 = vpack.c.b16 %v5385, %v5379
  %v5566 = vpack.c.b16 %v5386, %v5380
  %v5567 = vpack.c.b16 %v5387, %v5381
  %v5568 = vpack.c.b16 %v5388, %v5382
  %v5569 = vpack.c.b16 %v5389, %v5383
  %v5570 = vpack.c.b16 %v5396, %v5390
  %v5571 = vpack.c.b16 %v5397, %v5391
  %v5572 = vpack.c.b16 %v5398, %v5392
  %v5573 = vpack.c.b16 %v5399, %v5393
  %v5574 = vpack.c.b16 %v5400, %v5394
  %v5575 = vpack.c.b16 %v5401, %v5395
  %v5576 = vpack.c.b16 %v5408, %v5402
  %v5577 = vpack.c.b16 %v5409, %v5403
  %v5578 = vpack.c.b16 %v5410, %v5404
  %v5579 = vpack.c.b16 %v5411, %v5405
  %v5580 = vpack.c.b16 %v5412, %v5406
  %v5581 = vpack.c.b16 %v5413, %v5407
  %v5582 = vpack.c.b16 %v5420, %v5414
  %v5583 = vpack.c.b16 %v5421, %v5415
  %v5584 = vpack.c.b16 %v5422, %v5416
  %v5585 = vpack.c.b16 %v5423, %v5417
  %v5586 = vpack.c.b16 %v5424, %v5418
  %v5587 = vpack.c.b16 %v5425, %v5419
  %v5588 = vpack.c.b16 %v5432, %v5426
  %v5589 = vpack.c.b16 %v5433, %v5427
  %v5590 = vpack.c.b16 %v5434, %v5428
  %v5591 = vpack.c.b16 %v5435, %v5429
  %v5592 = vpack.c.b16 %v5436, %v5430
  %v5593 = vpack.c.b16 %v5437, %v5431
  %v5594 = vpack.c.b16 %v5444, %v5438
  %v5595 = vpack.c.b16 %v5445, %v5439
  %v5596 = vpack.c.b16 %v5446, %v5440
  %v5597 = vpack.c.b16 %v5447, %v5441
  %v5598 = vpack.c.b16 %v5448, %v5442
  %v5599 = vpack.c.b16 %v5449, %v5443
  %v5600 = vpack.c.b16 %v5456, %v5450
  %v5601 = vpack.c.b16 %v5457, %v5451
  %v5602 = vpack.c.b16 %v5458, %v5452
  %v5603 = vpack.c.b16 %v5459, %v5453
  %v5604 = vpack.c.b16 %v5460, %v5454
  %v5605 = vpack.c.b16 %v5461, %v5455
  %v5606 = vpack.c.b16 %v5468, %v5462
  %v5607 = vpack.c.b16 %v5469, %v5463
  %v5608 = vpack.c.b16 %v5470, %v5464
  %v5609 = vpack.c.b16 %v5471, %v5465
  %v5610 = vpack.c.b16 %v5472, %v5466
  %v5611 = vpack.c.b16 %v5473, %v5467
  %v5612 = vpack.c.b16 %v5480, %v5474
  %v5613 = vpack.c.b16 %v5481, %v5475
  %v5614 = vpack.c.b16 %v5482, %v5476
  %v5615 = vpack.c.b16 %v5483, %v5477
  %v5616 = vpack.c.b16 %v5484, %v5478
  %v5617 = vpack.c.b16 %v5485, %v5479
  %v5618 = vpack.c.b16 %v5492, %v5486
  %v5619 = vpack.c.b16 %v5493, %v5487
  %v5620 = vpack.c.b16 %v5494, %v5488
  %v5621 = vpack.c.b16 %v5495, %v5489
  %v5622 = vpack.c.b16 %v5496, %v5490
  %v5623 = vpack.c.b16 %v5497, %v5491
  %v5624 = vpack.c.b16 %v5504, %v5498
  %v5625 = vpack.c.b16 %v5505, %v5499
  %v5626 = vpack.c.b16 %v5506, %v5500
  %v5627 = vpack.c.b16 %v5507, %v5501
  %v5628 = vpack.c.b16 %v5508, %v5502
  %v5629 = vpack.c.b16 %v5509, %v5503
  %v5630 = vpack.c.b16 %v5516, %v5510
  %v5631 = vpack.c.b16 %v5517, %v5511
  %v5632 = vpack.c.b16 %v5518, %v5512
  %v5633 = vpack.c.b16 %v5519, %v5513
  %v5634 = vpack.c.b16 %v5520, %v5514
  %v5635 = vpack.c.b16 %v5521, %v5515
  %v5636 = vpack.c.b16 %v5528, %v5522
  %v5637 = vpack.c.b16 %v5529, %v5523
  %v5638 = vpack.c.b16 %v5530, %v5524
  %v5639 = vpack.c.b16 %v5531, %v5525
  %v5640 = vpack.c.b16 %v5532, %v5526
  %v5641 = vpack.c.b16 %v5533, %v5527
  %v5642 = vpack.c.b16 %v5540, %v5534
  %v5643 = vpack.c.b16 %v5541, %v5535
  %v5644 = vpack.c.b16 %v5542, %v5536
  %v5645 = vpack.c.b16 %v5543, %v5537
  %v5646 = vpack.c.b16 %v5544, %v5538
  %v5647 = vpack.c.b16 %v5545, %v5539
  %v5648 = vpack.c.b16 %v5552, %v5546
  %v5649 = vpack.c.b16 %v5553, %v5547
  %v5650 = vpack.c.b16 %v5554, %v5548
  %v5651 = vpack.c.b16 %v5555, %v5549
  %v5652 = vpack.c.b16 %v5556, %v5550
  %v5653 = vpack.c.b16 %v5557, %v5551
  %5750 = vmatpush.bf16.msra.mxu0 %v5600
  %5751 = vmatpush.bf16.msra.mxu0 %v5594
  %5752 = vmatpush.bf16.msra.mxu0 %v5588
  %5753 = vmatpush.bf16.msra.mxu0 %v5582
  %5754 = vmatpush.bf16.msra.mxu0 %v5576
  %5755 = vmatpush.bf16.msra.mxu0 %v5570
  %5756 = vmatpush.bf16.msra.mxu0 %v5564
  %5757 = vmatpush.bf16.msra.mxu0 %v5558
  %5758 = vmatmul.bf16.gmra.mxu0 0
  %v5759 = vpop.f32.mrf.mxu0
  %v5760 = vadd.f32 0.0, %v5759
  %v5761 = vpop.f32.mrf.mxu0
  %5762 = vdwg.mxu0
  %5763 = vmatpush.bf16.msra.mxu0 %v5648
  %5764 = vmatpush.bf16.msra.mxu0 %v5642
  %5765 = vmatpush.bf16.msra.mxu0 %v5636
  %5766 = vmatpush.bf16.msra.mxu0 %v5630
  %5767 = vmatpush.bf16.msra.mxu0 %v5624
  %5768 = vmatpush.bf16.msra.mxu0 %v5618
  %5769 = vmatpush.bf16.msra.mxu0 %v5612
  %5770 = vmatpush.bf16.msra.mxu0 %v5606
  %5771 = vmatmul.bf16.gmra.mxu0 0
  %v5772 = vpop.f32.mrf.mxu0
  %v5773 = vadd.f32 %v5760, %v5772
  %v5774 = vpop.f32.mrf.mxu0
  %5775 = vdwg.mxu0
  %5776 = vmatpush.bf16.msra.mxu0 %v5601
  %5777 = vmatpush.bf16.msra.mxu0 %v5595
  %5778 = vmatpush.bf16.msra.mxu0 %v5589
  %5779 = vmatpush.bf16.msra.mxu0 %v5583
  %5780 = vmatpush.bf16.msra.mxu0 %v5577
  %5781 = vmatpush.bf16.msra.mxu0 %v5571
  %5782 = vmatpush.bf16.msra.mxu0 %v5565
  %5783 = vmatpush.bf16.msra.mxu0 %v5559
  %5784 = vmatmul.bf16.gmra.mxu0 0
  %v5785 = vpop.f32.mrf.mxu0
  %v5786 = vadd.f32 0.0, %v5785
  %v5787 = vpop.f32.mrf.mxu0
  %5788 = vdwg.mxu0
  %5789 = vmatpush.bf16.msra.mxu0 %v5649
  %5790 = vmatpush.bf16.msra.mxu0 %v5643
  %5791 = vmatpush.bf16.msra.mxu0 %v5637
  %5792 = vmatpush.bf16.msra.mxu0 %v5631
  %5793 = vmatpush.bf16.msra.mxu0 %v5625
  %5794 = vmatpush.bf16.msra.mxu0 %v5619
  %5795 = vmatpush.bf16.msra.mxu0 %v5613
  %5796 = vmatpush.bf16.msra.mxu0 %v5607
  %5797 = vmatmul.bf16.gmra.mxu0 0
  %v5798 = vpop.f32.mrf.mxu0
  %v5799 = vadd.f32 %v5786, %v5798
  %v5800 = vpop.f32.mrf.mxu0
  %5801 = vdwg.mxu0
  %5802 = vmatpush.bf16.msra.mxu0 %v5602
  %5803 = vmatpush.bf16.msra.mxu0 %v5596
  %5804 = vmatpush.bf16.msra.mxu0 %v5590
  %5805 = vmatpush.bf16.msra.mxu0 %v5584
  %5806 = vmatpush.bf16.msra.mxu0 %v5578
  %5807 = vmatpush.bf16.msra.mxu0 %v5572
  %5808 = vmatpush.bf16.msra.mxu0 %v5566
  %5809 = vmatpush.bf16.msra.mxu0 %v5560
  %5810 = vmatmul.bf16.gmra.mxu0 0
  %v5811 = vpop.f32.mrf.mxu0
  %v5812 = vadd.f32 0.0, %v5811
  %v5813 = vpop.f32.mrf.mxu0
  %5814 = vdwg.mxu0
  %5815 = vmatpush.bf16.msra.mxu0 %v5650
  %5816 = vmatpush.bf16.msra.mxu0 %v5644
  %5817 = vmatpush.bf16.msra.mxu0 %v5638
  %5818 = vmatpush.bf16.msra.mxu0 %v5632
  %5819 = vmatpush.bf16.msra.mxu0 %v5626
  %5820 = vmatpush.bf16.msra.mxu0 %v5620
  %5821 = vmatpush.bf16.msra.mxu0 %v5614
  %5822 = vmatpush.bf16.msra.mxu0 %v5608
  %5823 = vmatmul.bf16.gmra.mxu0 0
  %v5824 = vpop.f32.mrf.mxu0
  %v5825 = vadd.f32 %v5812, %v5824
  %v5826 = vpop.f32.mrf.mxu0
  %5827 = vdwg.mxu0
  %5828 = vmatpush.bf16.msra.mxu0 %v5603
  %5829 = vmatpush.bf16.msra.mxu0 %v5597
  %5830 = vmatpush.bf16.msra.mxu0 %v5591
  %5831 = vmatpush.bf16.msra.mxu0 %v5585
  %5832 = vmatpush.bf16.msra.mxu0 %v5579
  %5833 = vmatpush.bf16.msra.mxu0 %v5573
  %5834 = vmatpush.bf16.msra.mxu0 %v5567
  %5835 = vmatpush.bf16.msra.mxu0 %v5561
  %5836 = vmatmul.bf16.gmra.mxu0 0
  %v5837 = vpop.f32.mrf.mxu0
  %v5838 = vadd.f32 0.0, %v5837
  %v5839 = vpop.f32.mrf.mxu0
  %5840 = vdwg.mxu0
  %5841 = vmatpush.bf16.msra.mxu0 %v5651
  %5842 = vmatpush.bf16.msra.mxu0 %v5645
  %5843 = vmatpush.bf16.msra.mxu0 %v5639
  %5844 = vmatpush.bf16.msra.mxu0 %v5633
  %5845 = vmatpush.bf16.msra.mxu0 %v5627
  %5846 = vmatpush.bf16.msra.mxu0 %v5621
  %5847 = vmatpush.bf16.msra.mxu0 %v5615
  %5848 = vmatpush.bf16.msra.mxu0 %v5609
  %5849 = vmatmul.bf16.gmra.mxu0 0
  %v5850 = vpop.f32.mrf.mxu0
  %v5851 = vadd.f32 %v5838, %v5850
  %v5852 = vpop.f32.mrf.mxu0
  %5853 = vdwg.mxu0
  %5854 = vmatpush.bf16.msra.mxu0 %v5604
  %5855 = vmatpush.bf16.msra.mxu0 %v5598
  %5856 = vmatpush.bf16.msra.mxu0 %v5592
  %5857 = vmatpush.bf16.msra.mxu0 %v5586
  %5858 = vmatpush.bf16.msra.mxu0 %v5580
  %5859 = vmatpush.bf16.msra.mxu0 %v5574
  %5860 = vmatpush.bf16.msra.mxu0 %v5568
  %5861 = vmatpush.bf16.msra.mxu0 %v5562
  %5862 = vmatmul.bf16.gmra.mxu0 0
  %v5863 = vpop.f32.mrf.mxu0
  %v5864 = vadd.f32 0.0, %v5863
  %v5865 = vpop.f32.mrf.mxu0
  %5866 = vdwg.mxu0
  %5867 = vmatpush.bf16.msra.mxu0 %v5652
  %5868 = vmatpush.bf16.msra.mxu0 %v5646
  %5869 = vmatpush.bf16.msra.mxu0 %v5640
  %5870 = vmatpush.bf16.msra.mxu0 %v5634
  %5871 = vmatpush.bf16.msra.mxu0 %v5628
  %5872 = vmatpush.bf16.msra.mxu0 %v5622
  %5873 = vmatpush.bf16.msra.mxu0 %v5616
  %5874 = vmatpush.bf16.msra.mxu0 %v5610
  %5875 = vmatmul.bf16.gmra.mxu0 0
  %v5876 = vpop.f32.mrf.mxu0
  %v5877 = vadd.f32 %v5864, %v5876
  %v5878 = vpop.f32.mrf.mxu0
  %5879 = vdwg.mxu0
  %5880 = vmatpush.bf16.msra.mxu0 %v5605
  %5881 = vmatpush.bf16.msra.mxu0 %v5599
  %5882 = vmatpush.bf16.msra.mxu0 %v5593
  %5883 = vmatpush.bf16.msra.mxu0 %v5587
  %5884 = vmatpush.bf16.msra.mxu0 %v5581
  %5885 = vmatpush.bf16.msra.mxu0 %v5575
  %5886 = vmatpush.bf16.msra.mxu0 %v5569
  %5887 = vmatpush.bf16.msra.mxu0 %v5563
  %5888 = vmatmul.bf16.gmra.mxu0 0
  %v5889 = vpop.f32.mrf.mxu0
  %v5890 = vadd.f32 0.0, %v5889
  %v5891 = vpop.f32.mrf.mxu0
  %5892 = vdwg.mxu0
  %5893 = vmatpush.bf16.msra.mxu0 %v5653
  %5894 = vmatpush.bf16.msra.mxu0 %v5647
  %5895 = vmatpush.bf16.msra.mxu0 %v5641
  %5896 = vmatpush.bf16.msra.mxu0 %v5635
  %5897 = vmatpush.bf16.msra.mxu0 %v5629
  %5898 = vmatpush.bf16.msra.mxu0 %v5623
  %5899 = vmatpush.bf16.msra.mxu0 %v5617
  %5900 = vmatpush.bf16.msra.mxu0 %v5611
  %5901 = vmatmul.bf16.gmra.mxu0 0
  %v5902 = vpop.f32.mrf.mxu0
  %v5903 = vadd.f32 %v5890, %v5902
  %v5904 = vpop.f32.mrf.mxu0
  %5905 = vdwg.mxu0
  %v5906 = vadd.f32 %v4619, %v5137
  %v5907 = vadd.f32 %v4620, %v5163
  %v5908 = vxor.u32 %v5906, 2147483648
  %v5909 = vxor.u32 %v5907, 2147483648
  %v5910 = vmul.f32 %v5908, 1.442695
  %v5911 = vpow.pop %v5910
  %v5912 = vmul.f32 %v5909, 1.442695
  %v5913 = vpow.pop %v5912
  %v5914 = vadd.f32 %v5911, 1.0
  %v5915 = vadd.f32 %v5913, 1.0
  %v5916 = vrcp.pop %v5914
  %v5917 = vmul.f32 %v5914, %v5916
  %v5918 = vsub.f32 1.0, %v5917
  %v5919 = vmul.f32 %v5916, %v5918
  %v5920 = vadd.f32 %v5916, %v5919
  %vm5921 = vweird.f32 %v5914
  %vm5922 = vweird.f32 %v5916
  %vm5923 = vmor %vm5921, %vm5922
  %v5924 = vsel %vm5923, %v5916, %v5920
  %v5925 = vand.u32 2147483647, %v5914
  %vm5926 = vcmp.eq.f32.partialorder %v5925, 8.507059e+37
  %v5927 = vand.u32 %v5914, 2147483648
  %v5928 = vor.u32 1.1754944e-38, %v5927
  %v5929 = vsel %vm5926, %v5928, %v5924
  %v5930 = vmul.f32 1.0, %v5929
  %v5931 = vrcp.pop %v5915
  %v5932 = vmul.f32 %v5915, %v5931
  %v5933 = vsub.f32 1.0, %v5932
  %v5934 = vmul.f32 %v5931, %v5933
  %v5935 = vadd.f32 %v5931, %v5934
  %vm5936 = vweird.f32 %v5915
  %vm5937 = vweird.f32 %v5931
  %vm5938 = vmor %vm5936, %vm5937
  %v5939 = vsel %vm5938, %v5931, %v5935
  %v5940 = vand.u32 2147483647, %v5915
  %vm5941 = vcmp.eq.f32.partialorder %v5940, 8.507059e+37
  %v5942 = vand.u32 %v5915, 2147483648
  %v5943 = vor.u32 1.1754944e-38, %v5942
  %v5944 = vsel %vm5941, %v5943, %v5939
  %v5945 = vmul.f32 1.0, %v5944
  %v5946 = vadd.f32 %v4621, %v5189
  %v5947 = vadd.f32 %v4622, %v5215
  %v5948 = vxor.u32 %v5946, 2147483648
  %v5949 = vxor.u32 %v5947, 2147483648
  %v5950 = vmul.f32 %v5948, 1.442695
  %v5951 = vpow.pop %v5950
  %v5952 = vmul.f32 %v5949, 1.442695
  %v5953 = vpow.pop %v5952
  %v5954 = vadd.f32 %v5951, 1.0
  %v5955 = vadd.f32 %v5953, 1.0
  %v5956 = vrcp.pop %v5954
  %v5957 = vmul.f32 %v5954, %v5956
  %v5958 = vsub.f32 1.0, %v5957
  %v5959 = vmul.f32 %v5956, %v5958
  %v5960 = vadd.f32 %v5956, %v5959
  %vm5961 = vweird.f32 %v5954
  %vm5962 = vweird.f32 %v5956
  %vm5963 = vmor %vm5961, %vm5962
  %v5964 = vsel %vm5963, %v5956, %v5960
  %v5965 = vand.u32 2147483647, %v5954
  %vm5966 = vcmp.eq.f32.partialorder %v5965, 8.507059e+37
  %v5967 = vand.u32 %v5954, 2147483648
  %v5968 = vor.u32 1.1754944e-38, %v5967
  %v5969 = vsel %vm5966, %v5968, %v5964
  %v5970 = vmul.f32 1.0, %v5969
  %v5971 = vrcp.pop %v5955
  %v5972 = vmul.f32 %v5955, %v5971
  %v5973 = vsub.f32 1.0, %v5972
  %v5974 = vmul.f32 %v5971, %v5973
  %v5975 = vadd.f32 %v5971, %v5974
  %vm5976 = vweird.f32 %v5955
  %vm5977 = vweird.f32 %v5971
  %vm5978 = vmor %vm5976, %vm5977
  %v5979 = vsel %vm5978, %v5971, %v5975
  %v5980 = vand.u32 2147483647, %v5955
  %vm5981 = vcmp.eq.f32.partialorder %v5980, 8.507059e+37
  %v5982 = vand.u32 %v5955, 2147483648
  %v5983 = vor.u32 1.1754944e-38, %v5982
  %v5984 = vsel %vm5981, %v5983, %v5979
  %v5985 = vmul.f32 1.0, %v5984
  %v5986 = vadd.f32 %v5241, %v4606
  %v5987 = vadd.f32 %v5267, %v4607
  %v5988 = vmul.f32 %v5930, %v5986
  %v5989 = vmul.f32 %v5945, %v5987
  %v5990 = vadd.f32 %v4623, %v5988
  %v5991 = vadd.f32 %v4624, %v5989
  %v5992 = vtanh.pop %v5990
  %v5993 = vtanh.pop %v5991
  %v5994 = vadd.f32 %v4628, %v5773
  %v5995 = vadd.f32 %v4629, %v5799
  %v5996 = vxor.u32 %v5994, 2147483648
  %v5997 = vxor.u32 %v5995, 2147483648
  %v5998 = vmul.f32 %v5996, 1.442695
  %v5999 = vpow.pop %v5998
  %v6000 = vmul.f32 %v5997, 1.442695
  %v6001 = vpow.pop %v6000
  %v6002 = vadd.f32 %v5999, 1.0
  %v6003 = vadd.f32 %v6001, 1.0
  %v6004 = vrcp.pop %v6002
  %v6005 = vmul.f32 %v6002, %v6004
  %v6006 = vsub.f32 1.0, %v6005
  %v6007 = vmul.f32 %v6004, %v6006
  %v6008 = vadd.f32 %v6004, %v6007
  %vm6009 = vweird.f32 %v6002
  %vm6010 = vweird.f32 %v6004
  %vm6011 = vmor %vm6009, %vm6010
  %v6012 = vsel %vm6011, %v6004, %v6008
  %v6013 = vand.u32 2147483647, %v6002
  %vm6014 = vcmp.eq.f32.partialorder %v6013, 8.507059e+37
  %v6015 = vand.u32 %v6002, 2147483648
  %v6016 = vor.u32 1.1754944e-38, %v6015
  %v6017 = vsel %vm6014, %v6016, %v6012
  %v6018 = vmul.f32 1.0, %v6017
  %v6019 = vrcp.pop %v6003
  %v6020 = vmul.f32 %v6003, %v6019
  %v6021 = vsub.f32 1.0, %v6020
  %v6022 = vmul.f32 %v6019, %v6021
  %v6023 = vadd.f32 %v6019, %v6022
  %vm6024 = vweird.f32 %v6003
  %vm6025 = vweird.f32 %v6019
  %vm6026 = vmor %vm6024, %vm6025
  %v6027 = vsel %vm6026, %v6019, %v6023
  %v6028 = vand.u32 2147483647, %v6003
  %vm6029 = vcmp.eq.f32.partialorder %v6028, 8.507059e+37
  %v6030 = vand.u32 %v6003, 2147483648
  %v6031 = vor.u32 1.1754944e-38, %v6030
  %v6032 = vsel %vm6029, %v6031, %v6027
  %v6033 = vmul.f32 1.0, %v6032
  %v6034 = vadd.f32 %v4630, %v5825
  %v6035 = vadd.f32 %v4631, %v5851
  %v6036 = vxor.u32 %v6034, 2147483648
  %v6037 = vxor.u32 %v6035, 2147483648
  %v6038 = vmul.f32 %v6036, 1.442695
  %v6039 = vpow.pop %v6038
  %v6040 = vmul.f32 %v6037, 1.442695
  %v6041 = vpow.pop %v6040
  %v6042 = vadd.f32 %v6039, 1.0
  %v6043 = vadd.f32 %v6041, 1.0
  %v6044 = vrcp.pop %v6042
  %v6045 = vmul.f32 %v6042, %v6044
  %v6046 = vsub.f32 1.0, %v6045
  %v6047 = vmul.f32 %v6044, %v6046
  %v6048 = vadd.f32 %v6044, %v6047
  %vm6049 = vweird.f32 %v6042
  %vm6050 = vweird.f32 %v6044
  %vm6051 = vmor %vm6049, %vm6050
  %v6052 = vsel %vm6051, %v6044, %v6048
  %v6053 = vand.u32 2147483647, %v6042
  %vm6054 = vcmp.eq.f32.partialorder %v6053, 8.507059e+37
  %v6055 = vand.u32 %v6042, 2147483648
  %v6056 = vor.u32 1.1754944e-38, %v6055
  %v6057 = vsel %vm6054, %v6056, %v6052
  %v6058 = vmul.f32 1.0, %v6057
  %v6059 = vrcp.pop %v6043
  %v6060 = vmul.f32 %v6043, %v6059
  %v6061 = vsub.f32 1.0, %v6060
  %v6062 = vmul.f32 %v6059, %v6061
  %v6063 = vadd.f32 %v6059, %v6062
  %vm6064 = vweird.f32 %v6043
  %vm6065 = vweird.f32 %v6059
  %vm6066 = vmor %vm6064, %vm6065
  %v6067 = vsel %vm6066, %v6059, %v6063
  %v6068 = vand.u32 2147483647, %v6043
  %vm6069 = vcmp.eq.f32.partialorder %v6068, 8.507059e+37
  %v6070 = vand.u32 %v6043, 2147483648
  %v6071 = vor.u32 1.1754944e-38, %v6070
  %v6072 = vsel %vm6069, %v6071, %v6067
  %v6073 = vmul.f32 1.0, %v6072
  %v6074 = vadd.f32 %v5877, %v4612
  %v6075 = vadd.f32 %v5903, %v4613
  %v6076 = vmul.f32 %v6018, %v6074
  %v6077 = vmul.f32 %v6033, %v6075
  %v6078 = vadd.f32 %v4632, %v6076
  %v6079 = vadd.f32 %v4633, %v6077
  %v6080 = vtanh.pop %v6078
  %v6081 = vtanh.pop %v6079
  %v6082 = vsub.f32 1.0, %v5970
  %v6083 = vsub.f32 1.0, %v5985
  %v6084 = vmul.f32 %v6082, %v5992
  %v6085 = vmul.f32 %v6083, %v5993
  %v6086 = vmul.f32 %v5970, 0.0
  %v6087 = vmul.f32 %v5985, 0.0
  %v6088 = vadd.f32 %v6084, %v6086
  %v6089 = vadd.f32 %v6085, %v6087
  %v6090 = vsub.f32 1.0, %v6058
  %v6091 = vsub.f32 1.0, %v6073
  %v6092 = vmul.f32 %v6090, %v6080
  %v6093 = vmul.f32 %v6091, %v6081
  %v6094 = vmul.f32 %v6058, 0.0
  %v6095 = vmul.f32 %v6073, 0.0
  %v6096 = vadd.f32 %v6092, %v6094
  %v6097 = vadd.f32 %v6093, %v6095
  %v6098 = vld [vmem:[#allocation2 + $0x30] sm:$0xff]
  %v6099 = vld [vmem:[#allocation2 + $0x38] sm:$0xff]
  %v6100 = vld [vmem:[#allocation2 + $0x40] sm:$0xff]
  %v6101 = vunpack.c.l.bf16 %v6098
  %v6102 = vunpack.c.h.bf16 %v6098
  %v6103 = vunpack.c.l.bf16 %v6099
  %v6104 = vunpack.c.h.bf16 %v6099
  %v6105 = vunpack.c.l.bf16 %v6100
  %v6106 = vunpack.c.h.bf16 %v6100
  %v6107 = vld [vmem:[#allocation2 + $0x138] sm:$0xff]
  %v6108 = vld [vmem:[#allocation2 + $0x140] sm:$0xff]
  %v6109 = vld [vmem:[#allocation2 + $0x148] sm:$0xff]
  %v6110 = vunpack.c.l.bf16 %v6107
  %v6111 = vunpack.c.h.bf16 %v6107
  %v6112 = vunpack.c.l.bf16 %v6108
  %v6113 = vunpack.c.h.bf16 %v6108
  %v6114 = vunpack.c.l.bf16 %v6109
  %v6115 = vunpack.c.h.bf16 %v6109
  %v6116 = vpack.c.bf16 %v6088, %v6088
  %v6117 = vpack.c.bf16 %v6089, %v6089
  %6118 = vmatpush.bf16.msra.mxu0 %v4964
  %6119 = vmatpush.bf16.msra.mxu0 %v4958
  %6120 = vmatpush.bf16.msra.mxu0 %v4952
  %6121 = vmatpush.bf16.msra.mxu0 %v4946
  %6122 = vmatpush.bf16.msra.mxu0 %v4940
  %6123 = vmatpush.bf16.msra.mxu0 %v4934
  %6124 = vmatpush.bf16.msra.mxu0 %v4928
  %6125 = vmatpush.bf16.msra.mxu0 %v4922
  %6126 = vmatmul.bf16.gmra.mxu0 %v6116
  %v6127 = vpop.f32.mrf.mxu0
  %v6128 = vadd.f32 0.0, %v6127
  %v6129 = vpop.f32.mrf.mxu0
  %6130 = vdwg.mxu0
  %6131 = vmatpush.bf16.msra.mxu0 %v5012
  %6132 = vmatpush.bf16.msra.mxu0 %v5006
  %6133 = vmatpush.bf16.msra.mxu0 %v5000
  %6134 = vmatpush.bf16.msra.mxu0 %v4994
  %6135 = vmatpush.bf16.msra.mxu0 %v4988
  %6136 = vmatpush.bf16.msra.mxu0 %v4982
  %6137 = vmatpush.bf16.msra.mxu0 %v4976
  %6138 = vmatpush.bf16.msra.mxu0 %v4970
  %6139 = vmatmul.bf16.gmra.mxu0 %v6117
  %v6140 = vpop.f32.mrf.mxu0
  %v6141 = vadd.f32 %v6128, %v6140
  %v6142 = vpop.f32.mrf.mxu0
  %6143 = vdwg.mxu0
  %6144 = vmatpush.bf16.msra.mxu0 %v4965
  %6145 = vmatpush.bf16.msra.mxu0 %v4959
  %6146 = vmatpush.bf16.msra.mxu0 %v4953
  %6147 = vmatpush.bf16.msra.mxu0 %v4947
  %6148 = vmatpush.bf16.msra.mxu0 %v4941
  %6149 = vmatpush.bf16.msra.mxu0 %v4935
  %6150 = vmatpush.bf16.msra.mxu0 %v4929
  %6151 = vmatpush.bf16.msra.mxu0 %v4923
  %6152 = vmatmul.bf16.gmra.mxu0 %v6116
  %v6153 = vpop.f32.mrf.mxu0
  %v6154 = vadd.f32 0.0, %v6153
  %v6155 = vpop.f32.mrf.mxu0
  %6156 = vdwg.mxu0
  %6157 = vmatpush.bf16.msra.mxu0 %v5013
  %6158 = vmatpush.bf16.msra.mxu0 %v5007
  %6159 = vmatpush.bf16.msra.mxu0 %v5001
  %6160 = vmatpush.bf16.msra.mxu0 %v4995
  %6161 = vmatpush.bf16.msra.mxu0 %v4989
  %6162 = vmatpush.bf16.msra.mxu0 %v4983
  %6163 = vmatpush.bf16.msra.mxu0 %v4977
  %6164 = vmatpush.bf16.msra.mxu0 %v4971
  %6165 = vmatmul.bf16.gmra.mxu0 %v6117
  %v6166 = vpop.f32.mrf.mxu0
  %v6167 = vadd.f32 %v6154, %v6166
  %v6168 = vpop.f32.mrf.mxu0
  %6169 = vdwg.mxu0
  %6170 = vmatpush.bf16.msra.mxu0 %v4966
  %6171 = vmatpush.bf16.msra.mxu0 %v4960
  %6172 = vmatpush.bf16.msra.mxu0 %v4954
  %6173 = vmatpush.bf16.msra.mxu0 %v4948
  %6174 = vmatpush.bf16.msra.mxu0 %v4942
  %6175 = vmatpush.bf16.msra.mxu0 %v4936
  %6176 = vmatpush.bf16.msra.mxu0 %v4930
  %6177 = vmatpush.bf16.msra.mxu0 %v4924
  %6178 = vmatmul.bf16.gmra.mxu0 %v6116
  %v6179 = vpop.f32.mrf.mxu0
  %v6180 = vadd.f32 0.0, %v6179
  %v6181 = vpop.f32.mrf.mxu0
  %6182 = vdwg.mxu0
  %6183 = vmatpush.bf16.msra.mxu0 %v5014
  %6184 = vmatpush.bf16.msra.mxu0 %v5008
  %6185 = vmatpush.bf16.msra.mxu0 %v5002
  %6186 = vmatpush.bf16.msra.mxu0 %v4996
  %6187 = vmatpush.bf16.msra.mxu0 %v4990
  %6188 = vmatpush.bf16.msra.mxu0 %v4984
  %6189 = vmatpush.bf16.msra.mxu0 %v4978
  %6190 = vmatpush.bf16.msra.mxu0 %v4972
  %6191 = vmatmul.bf16.gmra.mxu0 %v6117
  %v6192 = vpop.f32.mrf.mxu0
  %v6193 = vadd.f32 %v6180, %v6192
  %v6194 = vpop.f32.mrf.mxu0
  %6195 = vdwg.mxu0
  %6196 = vmatpush.bf16.msra.mxu0 %v4967
  %6197 = vmatpush.bf16.msra.mxu0 %v4961
  %6198 = vmatpush.bf16.msra.mxu0 %v4955
  %6199 = vmatpush.bf16.msra.mxu0 %v4949
  %6200 = vmatpush.bf16.msra.mxu0 %v4943
  %6201 = vmatpush.bf16.msra.mxu0 %v4937
  %6202 = vmatpush.bf16.msra.mxu0 %v4931
  %6203 = vmatpush.bf16.msra.mxu0 %v4925
  %6204 = vmatmul.bf16.gmra.mxu0 %v6116
  %v6205 = vpop.f32.mrf.mxu0
  %v6206 = vadd.f32 0.0, %v6205
  %v6207 = vpop.f32.mrf.mxu0
  %6208 = vdwg.mxu0
  %6209 = vmatpush.bf16.msra.mxu0 %v5015
  %6210 = vmatpush.bf16.msra.mxu0 %v5009
  %6211 = vmatpush.bf16.msra.mxu0 %v5003
  %6212 = vmatpush.bf16.msra.mxu0 %v4997
  %6213 = vmatpush.bf16.msra.mxu0 %v4991
  %6214 = vmatpush.bf16.msra.mxu0 %v4985
  %6215 = vmatpush.bf16.msra.mxu0 %v4979
  %6216 = vmatpush.bf16.msra.mxu0 %v4973
  %6217 = vmatmul.bf16.gmra.mxu0 %v6117
  %v6218 = vpop.f32.mrf.mxu0
  %v6219 = vadd.f32 %v6206, %v6218
  %v6220 = vpop.f32.mrf.mxu0
  %6221 = vdwg.mxu0
  %6222 = vmatpush.bf16.msra.mxu0 %v4968
  %6223 = vmatpush.bf16.msra.mxu0 %v4962
  %6224 = vmatpush.bf16.msra.mxu0 %v4956
  %6225 = vmatpush.bf16.msra.mxu0 %v4950
  %6226 = vmatpush.bf16.msra.mxu0 %v4944
  %6227 = vmatpush.bf16.msra.mxu0 %v4938
  %6228 = vmatpush.bf16.msra.mxu0 %v4932
  %6229 = vmatpush.bf16.msra.mxu0 %v4926
  %6230 = vmatmul.bf16.gmra.mxu0 %v6116
  %v6231 = vpop.f32.mrf.mxu0
  %v6232 = vadd.f32 0.0, %v6231
  %v6233 = vpop.f32.mrf.mxu0
  %6234 = vdwg.mxu0
  %6235 = vmatpush.bf16.msra.mxu0 %v5016
  %6236 = vmatpush.bf16.msra.mxu0 %v5010
  %6237 = vmatpush.bf16.msra.mxu0 %v5004
  %6238 = vmatpush.bf16.msra.mxu0 %v4998
  %6239 = vmatpush.bf16.msra.mxu0 %v4992
  %6240 = vmatpush.bf16.msra.mxu0 %v4986
  %6241 = vmatpush.bf16.msra.mxu0 %v4980
  %6242 = vmatpush.bf16.msra.mxu0 %v4974
  %6243 = vmatmul.bf16.gmra.mxu0 %v6117
  %v6244 = vpop.f32.mrf.mxu0
  %v6245 = vadd.f32 %v6232, %v6244
  %v6246 = vpop.f32.mrf.mxu0
  %6247 = vdwg.mxu0
  %6248 = vmatpush.bf16.msra.mxu0 %v4969
  %6249 = vmatpush.bf16.msra.mxu0 %v4963
  %6250 = vmatpush.bf16.msra.mxu0 %v4957
  %6251 = vmatpush.bf16.msra.mxu0 %v4951
  %6252 = vmatpush.bf16.msra.mxu0 %v4945
  %6253 = vmatpush.bf16.msra.mxu0 %v4939
  %6254 = vmatpush.bf16.msra.mxu0 %v4933
  %6255 = vmatpush.bf16.msra.mxu0 %v4927
  %6256 = vmatmul.bf16.gmra.mxu0 %v6116
  %v6257 = vpop.f32.mrf.mxu0
  %v6258 = vadd.f32 0.0, %v6257
  %v6259 = vpop.f32.mrf.mxu0
  %6260 = vdwg.mxu0
  %6261 = vmatpush.bf16.msra.mxu0 %v5017
  %6262 = vmatpush.bf16.msra.mxu0 %v5011
  %6263 = vmatpush.bf16.msra.mxu0 %v5005
  %6264 = vmatpush.bf16.msra.mxu0 %v4999
  %6265 = vmatpush.bf16.msra.mxu0 %v4993
  %6266 = vmatpush.bf16.msra.mxu0 %v4987
  %6267 = vmatpush.bf16.msra.mxu0 %v4981
  %6268 = vmatpush.bf16.msra.mxu0 %v4975
  %6269 = vmatmul.bf16.gmra.mxu0 %v6117
  %v6270 = vpop.f32.mrf.mxu0
  %v6271 = vadd.f32 %v6258, %v6270
  %v6272 = vpop.f32.mrf.mxu0
  %6273 = vdwg.mxu0
  %v6274 = vpack.c.bf16 %v6096, %v6096
  %v6275 = vpack.c.bf16 %v6097, %v6097
  %6276 = vmatpush.bf16.msra.mxu0 %v5600
  %6277 = vmatpush.bf16.msra.mxu0 %v5594
  %6278 = vmatpush.bf16.msra.mxu0 %v5588
  %6279 = vmatpush.bf16.msra.mxu0 %v5582
  %6280 = vmatpush.bf16.msra.mxu0 %v5576
  %6281 = vmatpush.bf16.msra.mxu0 %v5570
  %6282 = vmatpush.bf16.msra.mxu0 %v5564
  %6283 = vmatpush.bf16.msra.mxu0 %v5558
  %6284 = vmatmul.bf16.gmra.mxu0 %v6274
  %v6285 = vpop.f32.mrf.mxu0
  %v6286 = vadd.f32 0.0, %v6285
  %v6287 = vpop.f32.mrf.mxu0
  %6288 = vdwg.mxu0
  %6289 = vmatpush.bf16.msra.mxu0 %v5648
  %6290 = vmatpush.bf16.msra.mxu0 %v5642
  %6291 = vmatpush.bf16.msra.mxu0 %v5636
  %6292 = vmatpush.bf16.msra.mxu0 %v5630
  %6293 = vmatpush.bf16.msra.mxu0 %v5624
  %6294 = vmatpush.bf16.msra.mxu0 %v5618
  %6295 = vmatpush.bf16.msra.mxu0 %v5612
  %6296 = vmatpush.bf16.msra.mxu0 %v5606
  %6297 = vmatmul.bf16.gmra.mxu0 %v6275
  %v6298 = vpop.f32.mrf.mxu0
  %v6299 = vadd.f32 %v6286, %v6298
  %v6300 = vpop.f32.mrf.mxu0
  %6301 = vdwg.mxu0
  %6302 = vmatpush.bf16.msra.mxu0 %v5601
  %6303 = vmatpush.bf16.msra.mxu0 %v5595
  %6304 = vmatpush.bf16.msra.mxu0 %v5589
  %6305 = vmatpush.bf16.msra.mxu0 %v5583
  %6306 = vmatpush.bf16.msra.mxu0 %v5577
  %6307 = vmatpush.bf16.msra.mxu0 %v5571
  %6308 = vmatpush.bf16.msra.mxu0 %v5565
  %6309 = vmatpush.bf16.msra.mxu0 %v5559
  %6310 = vmatmul.bf16.gmra.mxu0 %v6274
  %v6311 = vpop.f32.mrf.mxu0
  %v6312 = vadd.f32 0.0, %v6311
  %v6313 = vpop.f32.mrf.mxu0
  %6314 = vdwg.mxu0
  %6315 = vmatpush.bf16.msra.mxu0 %v5649
  %6316 = vmatpush.bf16.msra.mxu0 %v5643
  %6317 = vmatpush.bf16.msra.mxu0 %v5637
  %6318 = vmatpush.bf16.msra.mxu0 %v5631
  %6319 = vmatpush.bf16.msra.mxu0 %v5625
  %6320 = vmatpush.bf16.msra.mxu0 %v5619
  %6321 = vmatpush.bf16.msra.mxu0 %v5613
  %6322 = vmatpush.bf16.msra.mxu0 %v5607
  %6323 = vmatmul.bf16.gmra.mxu0 %v6275
  %v6324 = vpop.f32.mrf.mxu0
  %v6325 = vadd.f32 %v6312, %v6324
  %v6326 = vpop.f32.mrf.mxu0
  %6327 = vdwg.mxu0
  %6328 = vmatpush.bf16.msra.mxu0 %v5602
  %6329 = vmatpush.bf16.msra.mxu0 %v5596
  %6330 = vmatpush.bf16.msra.mxu0 %v5590
  %6331 = vmatpush.bf16.msra.mxu0 %v5584
  %6332 = vmatpush.bf16.msra.mxu0 %v5578
  %6333 = vmatpush.bf16.msra.mxu0 %v5572
  %6334 = vmatpush.bf16.msra.mxu0 %v5566
  %6335 = vmatpush.bf16.msra.mxu0 %v5560
  %6336 = vmatmul.bf16.gmra.mxu0 %v6274
  %v6337 = vpop.f32.mrf.mxu0
  %v6338 = vadd.f32 0.0, %v6337
  %v6339 = vpop.f32.mrf.mxu0
  %6340 = vdwg.mxu0
  %6341 = vmatpush.bf16.msra.mxu0 %v5650
  %6342 = vmatpush.bf16.msra.mxu0 %v5644
  %6343 = vmatpush.bf16.msra.mxu0 %v5638
  %6344 = vmatpush.bf16.msra.mxu0 %v5632
  %6345 = vmatpush.bf16.msra.mxu0 %v5626
  %6346 = vmatpush.bf16.msra.mxu0 %v5620
  %6347 = vmatpush.bf16.msra.mxu0 %v5614
  %6348 = vmatpush.bf16.msra.mxu0 %v5608
  %6349 = vmatmul.bf16.gmra.mxu0 %v6275
  %v6350 = vpop.f32.mrf.mxu0
  %v6351 = vadd.f32 %v6338, %v6350
  %v6352 = vpop.f32.mrf.mxu0
  %6353 = vdwg.mxu0
  %6354 = vmatpush.bf16.msra.mxu0 %v5603
  %6355 = vmatpush.bf16.msra.mxu0 %v5597
  %6356 = vmatpush.bf16.msra.mxu0 %v5591
  %6357 = vmatpush.bf16.msra.mxu0 %v5585
  %6358 = vmatpush.bf16.msra.mxu0 %v5579
  %6359 = vmatpush.bf16.msra.mxu0 %v5573
  %6360 = vmatpush.bf16.msra.mxu0 %v5567
  %6361 = vmatpush.bf16.msra.mxu0 %v5561
  %6362 = vmatmul.bf16.gmra.mxu0 %v6274
  %v6363 = vpop.f32.mrf.mxu0
  %v6364 = vadd.f32 0.0, %v6363
  %v6365 = vpop.f32.mrf.mxu0
  %6366 = vdwg.mxu0
  %6367 = vmatpush.bf16.msra.mxu0 %v5651
  %6368 = vmatpush.bf16.msra.mxu0 %v5645
  %6369 = vmatpush.bf16.msra.mxu0 %v5639
  %6370 = vmatpush.bf16.msra.mxu0 %v5633
  %6371 = vmatpush.bf16.msra.mxu0 %v5627
  %6372 = vmatpush.bf16.msra.mxu0 %v5621
  %6373 = vmatpush.bf16.msra.mxu0 %v5615
  %6374 = vmatpush.bf16.msra.mxu0 %v5609
  %6375 = vmatmul.bf16.gmra.mxu0 %v6275
  %v6376 = vpop.f32.mrf.mxu0
  %v6377 = vadd.f32 %v6364, %v6376
  %v6378 = vpop.f32.mrf.mxu0
  %6379 = vdwg.mxu0
  %6380 = vmatpush.bf16.msra.mxu0 %v5604
  %6381 = vmatpush.bf16.msra.mxu0 %v5598
  %6382 = vmatpush.bf16.msra.mxu0 %v5592
  %6383 = vmatpush.bf16.msra.mxu0 %v5586
  %6384 = vmatpush.bf16.msra.mxu0 %v5580
  %6385 = vmatpush.bf16.msra.mxu0 %v5574
  %6386 = vmatpush.bf16.msra.mxu0 %v5568
  %6387 = vmatpush.bf16.msra.mxu0 %v5562
  %6388 = vmatmul.bf16.gmra.mxu0 %v6274
  %v6389 = vpop.f32.mrf.mxu0
  %v6390 = vadd.f32 0.0, %v6389
  %v6391 = vpop.f32.mrf.mxu0
  %6392 = vdwg.mxu0
  %6393 = vmatpush.bf16.msra.mxu0 %v5652
  %6394 = vmatpush.bf16.msra.mxu0 %v5646
  %6395 = vmatpush.bf16.msra.mxu0 %v5640
  %6396 = vmatpush.bf16.msra.mxu0 %v5634
  %6397 = vmatpush.bf16.msra.mxu0 %v5628
  %6398 = vmatpush.bf16.msra.mxu0 %v5622
  %6399 = vmatpush.bf16.msra.mxu0 %v5616
  %6400 = vmatpush.bf16.msra.mxu0 %v5610
  %6401 = vmatmul.bf16.gmra.mxu0 %v6275
  %v6402 = vpop.f32.mrf.mxu0
  %v6403 = vadd.f32 %v6390, %v6402
  %v6404 = vpop.f32.mrf.mxu0
  %6405 = vdwg.mxu0
  %6406 = vmatpush.bf16.msra.mxu0 %v5605
  %6407 = vmatpush.bf16.msra.mxu0 %v5599
  %6408 = vmatpush.bf16.msra.mxu0 %v5593
  %6409 = vmatpush.bf16.msra.mxu0 %v5587
  %6410 = vmatpush.bf16.msra.mxu0 %v5581
  %6411 = vmatpush.bf16.msra.mxu0 %v5575
  %6412 = vmatpush.bf16.msra.mxu0 %v5569
  %6413 = vmatpush.bf16.msra.mxu0 %v5563
  %6414 = vmatmul.bf16.gmra.mxu0 %v6274
  %v6415 = vpop.f32.mrf.mxu0
  %v6416 = vadd.f32 0.0, %v6415
  %v6417 = vpop.f32.mrf.mxu0
  %6418 = vdwg.mxu0
  %6419 = vmatpush.bf16.msra.mxu0 %v5653
  %6420 = vmatpush.bf16.msra.mxu0 %v5647
  %6421 = vmatpush.bf16.msra.mxu0 %v5641
  %6422 = vmatpush.bf16.msra.mxu0 %v5635
  %6423 = vmatpush.bf16.msra.mxu0 %v5629
  %6424 = vmatpush.bf16.msra.mxu0 %v5623
  %6425 = vmatpush.bf16.msra.mxu0 %v5617
  %6426 = vmatpush.bf16.msra.mxu0 %v5611
  %6427 = vmatmul.bf16.gmra.mxu0 %v6275
  %v6428 = vpop.f32.mrf.mxu0
  %v6429 = vadd.f32 %v6416, %v6428
  %v6430 = vpop.f32.mrf.mxu0
  %6431 = vdwg.mxu0
  %v6432 = vadd.f32 %v6101, %v6141
  %v6433 = vadd.f32 %v6102, %v6167
  %v6434 = vxor.u32 %v6432, 2147483648
  %v6435 = vxor.u32 %v6433, 2147483648
  %v6436 = vmul.f32 %v6434, 1.442695
  %v6437 = vpow.pop %v6436
  %v6438 = vmul.f32 %v6435, 1.442695
  %v6439 = vpow.pop %v6438
  %v6440 = vadd.f32 %v6437, 1.0
  %v6441 = vadd.f32 %v6439, 1.0
  %v6442 = vrcp.pop %v6440
  %v6443 = vmul.f32 %v6440, %v6442
  %v6444 = vsub.f32 1.0, %v6443
  %v6445 = vmul.f32 %v6442, %v6444
  %v6446 = vadd.f32 %v6442, %v6445
  %vm6447 = vweird.f32 %v6440
  %vm6448 = vweird.f32 %v6442
  %vm6449 = vmor %vm6447, %vm6448
  %v6450 = vsel %vm6449, %v6442, %v6446
  %v6451 = vand.u32 2147483647, %v6440
  %vm6452 = vcmp.eq.f32.partialorder %v6451, 8.507059e+37
  %v6453 = vand.u32 %v6440, 2147483648
  %v6454 = vor.u32 1.1754944e-38, %v6453
  %v6455 = vsel %vm6452, %v6454, %v6450
  %v6456 = vmul.f32 1.0, %v6455
  %v6457 = vrcp.pop %v6441
  %v6458 = vmul.f32 %v6441, %v6457
  %v6459 = vsub.f32 1.0, %v6458
  %v6460 = vmul.f32 %v6457, %v6459
  %v6461 = vadd.f32 %v6457, %v6460
  %vm6462 = vweird.f32 %v6441
  %vm6463 = vweird.f32 %v6457
  %vm6464 = vmor %vm6462, %vm6463
  %v6465 = vsel %vm6464, %v6457, %v6461
  %v6466 = vand.u32 2147483647, %v6441
  %vm6467 = vcmp.eq.f32.partialorder %v6466, 8.507059e+37
  %v6468 = vand.u32 %v6441, 2147483648
  %v6469 = vor.u32 1.1754944e-38, %v6468
  %v6470 = vsel %vm6467, %v6469, %v6465
  %v6471 = vmul.f32 1.0, %v6470
  %v6472 = vadd.f32 %v6103, %v6193
  %v6473 = vadd.f32 %v6104, %v6219
  %v6474 = vxor.u32 %v6472, 2147483648
  %v6475 = vxor.u32 %v6473, 2147483648
  %v6476 = vmul.f32 %v6474, 1.442695
  %v6477 = vpow.pop %v6476
  %v6478 = vmul.f32 %v6475, 1.442695
  %v6479 = vpow.pop %v6478
  %v6480 = vadd.f32 %v6477, 1.0
  %v6481 = vadd.f32 %v6479, 1.0
  %v6482 = vrcp.pop %v6480
  %v6483 = vmul.f32 %v6480, %v6482
  %v6484 = vsub.f32 1.0, %v6483
  %v6485 = vmul.f32 %v6482, %v6484
  %v6486 = vadd.f32 %v6482, %v6485
  %vm6487 = vweird.f32 %v6480
  %vm6488 = vweird.f32 %v6482
  %vm6489 = vmor %vm6487, %vm6488
  %v6490 = vsel %vm6489, %v6482, %v6486
  %v6491 = vand.u32 2147483647, %v6480
  %vm6492 = vcmp.eq.f32.partialorder %v6491, 8.507059e+37
  %v6493 = vand.u32 %v6480, 2147483648
  %v6494 = vor.u32 1.1754944e-38, %v6493
  %v6495 = vsel %vm6492, %v6494, %v6490
  %v6496 = vmul.f32 1.0, %v6495
  %v6497 = vrcp.pop %v6481
  %v6498 = vmul.f32 %v6481, %v6497
  %v6499 = vsub.f32 1.0, %v6498
  %v6500 = vmul.f32 %v6497, %v6499
  %v6501 = vadd.f32 %v6497, %v6500
  %vm6502 = vweird.f32 %v6481
  %vm6503 = vweird.f32 %v6497
  %vm6504 = vmor %vm6502, %vm6503
  %v6505 = vsel %vm6504, %v6497, %v6501
  %v6506 = vand.u32 2147483647, %v6481
  %vm6507 = vcmp.eq.f32.partialorder %v6506, 8.507059e+37
  %v6508 = vand.u32 %v6481, 2147483648
  %v6509 = vor.u32 1.1754944e-38, %v6508
  %v6510 = vsel %vm6507, %v6509, %v6505
  %v6511 = vmul.f32 1.0, %v6510
  %v6512 = vadd.f32 %v6245, %v4606
  %v6513 = vadd.f32 %v6271, %v4607
  %v6514 = vmul.f32 %v6456, %v6512
  %v6515 = vmul.f32 %v6471, %v6513
  %v6516 = vadd.f32 %v6105, %v6514
  %v6517 = vadd.f32 %v6106, %v6515
  %v6518 = vtanh.pop %v6516
  %v6519 = vtanh.pop %v6517
  %v6520 = vadd.f32 %v6110, %v6299
  %v6521 = vadd.f32 %v6111, %v6325
  %v6522 = vxor.u32 %v6520, 2147483648
  %v6523 = vxor.u32 %v6521, 2147483648
  %v6524 = vmul.f32 %v6522, 1.442695
  %v6525 = vpow.pop %v6524
  %v6526 = vmul.f32 %v6523, 1.442695
  %v6527 = vpow.pop %v6526
  %v6528 = vadd.f32 %v6525, 1.0
  %v6529 = vadd.f32 %v6527, 1.0
  %v6530 = vrcp.pop %v6528
  %v6531 = vmul.f32 %v6528, %v6530
  %v6532 = vsub.f32 1.0, %v6531
  %v6533 = vmul.f32 %v6530, %v6532
  %v6534 = vadd.f32 %v6530, %v6533
  %vm6535 = vweird.f32 %v6528
  %vm6536 = vweird.f32 %v6530
  %vm6537 = vmor %vm6535, %vm6536
  %v6538 = vsel %vm6537, %v6530, %v6534
  %v6539 = vand.u32 2147483647, %v6528
  %vm6540 = vcmp.eq.f32.partialorder %v6539, 8.507059e+37
  %v6541 = vand.u32 %v6528, 2147483648
  %v6542 = vor.u32 1.1754944e-38, %v6541
  %v6543 = vsel %vm6540, %v6542, %v6538
  %v6544 = vmul.f32 1.0, %v6543
  %v6545 = vrcp.pop %v6529
  %v6546 = vmul.f32 %v6529, %v6545
  %v6547 = vsub.f32 1.0, %v6546
  %v6548 = vmul.f32 %v6545, %v6547
  %v6549 = vadd.f32 %v6545, %v6548
  %vm6550 = vweird.f32 %v6529
  %vm6551 = vweird.f32 %v6545
  %vm6552 = vmor %vm6550, %vm6551
  %v6553 = vsel %vm6552, %v6545, %v6549
  %v6554 = vand.u32 2147483647, %v6529
  %vm6555 = vcmp.eq.f32.partialorder %v6554, 8.507059e+37
  %v6556 = vand.u32 %v6529, 2147483648
  %v6557 = vor.u32 1.1754944e-38, %v6556
  %v6558 = vsel %vm6555, %v6557, %v6553
  %v6559 = vmul.f32 1.0, %v6558
  %v6560 = vadd.f32 %v6112, %v6351
  %v6561 = vadd.f32 %v6113, %v6377
  %v6562 = vxor.u32 %v6560, 2147483648
  %v6563 = vxor.u32 %v6561, 2147483648
  %v6564 = vmul.f32 %v6562, 1.442695
  %v6565 = vpow.pop %v6564
  %v6566 = vmul.f32 %v6563, 1.442695
  %v6567 = vpow.pop %v6566
  %v6568 = vadd.f32 %v6565, 1.0
  %v6569 = vadd.f32 %v6567, 1.0
  %v6570 = vrcp.pop %v6568
  %v6571 = vmul.f32 %v6568, %v6570
  %v6572 = vsub.f32 1.0, %v6571
  %v6573 = vmul.f32 %v6570, %v6572
  %v6574 = vadd.f32 %v6570, %v6573
  %vm6575 = vweird.f32 %v6568
  %vm6576 = vweird.f32 %v6570
  %vm6577 = vmor %vm6575, %vm6576
  %v6578 = vsel %vm6577, %v6570, %v6574
  %v6579 = vand.u32 2147483647, %v6568
  %vm6580 = vcmp.eq.f32.partialorder %v6579, 8.507059e+37
  %v6581 = vand.u32 %v6568, 2147483648
  %v6582 = vor.u32 1.1754944e-38, %v6581
  %v6583 = vsel %vm6580, %v6582, %v6578
  %v6584 = vmul.f32 1.0, %v6583
  %v6585 = vrcp.pop %v6569
  %v6586 = vmul.f32 %v6569, %v6585
  %v6587 = vsub.f32 1.0, %v6586
  %v6588 = vmul.f32 %v6585, %v6587
  %v6589 = vadd.f32 %v6585, %v6588
  %vm6590 = vweird.f32 %v6569
  %vm6591 = vweird.f32 %v6585
  %vm6592 = vmor %vm6590, %vm6591
  %v6593 = vsel %vm6592, %v6585, %v6589
  %v6594 = vand.u32 2147483647, %v6569
  %vm6595 = vcmp.eq.f32.partialorder %v6594, 8.507059e+37
  %v6596 = vand.u32 %v6569, 2147483648
  %v6597 = vor.u32 1.1754944e-38, %v6596
  %v6598 = vsel %vm6595, %v6597, %v6593
  %v6599 = vmul.f32 1.0, %v6598
  %v6600 = vadd.f32 %v6403, %v4612
  %v6601 = vadd.f32 %v6429, %v4613
  %v6602 = vmul.f32 %v6544, %v6600
  %v6603 = vmul.f32 %v6559, %v6601
  %v6604 = vadd.f32 %v6114, %v6602
  %v6605 = vadd.f32 %v6115, %v6603
  %v6606 = vtanh.pop %v6604
  %v6607 = vtanh.pop %v6605
  %v6608 = vsub.f32 1.0, %v6496
  %v6609 = vsub.f32 1.0, %v6511
  %v6610 = vmul.f32 %v6608, %v6518
  %v6611 = vmul.f32 %v6609, %v6519
  %v6612 = vmul.f32 %v6496, %v6088
  %v6613 = vmul.f32 %v6511, %v6089
  %v6614 = vadd.f32 %v6610, %v6612
  %v6615 = vadd.f32 %v6611, %v6613
  %v6616 = vsub.f32 1.0, %v6584
  %v6617 = vsub.f32 1.0, %v6599
  %v6618 = vmul.f32 %v6616, %v6606
  %v6619 = vmul.f32 %v6617, %v6607
  %v6620 = vmul.f32 %v6584, %v6096
  %v6621 = vmul.f32 %v6599, %v6097
  %v6622 = vadd.f32 %v6618, %v6620
  %v6623 = vadd.f32 %v6619, %v6621
  %v6624 = vld [vmem:[#allocation2 + $0x60] sm:$0xff]
  %v6625 = vld [vmem:[#allocation2 + $0x68] sm:$0xff]
  %v6626 = vld [vmem:[#allocation2 + $0x70] sm:$0xff]
  %v6627 = vunpack.c.l.bf16 %v6624
  %v6628 = vunpack.c.h.bf16 %v6624
  %v6629 = vunpack.c.l.bf16 %v6625
  %v6630 = vunpack.c.h.bf16 %v6625
  %v6631 = vunpack.c.l.bf16 %v6626
  %v6632 = vunpack.c.h.bf16 %v6626
  %v6633 = vld [vmem:[#allocation2 + $0x108] sm:$0xff]
  %v6634 = vld [vmem:[#allocation2 + $0x110] sm:$0xff]
  %v6635 = vld [vmem:[#allocation2 + $0x118] sm:$0xff]
  %v6636 = vunpack.c.l.bf16 %v6633
  %v6637 = vunpack.c.h.bf16 %v6633
  %v6638 = vunpack.c.l.bf16 %v6634
  %v6639 = vunpack.c.h.bf16 %v6634
  %v6640 = vunpack.c.l.bf16 %v6635
  %v6641 = vunpack.c.h.bf16 %v6635
  %v6642 = vpack.c.bf16 %v6614, %v6614
  %v6643 = vpack.c.bf16 %v6615, %v6615
  %6644 = vmatpush.bf16.msra.mxu0 %v4964
  %6645 = vmatpush.bf16.msra.mxu0 %v4958
  %6646 = vmatpush.bf16.msra.mxu0 %v4952
  %6647 = vmatpush.bf16.msra.mxu0 %v4946
  %6648 = vmatpush.bf16.msra.mxu0 %v4940
  %6649 = vmatpush.bf16.msra.mxu0 %v4934
  %6650 = vmatpush.bf16.msra.mxu0 %v4928
  %6651 = vmatpush.bf16.msra.mxu0 %v4922
  %6652 = vmatmul.bf16.gmra.mxu0 %v6642
  %v6653 = vpop.f32.mrf.mxu0
  %v6654 = vadd.f32 0.0, %v6653
  %v6655 = vpop.f32.mrf.mxu0
  %6656 = vdwg.mxu0
  %6657 = vmatpush.bf16.msra.mxu0 %v5012
  %6658 = vmatpush.bf16.msra.mxu0 %v5006
  %6659 = vmatpush.bf16.msra.mxu0 %v5000
  %6660 = vmatpush.bf16.msra.mxu0 %v4994
  %6661 = vmatpush.bf16.msra.mxu0 %v4988
  %6662 = vmatpush.bf16.msra.mxu0 %v4982
  %6663 = vmatpush.bf16.msra.mxu0 %v4976
  %6664 = vmatpush.bf16.msra.mxu0 %v4970
  %6665 = vmatmul.bf16.gmra.mxu0 %v6643
  %v6666 = vpop.f32.mrf.mxu0
  %v6667 = vadd.f32 %v6654, %v6666
  %v6668 = vpop.f32.mrf.mxu0
  %6669 = vdwg.mxu0
  %6670 = vmatpush.bf16.msra.mxu0 %v4965
  %6671 = vmatpush.bf16.msra.mxu0 %v4959
  %6672 = vmatpush.bf16.msra.mxu0 %v4953
  %6673 = vmatpush.bf16.msra.mxu0 %v4947
  %6674 = vmatpush.bf16.msra.mxu0 %v4941
  %6675 = vmatpush.bf16.msra.mxu0 %v4935
  %6676 = vmatpush.bf16.msra.mxu0 %v4929
  %6677 = vmatpush.bf16.msra.mxu0 %v4923
  %6678 = vmatmul.bf16.gmra.mxu0 %v6642
  %v6679 = vpop.f32.mrf.mxu0
  %v6680 = vadd.f32 0.0, %v6679
  %v6681 = vpop.f32.mrf.mxu0
  %6682 = vdwg.mxu0
  %6683 = vmatpush.bf16.msra.mxu0 %v5013
  %6684 = vmatpush.bf16.msra.mxu0 %v5007
  %6685 = vmatpush.bf16.msra.mxu0 %v5001
  %6686 = vmatpush.bf16.msra.mxu0 %v4995
  %6687 = vmatpush.bf16.msra.mxu0 %v4989
  %6688 = vmatpush.bf16.msra.mxu0 %v4983
  %6689 = vmatpush.bf16.msra.mxu0 %v4977
  %6690 = vmatpush.bf16.msra.mxu0 %v4971
  %6691 = vmatmul.bf16.gmra.mxu0 %v6643
  %v6692 = vpop.f32.mrf.mxu0
  %v6693 = vadd.f32 %v6680, %v6692
  %v6694 = vpop.f32.mrf.mxu0
  %6695 = vdwg.mxu0
  %6696 = vmatpush.bf16.msra.mxu0 %v4966
  %6697 = vmatpush.bf16.msra.mxu0 %v4960
  %6698 = vmatpush.bf16.msra.mxu0 %v4954
  %6699 = vmatpush.bf16.msra.mxu0 %v4948
  %6700 = vmatpush.bf16.msra.mxu0 %v4942
  %6701 = vmatpush.bf16.msra.mxu0 %v4936
  %6702 = vmatpush.bf16.msra.mxu0 %v4930
  %6703 = vmatpush.bf16.msra.mxu0 %v4924
  %6704 = vmatmul.bf16.gmra.mxu0 %v6642
  %v6705 = vpop.f32.mrf.mxu0
  %v6706 = vadd.f32 0.0, %v6705
  %v6707 = vpop.f32.mrf.mxu0
  %6708 = vdwg.mxu0
  %6709 = vmatpush.bf16.msra.mxu0 %v5014
  %6710 = vmatpush.bf16.msra.mxu0 %v5008
  %6711 = vmatpush.bf16.msra.mxu0 %v5002
  %6712 = vmatpush.bf16.msra.mxu0 %v4996
  %6713 = vmatpush.bf16.msra.mxu0 %v4990
  %6714 = vmatpush.bf16.msra.mxu0 %v4984
  %6715 = vmatpush.bf16.msra.mxu0 %v4978
  %6716 = vmatpush.bf16.msra.mxu0 %v4972
  %6717 = vmatmul.bf16.gmra.mxu0 %v6643
  %v6718 = vpop.f32.mrf.mxu0
  %v6719 = vadd.f32 %v6706, %v6718
  %v6720 = vpop.f32.mrf.mxu0
  %6721 = vdwg.mxu0
  %6722 = vmatpush.bf16.msra.mxu0 %v4967
  %6723 = vmatpush.bf16.msra.mxu0 %v4961
  %6724 = vmatpush.bf16.msra.mxu0 %v4955
  %6725 = vmatpush.bf16.msra.mxu0 %v4949
  %6726 = vmatpush.bf16.msra.mxu0 %v4943
  %6727 = vmatpush.bf16.msra.mxu0 %v4937
  %6728 = vmatpush.bf16.msra.mxu0 %v4931
  %6729 = vmatpush.bf16.msra.mxu0 %v4925
  %6730 = vmatmul.bf16.gmra.mxu0 %v6642
  %v6731 = vpop.f32.mrf.mxu0
  %v6732 = vadd.f32 0.0, %v6731
  %v6733 = vpop.f32.mrf.mxu0
  %6734 = vdwg.mxu0
  %6735 = vmatpush.bf16.msra.mxu0 %v5015
  %6736 = vmatpush.bf16.msra.mxu0 %v5009
  %6737 = vmatpush.bf16.msra.mxu0 %v5003
  %6738 = vmatpush.bf16.msra.mxu0 %v4997
  %6739 = vmatpush.bf16.msra.mxu0 %v4991
  %6740 = vmatpush.bf16.msra.mxu0 %v4985
  %6741 = vmatpush.bf16.msra.mxu0 %v4979
  %6742 = vmatpush.bf16.msra.mxu0 %v4973
  %6743 = vmatmul.bf16.gmra.mxu0 %v6643
  %v6744 = vpop.f32.mrf.mxu0
  %v6745 = vadd.f32 %v6732, %v6744
  %v6746 = vpop.f32.mrf.mxu0
  %6747 = vdwg.mxu0
  %6748 = vmatpush.bf16.msra.mxu0 %v4968
  %6749 = vmatpush.bf16.msra.mxu0 %v4962
  %6750 = vmatpush.bf16.msra.mxu0 %v4956
  %6751 = vmatpush.bf16.msra.mxu0 %v4950
  %6752 = vmatpush.bf16.msra.mxu0 %v4944
  %6753 = vmatpush.bf16.msra.mxu0 %v4938
  %6754 = vmatpush.bf16.msra.mxu0 %v4932
  %6755 = vmatpush.bf16.msra.mxu0 %v4926
  %6756 = vmatmul.bf16.gmra.mxu0 %v6642
  %v6757 = vpop.f32.mrf.mxu0
  %v6758 = vadd.f32 0.0, %v6757
  %v6759 = vpop.f32.mrf.mxu0
  %6760 = vdwg.mxu0
  %6761 = vmatpush.bf16.msra.mxu0 %v5016
  %6762 = vmatpush.bf16.msra.mxu0 %v5010
  %6763 = vmatpush.bf16.msra.mxu0 %v5004
  %6764 = vmatpush.bf16.msra.mxu0 %v4998
  %6765 = vmatpush.bf16.msra.mxu0 %v4992
  %6766 = vmatpush.bf16.msra.mxu0 %v4986
  %6767 = vmatpush.bf16.msra.mxu0 %v4980
  %6768 = vmatpush.bf16.msra.mxu0 %v4974
  %6769 = vmatmul.bf16.gmra.mxu0 %v6643
  %v6770 = vpop.f32.mrf.mxu0
  %v6771 = vadd.f32 %v6758, %v6770
  %v6772 = vpop.f32.mrf.mxu0
  %6773 = vdwg.mxu0
  %6774 = vmatpush.bf16.msra.mxu0 %v4969
  %6775 = vmatpush.bf16.msra.mxu0 %v4963
  %6776 = vmatpush.bf16.msra.mxu0 %v4957
  %6777 = vmatpush.bf16.msra.mxu0 %v4951
  %6778 = vmatpush.bf16.msra.mxu0 %v4945
  %6779 = vmatpush.bf16.msra.mxu0 %v4939
  %6780 = vmatpush.bf16.msra.mxu0 %v4933
  %6781 = vmatpush.bf16.msra.mxu0 %v4927
  %6782 = vmatmul.bf16.gmra.mxu0 %v6642
  %v6783 = vpop.f32.mrf.mxu0
  %v6784 = vadd.f32 0.0, %v6783
  %v6785 = vpop.f32.mrf.mxu0
  %6786 = vdwg.mxu0
  %6787 = vmatpush.bf16.msra.mxu0 %v5017
  %6788 = vmatpush.bf16.msra.mxu0 %v5011
  %6789 = vmatpush.bf16.msra.mxu0 %v5005
  %6790 = vmatpush.bf16.msra.mxu0 %v4999
  %6791 = vmatpush.bf16.msra.mxu0 %v4993
  %6792 = vmatpush.bf16.msra.mxu0 %v4987
  %6793 = vmatpush.bf16.msra.mxu0 %v4981
  %6794 = vmatpush.bf16.msra.mxu0 %v4975
  %6795 = vmatmul.bf16.gmra.mxu0 %v6643
  %v6796 = vpop.f32.mrf.mxu0
  %v6797 = vadd.f32 %v6784, %v6796
  %v6798 = vpop.f32.mrf.mxu0
  %6799 = vdwg.mxu0
  %v6800 = vpack.c.bf16 %v6622, %v6622
  %v6801 = vpack.c.bf16 %v6623, %v6623
  %6802 = vmatpush.bf16.msra.mxu0 %v5600
  %6803 = vmatpush.bf16.msra.mxu0 %v5594
  %6804 = vmatpush.bf16.msra.mxu0 %v5588
  %6805 = vmatpush.bf16.msra.mxu0 %v5582
  %6806 = vmatpush.bf16.msra.mxu0 %v5576
  %6807 = vmatpush.bf16.msra.mxu0 %v5570
  %6808 = vmatpush.bf16.msra.mxu0 %v5564
  %6809 = vmatpush.bf16.msra.mxu0 %v5558
  %6810 = vmatmul.bf16.gmra.mxu0 %v6800
  %v6811 = vpop.f32.mrf.mxu0
  %v6812 = vadd.f32 0.0, %v6811
  %v6813 = vpop.f32.mrf.mxu0
  %6814 = vdwg.mxu0
  %6815 = vmatpush.bf16.msra.mxu0 %v5648
  %6816 = vmatpush.bf16.msra.mxu0 %v5642
  %6817 = vmatpush.bf16.msra.mxu0 %v5636
  %6818 = vmatpush.bf16.msra.mxu0 %v5630
  %6819 = vmatpush.bf16.msra.mxu0 %v5624
  %6820 = vmatpush.bf16.msra.mxu0 %v5618
  %6821 = vmatpush.bf16.msra.mxu0 %v5612
  %6822 = vmatpush.bf16.msra.mxu0 %v5606
  %6823 = vmatmul.bf16.gmra.mxu0 %v6801
  %v6824 = vpop.f32.mrf.mxu0
  %v6825 = vadd.f32 %v6812, %v6824
  %v6826 = vpop.f32.mrf.mxu0
  %6827 = vdwg.mxu0
  %6828 = vmatpush.bf16.msra.mxu0 %v5601
  %6829 = vmatpush.bf16.msra.mxu0 %v5595
  %6830 = vmatpush.bf16.msra.mxu0 %v5589
  %6831 = vmatpush.bf16.msra.mxu0 %v5583
  %6832 = vmatpush.bf16.msra.mxu0 %v5577
  %6833 = vmatpush.bf16.msra.mxu0 %v5571
  %6834 = vmatpush.bf16.msra.mxu0 %v5565
  %6835 = vmatpush.bf16.msra.mxu0 %v5559
  %6836 = vmatmul.bf16.gmra.mxu0 %v6800
  %v6837 = vpop.f32.mrf.mxu0
  %v6838 = vadd.f32 0.0, %v6837
  %v6839 = vpop.f32.mrf.mxu0
  %6840 = vdwg.mxu0
  %6841 = vmatpush.bf16.msra.mxu0 %v5649
  %6842 = vmatpush.bf16.msra.mxu0 %v5643
  %6843 = vmatpush.bf16.msra.mxu0 %v5637
  %6844 = vmatpush.bf16.msra.mxu0 %v5631
  %6845 = vmatpush.bf16.msra.mxu0 %v5625
  %6846 = vmatpush.bf16.msra.mxu0 %v5619
  %6847 = vmatpush.bf16.msra.mxu0 %v5613
  %6848 = vmatpush.bf16.msra.mxu0 %v5607
  %6849 = vmatmul.bf16.gmra.mxu0 %v6801
  %v6850 = vpop.f32.mrf.mxu0
  %v6851 = vadd.f32 %v6838, %v6850
  %v6852 = vpop.f32.mrf.mxu0
  %6853 = vdwg.mxu0
  %6854 = vmatpush.bf16.msra.mxu0 %v5602
  %6855 = vmatpush.bf16.msra.mxu0 %v5596
  %6856 = vmatpush.bf16.msra.mxu0 %v5590
  %6857 = vmatpush.bf16.msra.mxu0 %v5584
  %6858 = vmatpush.bf16.msra.mxu0 %v5578
  %6859 = vmatpush.bf16.msra.mxu0 %v5572
  %6860 = vmatpush.bf16.msra.mxu0 %v5566
  %6861 = vmatpush.bf16.msra.mxu0 %v5560
  %6862 = vmatmul.bf16.gmra.mxu0 %v6800
  %v6863 = vpop.f32.mrf.mxu0
  %v6864 = vadd.f32 0.0, %v6863
  %v6865 = vpop.f32.mrf.mxu0
  %6866 = vdwg.mxu0
  %6867 = vmatpush.bf16.msra.mxu0 %v5650
  %6868 = vmatpush.bf16.msra.mxu0 %v5644
  %6869 = vmatpush.bf16.msra.mxu0 %v5638
  %6870 = vmatpush.bf16.msra.mxu0 %v5632
  %6871 = vmatpush.bf16.msra.mxu0 %v5626
  %6872 = vmatpush.bf16.msra.mxu0 %v5620
  %6873 = vmatpush.bf16.msra.mxu0 %v5614
  %6874 = vmatpush.bf16.msra.mxu0 %v5608
  %6875 = vmatmul.bf16.gmra.mxu0 %v6801
  %v6876 = vpop.f32.mrf.mxu0
  %v6877 = vadd.f32 %v6864, %v6876
  %v6878 = vpop.f32.mrf.mxu0
  %6879 = vdwg.mxu0
  %6880 = vmatpush.bf16.msra.mxu0 %v5603
  %6881 = vmatpush.bf16.msra.mxu0 %v5597
  %6882 = vmatpush.bf16.msra.mxu0 %v5591
  %6883 = vmatpush.bf16.msra.mxu0 %v5585
  %6884 = vmatpush.bf16.msra.mxu0 %v5579
  %6885 = vmatpush.bf16.msra.mxu0 %v5573
  %6886 = vmatpush.bf16.msra.mxu0 %v5567
  %6887 = vmatpush.bf16.msra.mxu0 %v5561
  %6888 = vmatmul.bf16.gmra.mxu0 %v6800
  %v6889 = vpop.f32.mrf.mxu0
  %v6890 = vadd.f32 0.0, %v6889
  %v6891 = vpop.f32.mrf.mxu0
  %6892 = vdwg.mxu0
  %6893 = vmatpush.bf16.msra.mxu0 %v5651
  %6894 = vmatpush.bf16.msra.mxu0 %v5645
  %6895 = vmatpush.bf16.msra.mxu0 %v5639
  %6896 = vmatpush.bf16.msra.mxu0 %v5633
  %6897 = vmatpush.bf16.msra.mxu0 %v5627
  %6898 = vmatpush.bf16.msra.mxu0 %v5621
  %6899 = vmatpush.bf16.msra.mxu0 %v5615
  %6900 = vmatpush.bf16.msra.mxu0 %v5609
  %6901 = vmatmul.bf16.gmra.mxu0 %v6801
  %v6902 = vpop.f32.mrf.mxu0
  %v6903 = vadd.f32 %v6890, %v6902
  %v6904 = vpop.f32.mrf.mxu0
  %6905 = vdwg.mxu0
  %6906 = vmatpush.bf16.msra.mxu0 %v5604
  %6907 = vmatpush.bf16.msra.mxu0 %v5598
  %6908 = vmatpush.bf16.msra.mxu0 %v5592
  %6909 = vmatpush.bf16.msra.mxu0 %v5586
  %6910 = vmatpush.bf16.msra.mxu0 %v5580
  %6911 = vmatpush.bf16.msra.mxu0 %v5574
  %6912 = vmatpush.bf16.msra.mxu0 %v5568
  %6913 = vmatpush.bf16.msra.mxu0 %v5562
  %6914 = vmatmul.bf16.gmra.mxu0 %v6800
  %v6915 = vpop.f32.mrf.mxu0
  %v6916 = vadd.f32 0.0, %v6915
  %v6917 = vpop.f32.mrf.mxu0
  %6918 = vdwg.mxu0
  %6919 = vmatpush.bf16.msra.mxu0 %v5652
  %6920 = vmatpush.bf16.msra.mxu0 %v5646
  %6921 = vmatpush.bf16.msra.mxu0 %v5640
  %6922 = vmatpush.bf16.msra.mxu0 %v5634
  %6923 = vmatpush.bf16.msra.mxu0 %v5628
  %6924 = vmatpush.bf16.msra.mxu0 %v5622
  %6925 = vmatpush.bf16.msra.mxu0 %v5616
  %6926 = vmatpush.bf16.msra.mxu0 %v5610
  %6927 = vmatmul.bf16.gmra.mxu0 %v6801
  %v6928 = vpop.f32.mrf.mxu0
  %v6929 = vadd.f32 %v6916, %v6928
  %v6930 = vpop.f32.mrf.mxu0
  %6931 = vdwg.mxu0
  %6932 = vmatpush.bf16.msra.mxu0 %v5605
  %6933 = vmatpush.bf16.msra.mxu0 %v5599
  %6934 = vmatpush.bf16.msra.mxu0 %v5593
  %6935 = vmatpush.bf16.msra.mxu0 %v5587
  %6936 = vmatpush.bf16.msra.mxu0 %v5581
  %6937 = vmatpush.bf16.msra.mxu0 %v5575
  %6938 = vmatpush.bf16.msra.mxu0 %v5569
  %6939 = vmatpush.bf16.msra.mxu0 %v5563
  %6940 = vmatmul.bf16.gmra.mxu0 %v6800
  %v6941 = vpop.f32.mrf.mxu0
  %v6942 = vadd.f32 0.0, %v6941
  %v6943 = vpop.f32.mrf.mxu0
  %6944 = vdwg.mxu0
  %6945 = vmatpush.bf16.msra.mxu0 %v5653
  %6946 = vmatpush.bf16.msra.mxu0 %v5647
  %6947 = vmatpush.bf16.msra.mxu0 %v5641
  %6948 = vmatpush.bf16.msra.mxu0 %v5635
  %6949 = vmatpush.bf16.msra.mxu0 %v5629
  %6950 = vmatpush.bf16.msra.mxu0 %v5623
  %6951 = vmatpush.bf16.msra.mxu0 %v5617
  %6952 = vmatpush.bf16.msra.mxu0 %v5611
  %6953 = vmatmul.bf16.gmra.mxu0 %v6801
  %v6954 = vpop.f32.mrf.mxu0
  %v6955 = vadd.f32 %v6942, %v6954
  %v6956 = vpop.f32.mrf.mxu0
  %6957 = vdwg.mxu0
  %v6958 = vadd.f32 %v6627, %v6667
  %v6959 = vadd.f32 %v6628, %v6693
  %v6960 = vxor.u32 %v6958, 2147483648
  %v6961 = vxor.u32 %v6959, 2147483648
  %v6962 = vmul.f32 %v6960, 1.442695
  %v6963 = vpow.pop %v6962
  %v6964 = vmul.f32 %v6961, 1.442695
  %v6965 = vpow.pop %v6964
  %v6966 = vadd.f32 %v6963, 1.0
  %v6967 = vadd.f32 %v6965, 1.0
  %v6968 = vrcp.pop %v6966
  %v6969 = vmul.f32 %v6966, %v6968
  %v6970 = vsub.f32 1.0, %v6969
  %v6971 = vmul.f32 %v6968, %v6970
  %v6972 = vadd.f32 %v6968, %v6971
  %vm6973 = vweird.f32 %v6966
  %vm6974 = vweird.f32 %v6968
  %vm6975 = vmor %vm6973, %vm6974
  %v6976 = vsel %vm6975, %v6968, %v6972
  %v6977 = vand.u32 2147483647, %v6966
  %vm6978 = vcmp.eq.f32.partialorder %v6977, 8.507059e+37
  %v6979 = vand.u32 %v6966, 2147483648
  %v6980 = vor.u32 1.1754944e-38, %v6979
  %v6981 = vsel %vm6978, %v6980, %v6976
  %v6982 = vmul.f32 1.0, %v6981
  %v6983 = vrcp.pop %v6967
  %v6984 = vmul.f32 %v6967, %v6983
  %v6985 = vsub.f32 1.0, %v6984
  %v6986 = vmul.f32 %v6983, %v6985
  %v6987 = vadd.f32 %v6983, %v6986
  %vm6988 = vweird.f32 %v6967
  %vm6989 = vweird.f32 %v6983
  %vm6990 = vmor %vm6988, %vm6989
  %v6991 = vsel %vm6990, %v6983, %v6987
  %v6992 = vand.u32 2147483647, %v6967
  %vm6993 = vcmp.eq.f32.partialorder %v6992, 8.507059e+37
  %v6994 = vand.u32 %v6967, 2147483648
  %v6995 = vor.u32 1.1754944e-38, %v6994
  %v6996 = vsel %vm6993, %v6995, %v6991
  %v6997 = vmul.f32 1.0, %v6996
  %v6998 = vadd.f32 %v6629, %v6719
  %v6999 = vadd.f32 %v6630, %v6745
  %v7000 = vxor.u32 %v6998, 2147483648
  %v7001 = vxor.u32 %v6999, 2147483648
  %v7002 = vmul.f32 %v7000, 1.442695
  %v7003 = vpow.pop %v7002
  %v7004 = vmul.f32 %v7001, 1.442695
  %v7005 = vpow.pop %v7004
  %v7006 = vadd.f32 %v7003, 1.0
  %v7007 = vadd.f32 %v7005, 1.0
  %v7008 = vrcp.pop %v7006
  %v7009 = vmul.f32 %v7006, %v7008
  %v7010 = vsub.f32 1.0, %v7009
  %v7011 = vmul.f32 %v7008, %v7010
  %v7012 = vadd.f32 %v7008, %v7011
  %vm7013 = vweird.f32 %v7006
  %vm7014 = vweird.f32 %v7008
  %vm7015 = vmor %vm7013, %vm7014
  %v7016 = vsel %vm7015, %v7008, %v7012
  %v7017 = vand.u32 2147483647, %v7006
  %vm7018 = vcmp.eq.f32.partialorder %v7017, 8.507059e+37
  %v7019 = vand.u32 %v7006, 2147483648
  %v7020 = vor.u32 1.1754944e-38, %v7019
  %v7021 = vsel %vm7018, %v7020, %v7016
  %v7022 = vmul.f32 1.0, %v7021
  %v7023 = vrcp.pop %v7007
  %v7024 = vmul.f32 %v7007, %v7023
  %v7025 = vsub.f32 1.0, %v7024
  %v7026 = vmul.f32 %v7023, %v7025
  %v7027 = vadd.f32 %v7023, %v7026
  %vm7028 = vweird.f32 %v7007
  %vm7029 = vweird.f32 %v7023
  %vm7030 = vmor %vm7028, %vm7029
  %v7031 = vsel %vm7030, %v7023, %v7027
  %v7032 = vand.u32 2147483647, %v7007
  %vm7033 = vcmp.eq.f32.partialorder %v7032, 8.507059e+37
  %v7034 = vand.u32 %v7007, 2147483648
  %v7035 = vor.u32 1.1754944e-38, %v7034
  %v7036 = vsel %vm7033, %v7035, %v7031
  %v7037 = vmul.f32 1.0, %v7036
  %v7038 = vadd.f32 %v6771, %v4606
  %v7039 = vadd.f32 %v6797, %v4607
  %v7040 = vmul.f32 %v6982, %v7038
  %v7041 = vmul.f32 %v6997, %v7039
  %v7042 = vadd.f32 %v6631, %v7040
  %v7043 = vadd.f32 %v6632, %v7041
  %v7044 = vtanh.pop %v7042
  %v7045 = vtanh.pop %v7043
  %v7046 = vadd.f32 %v6636, %v6825
  %v7047 = vadd.f32 %v6637, %v6851
  %v7048 = vxor.u32 %v7046, 2147483648
  %v7049 = vxor.u32 %v7047, 2147483648
  %v7050 = vmul.f32 %v7048, 1.442695
  %v7051 = vpow.pop %v7050
  %v7052 = vmul.f32 %v7049, 1.442695
  %v7053 = vpow.pop %v7052
  %v7054 = vadd.f32 %v7051, 1.0
  %v7055 = vadd.f32 %v7053, 1.0
  %v7056 = vrcp.pop %v7054
  %v7057 = vmul.f32 %v7054, %v7056
  %v7058 = vsub.f32 1.0, %v7057
  %v7059 = vmul.f32 %v7056, %v7058
  %v7060 = vadd.f32 %v7056, %v7059
  %vm7061 = vweird.f32 %v7054
  %vm7062 = vweird.f32 %v7056
  %vm7063 = vmor %vm7061, %vm7062
  %v7064 = vsel %vm7063, %v7056, %v7060
  %v7065 = vand.u32 2147483647, %v7054
  %vm7066 = vcmp.eq.f32.partialorder %v7065, 8.507059e+37
  %v7067 = vand.u32 %v7054, 2147483648
  %v7068 = vor.u32 1.1754944e-38, %v7067
  %v7069 = vsel %vm7066, %v7068, %v7064
  %v7070 = vmul.f32 1.0, %v7069
  %v7071 = vrcp.pop %v7055
  %v7072 = vmul.f32 %v7055, %v7071
  %v7073 = vsub.f32 1.0, %v7072
  %v7074 = vmul.f32 %v7071, %v7073
  %v7075 = vadd.f32 %v7071, %v7074
  %vm7076 = vweird.f32 %v7055
  %vm7077 = vweird.f32 %v7071
  %vm7078 = vmor %vm7076, %vm7077
  %v7079 = vsel %vm7078, %v7071, %v7075
  %v7080 = vand.u32 2147483647, %v7055
  %vm7081 = vcmp.eq.f32.partialorder %v7080, 8.507059e+37
  %v7082 = vand.u32 %v7055, 2147483648
  %v7083 = vor.u32 1.1754944e-38, %v7082
  %v7084 = vsel %vm7081, %v7083, %v7079
  %v7085 = vmul.f32 1.0, %v7084
  %v7086 = vadd.f32 %v6638, %v6877
  %v7087 = vadd.f32 %v6639, %v6903
  %v7088 = vxor.u32 %v7086, 2147483648
  %v7089 = vxor.u32 %v7087, 2147483648
  %v7090 = vmul.f32 %v7088, 1.442695
  %v7091 = vpow.pop %v7090
  %v7092 = vmul.f32 %v7089, 1.442695
  %v7093 = vpow.pop %v7092
  %v7094 = vadd.f32 %v7091, 1.0
  %v7095 = vadd.f32 %v7093, 1.0
  %v7096 = vrcp.pop %v7094
  %v7097 = vmul.f32 %v7094, %v7096
  %v7098 = vsub.f32 1.0, %v7097
  %v7099 = vmul.f32 %v7096, %v7098
  %v7100 = vadd.f32 %v7096, %v7099
  %vm7101 = vweird.f32 %v7094
  %vm7102 = vweird.f32 %v7096
  %vm7103 = vmor %vm7101, %vm7102
  %v7104 = vsel %vm7103, %v7096, %v7100
  %v7105 = vand.u32 2147483647, %v7094
  %vm7106 = vcmp.eq.f32.partialorder %v7105, 8.507059e+37
  %v7107 = vand.u32 %v7094, 2147483648
  %v7108 = vor.u32 1.1754944e-38, %v7107
  %v7109 = vsel %vm7106, %v7108, %v7104
  %v7110 = vmul.f32 1.0, %v7109
  %v7111 = vrcp.pop %v7095
  %v7112 = vmul.f32 %v7095, %v7111
  %v7113 = vsub.f32 1.0, %v7112
  %v7114 = vmul.f32 %v7111, %v7113
  %v7115 = vadd.f32 %v7111, %v7114
  %vm7116 = vweird.f32 %v7095
  %vm7117 = vweird.f32 %v7111
  %vm7118 = vmor %vm7116, %vm7117
  %v7119 = vsel %vm7118, %v7111, %v7115
  %v7120 = vand.u32 2147483647, %v7095
  %vm7121 = vcmp.eq.f32.partialorder %v7120, 8.507059e+37
  %v7122 = vand.u32 %v7095, 2147483648
  %v7123 = vor.u32 1.1754944e-38, %v7122
  %v7124 = vsel %vm7121, %v7123, %v7119
  %v7125 = vmul.f32 1.0, %v7124
  %v7126 = vadd.f32 %v6929, %v4612
  %v7127 = vadd.f32 %v6955, %v4613
  %v7128 = vmul.f32 %v7070, %v7126
  %v7129 = vmul.f32 %v7085, %v7127
  %v7130 = vadd.f32 %v6640, %v7128
  %v7131 = vadd.f32 %v6641, %v7129
  %v7132 = vtanh.pop %v7130
  %v7133 = vtanh.pop %v7131
  %v7134 = vsub.f32 1.0, %v7022
  %v7135 = vsub.f32 1.0, %v7037
  %v7136 = vmul.f32 %v7134, %v7044
  %v7137 = vmul.f32 %v7135, %v7045
  %v7138 = vmul.f32 %v7022, %v6614
  %v7139 = vmul.f32 %v7037, %v6615
  %v7140 = vadd.f32 %v7136, %v7138
  %v7141 = vadd.f32 %v7137, %v7139
  %v7142 = vsub.f32 1.0, %v7110
  %v7143 = vsub.f32 1.0, %v7125
  %v7144 = vmul.f32 %v7142, %v7132
  %v7145 = vmul.f32 %v7143, %v7133
  %v7146 = vmul.f32 %v7110, %v6622
  %v7147 = vmul.f32 %v7125, %v6623
  %v7148 = vadd.f32 %v7144, %v7146
  %v7149 = vadd.f32 %v7145, %v7147
  %v7150 = vld [vmem:[#allocation2 + $0x90] sm:$0xff]
  %v7151 = vld [vmem:[#allocation2 + $0x98] sm:$0xff]
  %v7152 = vld [vmem:[#allocation2 + $0xa0] sm:$0xff]
  %v7153 = vunpack.c.l.bf16 %v7150
  %v7154 = vunpack.c.h.bf16 %v7150
  %v7155 = vunpack.c.l.bf16 %v7151
  %v7156 = vunpack.c.h.bf16 %v7151
  %v7157 = vunpack.c.l.bf16 %v7152
  %v7158 = vunpack.c.h.bf16 %v7152
  %v7159 = vld [vmem:[#allocation2 + $0xd8] sm:$0xff]
  %v7160 = vld [vmem:[#allocation2 + $0xe0] sm:$0xff]
  %v7161 = vld [vmem:[#allocation2 + $0xe8] sm:$0xff]
  %v7162 = vunpack.c.l.bf16 %v7159
  %v7163 = vunpack.c.h.bf16 %v7159
  %v7164 = vunpack.c.l.bf16 %v7160
  %v7165 = vunpack.c.h.bf16 %v7160
  %v7166 = vunpack.c.l.bf16 %v7161
  %v7167 = vunpack.c.h.bf16 %v7161
  %v7168 = vpack.c.bf16 %v7140, %v7140
  %v7169 = vpack.c.bf16 %v7141, %v7141
  %7170 = vmatpush.bf16.msra.mxu0 %v4964
  %7171 = vmatpush.bf16.msra.mxu0 %v4958
  %7172 = vmatpush.bf16.msra.mxu0 %v4952
  %7173 = vmatpush.bf16.msra.mxu0 %v4946
  %7174 = vmatpush.bf16.msra.mxu0 %v4940
  %7175 = vmatpush.bf16.msra.mxu0 %v4934
  %7176 = vmatpush.bf16.msra.mxu0 %v4928
  %7177 = vmatpush.bf16.msra.mxu0 %v4922
  %7178 = vmatmul.bf16.gmra.mxu0 %v7168
  %v7179 = vpop.f32.mrf.mxu0
  %v7180 = vadd.f32 0.0, %v7179
  %v7181 = vpop.f32.mrf.mxu0
  %7182 = vdwg.mxu0
  %7183 = vmatpush.bf16.msra.mxu0 %v5012
  %7184 = vmatpush.bf16.msra.mxu0 %v5006
  %7185 = vmatpush.bf16.msra.mxu0 %v5000
  %7186 = vmatpush.bf16.msra.mxu0 %v4994
  %7187 = vmatpush.bf16.msra.mxu0 %v4988
  %7188 = vmatpush.bf16.msra.mxu0 %v4982
  %7189 = vmatpush.bf16.msra.mxu0 %v4976
  %7190 = vmatpush.bf16.msra.mxu0 %v4970
  %7191 = vmatmul.bf16.gmra.mxu0 %v7169
  %v7192 = vpop.f32.mrf.mxu0
  %v7193 = vadd.f32 %v7180, %v7192
  %v7194 = vpop.f32.mrf.mxu0
  %7195 = vdwg.mxu0
  %7196 = vmatpush.bf16.msra.mxu0 %v4965
  %7197 = vmatpush.bf16.msra.mxu0 %v4959
  %7198 = vmatpush.bf16.msra.mxu0 %v4953
  %7199 = vmatpush.bf16.msra.mxu0 %v4947
  %7200 = vmatpush.bf16.msra.mxu0 %v4941
  %7201 = vmatpush.bf16.msra.mxu0 %v4935
  %7202 = vmatpush.bf16.msra.mxu0 %v4929
  %7203 = vmatpush.bf16.msra.mxu0 %v4923
  %7204 = vmatmul.bf16.gmra.mxu0 %v7168
  %v7205 = vpop.f32.mrf.mxu0
  %v7206 = vadd.f32 0.0, %v7205
  %v7207 = vpop.f32.mrf.mxu0
  %7208 = vdwg.mxu0
  %7209 = vmatpush.bf16.msra.mxu0 %v5013
  %7210 = vmatpush.bf16.msra.mxu0 %v5007
  %7211 = vmatpush.bf16.msra.mxu0 %v5001
  %7212 = vmatpush.bf16.msra.mxu0 %v4995
  %7213 = vmatpush.bf16.msra.mxu0 %v4989
  %7214 = vmatpush.bf16.msra.mxu0 %v4983
  %7215 = vmatpush.bf16.msra.mxu0 %v4977
  %7216 = vmatpush.bf16.msra.mxu0 %v4971
  %7217 = vmatmul.bf16.gmra.mxu0 %v7169
  %v7218 = vpop.f32.mrf.mxu0
  %v7219 = vadd.f32 %v7206, %v7218
  %v7220 = vpop.f32.mrf.mxu0
  %7221 = vdwg.mxu0
  %7222 = vmatpush.bf16.msra.mxu0 %v4966
  %7223 = vmatpush.bf16.msra.mxu0 %v4960
  %7224 = vmatpush.bf16.msra.mxu0 %v4954
  %7225 = vmatpush.bf16.msra.mxu0 %v4948
  %7226 = vmatpush.bf16.msra.mxu0 %v4942
  %7227 = vmatpush.bf16.msra.mxu0 %v4936
  %7228 = vmatpush.bf16.msra.mxu0 %v4930
  %7229 = vmatpush.bf16.msra.mxu0 %v4924
  %7230 = vmatmul.bf16.gmra.mxu0 %v7168
  %v7231 = vpop.f32.mrf.mxu0
  %v7232 = vadd.f32 0.0, %v7231
  %v7233 = vpop.f32.mrf.mxu0
  %7234 = vdwg.mxu0
  %7235 = vmatpush.bf16.msra.mxu0 %v5014
  %7236 = vmatpush.bf16.msra.mxu0 %v5008
  %7237 = vmatpush.bf16.msra.mxu0 %v5002
  %7238 = vmatpush.bf16.msra.mxu0 %v4996
  %7239 = vmatpush.bf16.msra.mxu0 %v4990
  %7240 = vmatpush.bf16.msra.mxu0 %v4984
  %7241 = vmatpush.bf16.msra.mxu0 %v4978
  %7242 = vmatpush.bf16.msra.mxu0 %v4972
  %7243 = vmatmul.bf16.gmra.mxu0 %v7169
  %v7244 = vpop.f32.mrf.mxu0
  %v7245 = vadd.f32 %v7232, %v7244
  %v7246 = vpop.f32.mrf.mxu0
  %7247 = vdwg.mxu0
  %7248 = vmatpush.bf16.msra.mxu0 %v4967
  %7249 = vmatpush.bf16.msra.mxu0 %v4961
  %7250 = vmatpush.bf16.msra.mxu0 %v4955
  %7251 = vmatpush.bf16.msra.mxu0 %v4949
  %7252 = vmatpush.bf16.msra.mxu0 %v4943
  %7253 = vmatpush.bf16.msra.mxu0 %v4937
  %7254 = vmatpush.bf16.msra.mxu0 %v4931
  %7255 = vmatpush.bf16.msra.mxu0 %v4925
  %7256 = vmatmul.bf16.gmra.mxu0 %v7168
  %v7257 = vpop.f32.mrf.mxu0
  %v7258 = vadd.f32 0.0, %v7257
  %v7259 = vpop.f32.mrf.mxu0
  %7260 = vdwg.mxu0
  %7261 = vmatpush.bf16.msra.mxu0 %v5015
  %7262 = vmatpush.bf16.msra.mxu0 %v5009
  %7263 = vmatpush.bf16.msra.mxu0 %v5003
  %7264 = vmatpush.bf16.msra.mxu0 %v4997
  %7265 = vmatpush.bf16.msra.mxu0 %v4991
  %7266 = vmatpush.bf16.msra.mxu0 %v4985
  %7267 = vmatpush.bf16.msra.mxu0 %v4979
  %7268 = vmatpush.bf16.msra.mxu0 %v4973
  %7269 = vmatmul.bf16.gmra.mxu0 %v7169
  %v7270 = vpop.f32.mrf.mxu0
  %v7271 = vadd.f32 %v7258, %v7270
  %v7272 = vpop.f32.mrf.mxu0
  %7273 = vdwg.mxu0
  %7274 = vmatpush.bf16.msra.mxu0 %v4968
  %7275 = vmatpush.bf16.msra.mxu0 %v4962
  %7276 = vmatpush.bf16.msra.mxu0 %v4956
  %7277 = vmatpush.bf16.msra.mxu0 %v4950
  %7278 = vmatpush.bf16.msra.mxu0 %v4944
  %7279 = vmatpush.bf16.msra.mxu0 %v4938
  %7280 = vmatpush.bf16.msra.mxu0 %v4932
  %7281 = vmatpush.bf16.msra.mxu0 %v4926
  %7282 = vmatmul.bf16.gmra.mxu0 %v7168
  %v7283 = vpop.f32.mrf.mxu0
  %v7284 = vadd.f32 0.0, %v7283
  %v7285 = vpop.f32.mrf.mxu0
  %7286 = vdwg.mxu0
  %7287 = vmatpush.bf16.msra.mxu0 %v5016
  %7288 = vmatpush.bf16.msra.mxu0 %v5010
  %7289 = vmatpush.bf16.msra.mxu0 %v5004
  %7290 = vmatpush.bf16.msra.mxu0 %v4998
  %7291 = vmatpush.bf16.msra.mxu0 %v4992
  %7292 = vmatpush.bf16.msra.mxu0 %v4986
  %7293 = vmatpush.bf16.msra.mxu0 %v4980
  %7294 = vmatpush.bf16.msra.mxu0 %v4974
  %7295 = vmatmul.bf16.gmra.mxu0 %v7169
  %v7296 = vpop.f32.mrf.mxu0
  %v7297 = vadd.f32 %v7284, %v7296
  %v7298 = vpop.f32.mrf.mxu0
  %7299 = vdwg.mxu0
  %7300 = vmatpush.bf16.msra.mxu0 %v4969
  %7301 = vmatpush.bf16.msra.mxu0 %v4963
  %7302 = vmatpush.bf16.msra.mxu0 %v4957
  %7303 = vmatpush.bf16.msra.mxu0 %v4951
  %7304 = vmatpush.bf16.msra.mxu0 %v4945
  %7305 = vmatpush.bf16.msra.mxu0 %v4939
  %7306 = vmatpush.bf16.msra.mxu0 %v4933
  %7307 = vmatpush.bf16.msra.mxu0 %v4927
  %7308 = vmatmul.bf16.gmra.mxu0 %v7168
  %v7309 = vpop.f32.mrf.mxu0
  %v7310 = vadd.f32 0.0, %v7309
  %v7311 = vpop.f32.mrf.mxu0
  %7312 = vdwg.mxu0
  %7313 = vmatpush.bf16.msra.mxu0 %v5017
  %7314 = vmatpush.bf16.msra.mxu0 %v5011
  %7315 = vmatpush.bf16.msra.mxu0 %v5005
  %7316 = vmatpush.bf16.msra.mxu0 %v4999
  %7317 = vmatpush.bf16.msra.mxu0 %v4993
  %7318 = vmatpush.bf16.msra.mxu0 %v4987
  %7319 = vmatpush.bf16.msra.mxu0 %v4981
  %7320 = vmatpush.bf16.msra.mxu0 %v4975
  %7321 = vmatmul.bf16.gmra.mxu0 %v7169
  %v7322 = vpop.f32.mrf.mxu0
  %v7323 = vadd.f32 %v7310, %v7322
  %v7324 = vpop.f32.mrf.mxu0
  %7325 = vdwg.mxu0
  %v7326 = vpack.c.bf16 %v7148, %v7148
  %v7327 = vpack.c.bf16 %v7149, %v7149
  %7328 = vmatpush.bf16.msra.mxu0 %v5600
  %7329 = vmatpush.bf16.msra.mxu0 %v5594
  %7330 = vmatpush.bf16.msra.mxu0 %v5588
  %7331 = vmatpush.bf16.msra.mxu0 %v5582
  %7332 = vmatpush.bf16.msra.mxu0 %v5576
  %7333 = vmatpush.bf16.msra.mxu0 %v5570
  %7334 = vmatpush.bf16.msra.mxu0 %v5564
  %7335 = vmatpush.bf16.msra.mxu0 %v5558
  %7336 = vmatmul.bf16.gmra.mxu0 %v7326
  %v7337 = vpop.f32.mrf.mxu0
  %v7338 = vadd.f32 0.0, %v7337
  %v7339 = vpop.f32.mrf.mxu0
  %7340 = vdwg.mxu0
  %7341 = vmatpush.bf16.msra.mxu0 %v5648
  %7342 = vmatpush.bf16.msra.mxu0 %v5642
  %7343 = vmatpush.bf16.msra.mxu0 %v5636
  %7344 = vmatpush.bf16.msra.mxu0 %v5630
  %7345 = vmatpush.bf16.msra.mxu0 %v5624
  %7346 = vmatpush.bf16.msra.mxu0 %v5618
  %7347 = vmatpush.bf16.msra.mxu0 %v5612
  %7348 = vmatpush.bf16.msra.mxu0 %v5606
  %7349 = vmatmul.bf16.gmra.mxu0 %v7327
  %v7350 = vpop.f32.mrf.mxu0
  %v7351 = vadd.f32 %v7338, %v7350
  %v7352 = vpop.f32.mrf.mxu0
  %7353 = vdwg.mxu0
  %7354 = vmatpush.bf16.msra.mxu0 %v5601
  %7355 = vmatpush.bf16.msra.mxu0 %v5595
  %7356 = vmatpush.bf16.msra.mxu0 %v5589
  %7357 = vmatpush.bf16.msra.mxu0 %v5583
  %7358 = vmatpush.bf16.msra.mxu0 %v5577
  %7359 = vmatpush.bf16.msra.mxu0 %v5571
  %7360 = vmatpush.bf16.msra.mxu0 %v5565
  %7361 = vmatpush.bf16.msra.mxu0 %v5559
  %7362 = vmatmul.bf16.gmra.mxu0 %v7326
  %v7363 = vpop.f32.mrf.mxu0
  %v7364 = vadd.f32 0.0, %v7363
  %v7365 = vpop.f32.mrf.mxu0
  %7366 = vdwg.mxu0
  %7367 = vmatpush.bf16.msra.mxu0 %v5649
  %7368 = vmatpush.bf16.msra.mxu0 %v5643
  %7369 = vmatpush.bf16.msra.mxu0 %v5637
  %7370 = vmatpush.bf16.msra.mxu0 %v5631
  %7371 = vmatpush.bf16.msra.mxu0 %v5625
  %7372 = vmatpush.bf16.msra.mxu0 %v5619
  %7373 = vmatpush.bf16.msra.mxu0 %v5613
  %7374 = vmatpush.bf16.msra.mxu0 %v5607
  %7375 = vmatmul.bf16.gmra.mxu0 %v7327
  %v7376 = vpop.f32.mrf.mxu0
  %v7377 = vadd.f32 %v7364, %v7376
  %v7378 = vpop.f32.mrf.mxu0
  %7379 = vdwg.mxu0
  %7380 = vmatpush.bf16.msra.mxu0 %v5602
  %7381 = vmatpush.bf16.msra.mxu0 %v5596
  %7382 = vmatpush.bf16.msra.mxu0 %v5590
  %7383 = vmatpush.bf16.msra.mxu0 %v5584
  %7384 = vmatpush.bf16.msra.mxu0 %v5578
  %7385 = vmatpush.bf16.msra.mxu0 %v5572
  %7386 = vmatpush.bf16.msra.mxu0 %v5566
  %7387 = vmatpush.bf16.msra.mxu0 %v5560
  %7388 = vmatmul.bf16.gmra.mxu0 %v7326
  %v7389 = vpop.f32.mrf.mxu0
  %v7390 = vadd.f32 0.0, %v7389
  %v7391 = vpop.f32.mrf.mxu0
  %7392 = vdwg.mxu0
  %7393 = vmatpush.bf16.msra.mxu0 %v5650
  %7394 = vmatpush.bf16.msra.mxu0 %v5644
  %7395 = vmatpush.bf16.msra.mxu0 %v5638
  %7396 = vmatpush.bf16.msra.mxu0 %v5632
  %7397 = vmatpush.bf16.msra.mxu0 %v5626
  %7398 = vmatpush.bf16.msra.mxu0 %v5620
  %7399 = vmatpush.bf16.msra.mxu0 %v5614
  %7400 = vmatpush.bf16.msra.mxu0 %v5608
  %7401 = vmatmul.bf16.gmra.mxu0 %v7327
  %v7402 = vpop.f32.mrf.mxu0
  %v7403 = vadd.f32 %v7390, %v7402
  %v7404 = vpop.f32.mrf.mxu0
  %7405 = vdwg.mxu0
  %7406 = vmatpush.bf16.msra.mxu0 %v5603
  %7407 = vmatpush.bf16.msra.mxu0 %v5597
  %7408 = vmatpush.bf16.msra.mxu0 %v5591
  %7409 = vmatpush.bf16.msra.mxu0 %v5585
  %7410 = vmatpush.bf16.msra.mxu0 %v5579
  %7411 = vmatpush.bf16.msra.mxu0 %v5573
  %7412 = vmatpush.bf16.msra.mxu0 %v5567
  %7413 = vmatpush.bf16.msra.mxu0 %v5561
  %7414 = vmatmul.bf16.gmra.mxu0 %v7326
  %v7415 = vpop.f32.mrf.mxu0
  %v7416 = vadd.f32 0.0, %v7415
  %v7417 = vpop.f32.mrf.mxu0
  %7418 = vdwg.mxu0
  %7419 = vmatpush.bf16.msra.mxu0 %v5651
  %7420 = vmatpush.bf16.msra.mxu0 %v5645
  %7421 = vmatpush.bf16.msra.mxu0 %v5639
  %7422 = vmatpush.bf16.msra.mxu0 %v5633
  %7423 = vmatpush.bf16.msra.mxu0 %v5627
  %7424 = vmatpush.bf16.msra.mxu0 %v5621
  %7425 = vmatpush.bf16.msra.mxu0 %v5615
  %7426 = vmatpush.bf16.msra.mxu0 %v5609
  %7427 = vmatmul.bf16.gmra.mxu0 %v7327
  %v7428 = vpop.f32.mrf.mxu0
  %v7429 = vadd.f32 %v7416, %v7428
  %v7430 = vpop.f32.mrf.mxu0
  %7431 = vdwg.mxu0
  %7432 = vmatpush.bf16.msra.mxu0 %v5604
  %7433 = vmatpush.bf16.msra.mxu0 %v5598
  %7434 = vmatpush.bf16.msra.mxu0 %v5592
  %7435 = vmatpush.bf16.msra.mxu0 %v5586
  %7436 = vmatpush.bf16.msra.mxu0 %v5580
  %7437 = vmatpush.bf16.msra.mxu0 %v5574
  %7438 = vmatpush.bf16.msra.mxu0 %v5568
  %7439 = vmatpush.bf16.msra.mxu0 %v5562
  %7440 = vmatmul.bf16.gmra.mxu0 %v7326
  %v7441 = vpop.f32.mrf.mxu0
  %v7442 = vadd.f32 0.0, %v7441
  %v7443 = vpop.f32.mrf.mxu0
  %7444 = vdwg.mxu0
  %7445 = vmatpush.bf16.msra.mxu0 %v5652
  %7446 = vmatpush.bf16.msra.mxu0 %v5646
  %7447 = vmatpush.bf16.msra.mxu0 %v5640
  %7448 = vmatpush.bf16.msra.mxu0 %v5634
  %7449 = vmatpush.bf16.msra.mxu0 %v5628
  %7450 = vmatpush.bf16.msra.mxu0 %v5622
  %7451 = vmatpush.bf16.msra.mxu0 %v5616
  %7452 = vmatpush.bf16.msra.mxu0 %v5610
  %7453 = vmatmul.bf16.gmra.mxu0 %v7327
  %v7454 = vpop.f32.mrf.mxu0
  %v7455 = vadd.f32 %v7442, %v7454
  %v7456 = vpop.f32.mrf.mxu0
  %7457 = vdwg.mxu0
  %7458 = vmatpush.bf16.msra.mxu0 %v5605
  %7459 = vmatpush.bf16.msra.mxu0 %v5599
  %7460 = vmatpush.bf16.msra.mxu0 %v5593
  %7461 = vmatpush.bf16.msra.mxu0 %v5587
  %7462 = vmatpush.bf16.msra.mxu0 %v5581
  %7463 = vmatpush.bf16.msra.mxu0 %v5575
  %7464 = vmatpush.bf16.msra.mxu0 %v5569
  %7465 = vmatpush.bf16.msra.mxu0 %v5563
  %7466 = vmatmul.bf16.gmra.mxu0 %v7326
  %v7467 = vpop.f32.mrf.mxu0
  %v7468 = vadd.f32 0.0, %v7467
  %v7469 = vpop.f32.mrf.mxu0
  %7470 = vdwg.mxu0
  %7471 = vmatpush.bf16.msra.mxu0 %v5653
  %7472 = vmatpush.bf16.msra.mxu0 %v5647
  %7473 = vmatpush.bf16.msra.mxu0 %v5641
  %7474 = vmatpush.bf16.msra.mxu0 %v5635
  %7475 = vmatpush.bf16.msra.mxu0 %v5629
  %7476 = vmatpush.bf16.msra.mxu0 %v5623
  %7477 = vmatpush.bf16.msra.mxu0 %v5617
  %7478 = vmatpush.bf16.msra.mxu0 %v5611
  %7479 = vmatmul.bf16.gmra.mxu0 %v7327
  %v7480 = vpop.f32.mrf.mxu0
  %v7481 = vadd.f32 %v7468, %v7480
  %v7482 = vpop.f32.mrf.mxu0
  %7483 = vdwg.mxu0
  %v7484 = vadd.f32 %v7153, %v7193
  %v7485 = vadd.f32 %v7154, %v7219
  %v7486 = vxor.u32 %v7484, 2147483648
  %v7487 = vxor.u32 %v7485, 2147483648
  %v7488 = vmul.f32 %v7486, 1.442695
  %v7489 = vpow.pop %v7488
  %v7490 = vmul.f32 %v7487, 1.442695
  %v7491 = vpow.pop %v7490
  %v7492 = vadd.f32 %v7489, 1.0
  %v7493 = vadd.f32 %v7491, 1.0
  %v7494 = vrcp.pop %v7492
  %v7495 = vmul.f32 %v7492, %v7494
  %v7496 = vsub.f32 1.0, %v7495
  %v7497 = vmul.f32 %v7494, %v7496
  %v7498 = vadd.f32 %v7494, %v7497
  %vm7499 = vweird.f32 %v7492
  %vm7500 = vweird.f32 %v7494
  %vm7501 = vmor %vm7499, %vm7500
  %v7502 = vsel %vm7501, %v7494, %v7498
  %v7503 = vand.u32 2147483647, %v7492
  %vm7504 = vcmp.eq.f32.partialorder %v7503, 8.507059e+37
  %v7505 = vand.u32 %v7492, 2147483648
  %v7506 = vor.u32 1.1754944e-38, %v7505
  %v7507 = vsel %vm7504, %v7506, %v7502
  %v7508 = vmul.f32 1.0, %v7507
  %v7509 = vrcp.pop %v7493
  %v7510 = vmul.f32 %v7493, %v7509
  %v7511 = vsub.f32 1.0, %v7510
  %v7512 = vmul.f32 %v7509, %v7511
  %v7513 = vadd.f32 %v7509, %v7512
  %vm7514 = vweird.f32 %v7493
  %vm7515 = vweird.f32 %v7509
  %vm7516 = vmor %vm7514, %vm7515
  %v7517 = vsel %vm7516, %v7509, %v7513
  %v7518 = vand.u32 2147483647, %v7493
  %vm7519 = vcmp.eq.f32.partialorder %v7518, 8.507059e+37
  %v7520 = vand.u32 %v7493, 2147483648
  %v7521 = vor.u32 1.1754944e-38, %v7520
  %v7522 = vsel %vm7519, %v7521, %v7517
  %v7523 = vmul.f32 1.0, %v7522
  %v7524 = vadd.f32 %v7155, %v7245
  %v7525 = vadd.f32 %v7156, %v7271
  %v7526 = vxor.u32 %v7524, 2147483648
  %v7527 = vxor.u32 %v7525, 2147483648
  %v7528 = vmul.f32 %v7526, 1.442695
  %v7529 = vpow.pop %v7528
  %v7530 = vmul.f32 %v7527, 1.442695
  %v7531 = vpow.pop %v7530
  %v7532 = vadd.f32 %v7529, 1.0
  %v7533 = vadd.f32 %v7531, 1.0
  %v7534 = vrcp.pop %v7532
  %v7535 = vmul.f32 %v7532, %v7534
  %v7536 = vsub.f32 1.0, %v7535
  %v7537 = vmul.f32 %v7534, %v7536
  %v7538 = vadd.f32 %v7534, %v7537
  %vm7539 = vweird.f32 %v7532
  %vm7540 = vweird.f32 %v7534
  %vm7541 = vmor %vm7539, %vm7540
  %v7542 = vsel %vm7541, %v7534, %v7538
  %v7543 = vand.u32 2147483647, %v7532
  %vm7544 = vcmp.eq.f32.partialorder %v7543, 8.507059e+37
  %v7545 = vand.u32 %v7532, 2147483648
  %v7546 = vor.u32 1.1754944e-38, %v7545
  %v7547 = vsel %vm7544, %v7546, %v7542
  %v7548 = vmul.f32 1.0, %v7547
  %v7549 = vrcp.pop %v7533
  %v7550 = vmul.f32 %v7533, %v7549
  %v7551 = vsub.f32 1.0, %v7550
  %v7552 = vmul.f32 %v7549, %v7551
  %v7553 = vadd.f32 %v7549, %v7552
  %vm7554 = vweird.f32 %v7533
  %vm7555 = vweird.f32 %v7549
  %vm7556 = vmor %vm7554, %vm7555
  %v7557 = vsel %vm7556, %v7549, %v7553
  %v7558 = vand.u32 2147483647, %v7533
  %vm7559 = vcmp.eq.f32.partialorder %v7558, 8.507059e+37
  %v7560 = vand.u32 %v7533, 2147483648
  %v7561 = vor.u32 1.1754944e-38, %v7560
  %v7562 = vsel %vm7559, %v7561, %v7557
  %v7563 = vmul.f32 1.0, %v7562
  %v7564 = vadd.f32 %v7297, %v4606
  %v7565 = vadd.f32 %v7323, %v4607
  %v7566 = vmul.f32 %v7508, %v7564
  %v7567 = vmul.f32 %v7523, %v7565
  %v7568 = vadd.f32 %v7157, %v7566
  %v7569 = vadd.f32 %v7158, %v7567
  %v7570 = vtanh.pop %v7568
  %v7571 = vtanh.pop %v7569
  %v7572 = vadd.f32 %v7162, %v7351
  %v7573 = vadd.f32 %v7163, %v7377
  %v7574 = vxor.u32 %v7572, 2147483648
  %v7575 = vxor.u32 %v7573, 2147483648
  %v7576 = vmul.f32 %v7574, 1.442695
  %v7577 = vpow.pop %v7576
  %v7578 = vmul.f32 %v7575, 1.442695
  %v7579 = vpow.pop %v7578
  %v7580 = vadd.f32 %v7577, 1.0
  %v7581 = vadd.f32 %v7579, 1.0
  %v7582 = vrcp.pop %v7580
  %v7583 = vmul.f32 %v7580, %v7582
  %v7584 = vsub.f32 1.0, %v7583
  %v7585 = vmul.f32 %v7582, %v7584
  %v7586 = vadd.f32 %v7582, %v7585
  %vm7587 = vweird.f32 %v7580
  %vm7588 = vweird.f32 %v7582
  %vm7589 = vmor %vm7587, %vm7588
  %v7590 = vsel %vm7589, %v7582, %v7586
  %v7591 = vand.u32 2147483647, %v7580
  %vm7592 = vcmp.eq.f32.partialorder %v7591, 8.507059e+37
  %v7593 = vand.u32 %v7580, 2147483648
  %v7594 = vor.u32 1.1754944e-38, %v7593
  %v7595 = vsel %vm7592, %v7594, %v7590
  %v7596 = vmul.f32 1.0, %v7595
  %v7597 = vrcp.pop %v7581
  %v7598 = vmul.f32 %v7581, %v7597
  %v7599 = vsub.f32 1.0, %v7598
  %v7600 = vmul.f32 %v7597, %v7599
  %v7601 = vadd.f32 %v7597, %v7600
  %vm7602 = vweird.f32 %v7581
  %vm7603 = vweird.f32 %v7597
  %vm7604 = vmor %vm7602, %vm7603
  %v7605 = vsel %vm7604, %v7597, %v7601
  %v7606 = vand.u32 2147483647, %v7581
  %vm7607 = vcmp.eq.f32.partialorder %v7606, 8.507059e+37
  %v7608 = vand.u32 %v7581, 2147483648
  %v7609 = vor.u32 1.1754944e-38, %v7608
  %v7610 = vsel %vm7607, %v7609, %v7605
  %v7611 = vmul.f32 1.0, %v7610
  %v7612 = vadd.f32 %v7164, %v7403
  %v7613 = vadd.f32 %v7165, %v7429
  %v7614 = vxor.u32 %v7612, 2147483648
  %v7615 = vxor.u32 %v7613, 2147483648
  %v7616 = vmul.f32 %v7614, 1.442695
  %v7617 = vpow.pop %v7616
  %v7618 = vmul.f32 %v7615, 1.442695
  %v7619 = vpow.pop %v7618
  %v7620 = vadd.f32 %v7617, 1.0
  %v7621 = vadd.f32 %v7619, 1.0
  %v7622 = vrcp.pop %v7620
  %v7623 = vmul.f32 %v7620, %v7622
  %v7624 = vsub.f32 1.0, %v7623
  %v7625 = vmul.f32 %v7622, %v7624
  %v7626 = vadd.f32 %v7622, %v7625
  %vm7627 = vweird.f32 %v7620
  %vm7628 = vweird.f32 %v7622
  %vm7629 = vmor %vm7627, %vm7628
  %v7630 = vsel %vm7629, %v7622, %v7626
  %v7631 = vand.u32 2147483647, %v7620
  %vm7632 = vcmp.eq.f32.partialorder %v7631, 8.507059e+37
  %v7633 = vand.u32 %v7620, 2147483648
  %v7634 = vor.u32 1.1754944e-38, %v7633
  %v7635 = vsel %vm7632, %v7634, %v7630
  %v7636 = vmul.f32 1.0, %v7635
  %v7637 = vrcp.pop %v7621
  %v7638 = vmul.f32 %v7621, %v7637
  %v7639 = vsub.f32 1.0, %v7638
  %v7640 = vmul.f32 %v7637, %v7639
  %v7641 = vadd.f32 %v7637, %v7640
  %vm7642 = vweird.f32 %v7621
  %vm7643 = vweird.f32 %v7637
  %vm7644 = vmor %vm7642, %vm7643
  %v7645 = vsel %vm7644, %v7637, %v7641
  %v7646 = vand.u32 2147483647, %v7621
  %vm7647 = vcmp.eq.f32.partialorder %v7646, 8.507059e+37
  %v7648 = vand.u32 %v7621, 2147483648
  %v7649 = vor.u32 1.1754944e-38, %v7648
  %v7650 = vsel %vm7647, %v7649, %v7645
  %v7651 = vmul.f32 1.0, %v7650
  %v7652 = vadd.f32 %v7455, %v4612
  %v7653 = vadd.f32 %v7481, %v4613
  %v7654 = vmul.f32 %v7596, %v7652
  %v7655 = vmul.f32 %v7611, %v7653
  %v7656 = vadd.f32 %v7166, %v7654
  %v7657 = vadd.f32 %v7167, %v7655
  %v7658 = vtanh.pop %v7656
  %v7659 = vtanh.pop %v7657
  %v7660 = vsub.f32 1.0, %v7548
  %v7661 = vsub.f32 1.0, %v7563
  %v7662 = vmul.f32 %v7660, %v7570
  %v7663 = vmul.f32 %v7661, %v7571
  %v7664 = vmul.f32 %v7548, %v7140
  %v7665 = vmul.f32 %v7563, %v7141
  %v7666 = vadd.f32 %v7662, %v7664
  %v7667 = vadd.f32 %v7663, %v7665
  %v7668 = vsub.f32 1.0, %v7636
  %v7669 = vsub.f32 1.0, %v7651
  %v7670 = vmul.f32 %v7668, %v7658
  %v7671 = vmul.f32 %v7669, %v7659
  %v7672 = vmul.f32 %v7636, %v7148
  %v7673 = vmul.f32 %v7651, %v7149
  %v7674 = vadd.f32 %v7670, %v7672
  %v7675 = vadd.f32 %v7671, %v7673
  %v7676 = vld [vmem:[#allocation2 + $0xc0] sm:$0xff]
  %v7677 = vld [vmem:[#allocation2 + $0xc8] sm:$0xff]
  %v7678 = vld [vmem:[#allocation2 + $0xd0] sm:$0xff]
  %v7679 = vunpack.c.l.bf16 %v7676
  %v7680 = vunpack.c.h.bf16 %v7676
  %v7681 = vunpack.c.l.bf16 %v7677
  %v7682 = vunpack.c.h.bf16 %v7677
  %v7683 = vunpack.c.l.bf16 %v7678
  %v7684 = vunpack.c.h.bf16 %v7678
  %v7685 = vld [vmem:[#allocation2 + $0xa8] sm:$0xff]
  %v7686 = vld [vmem:[#allocation2 + $0xb0] sm:$0xff]
  %v7687 = vld [vmem:[#allocation2 + $0xb8] sm:$0xff]
  %v7688 = vunpack.c.l.bf16 %v7685
  %v7689 = vunpack.c.h.bf16 %v7685
  %v7690 = vunpack.c.l.bf16 %v7686
  %v7691 = vunpack.c.h.bf16 %v7686
  %v7692 = vunpack.c.l.bf16 %v7687
  %v7693 = vunpack.c.h.bf16 %v7687
  %v7694 = vpack.c.bf16 %v7666, %v7666
  %v7695 = vpack.c.bf16 %v7667, %v7667
  %7696 = vmatpush.bf16.msra.mxu0 %v4964
  %7697 = vmatpush.bf16.msra.mxu0 %v4958
  %7698 = vmatpush.bf16.msra.mxu0 %v4952
  %7699 = vmatpush.bf16.msra.mxu0 %v4946
  %7700 = vmatpush.bf16.msra.mxu0 %v4940
  %7701 = vmatpush.bf16.msra.mxu0 %v4934
  %7702 = vmatpush.bf16.msra.mxu0 %v4928
  %7703 = vmatpush.bf16.msra.mxu0 %v4922
  %7704 = vmatmul.bf16.gmra.mxu0 %v7694
  %v7705 = vpop.f32.mrf.mxu0
  %v7706 = vadd.f32 0.0, %v7705
  %v7707 = vpop.f32.mrf.mxu0
  %7708 = vdwg.mxu0
  %7709 = vmatpush.bf16.msra.mxu0 %v5012
  %7710 = vmatpush.bf16.msra.mxu0 %v5006
  %7711 = vmatpush.bf16.msra.mxu0 %v5000
  %7712 = vmatpush.bf16.msra.mxu0 %v4994
  %7713 = vmatpush.bf16.msra.mxu0 %v4988
  %7714 = vmatpush.bf16.msra.mxu0 %v4982
  %7715 = vmatpush.bf16.msra.mxu0 %v4976
  %7716 = vmatpush.bf16.msra.mxu0 %v4970
  %7717 = vmatmul.bf16.gmra.mxu0 %v7695
  %v7718 = vpop.f32.mrf.mxu0
  %v7719 = vadd.f32 %v7706, %v7718
  %v7720 = vpop.f32.mrf.mxu0
  %7721 = vdwg.mxu0
  %7722 = vmatpush.bf16.msra.mxu0 %v4965
  %7723 = vmatpush.bf16.msra.mxu0 %v4959
  %7724 = vmatpush.bf16.msra.mxu0 %v4953
  %7725 = vmatpush.bf16.msra.mxu0 %v4947
  %7726 = vmatpush.bf16.msra.mxu0 %v4941
  %7727 = vmatpush.bf16.msra.mxu0 %v4935
  %7728 = vmatpush.bf16.msra.mxu0 %v4929
  %7729 = vmatpush.bf16.msra.mxu0 %v4923
  %7730 = vmatmul.bf16.gmra.mxu0 %v7694
  %v7731 = vpop.f32.mrf.mxu0
  %v7732 = vadd.f32 0.0, %v7731
  %v7733 = vpop.f32.mrf.mxu0
  %7734 = vdwg.mxu0
  %7735 = vmatpush.bf16.msra.mxu0 %v5013
  %7736 = vmatpush.bf16.msra.mxu0 %v5007
  %7737 = vmatpush.bf16.msra.mxu0 %v5001
  %7738 = vmatpush.bf16.msra.mxu0 %v4995
  %7739 = vmatpush.bf16.msra.mxu0 %v4989
  %7740 = vmatpush.bf16.msra.mxu0 %v4983
  %7741 = vmatpush.bf16.msra.mxu0 %v4977
  %7742 = vmatpush.bf16.msra.mxu0 %v4971
  %7743 = vmatmul.bf16.gmra.mxu0 %v7695
  %v7744 = vpop.f32.mrf.mxu0
  %v7745 = vadd.f32 %v7732, %v7744
  %v7746 = vpop.f32.mrf.mxu0
  %7747 = vdwg.mxu0
  %7748 = vmatpush.bf16.msra.mxu0 %v4966
  %7749 = vmatpush.bf16.msra.mxu0 %v4960
  %7750 = vmatpush.bf16.msra.mxu0 %v4954
  %7751 = vmatpush.bf16.msra.mxu0 %v4948
  %7752 = vmatpush.bf16.msra.mxu0 %v4942
  %7753 = vmatpush.bf16.msra.mxu0 %v4936
  %7754 = vmatpush.bf16.msra.mxu0 %v4930
  %7755 = vmatpush.bf16.msra.mxu0 %v4924
  %7756 = vmatmul.bf16.gmra.mxu0 %v7694
  %v7757 = vpop.f32.mrf.mxu0
  %v7758 = vadd.f32 0.0, %v7757
  %v7759 = vpop.f32.mrf.mxu0
  %7760 = vdwg.mxu0
  %7761 = vmatpush.bf16.msra.mxu0 %v5014
  %7762 = vmatpush.bf16.msra.mxu0 %v5008
  %7763 = vmatpush.bf16.msra.mxu0 %v5002
  %7764 = vmatpush.bf16.msra.mxu0 %v4996
  %7765 = vmatpush.bf16.msra.mxu0 %v4990
  %7766 = vmatpush.bf16.msra.mxu0 %v4984
  %7767 = vmatpush.bf16.msra.mxu0 %v4978
  %7768 = vmatpush.bf16.msra.mxu0 %v4972
  %7769 = vmatmul.bf16.gmra.mxu0 %v7695
  %v7770 = vpop.f32.mrf.mxu0
  %v7771 = vadd.f32 %v7758, %v7770
  %v7772 = vpop.f32.mrf.mxu0
  %7773 = vdwg.mxu0
  %7774 = vmatpush.bf16.msra.mxu0 %v4967
  %7775 = vmatpush.bf16.msra.mxu0 %v4961
  %7776 = vmatpush.bf16.msra.mxu0 %v4955
  %7777 = vmatpush.bf16.msra.mxu0 %v4949
  %7778 = vmatpush.bf16.msra.mxu0 %v4943
  %7779 = vmatpush.bf16.msra.mxu0 %v4937
  %7780 = vmatpush.bf16.msra.mxu0 %v4931
  %7781 = vmatpush.bf16.msra.mxu0 %v4925
  %7782 = vmatmul.bf16.gmra.mxu0 %v7694
  %v7783 = vpop.f32.mrf.mxu0
  %v7784 = vadd.f32 0.0, %v7783
  %v7785 = vpop.f32.mrf.mxu0
  %7786 = vdwg.mxu0
  %7787 = vmatpush.bf16.msra.mxu0 %v5015
  %7788 = vmatpush.bf16.msra.mxu0 %v5009
  %7789 = vmatpush.bf16.msra.mxu0 %v5003
  %7790 = vmatpush.bf16.msra.mxu0 %v4997
  %7791 = vmatpush.bf16.msra.mxu0 %v4991
  %7792 = vmatpush.bf16.msra.mxu0 %v4985
  %7793 = vmatpush.bf16.msra.mxu0 %v4979
  %7794 = vmatpush.bf16.msra.mxu0 %v4973
  %7795 = vmatmul.bf16.gmra.mxu0 %v7695
  %v7796 = vpop.f32.mrf.mxu0
  %v7797 = vadd.f32 %v7784, %v7796
  %v7798 = vpop.f32.mrf.mxu0
  %7799 = vdwg.mxu0
  %7800 = vmatpush.bf16.msra.mxu0 %v4968
  %7801 = vmatpush.bf16.msra.mxu0 %v4962
  %7802 = vmatpush.bf16.msra.mxu0 %v4956
  %7803 = vmatpush.bf16.msra.mxu0 %v4950
  %7804 = vmatpush.bf16.msra.mxu0 %v4944
  %7805 = vmatpush.bf16.msra.mxu0 %v4938
  %7806 = vmatpush.bf16.msra.mxu0 %v4932
  %7807 = vmatpush.bf16.msra.mxu0 %v4926
  %7808 = vmatmul.bf16.gmra.mxu0 %v7694
  %v7809 = vpop.f32.mrf.mxu0
  %v7810 = vadd.f32 0.0, %v7809
  %v7811 = vpop.f32.mrf.mxu0
  %7812 = vdwg.mxu0
  %7813 = vmatpush.bf16.msra.mxu0 %v5016
  %7814 = vmatpush.bf16.msra.mxu0 %v5010
  %7815 = vmatpush.bf16.msra.mxu0 %v5004
  %7816 = vmatpush.bf16.msra.mxu0 %v4998
  %7817 = vmatpush.bf16.msra.mxu0 %v4992
  %7818 = vmatpush.bf16.msra.mxu0 %v4986
  %7819 = vmatpush.bf16.msra.mxu0 %v4980
  %7820 = vmatpush.bf16.msra.mxu0 %v4974
  %7821 = vmatmul.bf16.gmra.mxu0 %v7695
  %v7822 = vpop.f32.mrf.mxu0
  %v7823 = vadd.f32 %v7810, %v7822
  %v7824 = vpop.f32.mrf.mxu0
  %7825 = vdwg.mxu0
  %7826 = vmatpush.bf16.msra.mxu0 %v4969
  %7827 = vmatpush.bf16.msra.mxu0 %v4963
  %7828 = vmatpush.bf16.msra.mxu0 %v4957
  %7829 = vmatpush.bf16.msra.mxu0 %v4951
  %7830 = vmatpush.bf16.msra.mxu0 %v4945
  %7831 = vmatpush.bf16.msra.mxu0 %v4939
  %7832 = vmatpush.bf16.msra.mxu0 %v4933
  %7833 = vmatpush.bf16.msra.mxu0 %v4927
  %7834 = vmatmul.bf16.gmra.mxu0 %v7694
  %v7835 = vpop.f32.mrf.mxu0
  %v7836 = vadd.f32 0.0, %v7835
  %v7837 = vpop.f32.mrf.mxu0
  %7838 = vdwg.mxu0
  %7839 = vmatpush.bf16.msra.mxu0 %v5017
  %7840 = vmatpush.bf16.msra.mxu0 %v5011
  %7841 = vmatpush.bf16.msra.mxu0 %v5005
  %7842 = vmatpush.bf16.msra.mxu0 %v4999
  %7843 = vmatpush.bf16.msra.mxu0 %v4993
  %7844 = vmatpush.bf16.msra.mxu0 %v4987
  %7845 = vmatpush.bf16.msra.mxu0 %v4981
  %7846 = vmatpush.bf16.msra.mxu0 %v4975
  %7847 = vmatmul.bf16.gmra.mxu0 %v7695
  %v7848 = vpop.f32.mrf.mxu0
  %v7849 = vadd.f32 %v7836, %v7848
  %v7850 = vpop.f32.mrf.mxu0
  %7851 = vdwg.mxu0
  %v7852 = vpack.c.bf16 %v7674, %v7674
  %v7853 = vpack.c.bf16 %v7675, %v7675
  %7854 = vmatpush.bf16.msra.mxu0 %v5600
  %7855 = vmatpush.bf16.msra.mxu0 %v5594
  %7856 = vmatpush.bf16.msra.mxu0 %v5588
  %7857 = vmatpush.bf16.msra.mxu0 %v5582
  %7858 = vmatpush.bf16.msra.mxu0 %v5576
  %7859 = vmatpush.bf16.msra.mxu0 %v5570
  %7860 = vmatpush.bf16.msra.mxu0 %v5564
  %7861 = vmatpush.bf16.msra.mxu0 %v5558
  %7862 = vmatmul.bf16.gmra.mxu0 %v7852
  %v7863 = vpop.f32.mrf.mxu0
  %v7864 = vadd.f32 0.0, %v7863
  %v7865 = vpop.f32.mrf.mxu0
  %7866 = vdwg.mxu0
  %7867 = vmatpush.bf16.msra.mxu0 %v5648
  %7868 = vmatpush.bf16.msra.mxu0 %v5642
  %7869 = vmatpush.bf16.msra.mxu0 %v5636
  %7870 = vmatpush.bf16.msra.mxu0 %v5630
  %7871 = vmatpush.bf16.msra.mxu0 %v5624
  %7872 = vmatpush.bf16.msra.mxu0 %v5618
  %7873 = vmatpush.bf16.msra.mxu0 %v5612
  %7874 = vmatpush.bf16.msra.mxu0 %v5606
  %7875 = vmatmul.bf16.gmra.mxu0 %v7853
  %v7876 = vpop.f32.mrf.mxu0
  %v7877 = vadd.f32 %v7864, %v7876
  %v7878 = vpop.f32.mrf.mxu0
  %7879 = vdwg.mxu0
  %7880 = vmatpush.bf16.msra.mxu0 %v5601
  %7881 = vmatpush.bf16.msra.mxu0 %v5595
  %7882 = vmatpush.bf16.msra.mxu0 %v5589
  %7883 = vmatpush.bf16.msra.mxu0 %v5583
  %7884 = vmatpush.bf16.msra.mxu0 %v5577
  %7885 = vmatpush.bf16.msra.mxu0 %v5571
  %7886 = vmatpush.bf16.msra.mxu0 %v5565
  %7887 = vmatpush.bf16.msra.mxu0 %v5559
  %7888 = vmatmul.bf16.gmra.mxu0 %v7852
  %v7889 = vpop.f32.mrf.mxu0
  %v7890 = vadd.f32 0.0, %v7889
  %v7891 = vpop.f32.mrf.mxu0
  %7892 = vdwg.mxu0
  %7893 = vmatpush.bf16.msra.mxu0 %v5649
  %7894 = vmatpush.bf16.msra.mxu0 %v5643
  %7895 = vmatpush.bf16.msra.mxu0 %v5637
  %7896 = vmatpush.bf16.msra.mxu0 %v5631
  %7897 = vmatpush.bf16.msra.mxu0 %v5625
  %7898 = vmatpush.bf16.msra.mxu0 %v5619
  %7899 = vmatpush.bf16.msra.mxu0 %v5613
  %7900 = vmatpush.bf16.msra.mxu0 %v5607
  %7901 = vmatmul.bf16.gmra.mxu0 %v7853
  %v7902 = vpop.f32.mrf.mxu0
  %v7903 = vadd.f32 %v7890, %v7902
  %v7904 = vpop.f32.mrf.mxu0
  %7905 = vdwg.mxu0
  %7906 = vmatpush.bf16.msra.mxu0 %v5602
  %7907 = vmatpush.bf16.msra.mxu0 %v5596
  %7908 = vmatpush.bf16.msra.mxu0 %v5590
  %7909 = vmatpush.bf16.msra.mxu0 %v5584
  %7910 = vmatpush.bf16.msra.mxu0 %v5578
  %7911 = vmatpush.bf16.msra.mxu0 %v5572
  %7912 = vmatpush.bf16.msra.mxu0 %v5566
  %7913 = vmatpush.bf16.msra.mxu0 %v5560
  %7914 = vmatmul.bf16.gmra.mxu0 %v7852
  %v7915 = vpop.f32.mrf.mxu0
  %v7916 = vadd.f32 0.0, %v7915
  %v7917 = vpop.f32.mrf.mxu0
  %7918 = vdwg.mxu0
  %7919 = vmatpush.bf16.msra.mxu0 %v5650
  %7920 = vmatpush.bf16.msra.mxu0 %v5644
  %7921 = vmatpush.bf16.msra.mxu0 %v5638
  %7922 = vmatpush.bf16.msra.mxu0 %v5632
  %7923 = vmatpush.bf16.msra.mxu0 %v5626
  %7924 = vmatpush.bf16.msra.mxu0 %v5620
  %7925 = vmatpush.bf16.msra.mxu0 %v5614
  %7926 = vmatpush.bf16.msra.mxu0 %v5608
  %7927 = vmatmul.bf16.gmra.mxu0 %v7853
  %v7928 = vpop.f32.mrf.mxu0
  %v7929 = vadd.f32 %v7916, %v7928
  %v7930 = vpop.f32.mrf.mxu0
  %7931 = vdwg.mxu0
  %7932 = vmatpush.bf16.msra.mxu0 %v5603
  %7933 = vmatpush.bf16.msra.mxu0 %v5597
  %7934 = vmatpush.bf16.msra.mxu0 %v5591
  %7935 = vmatpush.bf16.msra.mxu0 %v5585
  %7936 = vmatpush.bf16.msra.mxu0 %v5579
  %7937 = vmatpush.bf16.msra.mxu0 %v5573
  %7938 = vmatpush.bf16.msra.mxu0 %v5567
  %7939 = vmatpush.bf16.msra.mxu0 %v5561
  %7940 = vmatmul.bf16.gmra.mxu0 %v7852
  %v7941 = vpop.f32.mrf.mxu0
  %v7942 = vadd.f32 0.0, %v7941
  %v7943 = vpop.f32.mrf.mxu0
  %7944 = vdwg.mxu0
  %7945 = vmatpush.bf16.msra.mxu0 %v5651
  %7946 = vmatpush.bf16.msra.mxu0 %v5645
  %7947 = vmatpush.bf16.msra.mxu0 %v5639
  %7948 = vmatpush.bf16.msra.mxu0 %v5633
  %7949 = vmatpush.bf16.msra.mxu0 %v5627
  %7950 = vmatpush.bf16.msra.mxu0 %v5621
  %7951 = vmatpush.bf16.msra.mxu0 %v5615
  %7952 = vmatpush.bf16.msra.mxu0 %v5609
  %7953 = vmatmul.bf16.gmra.mxu0 %v7853
  %v7954 = vpop.f32.mrf.mxu0
  %v7955 = vadd.f32 %v7942, %v7954
  %v7956 = vpop.f32.mrf.mxu0
  %7957 = vdwg.mxu0
  %7958 = vmatpush.bf16.msra.mxu0 %v5604
  %7959 = vmatpush.bf16.msra.mxu0 %v5598
  %7960 = vmatpush.bf16.msra.mxu0 %v5592
  %7961 = vmatpush.bf16.msra.mxu0 %v5586
  %7962 = vmatpush.bf16.msra.mxu0 %v5580
  %7963 = vmatpush.bf16.msra.mxu0 %v5574
  %7964 = vmatpush.bf16.msra.mxu0 %v5568
  %7965 = vmatpush.bf16.msra.mxu0 %v5562
  %7966 = vmatmul.bf16.gmra.mxu0 %v7852
  %v7967 = vpop.f32.mrf.mxu0
  %v7968 = vadd.f32 0.0, %v7967
  %v7969 = vpop.f32.mrf.mxu0
  %7970 = vdwg.mxu0
  %7971 = vmatpush.bf16.msra.mxu0 %v5652
  %7972 = vmatpush.bf16.msra.mxu0 %v5646
  %7973 = vmatpush.bf16.msra.mxu0 %v5640
  %7974 = vmatpush.bf16.msra.mxu0 %v5634
  %7975 = vmatpush.bf16.msra.mxu0 %v5628
  %7976 = vmatpush.bf16.msra.mxu0 %v5622
  %7977 = vmatpush.bf16.msra.mxu0 %v5616
  %7978 = vmatpush.bf16.msra.mxu0 %v5610
  %7979 = vmatmul.bf16.gmra.mxu0 %v7853
  %v7980 = vpop.f32.mrf.mxu0
  %v7981 = vadd.f32 %v7968, %v7980
  %v7982 = vpop.f32.mrf.mxu0
  %7983 = vdwg.mxu0
  %7984 = vmatpush.bf16.msra.mxu0 %v5605
  %7985 = vmatpush.bf16.msra.mxu0 %v5599
  %7986 = vmatpush.bf16.msra.mxu0 %v5593
  %7987 = vmatpush.bf16.msra.mxu0 %v5587
  %7988 = vmatpush.bf16.msra.mxu0 %v5581
  %7989 = vmatpush.bf16.msra.mxu0 %v5575
  %7990 = vmatpush.bf16.msra.mxu0 %v5569
  %7991 = vmatpush.bf16.msra.mxu0 %v5563
  %7992 = vmatmul.bf16.gmra.mxu0 %v7852
  %v7993 = vpop.f32.mrf.mxu0
  %v7994 = vadd.f32 0.0, %v7993
  %v7995 = vpop.f32.mrf.mxu0
  %7996 = vdwg.mxu0
  %7997 = vmatpush.bf16.msra.mxu0 %v5653
  %7998 = vmatpush.bf16.msra.mxu0 %v5647
  %7999 = vmatpush.bf16.msra.mxu0 %v5641
  %8000 = vmatpush.bf16.msra.mxu0 %v5635
  %8001 = vmatpush.bf16.msra.mxu0 %v5629
  %8002 = vmatpush.bf16.msra.mxu0 %v5623
  %8003 = vmatpush.bf16.msra.mxu0 %v5617
  %8004 = vmatpush.bf16.msra.mxu0 %v5611
  %8005 = vmatmul.bf16.gmra.mxu0 %v7853
  %v8006 = vpop.f32.mrf.mxu0
  %v8007 = vadd.f32 %v7994, %v8006
  %v8008 = vpop.f32.mrf.mxu0
  %8009 = vdwg.mxu0
  %v8010 = vadd.f32 %v7679, %v7719
  %v8011 = vadd.f32 %v7680, %v7745
  %v8012 = vxor.u32 %v8010, 2147483648
  %v8013 = vxor.u32 %v8011, 2147483648
  %v8014 = vmul.f32 %v8012, 1.442695
  %v8015 = vpow.pop %v8014
  %v8016 = vmul.f32 %v8013, 1.442695
  %v8017 = vpow.pop %v8016
  %v8018 = vadd.f32 %v8015, 1.0
  %v8019 = vadd.f32 %v8017, 1.0
  %v8020 = vrcp.pop %v8018
  %v8021 = vmul.f32 %v8018, %v8020
  %v8022 = vsub.f32 1.0, %v8021
  %v8023 = vmul.f32 %v8020, %v8022
  %v8024 = vadd.f32 %v8020, %v8023
  %vm8025 = vweird.f32 %v8018
  %vm8026 = vweird.f32 %v8020
  %vm8027 = vmor %vm8025, %vm8026
  %v8028 = vsel %vm8027, %v8020, %v8024
  %v8029 = vand.u32 2147483647, %v8018
  %vm8030 = vcmp.eq.f32.partialorder %v8029, 8.507059e+37
  %v8031 = vand.u32 %v8018, 2147483648
  %v8032 = vor.u32 1.1754944e-38, %v8031
  %v8033 = vsel %vm8030, %v8032, %v8028
  %v8034 = vmul.f32 1.0, %v8033
  %v8035 = vrcp.pop %v8019
  %v8036 = vmul.f32 %v8019, %v8035
  %v8037 = vsub.f32 1.0, %v8036
  %v8038 = vmul.f32 %v8035, %v8037
  %v8039 = vadd.f32 %v8035, %v8038
  %vm8040 = vweird.f32 %v8019
  %vm8041 = vweird.f32 %v8035
  %vm8042 = vmor %vm8040, %vm8041
  %v8043 = vsel %vm8042, %v8035, %v8039
  %v8044 = vand.u32 2147483647, %v8019
  %vm8045 = vcmp.eq.f32.partialorder %v8044, 8.507059e+37
  %v8046 = vand.u32 %v8019, 2147483648
  %v8047 = vor.u32 1.1754944e-38, %v8046
  %v8048 = vsel %vm8045, %v8047, %v8043
  %v8049 = vmul.f32 1.0, %v8048
  %v8050 = vadd.f32 %v7681, %v7771
  %v8051 = vadd.f32 %v7682, %v7797
  %v8052 = vxor.u32 %v8050, 2147483648
  %v8053 = vxor.u32 %v8051, 2147483648
  %v8054 = vmul.f32 %v8052, 1.442695
  %v8055 = vpow.pop %v8054
  %v8056 = vmul.f32 %v8053, 1.442695
  %v8057 = vpow.pop %v8056
  %v8058 = vadd.f32 %v8055, 1.0
  %v8059 = vadd.f32 %v8057, 1.0
  %v8060 = vrcp.pop %v8058
  %v8061 = vmul.f32 %v8058, %v8060
  %v8062 = vsub.f32 1.0, %v8061
  %v8063 = vmul.f32 %v8060, %v8062
  %v8064 = vadd.f32 %v8060, %v8063
  %vm8065 = vweird.f32 %v8058
  %vm8066 = vweird.f32 %v8060
  %vm8067 = vmor %vm8065, %vm8066
  %v8068 = vsel %vm8067, %v8060, %v8064
  %v8069 = vand.u32 2147483647, %v8058
  %vm8070 = vcmp.eq.f32.partialorder %v8069, 8.507059e+37
  %v8071 = vand.u32 %v8058, 2147483648
  %v8072 = vor.u32 1.1754944e-38, %v8071
  %v8073 = vsel %vm8070, %v8072, %v8068
  %v8074 = vmul.f32 1.0, %v8073
  %v8075 = vrcp.pop %v8059
  %v8076 = vmul.f32 %v8059, %v8075
  %v8077 = vsub.f32 1.0, %v8076
  %v8078 = vmul.f32 %v8075, %v8077
  %v8079 = vadd.f32 %v8075, %v8078
  %vm8080 = vweird.f32 %v8059
  %vm8081 = vweird.f32 %v8075
  %vm8082 = vmor %vm8080, %vm8081
  %v8083 = vsel %vm8082, %v8075, %v8079
  %v8084 = vand.u32 2147483647, %v8059
  %vm8085 = vcmp.eq.f32.partialorder %v8084, 8.507059e+37
  %v8086 = vand.u32 %v8059, 2147483648
  %v8087 = vor.u32 1.1754944e-38, %v8086
  %v8088 = vsel %vm8085, %v8087, %v8083
  %v8089 = vmul.f32 1.0, %v8088
  %v8090 = vadd.f32 %v7823, %v4606
  %v8091 = vadd.f32 %v7849, %v4607
  %v8092 = vmul.f32 %v8034, %v8090
  %v8093 = vmul.f32 %v8049, %v8091
  %v8094 = vadd.f32 %v7683, %v8092
  %v8095 = vadd.f32 %v7684, %v8093
  %v8096 = vtanh.pop %v8094
  %v8097 = vtanh.pop %v8095
  %v8098 = vadd.f32 %v7688, %v7877
  %v8099 = vadd.f32 %v7689, %v7903
  %v8100 = vxor.u32 %v8098, 2147483648
  %v8101 = vxor.u32 %v8099, 2147483648
  %v8102 = vmul.f32 %v8100, 1.442695
  %v8103 = vpow.pop %v8102
  %v8104 = vmul.f32 %v8101, 1.442695
  %v8105 = vpow.pop %v8104
  %v8106 = vadd.f32 %v8103, 1.0
  %v8107 = vadd.f32 %v8105, 1.0
  %v8108 = vrcp.pop %v8106
  %v8109 = vmul.f32 %v8106, %v8108
  %v8110 = vsub.f32 1.0, %v8109
  %v8111 = vmul.f32 %v8108, %v8110
  %v8112 = vadd.f32 %v8108, %v8111
  %vm8113 = vweird.f32 %v8106
  %vm8114 = vweird.f32 %v8108
  %vm8115 = vmor %vm8113, %vm8114
  %v8116 = vsel %vm8115, %v8108, %v8112
  %v8117 = vand.u32 2147483647, %v8106
  %vm8118 = vcmp.eq.f32.partialorder %v8117, 8.507059e+37
  %v8119 = vand.u32 %v8106, 2147483648
  %v8120 = vor.u32 1.1754944e-38, %v8119
  %v8121 = vsel %vm8118, %v8120, %v8116
  %v8122 = vmul.f32 1.0, %v8121
  %v8123 = vrcp.pop %v8107
  %v8124 = vmul.f32 %v8107, %v8123
  %v8125 = vsub.f32 1.0, %v8124
  %v8126 = vmul.f32 %v8123, %v8125
  %v8127 = vadd.f32 %v8123, %v8126
  %vm8128 = vweird.f32 %v8107
  %vm8129 = vweird.f32 %v8123
  %vm8130 = vmor %vm8128, %vm8129
  %v8131 = vsel %vm8130, %v8123, %v8127
  %v8132 = vand.u32 2147483647, %v8107
  %vm8133 = vcmp.eq.f32.partialorder %v8132, 8.507059e+37
  %v8134 = vand.u32 %v8107, 2147483648
  %v8135 = vor.u32 1.1754944e-38, %v8134
  %v8136 = vsel %vm8133, %v8135, %v8131
  %v8137 = vmul.f32 1.0, %v8136
  %v8138 = vadd.f32 %v7690, %v7929
  %v8139 = vadd.f32 %v7691, %v7955
  %v8140 = vxor.u32 %v8138, 2147483648
  %v8141 = vxor.u32 %v8139, 2147483648
  %v8142 = vmul.f32 %v8140, 1.442695
  %v8143 = vpow.pop %v8142
  %v8144 = vmul.f32 %v8141, 1.442695
  %v8145 = vpow.pop %v8144
  %v8146 = vadd.f32 %v8143, 1.0
  %v8147 = vadd.f32 %v8145, 1.0
  %v8148 = vrcp.pop %v8146
  %v8149 = vmul.f32 %v8146, %v8148
  %v8150 = vsub.f32 1.0, %v8149
  %v8151 = vmul.f32 %v8148, %v8150
  %v8152 = vadd.f32 %v8148, %v8151
  %vm8153 = vweird.f32 %v8146
  %vm8154 = vweird.f32 %v8148
  %vm8155 = vmor %vm8153, %vm8154
  %v8156 = vsel %vm8155, %v8148, %v8152
  %v8157 = vand.u32 2147483647, %v8146
  %vm8158 = vcmp.eq.f32.partialorder %v8157, 8.507059e+37
  %v8159 = vand.u32 %v8146, 2147483648
  %v8160 = vor.u32 1.1754944e-38, %v8159
  %v8161 = vsel %vm8158, %v8160, %v8156
  %v8162 = vmul.f32 1.0, %v8161
  %v8163 = vrcp.pop %v8147
  %v8164 = vmul.f32 %v8147, %v8163
  %v8165 = vsub.f32 1.0, %v8164
  %v8166 = vmul.f32 %v8163, %v8165
  %v8167 = vadd.f32 %v8163, %v8166
  %vm8168 = vweird.f32 %v8147
  %vm8169 = vweird.f32 %v8163
  %vm8170 = vmor %vm8168, %vm8169
  %v8171 = vsel %vm8170, %v8163, %v8167
  %v8172 = vand.u32 2147483647, %v8147
  %vm8173 = vcmp.eq.f32.partialorder %v8172, 8.507059e+37
  %v8174 = vand.u32 %v8147, 2147483648
  %v8175 = vor.u32 1.1754944e-38, %v8174
  %v8176 = vsel %vm8173, %v8175, %v8171
  %v8177 = vmul.f32 1.0, %v8176
  %v8178 = vadd.f32 %v7981, %v4612
  %v8179 = vadd.f32 %v8007, %v4613
  %v8180 = vmul.f32 %v8122, %v8178
  %v8181 = vmul.f32 %v8137, %v8179
  %v8182 = vadd.f32 %v7692, %v8180
  %v8183 = vadd.f32 %v7693, %v8181
  %v8184 = vtanh.pop %v8182
  %v8185 = vtanh.pop %v8183
  %v8186 = vsub.f32 1.0, %v8074
  %v8187 = vsub.f32 1.0, %v8089
  %v8188 = vmul.f32 %v8186, %v8096
  %v8189 = vmul.f32 %v8187, %v8097
  %v8190 = vmul.f32 %v8074, %v7666
  %v8191 = vmul.f32 %v8089, %v7667
  %v8192 = vadd.f32 %v8188, %v8190
  %v8193 = vadd.f32 %v8189, %v8191
  %v8194 = vsub.f32 1.0, %v8162
  %v8195 = vsub.f32 1.0, %v8177
  %v8196 = vmul.f32 %v8194, %v8184
  %v8197 = vmul.f32 %v8195, %v8185
  %v8198 = vmul.f32 %v8162, %v7674
  %v8199 = vmul.f32 %v8177, %v7675
  %v8200 = vadd.f32 %v8196, %v8198
  %v8201 = vadd.f32 %v8197, %v8199
  %v8202 = vld [vmem:[#allocation2 + $0xf0] sm:$0xff]
  %v8203 = vld [vmem:[#allocation2 + $0xf8] sm:$0xff]
  %v8204 = vld [vmem:[#allocation2 + $0x100] sm:$0xff]
  %v8205 = vunpack.c.l.bf16 %v8202
  %v8206 = vunpack.c.h.bf16 %v8202
  %v8207 = vunpack.c.l.bf16 %v8203
  %v8208 = vunpack.c.h.bf16 %v8203
  %v8209 = vunpack.c.l.bf16 %v8204
  %v8210 = vunpack.c.h.bf16 %v8204
  %v8211 = vld [vmem:[#allocation2 + $0x78] sm:$0xff]
  %v8212 = vld [vmem:[#allocation2 + $0x80] sm:$0xff]
  %v8213 = vld [vmem:[#allocation2 + $0x88] sm:$0xff]
  %v8214 = vunpack.c.l.bf16 %v8211
  %v8215 = vunpack.c.h.bf16 %v8211
  %v8216 = vunpack.c.l.bf16 %v8212
  %v8217 = vunpack.c.h.bf16 %v8212
  %v8218 = vunpack.c.l.bf16 %v8213
  %v8219 = vunpack.c.h.bf16 %v8213
  %v8220 = vpack.c.bf16 %v8192, %v8192
  %v8221 = vpack.c.bf16 %v8193, %v8193
  %8222 = vmatpush.bf16.msra.mxu0 %v4964
  %8223 = vmatpush.bf16.msra.mxu0 %v4958
  %8224 = vmatpush.bf16.msra.mxu0 %v4952
  %8225 = vmatpush.bf16.msra.mxu0 %v4946
  %8226 = vmatpush.bf16.msra.mxu0 %v4940
  %8227 = vmatpush.bf16.msra.mxu0 %v4934
  %8228 = vmatpush.bf16.msra.mxu0 %v4928
  %8229 = vmatpush.bf16.msra.mxu0 %v4922
  %8230 = vmatmul.bf16.gmra.mxu0 %v8220
  %v8231 = vpop.f32.mrf.mxu0
  %v8232 = vadd.f32 0.0, %v8231
  %v8233 = vpop.f32.mrf.mxu0
  %8234 = vdwg.mxu0
  %8235 = vmatpush.bf16.msra.mxu0 %v5012
  %8236 = vmatpush.bf16.msra.mxu0 %v5006
  %8237 = vmatpush.bf16.msra.mxu0 %v5000
  %8238 = vmatpush.bf16.msra.mxu0 %v4994
  %8239 = vmatpush.bf16.msra.mxu0 %v4988
  %8240 = vmatpush.bf16.msra.mxu0 %v4982
  %8241 = vmatpush.bf16.msra.mxu0 %v4976
  %8242 = vmatpush.bf16.msra.mxu0 %v4970
  %8243 = vmatmul.bf16.gmra.mxu0 %v8221
  %v8244 = vpop.f32.mrf.mxu0
  %v8245 = vadd.f32 %v8232, %v8244
  %v8246 = vpop.f32.mrf.mxu0
  %8247 = vdwg.mxu0
  %8248 = vmatpush.bf16.msra.mxu0 %v4965
  %8249 = vmatpush.bf16.msra.mxu0 %v4959
  %8250 = vmatpush.bf16.msra.mxu0 %v4953
  %8251 = vmatpush.bf16.msra.mxu0 %v4947
  %8252 = vmatpush.bf16.msra.mxu0 %v4941
  %8253 = vmatpush.bf16.msra.mxu0 %v4935
  %8254 = vmatpush.bf16.msra.mxu0 %v4929
  %8255 = vmatpush.bf16.msra.mxu0 %v4923
  %8256 = vmatmul.bf16.gmra.mxu0 %v8220
  %v8257 = vpop.f32.mrf.mxu0
  %v8258 = vadd.f32 0.0, %v8257
  %v8259 = vpop.f32.mrf.mxu0
  %8260 = vdwg.mxu0
  %8261 = vmatpush.bf16.msra.mxu0 %v5013
  %8262 = vmatpush.bf16.msra.mxu0 %v5007
  %8263 = vmatpush.bf16.msra.mxu0 %v5001
  %8264 = vmatpush.bf16.msra.mxu0 %v4995
  %8265 = vmatpush.bf16.msra.mxu0 %v4989
  %8266 = vmatpush.bf16.msra.mxu0 %v4983
  %8267 = vmatpush.bf16.msra.mxu0 %v4977
  %8268 = vmatpush.bf16.msra.mxu0 %v4971
  %8269 = vmatmul.bf16.gmra.mxu0 %v8221
  %v8270 = vpop.f32.mrf.mxu0
  %v8271 = vadd.f32 %v8258, %v8270
  %v8272 = vpop.f32.mrf.mxu0
  %8273 = vdwg.mxu0
  %8274 = vmatpush.bf16.msra.mxu0 %v4966
  %8275 = vmatpush.bf16.msra.mxu0 %v4960
  %8276 = vmatpush.bf16.msra.mxu0 %v4954
  %8277 = vmatpush.bf16.msra.mxu0 %v4948
  %8278 = vmatpush.bf16.msra.mxu0 %v4942
  %8279 = vmatpush.bf16.msra.mxu0 %v4936
  %8280 = vmatpush.bf16.msra.mxu0 %v4930
  %8281 = vmatpush.bf16.msra.mxu0 %v4924
  %8282 = vmatmul.bf16.gmra.mxu0 %v8220
  %v8283 = vpop.f32.mrf.mxu0
  %v8284 = vadd.f32 0.0, %v8283
  %v8285 = vpop.f32.mrf.mxu0
  %8286 = vdwg.mxu0
  %8287 = vmatpush.bf16.msra.mxu0 %v5014
  %8288 = vmatpush.bf16.msra.mxu0 %v5008
  %8289 = vmatpush.bf16.msra.mxu0 %v5002
  %8290 = vmatpush.bf16.msra.mxu0 %v4996
  %8291 = vmatpush.bf16.msra.mxu0 %v4990
  %8292 = vmatpush.bf16.msra.mxu0 %v4984
  %8293 = vmatpush.bf16.msra.mxu0 %v4978
  %8294 = vmatpush.bf16.msra.mxu0 %v4972
  %8295 = vmatmul.bf16.gmra.mxu0 %v8221
  %v8296 = vpop.f32.mrf.mxu0
  %v8297 = vadd.f32 %v8284, %v8296
  %v8298 = vpop.f32.mrf.mxu0
  %8299 = vdwg.mxu0
  %8300 = vmatpush.bf16.msra.mxu0 %v4967
  %8301 = vmatpush.bf16.msra.mxu0 %v4961
  %8302 = vmatpush.bf16.msra.mxu0 %v4955
  %8303 = vmatpush.bf16.msra.mxu0 %v4949
  %8304 = vmatpush.bf16.msra.mxu0 %v4943
  %8305 = vmatpush.bf16.msra.mxu0 %v4937
  %8306 = vmatpush.bf16.msra.mxu0 %v4931
  %8307 = vmatpush.bf16.msra.mxu0 %v4925
  %8308 = vmatmul.bf16.gmra.mxu0 %v8220
  %v8309 = vpop.f32.mrf.mxu0
  %v8310 = vadd.f32 0.0, %v8309
  %v8311 = vpop.f32.mrf.mxu0
  %8312 = vdwg.mxu0
  %8313 = vmatpush.bf16.msra.mxu0 %v5015
  %8314 = vmatpush.bf16.msra.mxu0 %v5009
  %8315 = vmatpush.bf16.msra.mxu0 %v5003
  %8316 = vmatpush.bf16.msra.mxu0 %v4997
  %8317 = vmatpush.bf16.msra.mxu0 %v4991
  %8318 = vmatpush.bf16.msra.mxu0 %v4985
  %8319 = vmatpush.bf16.msra.mxu0 %v4979
  %8320 = vmatpush.bf16.msra.mxu0 %v4973
  %8321 = vmatmul.bf16.gmra.mxu0 %v8221
  %v8322 = vpop.f32.mrf.mxu0
  %v8323 = vadd.f32 %v8310, %v8322
  %v8324 = vpop.f32.mrf.mxu0
  %8325 = vdwg.mxu0
  %8326 = vmatpush.bf16.msra.mxu0 %v4968
  %8327 = vmatpush.bf16.msra.mxu0 %v4962
  %8328 = vmatpush.bf16.msra.mxu0 %v4956
  %8329 = vmatpush.bf16.msra.mxu0 %v4950
  %8330 = vmatpush.bf16.msra.mxu0 %v4944
  %8331 = vmatpush.bf16.msra.mxu0 %v4938
  %8332 = vmatpush.bf16.msra.mxu0 %v4932
  %8333 = vmatpush.bf16.msra.mxu0 %v4926
  %8334 = vmatmul.bf16.gmra.mxu0 %v8220
  %v8335 = vpop.f32.mrf.mxu0
  %v8336 = vadd.f32 0.0, %v8335
  %v8337 = vpop.f32.mrf.mxu0
  %8338 = vdwg.mxu0
  %8339 = vmatpush.bf16.msra.mxu0 %v5016
  %8340 = vmatpush.bf16.msra.mxu0 %v5010
  %8341 = vmatpush.bf16.msra.mxu0 %v5004
  %8342 = vmatpush.bf16.msra.mxu0 %v4998
  %8343 = vmatpush.bf16.msra.mxu0 %v4992
  %8344 = vmatpush.bf16.msra.mxu0 %v4986
  %8345 = vmatpush.bf16.msra.mxu0 %v4980
  %8346 = vmatpush.bf16.msra.mxu0 %v4974
  %8347 = vmatmul.bf16.gmra.mxu0 %v8221
  %v8348 = vpop.f32.mrf.mxu0
  %v8349 = vadd.f32 %v8336, %v8348
  %v8350 = vpop.f32.mrf.mxu0
  %8351 = vdwg.mxu0
  %8352 = vmatpush.bf16.msra.mxu0 %v4969
  %8353 = vmatpush.bf16.msra.mxu0 %v4963
  %8354 = vmatpush.bf16.msra.mxu0 %v4957
  %8355 = vmatpush.bf16.msra.mxu0 %v4951
  %8356 = vmatpush.bf16.msra.mxu0 %v4945
  %8357 = vmatpush.bf16.msra.mxu0 %v4939
  %8358 = vmatpush.bf16.msra.mxu0 %v4933
  %8359 = vmatpush.bf16.msra.mxu0 %v4927
  %8360 = vmatmul.bf16.gmra.mxu0 %v8220
  %v8361 = vpop.f32.mrf.mxu0
  %v8362 = vadd.f32 0.0, %v8361
  %v8363 = vpop.f32.mrf.mxu0
  %8364 = vdwg.mxu0
  %8365 = vmatpush.bf16.msra.mxu0 %v5017
  %8366 = vmatpush.bf16.msra.mxu0 %v5011
  %8367 = vmatpush.bf16.msra.mxu0 %v5005
  %8368 = vmatpush.bf16.msra.mxu0 %v4999
  %8369 = vmatpush.bf16.msra.mxu0 %v4993
  %8370 = vmatpush.bf16.msra.mxu0 %v4987
  %8371 = vmatpush.bf16.msra.mxu0 %v4981
  %8372 = vmatpush.bf16.msra.mxu0 %v4975
  %8373 = vmatmul.bf16.gmra.mxu0 %v8221
  %v8374 = vpop.f32.mrf.mxu0
  %v8375 = vadd.f32 %v8362, %v8374
  %v8376 = vpop.f32.mrf.mxu0
  %8377 = vdwg.mxu0
  %v8378 = vpack.c.bf16 %v8200, %v8200
  %v8379 = vpack.c.bf16 %v8201, %v8201
  %8380 = vmatpush.bf16.msra.mxu0 %v5600
  %8381 = vmatpush.bf16.msra.mxu0 %v5594
  %8382 = vmatpush.bf16.msra.mxu0 %v5588
  %8383 = vmatpush.bf16.msra.mxu0 %v5582
  %8384 = vmatpush.bf16.msra.mxu0 %v5576
  %8385 = vmatpush.bf16.msra.mxu0 %v5570
  %8386 = vmatpush.bf16.msra.mxu0 %v5564
  %8387 = vmatpush.bf16.msra.mxu0 %v5558
  %8388 = vmatmul.bf16.gmra.mxu0 %v8378
  %v8389 = vpop.f32.mrf.mxu0
  %v8390 = vadd.f32 0.0, %v8389
  %v8391 = vpop.f32.mrf.mxu0
  %8392 = vdwg.mxu0
  %8393 = vmatpush.bf16.msra.mxu0 %v5648
  %8394 = vmatpush.bf16.msra.mxu0 %v5642
  %8395 = vmatpush.bf16.msra.mxu0 %v5636
  %8396 = vmatpush.bf16.msra.mxu0 %v5630
  %8397 = vmatpush.bf16.msra.mxu0 %v5624
  %8398 = vmatpush.bf16.msra.mxu0 %v5618
  %8399 = vmatpush.bf16.msra.mxu0 %v5612
  %8400 = vmatpush.bf16.msra.mxu0 %v5606
  %8401 = vmatmul.bf16.gmra.mxu0 %v8379
  %v8402 = vpop.f32.mrf.mxu0
  %v8403 = vadd.f32 %v8390, %v8402
  %v8404 = vpop.f32.mrf.mxu0
  %8405 = vdwg.mxu0
  %8406 = vmatpush.bf16.msra.mxu0 %v5601
  %8407 = vmatpush.bf16.msra.mxu0 %v5595
  %8408 = vmatpush.bf16.msra.mxu0 %v5589
  %8409 = vmatpush.bf16.msra.mxu0 %v5583
  %8410 = vmatpush.bf16.msra.mxu0 %v5577
  %8411 = vmatpush.bf16.msra.mxu0 %v5571
  %8412 = vmatpush.bf16.msra.mxu0 %v5565
  %8413 = vmatpush.bf16.msra.mxu0 %v5559
  %8414 = vmatmul.bf16.gmra.mxu0 %v8378
  %v8415 = vpop.f32.mrf.mxu0
  %v8416 = vadd.f32 0.0, %v8415
  %v8417 = vpop.f32.mrf.mxu0
  %8418 = vdwg.mxu0
  %8419 = vmatpush.bf16.msra.mxu0 %v5649
  %8420 = vmatpush.bf16.msra.mxu0 %v5643
  %8421 = vmatpush.bf16.msra.mxu0 %v5637
  %8422 = vmatpush.bf16.msra.mxu0 %v5631
  %8423 = vmatpush.bf16.msra.mxu0 %v5625
  %8424 = vmatpush.bf16.msra.mxu0 %v5619
  %8425 = vmatpush.bf16.msra.mxu0 %v5613
  %8426 = vmatpush.bf16.msra.mxu0 %v5607
  %8427 = vmatmul.bf16.gmra.mxu0 %v8379
  %v8428 = vpop.f32.mrf.mxu0
  %v8429 = vadd.f32 %v8416, %v8428
  %v8430 = vpop.f32.mrf.mxu0
  %8431 = vdwg.mxu0
  %8432 = vmatpush.bf16.msra.mxu0 %v5602
  %8433 = vmatpush.bf16.msra.mxu0 %v5596
  %8434 = vmatpush.bf16.msra.mxu0 %v5590
  %8435 = vmatpush.bf16.msra.mxu0 %v5584
  %8436 = vmatpush.bf16.msra.mxu0 %v5578
  %8437 = vmatpush.bf16.msra.mxu0 %v5572
  %8438 = vmatpush.bf16.msra.mxu0 %v5566
  %8439 = vmatpush.bf16.msra.mxu0 %v5560
  %8440 = vmatmul.bf16.gmra.mxu0 %v8378
  %v8441 = vpop.f32.mrf.mxu0
  %v8442 = vadd.f32 0.0, %v8441
  %v8443 = vpop.f32.mrf.mxu0
  %8444 = vdwg.mxu0
  %8445 = vmatpush.bf16.msra.mxu0 %v5650
  %8446 = vmatpush.bf16.msra.mxu0 %v5644
  %8447 = vmatpush.bf16.msra.mxu0 %v5638
  %8448 = vmatpush.bf16.msra.mxu0 %v5632
  %8449 = vmatpush.bf16.msra.mxu0 %v5626
  %8450 = vmatpush.bf16.msra.mxu0 %v5620
  %8451 = vmatpush.bf16.msra.mxu0 %v5614
  %8452 = vmatpush.bf16.msra.mxu0 %v5608
  %8453 = vmatmul.bf16.gmra.mxu0 %v8379
  %v8454 = vpop.f32.mrf.mxu0
  %v8455 = vadd.f32 %v8442, %v8454
  %v8456 = vpop.f32.mrf.mxu0
  %8457 = vdwg.mxu0
  %8458 = vmatpush.bf16.msra.mxu0 %v5603
  %8459 = vmatpush.bf16.msra.mxu0 %v5597
  %8460 = vmatpush.bf16.msra.mxu0 %v5591
  %8461 = vmatpush.bf16.msra.mxu0 %v5585
  %8462 = vmatpush.bf16.msra.mxu0 %v5579
  %8463 = vmatpush.bf16.msra.mxu0 %v5573
  %8464 = vmatpush.bf16.msra.mxu0 %v5567
  %8465 = vmatpush.bf16.msra.mxu0 %v5561
  %8466 = vmatmul.bf16.gmra.mxu0 %v8378
  %v8467 = vpop.f32.mrf.mxu0
  %v8468 = vadd.f32 0.0, %v8467
  %v8469 = vpop.f32.mrf.mxu0
  %8470 = vdwg.mxu0
  %8471 = vmatpush.bf16.msra.mxu0 %v5651
  %8472 = vmatpush.bf16.msra.mxu0 %v5645
  %8473 = vmatpush.bf16.msra.mxu0 %v5639
  %8474 = vmatpush.bf16.msra.mxu0 %v5633
  %8475 = vmatpush.bf16.msra.mxu0 %v5627
  %8476 = vmatpush.bf16.msra.mxu0 %v5621
  %8477 = vmatpush.bf16.msra.mxu0 %v5615
  %8478 = vmatpush.bf16.msra.mxu0 %v5609
  %8479 = vmatmul.bf16.gmra.mxu0 %v8379
  %v8480 = vpop.f32.mrf.mxu0
  %v8481 = vadd.f32 %v8468, %v8480
  %v8482 = vpop.f32.mrf.mxu0
  %8483 = vdwg.mxu0
  %8484 = vmatpush.bf16.msra.mxu0 %v5604
  %8485 = vmatpush.bf16.msra.mxu0 %v5598
  %8486 = vmatpush.bf16.msra.mxu0 %v5592
  %8487 = vmatpush.bf16.msra.mxu0 %v5586
  %8488 = vmatpush.bf16.msra.mxu0 %v5580
  %8489 = vmatpush.bf16.msra.mxu0 %v5574
  %8490 = vmatpush.bf16.msra.mxu0 %v5568
  %8491 = vmatpush.bf16.msra.mxu0 %v5562
  %8492 = vmatmul.bf16.gmra.mxu0 %v8378
  %v8493 = vpop.f32.mrf.mxu0
  %v8494 = vadd.f32 0.0, %v8493
  %v8495 = vpop.f32.mrf.mxu0
  %8496 = vdwg.mxu0
  %8497 = vmatpush.bf16.msra.mxu0 %v5652
  %8498 = vmatpush.bf16.msra.mxu0 %v5646
  %8499 = vmatpush.bf16.msra.mxu0 %v5640
  %8500 = vmatpush.bf16.msra.mxu0 %v5634
  %8501 = vmatpush.bf16.msra.mxu0 %v5628
  %8502 = vmatpush.bf16.msra.mxu0 %v5622
  %8503 = vmatpush.bf16.msra.mxu0 %v5616
  %8504 = vmatpush.bf16.msra.mxu0 %v5610
  %8505 = vmatmul.bf16.gmra.mxu0 %v8379
  %v8506 = vpop.f32.mrf.mxu0
  %v8507 = vadd.f32 %v8494, %v8506
  %v8508 = vpop.f32.mrf.mxu0
  %8509 = vdwg.mxu0
  %8510 = vmatpush.bf16.msra.mxu0 %v5605
  %8511 = vmatpush.bf16.msra.mxu0 %v5599
  %8512 = vmatpush.bf16.msra.mxu0 %v5593
  %8513 = vmatpush.bf16.msra.mxu0 %v5587
  %8514 = vmatpush.bf16.msra.mxu0 %v5581
  %8515 = vmatpush.bf16.msra.mxu0 %v5575
  %8516 = vmatpush.bf16.msra.mxu0 %v5569
  %8517 = vmatpush.bf16.msra.mxu0 %v5563
  %8518 = vmatmul.bf16.gmra.mxu0 %v8378
  %v8519 = vpop.f32.mrf.mxu0
  %v8520 = vadd.f32 0.0, %v8519
  %v8521 = vpop.f32.mrf.mxu0
  %8522 = vdwg.mxu0
  %8523 = vmatpush.bf16.msra.mxu0 %v5653
  %8524 = vmatpush.bf16.msra.mxu0 %v5647
  %8525 = vmatpush.bf16.msra.mxu0 %v5641
  %8526 = vmatpush.bf16.msra.mxu0 %v5635
  %8527 = vmatpush.bf16.msra.mxu0 %v5629
  %8528 = vmatpush.bf16.msra.mxu0 %v5623
  %8529 = vmatpush.bf16.msra.mxu0 %v5617
  %8530 = vmatpush.bf16.msra.mxu0 %v5611
  %8531 = vmatmul.bf16.gmra.mxu0 %v8379
  %v8532 = vpop.f32.mrf.mxu0
  %v8533 = vadd.f32 %v8520, %v8532
  %v8534 = vpop.f32.mrf.mxu0
  %8535 = vdwg.mxu0
  %v8536 = vadd.f32 %v8205, %v8245
  %v8537 = vadd.f32 %v8206, %v8271
  %v8538 = vxor.u32 %v8536, 2147483648
  %v8539 = vxor.u32 %v8537, 2147483648
  %v8540 = vmul.f32 %v8538, 1.442695
  %v8541 = vpow.pop %v8540
  %v8542 = vmul.f32 %v8539, 1.442695
  %v8543 = vpow.pop %v8542
  %v8544 = vadd.f32 %v8541, 1.0
  %v8545 = vadd.f32 %v8543, 1.0
  %v8546 = vrcp.pop %v8544
  %v8547 = vmul.f32 %v8544, %v8546
  %v8548 = vsub.f32 1.0, %v8547
  %v8549 = vmul.f32 %v8546, %v8548
  %v8550 = vadd.f32 %v8546, %v8549
  %vm8551 = vweird.f32 %v8544
  %vm8552 = vweird.f32 %v8546
  %vm8553 = vmor %vm8551, %vm8552
  %v8554 = vsel %vm8553, %v8546, %v8550
  %v8555 = vand.u32 2147483647, %v8544
  %vm8556 = vcmp.eq.f32.partialorder %v8555, 8.507059e+37
  %v8557 = vand.u32 %v8544, 2147483648
  %v8558 = vor.u32 1.1754944e-38, %v8557
  %v8559 = vsel %vm8556, %v8558, %v8554
  %v8560 = vmul.f32 1.0, %v8559
  %v8561 = vrcp.pop %v8545
  %v8562 = vmul.f32 %v8545, %v8561
  %v8563 = vsub.f32 1.0, %v8562
  %v8564 = vmul.f32 %v8561, %v8563
  %v8565 = vadd.f32 %v8561, %v8564
  %vm8566 = vweird.f32 %v8545
  %vm8567 = vweird.f32 %v8561
  %vm8568 = vmor %vm8566, %vm8567
  %v8569 = vsel %vm8568, %v8561, %v8565
  %v8570 = vand.u32 2147483647, %v8545
  %vm8571 = vcmp.eq.f32.partialorder %v8570, 8.507059e+37
  %v8572 = vand.u32 %v8545, 2147483648
  %v8573 = vor.u32 1.1754944e-38, %v8572
  %v8574 = vsel %vm8571, %v8573, %v8569
  %v8575 = vmul.f32 1.0, %v8574
  %v8576 = vadd.f32 %v8207, %v8297
  %v8577 = vadd.f32 %v8208, %v8323
  %v8578 = vxor.u32 %v8576, 2147483648
  %v8579 = vxor.u32 %v8577, 2147483648
  %v8580 = vmul.f32 %v8578, 1.442695
  %v8581 = vpow.pop %v8580
  %v8582 = vmul.f32 %v8579, 1.442695
  %v8583 = vpow.pop %v8582
  %v8584 = vadd.f32 %v8581, 1.0
  %v8585 = vadd.f32 %v8583, 1.0
  %v8586 = vrcp.pop %v8584
  %v8587 = vmul.f32 %v8584, %v8586
  %v8588 = vsub.f32 1.0, %v8587
  %v8589 = vmul.f32 %v8586, %v8588
  %v8590 = vadd.f32 %v8586, %v8589
  %vm8591 = vweird.f32 %v8584
  %vm8592 = vweird.f32 %v8586
  %vm8593 = vmor %vm8591, %vm8592
  %v8594 = vsel %vm8593, %v8586, %v8590
  %v8595 = vand.u32 2147483647, %v8584
  %vm8596 = vcmp.eq.f32.partialorder %v8595, 8.507059e+37
  %v8597 = vand.u32 %v8584, 2147483648
  %v8598 = vor.u32 1.1754944e-38, %v8597
  %v8599 = vsel %vm8596, %v8598, %v8594
  %v8600 = vmul.f32 1.0, %v8599
  %v8601 = vrcp.pop %v8585
  %v8602 = vmul.f32 %v8585, %v8601
  %v8603 = vsub.f32 1.0, %v8602
  %v8604 = vmul.f32 %v8601, %v8603
  %v8605 = vadd.f32 %v8601, %v8604
  %vm8606 = vweird.f32 %v8585
  %vm8607 = vweird.f32 %v8601
  %vm8608 = vmor %vm8606, %vm8607
  %v8609 = vsel %vm8608, %v8601, %v8605
  %v8610 = vand.u32 2147483647, %v8585
  %vm8611 = vcmp.eq.f32.partialorder %v8610, 8.507059e+37
  %v8612 = vand.u32 %v8585, 2147483648
  %v8613 = vor.u32 1.1754944e-38, %v8612
  %v8614 = vsel %vm8611, %v8613, %v8609
  %v8615 = vmul.f32 1.0, %v8614
  %v8616 = vadd.f32 %v8349, %v4606
  %v8617 = vadd.f32 %v8375, %v4607
  %v8618 = vmul.f32 %v8560, %v8616
  %v8619 = vmul.f32 %v8575, %v8617
  %v8620 = vadd.f32 %v8209, %v8618
  %v8621 = vadd.f32 %v8210, %v8619
  %v8622 = vtanh.pop %v8620
  %v8623 = vtanh.pop %v8621
  %v8624 = vadd.f32 %v8214, %v8403
  %v8625 = vadd.f32 %v8215, %v8429
  %v8626 = vxor.u32 %v8624, 2147483648
  %v8627 = vxor.u32 %v8625, 2147483648
  %v8628 = vmul.f32 %v8626, 1.442695
  %v8629 = vpow.pop %v8628
  %v8630 = vmul.f32 %v8627, 1.442695
  %v8631 = vpow.pop %v8630
  %v8632 = vadd.f32 %v8629, 1.0
  %v8633 = vadd.f32 %v8631, 1.0
  %v8634 = vrcp.pop %v8632
  %v8635 = vmul.f32 %v8632, %v8634
  %v8636 = vsub.f32 1.0, %v8635
  %v8637 = vmul.f32 %v8634, %v8636
  %v8638 = vadd.f32 %v8634, %v8637
  %vm8639 = vweird.f32 %v8632
  %vm8640 = vweird.f32 %v8634
  %vm8641 = vmor %vm8639, %vm8640
  %v8642 = vsel %vm8641, %v8634, %v8638
  %v8643 = vand.u32 2147483647, %v8632
  %vm8644 = vcmp.eq.f32.partialorder %v8643, 8.507059e+37
  %v8645 = vand.u32 %v8632, 2147483648
  %v8646 = vor.u32 1.1754944e-38, %v8645
  %v8647 = vsel %vm8644, %v8646, %v8642
  %v8648 = vmul.f32 1.0, %v8647
  %v8649 = vrcp.pop %v8633
  %v8650 = vmul.f32 %v8633, %v8649
  %v8651 = vsub.f32 1.0, %v8650
  %v8652 = vmul.f32 %v8649, %v8651
  %v8653 = vadd.f32 %v8649, %v8652
  %vm8654 = vweird.f32 %v8633
  %vm8655 = vweird.f32 %v8649
  %vm8656 = vmor %vm8654, %vm8655
  %v8657 = vsel %vm8656, %v8649, %v8653
  %v8658 = vand.u32 2147483647, %v8633
  %vm8659 = vcmp.eq.f32.partialorder %v8658, 8.507059e+37
  %v8660 = vand.u32 %v8633, 2147483648
  %v8661 = vor.u32 1.1754944e-38, %v8660
  %v8662 = vsel %vm8659, %v8661, %v8657
  %v8663 = vmul.f32 1.0, %v8662
  %v8664 = vadd.f32 %v8216, %v8455
  %v8665 = vadd.f32 %v8217, %v8481
  %v8666 = vxor.u32 %v8664, 2147483648
  %v8667 = vxor.u32 %v8665, 2147483648
  %v8668 = vmul.f32 %v8666, 1.442695
  %v8669 = vpow.pop %v8668
  %v8670 = vmul.f32 %v8667, 1.442695
  %v8671 = vpow.pop %v8670
  %v8672 = vadd.f32 %v8669, 1.0
  %v8673 = vadd.f32 %v8671, 1.0
  %v8674 = vrcp.pop %v8672
  %v8675 = vmul.f32 %v8672, %v8674
  %v8676 = vsub.f32 1.0, %v8675
  %v8677 = vmul.f32 %v8674, %v8676
  %v8678 = vadd.f32 %v8674, %v8677
  %vm8679 = vweird.f32 %v8672
  %vm8680 = vweird.f32 %v8674
  %vm8681 = vmor %vm8679, %vm8680
  %v8682 = vsel %vm8681, %v8674, %v8678
  %v8683 = vand.u32 2147483647, %v8672
  %vm8684 = vcmp.eq.f32.partialorder %v8683, 8.507059e+37
  %v8685 = vand.u32 %v8672, 2147483648
  %v8686 = vor.u32 1.1754944e-38, %v8685
  %v8687 = vsel %vm8684, %v8686, %v8682
  %v8688 = vmul.f32 1.0, %v8687
  %v8689 = vrcp.pop %v8673
  %v8690 = vmul.f32 %v8673, %v8689
  %v8691 = vsub.f32 1.0, %v8690
  %v8692 = vmul.f32 %v8689, %v8691
  %v8693 = vadd.f32 %v8689, %v8692
  %vm8694 = vweird.f32 %v8673
  %vm8695 = vweird.f32 %v8689
  %vm8696 = vmor %vm8694, %vm8695
  %v8697 = vsel %vm8696, %v8689, %v8693
  %v8698 = vand.u32 2147483647, %v8673
  %vm8699 = vcmp.eq.f32.partialorder %v8698, 8.507059e+37
  %v8700 = vand.u32 %v8673, 2147483648
  %v8701 = vor.u32 1.1754944e-38, %v8700
  %v8702 = vsel %vm8699, %v8701, %v8697
  %v8703 = vmul.f32 1.0, %v8702
  %v8704 = vadd.f32 %v8507, %v4612
  %v8705 = vadd.f32 %v8533, %v4613
  %v8706 = vmul.f32 %v8648, %v8704
  %v8707 = vmul.f32 %v8663, %v8705
  %v8708 = vadd.f32 %v8218, %v8706
  %v8709 = vadd.f32 %v8219, %v8707
  %v8710 = vtanh.pop %v8708
  %v8711 = vtanh.pop %v8709
  %v8712 = vsub.f32 1.0, %v8600
  %v8713 = vsub.f32 1.0, %v8615
  %v8714 = vmul.f32 %v8712, %v8622
  %v8715 = vmul.f32 %v8713, %v8623
  %v8716 = vmul.f32 %v8600, %v8192
  %v8717 = vmul.f32 %v8615, %v8193
  %v8718 = vadd.f32 %v8714, %v8716
  %v8719 = vadd.f32 %v8715, %v8717
  %v8720 = vsub.f32 1.0, %v8688
  %v8721 = vsub.f32 1.0, %v8703
  %v8722 = vmul.f32 %v8720, %v8710
  %v8723 = vmul.f32 %v8721, %v8711
  %v8724 = vmul.f32 %v8688, %v8200
  %v8725 = vmul.f32 %v8703, %v8201
  %v8726 = vadd.f32 %v8722, %v8724
  %v8727 = vadd.f32 %v8723, %v8725
  %v8728 = vld [vmem:[#allocation2 + $0x120] sm:$0xff]
  %v8729 = vld [vmem:[#allocation2 + $0x128] sm:$0xff]
  %v8730 = vld [vmem:[#allocation2 + $0x130] sm:$0xff]
  %v8731 = vunpack.c.l.bf16 %v8728
  %v8732 = vunpack.c.h.bf16 %v8728
  %v8733 = vunpack.c.l.bf16 %v8729
  %v8734 = vunpack.c.h.bf16 %v8729
  %v8735 = vunpack.c.l.bf16 %v8730
  %v8736 = vunpack.c.h.bf16 %v8730
  %v8737 = vld [vmem:[#allocation2 + $0x48] sm:$0xff]
  %v8738 = vld [vmem:[#allocation2 + $0x50] sm:$0xff]
  %v8739 = vld [vmem:[#allocation2 + $0x58] sm:$0xff]
  %v8740 = vunpack.c.l.bf16 %v8737
  %v8741 = vunpack.c.h.bf16 %v8737
  %v8742 = vunpack.c.l.bf16 %v8738
  %v8743 = vunpack.c.h.bf16 %v8738
  %v8744 = vunpack.c.l.bf16 %v8739
  %v8745 = vunpack.c.h.bf16 %v8739
  %v8746 = vpack.c.bf16 %v8718, %v8718
  %v8747 = vpack.c.bf16 %v8719, %v8719
  %8748 = vmatpush.bf16.msra.mxu0 %v4964
  %8749 = vmatpush.bf16.msra.mxu0 %v4958
  %8750 = vmatpush.bf16.msra.mxu0 %v4952
  %8751 = vmatpush.bf16.msra.mxu0 %v4946
  %8752 = vmatpush.bf16.msra.mxu0 %v4940
  %8753 = vmatpush.bf16.msra.mxu0 %v4934
  %8754 = vmatpush.bf16.msra.mxu0 %v4928
  %8755 = vmatpush.bf16.msra.mxu0 %v4922
  %8756 = vmatmul.bf16.gmra.mxu0 %v8746
  %v8757 = vpop.f32.mrf.mxu0
  %v8758 = vadd.f32 0.0, %v8757
  %v8759 = vpop.f32.mrf.mxu0
  %8760 = vdwg.mxu0
  %8761 = vmatpush.bf16.msra.mxu0 %v5012
  %8762 = vmatpush.bf16.msra.mxu0 %v5006
  %8763 = vmatpush.bf16.msra.mxu0 %v5000
  %8764 = vmatpush.bf16.msra.mxu0 %v4994
  %8765 = vmatpush.bf16.msra.mxu0 %v4988
  %8766 = vmatpush.bf16.msra.mxu0 %v4982
  %8767 = vmatpush.bf16.msra.mxu0 %v4976
  %8768 = vmatpush.bf16.msra.mxu0 %v4970
  %8769 = vmatmul.bf16.gmra.mxu0 %v8747
  %v8770 = vpop.f32.mrf.mxu0
  %v8771 = vadd.f32 %v8758, %v8770
  %v8772 = vpop.f32.mrf.mxu0
  %8773 = vdwg.mxu0
  %8774 = vmatpush.bf16.msra.mxu0 %v4965
  %8775 = vmatpush.bf16.msra.mxu0 %v4959
  %8776 = vmatpush.bf16.msra.mxu0 %v4953
  %8777 = vmatpush.bf16.msra.mxu0 %v4947
  %8778 = vmatpush.bf16.msra.mxu0 %v4941
  %8779 = vmatpush.bf16.msra.mxu0 %v4935
  %8780 = vmatpush.bf16.msra.mxu0 %v4929
  %8781 = vmatpush.bf16.msra.mxu0 %v4923
  %8782 = vmatmul.bf16.gmra.mxu0 %v8746
  %v8783 = vpop.f32.mrf.mxu0
  %v8784 = vadd.f32 0.0, %v8783
  %v8785 = vpop.f32.mrf.mxu0
  %8786 = vdwg.mxu0
  %8787 = vmatpush.bf16.msra.mxu0 %v5013
  %8788 = vmatpush.bf16.msra.mxu0 %v5007
  %8789 = vmatpush.bf16.msra.mxu0 %v5001
  %8790 = vmatpush.bf16.msra.mxu0 %v4995
  %8791 = vmatpush.bf16.msra.mxu0 %v4989
  %8792 = vmatpush.bf16.msra.mxu0 %v4983
  %8793 = vmatpush.bf16.msra.mxu0 %v4977
  %8794 = vmatpush.bf16.msra.mxu0 %v4971
  %8795 = vmatmul.bf16.gmra.mxu0 %v8747
  %v8796 = vpop.f32.mrf.mxu0
  %v8797 = vadd.f32 %v8784, %v8796
  %v8798 = vpop.f32.mrf.mxu0
  %8799 = vdwg.mxu0
  %8800 = vmatpush.bf16.msra.mxu0 %v4966
  %8801 = vmatpush.bf16.msra.mxu0 %v4960
  %8802 = vmatpush.bf16.msra.mxu0 %v4954
  %8803 = vmatpush.bf16.msra.mxu0 %v4948
  %8804 = vmatpush.bf16.msra.mxu0 %v4942
  %8805 = vmatpush.bf16.msra.mxu0 %v4936
  %8806 = vmatpush.bf16.msra.mxu0 %v4930
  %8807 = vmatpush.bf16.msra.mxu0 %v4924
  %8808 = vmatmul.bf16.gmra.mxu0 %v8746
  %v8809 = vpop.f32.mrf.mxu0
  %v8810 = vadd.f32 0.0, %v8809
  %v8811 = vpop.f32.mrf.mxu0
  %8812 = vdwg.mxu0
  %8813 = vmatpush.bf16.msra.mxu0 %v5014
  %8814 = vmatpush.bf16.msra.mxu0 %v5008
  %8815 = vmatpush.bf16.msra.mxu0 %v5002
  %8816 = vmatpush.bf16.msra.mxu0 %v4996
  %8817 = vmatpush.bf16.msra.mxu0 %v4990
  %8818 = vmatpush.bf16.msra.mxu0 %v4984
  %8819 = vmatpush.bf16.msra.mxu0 %v4978
  %8820 = vmatpush.bf16.msra.mxu0 %v4972
  %8821 = vmatmul.bf16.gmra.mxu0 %v8747
  %v8822 = vpop.f32.mrf.mxu0
  %v8823 = vadd.f32 %v8810, %v8822
  %v8824 = vpop.f32.mrf.mxu0
  %8825 = vdwg.mxu0
  %8826 = vmatpush.bf16.msra.mxu0 %v4967
  %8827 = vmatpush.bf16.msra.mxu0 %v4961
  %8828 = vmatpush.bf16.msra.mxu0 %v4955
  %8829 = vmatpush.bf16.msra.mxu0 %v4949
  %8830 = vmatpush.bf16.msra.mxu0 %v4943
  %8831 = vmatpush.bf16.msra.mxu0 %v4937
  %8832 = vmatpush.bf16.msra.mxu0 %v4931
  %8833 = vmatpush.bf16.msra.mxu0 %v4925
  %8834 = vmatmul.bf16.gmra.mxu0 %v8746
  %v8835 = vpop.f32.mrf.mxu0
  %v8836 = vadd.f32 0.0, %v8835
  %v8837 = vpop.f32.mrf.mxu0
  %8838 = vdwg.mxu0
  %8839 = vmatpush.bf16.msra.mxu0 %v5015
  %8840 = vmatpush.bf16.msra.mxu0 %v5009
  %8841 = vmatpush.bf16.msra.mxu0 %v5003
  %8842 = vmatpush.bf16.msra.mxu0 %v4997
  %8843 = vmatpush.bf16.msra.mxu0 %v4991
  %8844 = vmatpush.bf16.msra.mxu0 %v4985
  %8845 = vmatpush.bf16.msra.mxu0 %v4979
  %8846 = vmatpush.bf16.msra.mxu0 %v4973
  %8847 = vmatmul.bf16.gmra.mxu0 %v8747
  %v8848 = vpop.f32.mrf.mxu0
  %v8849 = vadd.f32 %v8836, %v8848
  %v8850 = vpop.f32.mrf.mxu0
  %8851 = vdwg.mxu0
  %8852 = vmatpush.bf16.msra.mxu0 %v4968
  %8853 = vmatpush.bf16.msra.mxu0 %v4962
  %8854 = vmatpush.bf16.msra.mxu0 %v4956
  %8855 = vmatpush.bf16.msra.mxu0 %v4950
  %8856 = vmatpush.bf16.msra.mxu0 %v4944
  %8857 = vmatpush.bf16.msra.mxu0 %v4938
  %8858 = vmatpush.bf16.msra.mxu0 %v4932
  %8859 = vmatpush.bf16.msra.mxu0 %v4926
  %8860 = vmatmul.bf16.gmra.mxu0 %v8746
  %v8861 = vpop.f32.mrf.mxu0
  %v8862 = vadd.f32 0.0, %v8861
  %v8863 = vpop.f32.mrf.mxu0
  %8864 = vdwg.mxu0
  %8865 = vmatpush.bf16.msra.mxu0 %v5016
  %8866 = vmatpush.bf16.msra.mxu0 %v5010
  %8867 = vmatpush.bf16.msra.mxu0 %v5004
  %8868 = vmatpush.bf16.msra.mxu0 %v4998
  %8869 = vmatpush.bf16.msra.mxu0 %v4992
  %8870 = vmatpush.bf16.msra.mxu0 %v4986
  %8871 = vmatpush.bf16.msra.mxu0 %v4980
  %8872 = vmatpush.bf16.msra.mxu0 %v4974
  %8873 = vmatmul.bf16.gmra.mxu0 %v8747
  %v8874 = vpop.f32.mrf.mxu0
  %v8875 = vadd.f32 %v8862, %v8874
  %v8876 = vpop.f32.mrf.mxu0
  %8877 = vdwg.mxu0
  %8878 = vmatpush.bf16.msra.mxu0 %v4969
  %8879 = vmatpush.bf16.msra.mxu0 %v4963
  %8880 = vmatpush.bf16.msra.mxu0 %v4957
  %8881 = vmatpush.bf16.msra.mxu0 %v4951
  %8882 = vmatpush.bf16.msra.mxu0 %v4945
  %8883 = vmatpush.bf16.msra.mxu0 %v4939
  %8884 = vmatpush.bf16.msra.mxu0 %v4933
  %8885 = vmatpush.bf16.msra.mxu0 %v4927
  %8886 = vmatmul.bf16.gmra.mxu0 %v8746
  %v8887 = vpop.f32.mrf.mxu0
  %v8888 = vadd.f32 0.0, %v8887
  %v8889 = vpop.f32.mrf.mxu0
  %8890 = vdwg.mxu0
  %8891 = vmatpush.bf16.msra.mxu0 %v5017
  %8892 = vmatpush.bf16.msra.mxu0 %v5011
  %8893 = vmatpush.bf16.msra.mxu0 %v5005
  %8894 = vmatpush.bf16.msra.mxu0 %v4999
  %8895 = vmatpush.bf16.msra.mxu0 %v4993
  %8896 = vmatpush.bf16.msra.mxu0 %v4987
  %8897 = vmatpush.bf16.msra.mxu0 %v4981
  %8898 = vmatpush.bf16.msra.mxu0 %v4975
  %8899 = vmatmul.bf16.gmra.mxu0 %v8747
  %v8900 = vpop.f32.mrf.mxu0
  %v8901 = vadd.f32 %v8888, %v8900
  %v8902 = vpop.f32.mrf.mxu0
  %8903 = vdwg.mxu0
  %v8904 = vpack.c.bf16 %v8726, %v8726
  %v8905 = vpack.c.bf16 %v8727, %v8727
  %8906 = vmatpush.bf16.msra.mxu0 %v5600
  %8907 = vmatpush.bf16.msra.mxu0 %v5594
  %8908 = vmatpush.bf16.msra.mxu0 %v5588
  %8909 = vmatpush.bf16.msra.mxu0 %v5582
  %8910 = vmatpush.bf16.msra.mxu0 %v5576
  %8911 = vmatpush.bf16.msra.mxu0 %v5570
  %8912 = vmatpush.bf16.msra.mxu0 %v5564
  %8913 = vmatpush.bf16.msra.mxu0 %v5558
  %8914 = vmatmul.bf16.gmra.mxu0 %v8904
  %v8915 = vpop.f32.mrf.mxu0
  %v8916 = vadd.f32 0.0, %v8915
  %v8917 = vpop.f32.mrf.mxu0
  %8918 = vdwg.mxu0
  %8919 = vmatpush.bf16.msra.mxu0 %v5648
  %8920 = vmatpush.bf16.msra.mxu0 %v5642
  %8921 = vmatpush.bf16.msra.mxu0 %v5636
  %8922 = vmatpush.bf16.msra.mxu0 %v5630
  %8923 = vmatpush.bf16.msra.mxu0 %v5624
  %8924 = vmatpush.bf16.msra.mxu0 %v5618
  %8925 = vmatpush.bf16.msra.mxu0 %v5612
  %8926 = vmatpush.bf16.msra.mxu0 %v5606
  %8927 = vmatmul.bf16.gmra.mxu0 %v8905
  %v8928 = vpop.f32.mrf.mxu0
  %v8929 = vadd.f32 %v8916, %v8928
  %v8930 = vpop.f32.mrf.mxu0
  %8931 = vdwg.mxu0
  %8932 = vmatpush.bf16.msra.mxu0 %v5601
  %8933 = vmatpush.bf16.msra.mxu0 %v5595
  %8934 = vmatpush.bf16.msra.mxu0 %v5589
  %8935 = vmatpush.bf16.msra.mxu0 %v5583
  %8936 = vmatpush.bf16.msra.mxu0 %v5577
  %8937 = vmatpush.bf16.msra.mxu0 %v5571
  %8938 = vmatpush.bf16.msra.mxu0 %v5565
  %8939 = vmatpush.bf16.msra.mxu0 %v5559
  %8940 = vmatmul.bf16.gmra.mxu0 %v8904
  %v8941 = vpop.f32.mrf.mxu0
  %v8942 = vadd.f32 0.0, %v8941
  %v8943 = vpop.f32.mrf.mxu0
  %8944 = vdwg.mxu0
  %8945 = vmatpush.bf16.msra.mxu0 %v5649
  %8946 = vmatpush.bf16.msra.mxu0 %v5643
  %8947 = vmatpush.bf16.msra.mxu0 %v5637
  %8948 = vmatpush.bf16.msra.mxu0 %v5631
  %8949 = vmatpush.bf16.msra.mxu0 %v5625
  %8950 = vmatpush.bf16.msra.mxu0 %v5619
  %8951 = vmatpush.bf16.msra.mxu0 %v5613
  %8952 = vmatpush.bf16.msra.mxu0 %v5607
  %8953 = vmatmul.bf16.gmra.mxu0 %v8905
  %v8954 = vpop.f32.mrf.mxu0
  %v8955 = vadd.f32 %v8942, %v8954
  %v8956 = vpop.f32.mrf.mxu0
  %8957 = vdwg.mxu0
  %8958 = vmatpush.bf16.msra.mxu0 %v5602
  %8959 = vmatpush.bf16.msra.mxu0 %v5596
  %8960 = vmatpush.bf16.msra.mxu0 %v5590
  %8961 = vmatpush.bf16.msra.mxu0 %v5584
  %8962 = vmatpush.bf16.msra.mxu0 %v5578
  %8963 = vmatpush.bf16.msra.mxu0 %v5572
  %8964 = vmatpush.bf16.msra.mxu0 %v5566
  %8965 = vmatpush.bf16.msra.mxu0 %v5560
  %8966 = vmatmul.bf16.gmra.mxu0 %v8904
  %v8967 = vpop.f32.mrf.mxu0
  %v8968 = vadd.f32 0.0, %v8967
  %v8969 = vpop.f32.mrf.mxu0
  %8970 = vdwg.mxu0
  %8971 = vmatpush.bf16.msra.mxu0 %v5650
  %8972 = vmatpush.bf16.msra.mxu0 %v5644
  %8973 = vmatpush.bf16.msra.mxu0 %v5638
  %8974 = vmatpush.bf16.msra.mxu0 %v5632
  %8975 = vmatpush.bf16.msra.mxu0 %v5626
  %8976 = vmatpush.bf16.msra.mxu0 %v5620
  %8977 = vmatpush.bf16.msra.mxu0 %v5614
  %8978 = vmatpush.bf16.msra.mxu0 %v5608
  %8979 = vmatmul.bf16.gmra.mxu0 %v8905
  %v8980 = vpop.f32.mrf.mxu0
  %v8981 = vadd.f32 %v8968, %v8980
  %v8982 = vpop.f32.mrf.mxu0
  %8983 = vdwg.mxu0
  %8984 = vmatpush.bf16.msra.mxu0 %v5603
  %8985 = vmatpush.bf16.msra.mxu0 %v5597
  %8986 = vmatpush.bf16.msra.mxu0 %v5591
  %8987 = vmatpush.bf16.msra.mxu0 %v5585
  %8988 = vmatpush.bf16.msra.mxu0 %v5579
  %8989 = vmatpush.bf16.msra.mxu0 %v5573
  %8990 = vmatpush.bf16.msra.mxu0 %v5567
  %8991 = vmatpush.bf16.msra.mxu0 %v5561
  %8992 = vmatmul.bf16.gmra.mxu0 %v8904
  %v8993 = vpop.f32.mrf.mxu0
  %v8994 = vadd.f32 0.0, %v8993
  %v8995 = vpop.f32.mrf.mxu0
  %8996 = vdwg.mxu0
  %8997 = vmatpush.bf16.msra.mxu0 %v5651
  %8998 = vmatpush.bf16.msra.mxu0 %v5645
  %8999 = vmatpush.bf16.msra.mxu0 %v5639
  %9000 = vmatpush.bf16.msra.mxu0 %v5633
  %9001 = vmatpush.bf16.msra.mxu0 %v5627
  %9002 = vmatpush.bf16.msra.mxu0 %v5621
  %9003 = vmatpush.bf16.msra.mxu0 %v5615
  %9004 = vmatpush.bf16.msra.mxu0 %v5609
  %9005 = vmatmul.bf16.gmra.mxu0 %v8905
  %v9006 = vpop.f32.mrf.mxu0
  %v9007 = vadd.f32 %v8994, %v9006
  %v9008 = vpop.f32.mrf.mxu0
  %9009 = vdwg.mxu0
  %9010 = vmatpush.bf16.msra.mxu0 %v5604
  %9011 = vmatpush.bf16.msra.mxu0 %v5598
  %9012 = vmatpush.bf16.msra.mxu0 %v5592
  %9013 = vmatpush.bf16.msra.mxu0 %v5586
  %9014 = vmatpush.bf16.msra.mxu0 %v5580
  %9015 = vmatpush.bf16.msra.mxu0 %v5574
  %9016 = vmatpush.bf16.msra.mxu0 %v5568
  %9017 = vmatpush.bf16.msra.mxu0 %v5562
  %9018 = vmatmul.bf16.gmra.mxu0 %v8904
  %v9019 = vpop.f32.mrf.mxu0
  %v9020 = vadd.f32 0.0, %v9019
  %v9021 = vpop.f32.mrf.mxu0
  %9022 = vdwg.mxu0
  %9023 = vmatpush.bf16.msra.mxu0 %v5652
  %9024 = vmatpush.bf16.msra.mxu0 %v5646
  %9025 = vmatpush.bf16.msra.mxu0 %v5640
  %9026 = vmatpush.bf16.msra.mxu0 %v5634
  %9027 = vmatpush.bf16.msra.mxu0 %v5628
  %9028 = vmatpush.bf16.msra.mxu0 %v5622
  %9029 = vmatpush.bf16.msra.mxu0 %v5616
  %9030 = vmatpush.bf16.msra.mxu0 %v5610
  %9031 = vmatmul.bf16.gmra.mxu0 %v8905
  %v9032 = vpop.f32.mrf.mxu0
  %v9033 = vadd.f32 %v9020, %v9032
  %v9034 = vpop.f32.mrf.mxu0
  %9035 = vdwg.mxu0
  %9036 = vmatpush.bf16.msra.mxu0 %v5605
  %9037 = vmatpush.bf16.msra.mxu0 %v5599
  %9038 = vmatpush.bf16.msra.mxu0 %v5593
  %9039 = vmatpush.bf16.msra.mxu0 %v5587
  %9040 = vmatpush.bf16.msra.mxu0 %v5581
  %9041 = vmatpush.bf16.msra.mxu0 %v5575
  %9042 = vmatpush.bf16.msra.mxu0 %v5569
  %9043 = vmatpush.bf16.msra.mxu0 %v5563
  %9044 = vmatmul.bf16.gmra.mxu0 %v8904
  %v9045 = vpop.f32.mrf.mxu0
  %v9046 = vadd.f32 0.0, %v9045
  %v9047 = vpop.f32.mrf.mxu0
  %9048 = vdwg.mxu0
  %9049 = vmatpush.bf16.msra.mxu0 %v5653
  %9050 = vmatpush.bf16.msra.mxu0 %v5647
  %9051 = vmatpush.bf16.msra.mxu0 %v5641
  %9052 = vmatpush.bf16.msra.mxu0 %v5635
  %9053 = vmatpush.bf16.msra.mxu0 %v5629
  %9054 = vmatpush.bf16.msra.mxu0 %v5623
  %9055 = vmatpush.bf16.msra.mxu0 %v5617
  %9056 = vmatpush.bf16.msra.mxu0 %v5611
  %9057 = vmatmul.bf16.gmra.mxu0 %v8905
  %v9058 = vpop.f32.mrf.mxu0
  %v9059 = vadd.f32 %v9046, %v9058
  %v9060 = vpop.f32.mrf.mxu0
  %9061 = vdwg.mxu0
  %v9062 = vadd.f32 %v8731, %v8771
  %v9063 = vadd.f32 %v8732, %v8797
  %v9064 = vxor.u32 %v9062, 2147483648
  %v9065 = vxor.u32 %v9063, 2147483648
  %v9066 = vmul.f32 %v9064, 1.442695
  %v9067 = vpow.pop %v9066
  %v9068 = vmul.f32 %v9065, 1.442695
  %v9069 = vpow.pop %v9068
  %v9070 = vadd.f32 %v9067, 1.0
  %v9071 = vadd.f32 %v9069, 1.0
  %v9072 = vrcp.pop %v9070
  %v9073 = vmul.f32 %v9070, %v9072
  %v9074 = vsub.f32 1.0, %v9073
  %v9075 = vmul.f32 %v9072, %v9074
  %v9076 = vadd.f32 %v9072, %v9075
  %vm9077 = vweird.f32 %v9070
  %vm9078 = vweird.f32 %v9072
  %vm9079 = vmor %vm9077, %vm9078
  %v9080 = vsel %vm9079, %v9072, %v9076
  %v9081 = vand.u32 2147483647, %v9070
  %vm9082 = vcmp.eq.f32.partialorder %v9081, 8.507059e+37
  %v9083 = vand.u32 %v9070, 2147483648
  %v9084 = vor.u32 1.1754944e-38, %v9083
  %v9085 = vsel %vm9082, %v9084, %v9080
  %v9086 = vmul.f32 1.0, %v9085
  %v9087 = vrcp.pop %v9071
  %v9088 = vmul.f32 %v9071, %v9087
  %v9089 = vsub.f32 1.0, %v9088
  %v9090 = vmul.f32 %v9087, %v9089
  %v9091 = vadd.f32 %v9087, %v9090
  %vm9092 = vweird.f32 %v9071
  %vm9093 = vweird.f32 %v9087
  %vm9094 = vmor %vm9092, %vm9093
  %v9095 = vsel %vm9094, %v9087, %v9091
  %v9096 = vand.u32 2147483647, %v9071
  %vm9097 = vcmp.eq.f32.partialorder %v9096, 8.507059e+37
  %v9098 = vand.u32 %v9071, 2147483648
  %v9099 = vor.u32 1.1754944e-38, %v9098
  %v9100 = vsel %vm9097, %v9099, %v9095
  %v9101 = vmul.f32 1.0, %v9100
  %v9102 = vadd.f32 %v8733, %v8823
  %v9103 = vadd.f32 %v8734, %v8849
  %v9104 = vxor.u32 %v9102, 2147483648
  %v9105 = vxor.u32 %v9103, 2147483648
  %v9106 = vmul.f32 %v9104, 1.442695
  %v9107 = vpow.pop %v9106
  %v9108 = vmul.f32 %v9105, 1.442695
  %v9109 = vpow.pop %v9108
  %v9110 = vadd.f32 %v9107, 1.0
  %v9111 = vadd.f32 %v9109, 1.0
  %v9112 = vrcp.pop %v9110
  %v9113 = vmul.f32 %v9110, %v9112
  %v9114 = vsub.f32 1.0, %v9113
  %v9115 = vmul.f32 %v9112, %v9114
  %v9116 = vadd.f32 %v9112, %v9115
  %vm9117 = vweird.f32 %v9110
  %vm9118 = vweird.f32 %v9112
  %vm9119 = vmor %vm9117, %vm9118
  %v9120 = vsel %vm9119, %v9112, %v9116
  %v9121 = vand.u32 2147483647, %v9110
  %vm9122 = vcmp.eq.f32.partialorder %v9121, 8.507059e+37
  %v9123 = vand.u32 %v9110, 2147483648
  %v9124 = vor.u32 1.1754944e-38, %v9123
  %v9125 = vsel %vm9122, %v9124, %v9120
  %v9126 = vmul.f32 1.0, %v9125
  %v9127 = vrcp.pop %v9111
  %v9128 = vmul.f32 %v9111, %v9127
  %v9129 = vsub.f32 1.0, %v9128
  %v9130 = vmul.f32 %v9127, %v9129
  %v9131 = vadd.f32 %v9127, %v9130
  %vm9132 = vweird.f32 %v9111
  %vm9133 = vweird.f32 %v9127
  %vm9134 = vmor %vm9132, %vm9133
  %v9135 = vsel %vm9134, %v9127, %v9131
  %v9136 = vand.u32 2147483647, %v9111
  %vm9137 = vcmp.eq.f32.partialorder %v9136, 8.507059e+37
  %v9138 = vand.u32 %v9111, 2147483648
  %v9139 = vor.u32 1.1754944e-38, %v9138
  %v9140 = vsel %vm9137, %v9139, %v9135
  %v9141 = vmul.f32 1.0, %v9140
  %v9142 = vadd.f32 %v8875, %v4606
  %v9143 = vadd.f32 %v8901, %v4607
  %v9144 = vmul.f32 %v9086, %v9142
  %v9145 = vmul.f32 %v9101, %v9143
  %v9146 = vadd.f32 %v8735, %v9144
  %v9147 = vadd.f32 %v8736, %v9145
  %v9148 = vtanh.pop %v9146
  %v9149 = vtanh.pop %v9147
  %v9150 = vadd.f32 %v8740, %v8929
  %v9151 = vadd.f32 %v8741, %v8955
  %v9152 = vxor.u32 %v9150, 2147483648
  %v9153 = vxor.u32 %v9151, 2147483648
  %v9154 = vmul.f32 %v9152, 1.442695
  %v9155 = vpow.pop %v9154
  %v9156 = vmul.f32 %v9153, 1.442695
  %v9157 = vpow.pop %v9156
  %v9158 = vadd.f32 %v9155, 1.0
  %v9159 = vadd.f32 %v9157, 1.0
  %v9160 = vrcp.pop %v9158
  %v9161 = vmul.f32 %v9158, %v9160
  %v9162 = vsub.f32 1.0, %v9161
  %v9163 = vmul.f32 %v9160, %v9162
  %v9164 = vadd.f32 %v9160, %v9163
  %vm9165 = vweird.f32 %v9158
  %vm9166 = vweird.f32 %v9160
  %vm9167 = vmor %vm9165, %vm9166
  %v9168 = vsel %vm9167, %v9160, %v9164
  %v9169 = vand.u32 2147483647, %v9158
  %vm9170 = vcmp.eq.f32.partialorder %v9169, 8.507059e+37
  %v9171 = vand.u32 %v9158, 2147483648
  %v9172 = vor.u32 1.1754944e-38, %v9171
  %v9173 = vsel %vm9170, %v9172, %v9168
  %v9174 = vmul.f32 1.0, %v9173
  %v9175 = vrcp.pop %v9159
  %v9176 = vmul.f32 %v9159, %v9175
  %v9177 = vsub.f32 1.0, %v9176
  %v9178 = vmul.f32 %v9175, %v9177
  %v9179 = vadd.f32 %v9175, %v9178
  %vm9180 = vweird.f32 %v9159
  %vm9181 = vweird.f32 %v9175
  %vm9182 = vmor %vm9180, %vm9181
  %v9183 = vsel %vm9182, %v9175, %v9179
  %v9184 = vand.u32 2147483647, %v9159
  %vm9185 = vcmp.eq.f32.partialorder %v9184, 8.507059e+37
  %v9186 = vand.u32 %v9159, 2147483648
  %v9187 = vor.u32 1.1754944e-38, %v9186
  %v9188 = vsel %vm9185, %v9187, %v9183
  %v9189 = vmul.f32 1.0, %v9188
  %v9190 = vadd.f32 %v8742, %v8981
  %v9191 = vadd.f32 %v8743, %v9007
  %v9192 = vxor.u32 %v9190, 2147483648
  %v9193 = vxor.u32 %v9191, 2147483648
  %v9194 = vmul.f32 %v9192, 1.442695
  %v9195 = vpow.pop %v9194
  %v9196 = vmul.f32 %v9193, 1.442695
  %v9197 = vpow.pop %v9196
  %v9198 = vadd.f32 %v9195, 1.0
  %v9199 = vadd.f32 %v9197, 1.0
  %v9200 = vrcp.pop %v9198
  %v9201 = vmul.f32 %v9198, %v9200
  %v9202 = vsub.f32 1.0, %v9201
  %v9203 = vmul.f32 %v9200, %v9202
  %v9204 = vadd.f32 %v9200, %v9203
  %vm9205 = vweird.f32 %v9198
  %vm9206 = vweird.f32 %v9200
  %vm9207 = vmor %vm9205, %vm9206
  %v9208 = vsel %vm9207, %v9200, %v9204
  %v9209 = vand.u32 2147483647, %v9198
  %vm9210 = vcmp.eq.f32.partialorder %v9209, 8.507059e+37
  %v9211 = vand.u32 %v9198, 2147483648
  %v9212 = vor.u32 1.1754944e-38, %v9211
  %v9213 = vsel %vm9210, %v9212, %v9208
  %v9214 = vmul.f32 1.0, %v9213
  %v9215 = vrcp.pop %v9199
  %v9216 = vmul.f32 %v9199, %v9215
  %v9217 = vsub.f32 1.0, %v9216
  %v9218 = vmul.f32 %v9215, %v9217
  %v9219 = vadd.f32 %v9215, %v9218
  %vm9220 = vweird.f32 %v9199
  %vm9221 = vweird.f32 %v9215
  %vm9222 = vmor %vm9220, %vm9221
  %v9223 = vsel %vm9222, %v9215, %v9219
  %v9224 = vand.u32 2147483647, %v9199
  %vm9225 = vcmp.eq.f32.partialorder %v9224, 8.507059e+37
  %v9226 = vand.u32 %v9199, 2147483648
  %v9227 = vor.u32 1.1754944e-38, %v9226
  %v9228 = vsel %vm9225, %v9227, %v9223
  %v9229 = vmul.f32 1.0, %v9228
  %v9230 = vadd.f32 %v9033, %v4612
  %v9231 = vadd.f32 %v9059, %v4613
  %v9232 = vmul.f32 %v9174, %v9230
  %v9233 = vmul.f32 %v9189, %v9231
  %v9234 = vadd.f32 %v8744, %v9232
  %v9235 = vadd.f32 %v8745, %v9233
  %v9236 = vtanh.pop %v9234
  %v9237 = vtanh.pop %v9235
  %v9238 = vsub.f32 1.0, %v9126
  %v9239 = vsub.f32 1.0, %v9141
  %v9240 = vmul.f32 %v9238, %v9148
  %v9241 = vmul.f32 %v9239, %v9149
  %v9242 = vmul.f32 %v9126, %v8718
  %v9243 = vmul.f32 %v9141, %v8719
  %v9244 = vadd.f32 %v9240, %v9242
  %v9245 = vadd.f32 %v9241, %v9243
  %v9246 = vsub.f32 1.0, %v9214
  %v9247 = vsub.f32 1.0, %v9229
  %v9248 = vmul.f32 %v9246, %v9236
  %v9249 = vmul.f32 %v9247, %v9237
  %v9250 = vmul.f32 %v9214, %v8726
  %v9251 = vmul.f32 %v9229, %v8727
  %v9252 = vadd.f32 %v9248, %v9250
  %v9253 = vadd.f32 %v9249, %v9251
  %v9254 = vld [vmem:[#allocation2 + $0x150] sm:$0xff]
  %v9255 = vld [vmem:[#allocation2 + $0x158] sm:$0xff]
  %v9256 = vld [vmem:[#allocation2 + $0x160] sm:$0xff]
  %v9257 = vunpack.c.l.bf16 %v9254
  %v9258 = vunpack.c.h.bf16 %v9254
  %v9259 = vunpack.c.l.bf16 %v9255
  %v9260 = vunpack.c.h.bf16 %v9255
  %v9261 = vunpack.c.l.bf16 %v9256
  %v9262 = vunpack.c.h.bf16 %v9256
  %v9263 = vld [vmem:[#allocation2 + $0x18] sm:$0xff]
  %v9264 = vld [vmem:[#allocation2 + $0x20] sm:$0xff]
  %v9265 = vld [vmem:[#allocation2 + $0x28] sm:$0xff]
  %v9266 = vunpack.c.l.bf16 %v9263
  %v9267 = vunpack.c.h.bf16 %v9263
  %v9268 = vunpack.c.l.bf16 %v9264
  %v9269 = vunpack.c.h.bf16 %v9264
  %v9270 = vunpack.c.l.bf16 %v9265
  %v9271 = vunpack.c.h.bf16 %v9265
  %v9272 = vpack.c.bf16 %v9244, %v9244
  %v9273 = vpack.c.bf16 %v9245, %v9245
  %9274 = vmatpush.bf16.msra.mxu0 %v4964
  %9275 = vmatpush.bf16.msra.mxu0 %v4958
  %9276 = vmatpush.bf16.msra.mxu0 %v4952
  %9277 = vmatpush.bf16.msra.mxu0 %v4946
  %9278 = vmatpush.bf16.msra.mxu0 %v4940
  %9279 = vmatpush.bf16.msra.mxu0 %v4934
  %9280 = vmatpush.bf16.msra.mxu0 %v4928
  %9281 = vmatpush.bf16.msra.mxu0 %v4922
  %9282 = vmatmul.bf16.gmra.mxu0 %v9272
  %v9283 = vpop.f32.mrf.mxu0
  %v9284 = vadd.f32 0.0, %v9283
  %v9285 = vpop.f32.mrf.mxu0
  %9286 = vdwg.mxu0
  %9287 = vmatpush.bf16.msra.mxu0 %v5012
  %9288 = vmatpush.bf16.msra.mxu0 %v5006
  %9289 = vmatpush.bf16.msra.mxu0 %v5000
  %9290 = vmatpush.bf16.msra.mxu0 %v4994
  %9291 = vmatpush.bf16.msra.mxu0 %v4988
  %9292 = vmatpush.bf16.msra.mxu0 %v4982
  %9293 = vmatpush.bf16.msra.mxu0 %v4976
  %9294 = vmatpush.bf16.msra.mxu0 %v4970
  %9295 = vmatmul.bf16.gmra.mxu0 %v9273
  %v9296 = vpop.f32.mrf.mxu0
  %v9297 = vadd.f32 %v9284, %v9296
  %v9298 = vpop.f32.mrf.mxu0
  %9299 = vdwg.mxu0
  %9300 = vmatpush.bf16.msra.mxu0 %v4965
  %9301 = vmatpush.bf16.msra.mxu0 %v4959
  %9302 = vmatpush.bf16.msra.mxu0 %v4953
  %9303 = vmatpush.bf16.msra.mxu0 %v4947
  %9304 = vmatpush.bf16.msra.mxu0 %v4941
  %9305 = vmatpush.bf16.msra.mxu0 %v4935
  %9306 = vmatpush.bf16.msra.mxu0 %v4929
  %9307 = vmatpush.bf16.msra.mxu0 %v4923
  %9308 = vmatmul.bf16.gmra.mxu0 %v9272
  %v9309 = vpop.f32.mrf.mxu0
  %v9310 = vadd.f32 0.0, %v9309
  %v9311 = vpop.f32.mrf.mxu0
  %9312 = vdwg.mxu0
  %9313 = vmatpush.bf16.msra.mxu0 %v5013
  %9314 = vmatpush.bf16.msra.mxu0 %v5007
  %9315 = vmatpush.bf16.msra.mxu0 %v5001
  %9316 = vmatpush.bf16.msra.mxu0 %v4995
  %9317 = vmatpush.bf16.msra.mxu0 %v4989
  %9318 = vmatpush.bf16.msra.mxu0 %v4983
  %9319 = vmatpush.bf16.msra.mxu0 %v4977
  %9320 = vmatpush.bf16.msra.mxu0 %v4971
  %9321 = vmatmul.bf16.gmra.mxu0 %v9273
  %v9322 = vpop.f32.mrf.mxu0
  %v9323 = vadd.f32 %v9310, %v9322
  %v9324 = vpop.f32.mrf.mxu0
  %9325 = vdwg.mxu0
  %9326 = vmatpush.bf16.msra.mxu0 %v4966
  %9327 = vmatpush.bf16.msra.mxu0 %v4960
  %9328 = vmatpush.bf16.msra.mxu0 %v4954
  %9329 = vmatpush.bf16.msra.mxu0 %v4948
  %9330 = vmatpush.bf16.msra.mxu0 %v4942
  %9331 = vmatpush.bf16.msra.mxu0 %v4936
  %9332 = vmatpush.bf16.msra.mxu0 %v4930
  %9333 = vmatpush.bf16.msra.mxu0 %v4924
  %9334 = vmatmul.bf16.gmra.mxu0 %v9272
  %v9335 = vpop.f32.mrf.mxu0
  %v9336 = vadd.f32 0.0, %v9335
  %v9337 = vpop.f32.mrf.mxu0
  %9338 = vdwg.mxu0
  %9339 = vmatpush.bf16.msra.mxu0 %v5014
  %9340 = vmatpush.bf16.msra.mxu0 %v5008
  %9341 = vmatpush.bf16.msra.mxu0 %v5002
  %9342 = vmatpush.bf16.msra.mxu0 %v4996
  %9343 = vmatpush.bf16.msra.mxu0 %v4990
  %9344 = vmatpush.bf16.msra.mxu0 %v4984
  %9345 = vmatpush.bf16.msra.mxu0 %v4978
  %9346 = vmatpush.bf16.msra.mxu0 %v4972
  %9347 = vmatmul.bf16.gmra.mxu0 %v9273
  %v9348 = vpop.f32.mrf.mxu0
  %v9349 = vadd.f32 %v9336, %v9348
  %v9350 = vpop.f32.mrf.mxu0
  %9351 = vdwg.mxu0
  %9352 = vmatpush.bf16.msra.mxu0 %v4967
  %9353 = vmatpush.bf16.msra.mxu0 %v4961
  %9354 = vmatpush.bf16.msra.mxu0 %v4955
  %9355 = vmatpush.bf16.msra.mxu0 %v4949
  %9356 = vmatpush.bf16.msra.mxu0 %v4943
  %9357 = vmatpush.bf16.msra.mxu0 %v4937
  %9358 = vmatpush.bf16.msra.mxu0 %v4931
  %9359 = vmatpush.bf16.msra.mxu0 %v4925
  %9360 = vmatmul.bf16.gmra.mxu0 %v9272
  %v9361 = vpop.f32.mrf.mxu0
  %v9362 = vadd.f32 0.0, %v9361
  %v9363 = vpop.f32.mrf.mxu0
  %9364 = vdwg.mxu0
  %9365 = vmatpush.bf16.msra.mxu0 %v5015
  %9366 = vmatpush.bf16.msra.mxu0 %v5009
  %9367 = vmatpush.bf16.msra.mxu0 %v5003
  %9368 = vmatpush.bf16.msra.mxu0 %v4997
  %9369 = vmatpush.bf16.msra.mxu0 %v4991
  %9370 = vmatpush.bf16.msra.mxu0 %v4985
  %9371 = vmatpush.bf16.msra.mxu0 %v4979
  %9372 = vmatpush.bf16.msra.mxu0 %v4973
  %9373 = vmatmul.bf16.gmra.mxu0 %v9273
  %v9374 = vpop.f32.mrf.mxu0
  %v9375 = vadd.f32 %v9362, %v9374
  %v9376 = vpop.f32.mrf.mxu0
  %9377 = vdwg.mxu0
  %9378 = vmatpush.bf16.msra.mxu0 %v4968
  %9379 = vmatpush.bf16.msra.mxu0 %v4962
  %9380 = vmatpush.bf16.msra.mxu0 %v4956
  %9381 = vmatpush.bf16.msra.mxu0 %v4950
  %9382 = vmatpush.bf16.msra.mxu0 %v4944
  %9383 = vmatpush.bf16.msra.mxu0 %v4938
  %9384 = vmatpush.bf16.msra.mxu0 %v4932
  %9385 = vmatpush.bf16.msra.mxu0 %v4926
  %9386 = vmatmul.bf16.gmra.mxu0 %v9272
  %v9387 = vpop.f32.mrf.mxu0
  %v9388 = vadd.f32 0.0, %v9387
  %v9389 = vpop.f32.mrf.mxu0
  %9390 = vdwg.mxu0
  %9391 = vmatpush.bf16.msra.mxu0 %v5016
  %9392 = vmatpush.bf16.msra.mxu0 %v5010
  %9393 = vmatpush.bf16.msra.mxu0 %v5004
  %9394 = vmatpush.bf16.msra.mxu0 %v4998
  %9395 = vmatpush.bf16.msra.mxu0 %v4992
  %9396 = vmatpush.bf16.msra.mxu0 %v4986
  %9397 = vmatpush.bf16.msra.mxu0 %v4980
  %9398 = vmatpush.bf16.msra.mxu0 %v4974
  %9399 = vmatmul.bf16.gmra.mxu0 %v9273
  %v9400 = vpop.f32.mrf.mxu0
  %v9401 = vadd.f32 %v9388, %v9400
  %v9402 = vpop.f32.mrf.mxu0
  %9403 = vdwg.mxu0
  %9404 = vmatpush.bf16.msra.mxu0 %v4969
  %9405 = vmatpush.bf16.msra.mxu0 %v4963
  %9406 = vmatpush.bf16.msra.mxu0 %v4957
  %9407 = vmatpush.bf16.msra.mxu0 %v4951
  %9408 = vmatpush.bf16.msra.mxu0 %v4945
  %9409 = vmatpush.bf16.msra.mxu0 %v4939
  %9410 = vmatpush.bf16.msra.mxu0 %v4933
  %9411 = vmatpush.bf16.msra.mxu0 %v4927
  %9412 = vmatmul.bf16.gmra.mxu0 %v9272
  %v9413 = vpop.f32.mrf.mxu0
  %v9414 = vadd.f32 0.0, %v9413
  %v9415 = vpop.f32.mrf.mxu0
  %9416 = vdwg.mxu0
  %9417 = vmatpush.bf16.msra.mxu0 %v5017
  %9418 = vmatpush.bf16.msra.mxu0 %v5011
  %9419 = vmatpush.bf16.msra.mxu0 %v5005
  %9420 = vmatpush.bf16.msra.mxu0 %v4999
  %9421 = vmatpush.bf16.msra.mxu0 %v4993
  %9422 = vmatpush.bf16.msra.mxu0 %v4987
  %9423 = vmatpush.bf16.msra.mxu0 %v4981
  %9424 = vmatpush.bf16.msra.mxu0 %v4975
  %9425 = vmatmul.bf16.gmra.mxu0 %v9273
  %v9426 = vpop.f32.mrf.mxu0
  %v9427 = vadd.f32 %v9414, %v9426
  %v9428 = vpop.f32.mrf.mxu0
  %9429 = vdwg.mxu0
  %v9430 = vpack.c.bf16 %v9252, %v9252
  %v9431 = vpack.c.bf16 %v9253, %v9253
  %9432 = vmatpush.bf16.msra.mxu0 %v5600
  %9433 = vmatpush.bf16.msra.mxu0 %v5594
  %9434 = vmatpush.bf16.msra.mxu0 %v5588
  %9435 = vmatpush.bf16.msra.mxu0 %v5582
  %9436 = vmatpush.bf16.msra.mxu0 %v5576
  %9437 = vmatpush.bf16.msra.mxu0 %v5570
  %9438 = vmatpush.bf16.msra.mxu0 %v5564
  %9439 = vmatpush.bf16.msra.mxu0 %v5558
  %9440 = vmatmul.bf16.gmra.mxu0 %v9430
  %v9441 = vpop.f32.mrf.mxu0
  %v9442 = vadd.f32 0.0, %v9441
  %v9443 = vpop.f32.mrf.mxu0
  %9444 = vdwg.mxu0
  %9445 = vmatpush.bf16.msra.mxu0 %v5648
  %9446 = vmatpush.bf16.msra.mxu0 %v5642
  %9447 = vmatpush.bf16.msra.mxu0 %v5636
  %9448 = vmatpush.bf16.msra.mxu0 %v5630
  %9449 = vmatpush.bf16.msra.mxu0 %v5624
  %9450 = vmatpush.bf16.msra.mxu0 %v5618
  %9451 = vmatpush.bf16.msra.mxu0 %v5612
  %9452 = vmatpush.bf16.msra.mxu0 %v5606
  %9453 = vmatmul.bf16.gmra.mxu0 %v9431
  %v9454 = vpop.f32.mrf.mxu0
  %v9455 = vadd.f32 %v9442, %v9454
  %v9456 = vpop.f32.mrf.mxu0
  %9457 = vdwg.mxu0
  %9458 = vmatpush.bf16.msra.mxu0 %v5601
  %9459 = vmatpush.bf16.msra.mxu0 %v5595
  %9460 = vmatpush.bf16.msra.mxu0 %v5589
  %9461 = vmatpush.bf16.msra.mxu0 %v5583
  %9462 = vmatpush.bf16.msra.mxu0 %v5577
  %9463 = vmatpush.bf16.msra.mxu0 %v5571
  %9464 = vmatpush.bf16.msra.mxu0 %v5565
  %9465 = vmatpush.bf16.msra.mxu0 %v5559
  %9466 = vmatmul.bf16.gmra.mxu0 %v9430
  %v9467 = vpop.f32.mrf.mxu0
  %v9468 = vadd.f32 0.0, %v9467
  %v9469 = vpop.f32.mrf.mxu0
  %9470 = vdwg.mxu0
  %9471 = vmatpush.bf16.msra.mxu0 %v5649
  %9472 = vmatpush.bf16.msra.mxu0 %v5643
  %9473 = vmatpush.bf16.msra.mxu0 %v5637
  %9474 = vmatpush.bf16.msra.mxu0 %v5631
  %9475 = vmatpush.bf16.msra.mxu0 %v5625
  %9476 = vmatpush.bf16.msra.mxu0 %v5619
  %9477 = vmatpush.bf16.msra.mxu0 %v5613
  %9478 = vmatpush.bf16.msra.mxu0 %v5607
  %9479 = vmatmul.bf16.gmra.mxu0 %v9431
  %v9480 = vpop.f32.mrf.mxu0
  %v9481 = vadd.f32 %v9468, %v9480
  %v9482 = vpop.f32.mrf.mxu0
  %9483 = vdwg.mxu0
  %9484 = vmatpush.bf16.msra.mxu0 %v5602
  %9485 = vmatpush.bf16.msra.mxu0 %v5596
  %9486 = vmatpush.bf16.msra.mxu0 %v5590
  %9487 = vmatpush.bf16.msra.mxu0 %v5584
  %9488 = vmatpush.bf16.msra.mxu0 %v5578
  %9489 = vmatpush.bf16.msra.mxu0 %v5572
  %9490 = vmatpush.bf16.msra.mxu0 %v5566
  %9491 = vmatpush.bf16.msra.mxu0 %v5560
  %9492 = vmatmul.bf16.gmra.mxu0 %v9430
  %v9493 = vpop.f32.mrf.mxu0
  %v9494 = vadd.f32 0.0, %v9493
  %v9495 = vpop.f32.mrf.mxu0
  %9496 = vdwg.mxu0
  %9497 = vmatpush.bf16.msra.mxu0 %v5650
  %9498 = vmatpush.bf16.msra.mxu0 %v5644
  %9499 = vmatpush.bf16.msra.mxu0 %v5638
  %9500 = vmatpush.bf16.msra.mxu0 %v5632
  %9501 = vmatpush.bf16.msra.mxu0 %v5626
  %9502 = vmatpush.bf16.msra.mxu0 %v5620
  %9503 = vmatpush.bf16.msra.mxu0 %v5614
  %9504 = vmatpush.bf16.msra.mxu0 %v5608
  %9505 = vmatmul.bf16.gmra.mxu0 %v9431
  %v9506 = vpop.f32.mrf.mxu0
  %v9507 = vadd.f32 %v9494, %v9506
  %v9508 = vpop.f32.mrf.mxu0
  %9509 = vdwg.mxu0
  %9510 = vmatpush.bf16.msra.mxu0 %v5603
  %9511 = vmatpush.bf16.msra.mxu0 %v5597
  %9512 = vmatpush.bf16.msra.mxu0 %v5591
  %9513 = vmatpush.bf16.msra.mxu0 %v5585
  %9514 = vmatpush.bf16.msra.mxu0 %v5579
  %9515 = vmatpush.bf16.msra.mxu0 %v5573
  %9516 = vmatpush.bf16.msra.mxu0 %v5567
  %9517 = vmatpush.bf16.msra.mxu0 %v5561
  %9518 = vmatmul.bf16.gmra.mxu0 %v9430
  %v9519 = vpop.f32.mrf.mxu0
  %v9520 = vadd.f32 0.0, %v9519
  %v9521 = vpop.f32.mrf.mxu0
  %9522 = vdwg.mxu0
  %9523 = vmatpush.bf16.msra.mxu0 %v5651
  %9524 = vmatpush.bf16.msra.mxu0 %v5645
  %9525 = vmatpush.bf16.msra.mxu0 %v5639
  %9526 = vmatpush.bf16.msra.mxu0 %v5633
  %9527 = vmatpush.bf16.msra.mxu0 %v5627
  %9528 = vmatpush.bf16.msra.mxu0 %v5621
  %9529 = vmatpush.bf16.msra.mxu0 %v5615
  %9530 = vmatpush.bf16.msra.mxu0 %v5609
  %9531 = vmatmul.bf16.gmra.mxu0 %v9431
  %v9532 = vpop.f32.mrf.mxu0
  %v9533 = vadd.f32 %v9520, %v9532
  %v9534 = vpop.f32.mrf.mxu0
  %9535 = vdwg.mxu0
  %9536 = vmatpush.bf16.msra.mxu0 %v5604
  %9537 = vmatpush.bf16.msra.mxu0 %v5598
  %9538 = vmatpush.bf16.msra.mxu0 %v5592
  %9539 = vmatpush.bf16.msra.mxu0 %v5586
  %9540 = vmatpush.bf16.msra.mxu0 %v5580
  %9541 = vmatpush.bf16.msra.mxu0 %v5574
  %9542 = vmatpush.bf16.msra.mxu0 %v5568
  %9543 = vmatpush.bf16.msra.mxu0 %v5562
  %9544 = vmatmul.bf16.gmra.mxu0 %v9430
  %v9545 = vpop.f32.mrf.mxu0
  %v9546 = vadd.f32 0.0, %v9545
  %v9547 = vpop.f32.mrf.mxu0
  %9548 = vdwg.mxu0
  %9549 = vmatpush.bf16.msra.mxu0 %v5652
  %9550 = vmatpush.bf16.msra.mxu0 %v5646
  %9551 = vmatpush.bf16.msra.mxu0 %v5640
  %9552 = vmatpush.bf16.msra.mxu0 %v5634
  %9553 = vmatpush.bf16.msra.mxu0 %v5628
  %9554 = vmatpush.bf16.msra.mxu0 %v5622
  %9555 = vmatpush.bf16.msra.mxu0 %v5616
  %9556 = vmatpush.bf16.msra.mxu0 %v5610
  %9557 = vmatmul.bf16.gmra.mxu0 %v9431
  %v9558 = vpop.f32.mrf.mxu0
  %v9559 = vadd.f32 %v9546, %v9558
  %v9560 = vpop.f32.mrf.mxu0
  %9561 = vdwg.mxu0
  %9562 = vmatpush.bf16.msra.mxu0 %v5605
  %9563 = vmatpush.bf16.msra.mxu0 %v5599
  %9564 = vmatpush.bf16.msra.mxu0 %v5593
  %9565 = vmatpush.bf16.msra.mxu0 %v5587
  %9566 = vmatpush.bf16.msra.mxu0 %v5581
  %9567 = vmatpush.bf16.msra.mxu0 %v5575
  %9568 = vmatpush.bf16.msra.mxu0 %v5569
  %9569 = vmatpush.bf16.msra.mxu0 %v5563
  %9570 = vmatmul.bf16.gmra.mxu0 %v9430
  %v9571 = vpop.f32.mrf.mxu0
  %v9572 = vadd.f32 0.0, %v9571
  %v9573 = vpop.f32.mrf.mxu0
  %9574 = vdwg.mxu0
  %9575 = vmatpush.bf16.msra.mxu0 %v5653
  %9576 = vmatpush.bf16.msra.mxu0 %v5647
  %9577 = vmatpush.bf16.msra.mxu0 %v5641
  %9578 = vmatpush.bf16.msra.mxu0 %v5635
  %9579 = vmatpush.bf16.msra.mxu0 %v5629
  %9580 = vmatpush.bf16.msra.mxu0 %v5623
  %9581 = vmatpush.bf16.msra.mxu0 %v5617
  %9582 = vmatpush.bf16.msra.mxu0 %v5611
  %9583 = vmatmul.bf16.gmra.mxu0 %v9431
  %v9584 = vpop.f32.mrf.mxu0
  %v9585 = vadd.f32 %v9572, %v9584
  %v9586 = vpop.f32.mrf.mxu0
  %9587 = vdwg.mxu0
  %v9588 = vadd.f32 %v9257, %v9297
  %v9589 = vadd.f32 %v9258, %v9323
  %v9590 = vxor.u32 %v9588, 2147483648
  %v9591 = vxor.u32 %v9589, 2147483648
  %v9592 = vmul.f32 %v9590, 1.442695
  %v9593 = vpow.pop %v9592
  %v9594 = vmul.f32 %v9591, 1.442695
  %v9595 = vpow.pop %v9594
  %v9596 = vadd.f32 %v9593, 1.0
  %v9597 = vadd.f32 %v9595, 1.0
  %v9598 = vrcp.pop %v9596
  %v9599 = vmul.f32 %v9596, %v9598
  %v9600 = vsub.f32 1.0, %v9599
  %v9601 = vmul.f32 %v9598, %v9600
  %v9602 = vadd.f32 %v9598, %v9601
  %vm9603 = vweird.f32 %v9596
  %vm9604 = vweird.f32 %v9598
  %vm9605 = vmor %vm9603, %vm9604
  %v9606 = vsel %vm9605, %v9598, %v9602
  %v9607 = vand.u32 2147483647, %v9596
  %vm9608 = vcmp.eq.f32.partialorder %v9607, 8.507059e+37
  %v9609 = vand.u32 %v9596, 2147483648
  %v9610 = vor.u32 1.1754944e-38, %v9609
  %v9611 = vsel %vm9608, %v9610, %v9606
  %v9612 = vmul.f32 1.0, %v9611
  %v9613 = vrcp.pop %v9597
  %v9614 = vmul.f32 %v9597, %v9613
  %v9615 = vsub.f32 1.0, %v9614
  %v9616 = vmul.f32 %v9613, %v9615
  %v9617 = vadd.f32 %v9613, %v9616
  %vm9618 = vweird.f32 %v9597
  %vm9619 = vweird.f32 %v9613
  %vm9620 = vmor %vm9618, %vm9619
  %v9621 = vsel %vm9620, %v9613, %v9617
  %v9622 = vand.u32 2147483647, %v9597
  %vm9623 = vcmp.eq.f32.partialorder %v9622, 8.507059e+37
  %v9624 = vand.u32 %v9597, 2147483648
  %v9625 = vor.u32 1.1754944e-38, %v9624
  %v9626 = vsel %vm9623, %v9625, %v9621
  %v9627 = vmul.f32 1.0, %v9626
  %v9628 = vadd.f32 %v9259, %v9349
  %v9629 = vadd.f32 %v9260, %v9375
  %v9630 = vxor.u32 %v9628, 2147483648
  %v9631 = vxor.u32 %v9629, 2147483648
  %v9632 = vmul.f32 %v9630, 1.442695
  %v9633 = vpow.pop %v9632
  %v9634 = vmul.f32 %v9631, 1.442695
  %v9635 = vpow.pop %v9634
  %v9636 = vadd.f32 %v9633, 1.0
  %v9637 = vadd.f32 %v9635, 1.0
  %v9638 = vrcp.pop %v9636
  %v9639 = vmul.f32 %v9636, %v9638
  %v9640 = vsub.f32 1.0, %v9639
  %v9641 = vmul.f32 %v9638, %v9640
  %v9642 = vadd.f32 %v9638, %v9641
  %vm9643 = vweird.f32 %v9636
  %vm9644 = vweird.f32 %v9638
  %vm9645 = vmor %vm9643, %vm9644
  %v9646 = vsel %vm9645, %v9638, %v9642
  %v9647 = vand.u32 2147483647, %v9636
  %vm9648 = vcmp.eq.f32.partialorder %v9647, 8.507059e+37
  %v9649 = vand.u32 %v9636, 2147483648
  %v9650 = vor.u32 1.1754944e-38, %v9649
  %v9651 = vsel %vm9648, %v9650, %v9646
  %v9652 = vmul.f32 1.0, %v9651
  %v9653 = vrcp.pop %v9637
  %v9654 = vmul.f32 %v9637, %v9653
  %v9655 = vsub.f32 1.0, %v9654
  %v9656 = vmul.f32 %v9653, %v9655
  %v9657 = vadd.f32 %v9653, %v9656
  %vm9658 = vweird.f32 %v9637
  %vm9659 = vweird.f32 %v9653
  %vm9660 = vmor %vm9658, %vm9659
  %v9661 = vsel %vm9660, %v9653, %v9657
  %v9662 = vand.u32 2147483647, %v9637
  %vm9663 = vcmp.eq.f32.partialorder %v9662, 8.507059e+37
  %v9664 = vand.u32 %v9637, 2147483648
  %v9665 = vor.u32 1.1754944e-38, %v9664
  %v9666 = vsel %vm9663, %v9665, %v9661
  %v9667 = vmul.f32 1.0, %v9666
  %v9668 = vadd.f32 %v9401, %v4606
  %v9669 = vadd.f32 %v9427, %v4607
  %v9670 = vmul.f32 %v9612, %v9668
  %v9671 = vmul.f32 %v9627, %v9669
  %v9672 = vadd.f32 %v9261, %v9670
  %v9673 = vadd.f32 %v9262, %v9671
  %v9674 = vtanh.pop %v9672
  %v9675 = vtanh.pop %v9673
  %v9676 = vadd.f32 %v9266, %v9455
  %v9677 = vadd.f32 %v9267, %v9481
  %v9678 = vxor.u32 %v9676, 2147483648
  %v9679 = vxor.u32 %v9677, 2147483648
  %v9680 = vmul.f32 %v9678, 1.442695
  %v9681 = vpow.pop %v9680
  %v9682 = vmul.f32 %v9679, 1.442695
  %v9683 = vpow.pop %v9682
  %v9684 = vadd.f32 %v9681, 1.0
  %v9685 = vadd.f32 %v9683, 1.0
  %v9686 = vrcp.pop %v9684
  %v9687 = vmul.f32 %v9684, %v9686
  %v9688 = vsub.f32 1.0, %v9687
  %v9689 = vmul.f32 %v9686, %v9688
  %v9690 = vadd.f32 %v9686, %v9689
  %vm9691 = vweird.f32 %v9684
  %vm9692 = vweird.f32 %v9686
  %vm9693 = vmor %vm9691, %vm9692
  %v9694 = vsel %vm9693, %v9686, %v9690
  %v9695 = vand.u32 2147483647, %v9684
  %vm9696 = vcmp.eq.f32.partialorder %v9695, 8.507059e+37
  %v9697 = vand.u32 %v9684, 2147483648
  %v9698 = vor.u32 1.1754944e-38, %v9697
  %v9699 = vsel %vm9696, %v9698, %v9694
  %v9700 = vmul.f32 1.0, %v9699
  %v9701 = vrcp.pop %v9685
  %v9702 = vmul.f32 %v9685, %v9701
  %v9703 = vsub.f32 1.0, %v9702
  %v9704 = vmul.f32 %v9701, %v9703
  %v9705 = vadd.f32 %v9701, %v9704
  %vm9706 = vweird.f32 %v9685
  %vm9707 = vweird.f32 %v9701
  %vm9708 = vmor %vm9706, %vm9707
  %v9709 = vsel %vm9708, %v9701, %v9705
  %v9710 = vand.u32 2147483647, %v9685
  %vm9711 = vcmp.eq.f32.partialorder %v9710, 8.507059e+37
  %v9712 = vand.u32 %v9685, 2147483648
  %v9713 = vor.u32 1.1754944e-38, %v9712
  %v9714 = vsel %vm9711, %v9713, %v9709
  %v9715 = vmul.f32 1.0, %v9714
  %v9716 = vadd.f32 %v9268, %v9507
  %v9717 = vadd.f32 %v9269, %v9533
  %v9718 = vxor.u32 %v9716, 2147483648
  %v9719 = vxor.u32 %v9717, 2147483648
  %v9720 = vmul.f32 %v9718, 1.442695
  %v9721 = vpow.pop %v9720
  %v9722 = vmul.f32 %v9719, 1.442695
  %v9723 = vpow.pop %v9722
  %v9724 = vadd.f32 %v9721, 1.0
  %v9725 = vadd.f32 %v9723, 1.0
  %v9726 = vrcp.pop %v9724
  %v9727 = vmul.f32 %v9724, %v9726
  %v9728 = vsub.f32 1.0, %v9727
  %v9729 = vmul.f32 %v9726, %v9728
  %v9730 = vadd.f32 %v9726, %v9729
  %vm9731 = vweird.f32 %v9724
  %vm9732 = vweird.f32 %v9726
  %vm9733 = vmor %vm9731, %vm9732
  %v9734 = vsel %vm9733, %v9726, %v9730
  %v9735 = vand.u32 2147483647, %v9724
  %vm9736 = vcmp.eq.f32.partialorder %v9735, 8.507059e+37
  %v9737 = vand.u32 %v9724, 2147483648
  %v9738 = vor.u32 1.1754944e-38, %v9737
  %v9739 = vsel %vm9736, %v9738, %v9734
  %v9740 = vmul.f32 1.0, %v9739
  %v9741 = vrcp.pop %v9725
  %v9742 = vmul.f32 %v9725, %v9741
  %v9743 = vsub.f32 1.0, %v9742
  %v9744 = vmul.f32 %v9741, %v9743
  %v9745 = vadd.f32 %v9741, %v9744
  %vm9746 = vweird.f32 %v9725
  %vm9747 = vweird.f32 %v9741
  %vm9748 = vmor %vm9746, %vm9747
  %v9749 = vsel %vm9748, %v9741, %v9745
  %v9750 = vand.u32 2147483647, %v9725
  %vm9751 = vcmp.eq.f32.partialorder %v9750, 8.507059e+37
  %v9752 = vand.u32 %v9725, 2147483648
  %v9753 = vor.u32 1.1754944e-38, %v9752
  %v9754 = vsel %vm9751, %v9753, %v9749
  %v9755 = vmul.f32 1.0, %v9754
  %v9756 = vadd.f32 %v9559, %v4612
  %v9757 = vadd.f32 %v9585, %v4613
  %v9758 = vmul.f32 %v9700, %v9756
  %v9759 = vmul.f32 %v9715, %v9757
  %v9760 = vadd.f32 %v9270, %v9758
  %v9761 = vadd.f32 %v9271, %v9759
  %v9762 = vtanh.pop %v9760
  %v9763 = vtanh.pop %v9761
  %v9764 = vsub.f32 1.0, %v9652
  %v9765 = vsub.f32 1.0, %v9667
  %v9766 = vmul.f32 %v9764, %v9674
  %v9767 = vmul.f32 %v9765, %v9675
  %v9768 = vmul.f32 %v9652, %v9244
  %v9769 = vmul.f32 %v9667, %v9245
  %v9770 = vadd.f32 %v9766, %v9768
  %v9771 = vadd.f32 %v9767, %v9769
  %v9772 = vsub.f32 1.0, %v9740
  %v9773 = vsub.f32 1.0, %v9755
  %v9774 = vmul.f32 %v9772, %v9762
  %v9775 = vmul.f32 %v9773, %v9763
  %v9776 = vmul.f32 %v9740, %v9252
  %v9777 = vmul.f32 %v9755, %v9253
  %v9778 = vadd.f32 %v9774, %v9776
  %v9779 = vadd.f32 %v9775, %v9777
  %v9780 = vadd.f32 %v9770, %v9778
  %v9781 = vadd.f32 %v9771, %v9779
  %v9782 = vmul.f32 %v9780, 0.5
  %v9783 = vmul.f32 %v9781, 0.5
  %v9784 = vpack.c.bf16 %v9782, %v9782
  %v9785 = vpack.c.bf16 %v9783, %v9783
  %s9786 = smul.u32 %s4406, 1
  %s9787 = sshll.u32 %s9786, 4
  %9788 = dma.done %s441, %s9787
  %v9789 = vld [vmem:[#allocation5] sm:$0xf]
  %v9790 = vld [vmem:[#allocation5 + $0x4] sm:$0xf]
  %v9791 = vld [vmem:[#allocation5 + $0x8] sm:$0xf]
  %v9792 = vld [vmem:[#allocation5 + $0xc] sm:$0xf]
  %v9793 = vld [vmem:[#allocation5 + $0x10] sm:$0xf]
  %v9794 = vld [vmem:[#allocation5 + $0x14] sm:$0xf]
  %v9795 = vld [vmem:[#allocation5 + $0x18] sm:$0xf]
  %v9796 = vld [vmem:[#allocation5 + $0x1c] sm:$0xf]
  %v9797 = vld [vmem:[#allocation5 + $0x20] sm:$0xf]
  %v9798 = vld [vmem:[#allocation5 + $0x24] sm:$0xf]
  %v9799 = vld [vmem:[#allocation5 + $0x28] sm:$0xf]
  %v9800 = vld [vmem:[#allocation5 + $0x2c] sm:$0xf]
  %v9801 = vld [vmem:[#allocation5 + $0x30] sm:$0xf]
  %v9802 = vld [vmem:[#allocation5 + $0x34] sm:$0xf]
  %v9803 = vld [vmem:[#allocation5 + $0x38] sm:$0xf]
  %v9804 = vld [vmem:[#allocation5 + $0x3c] sm:$0xf]
  %v9805 = vld [vmem:[#allocation5 + $0x40] sm:$0xf]
  %v9806 = vld [vmem:[#allocation5 + $0x44] sm:$0xf]
  %v9807 = vld [vmem:[#allocation5 + $0x48] sm:$0xf]
  %v9808 = vld [vmem:[#allocation5 + $0x4c] sm:$0xf]
  %v9809 = vld [vmem:[#allocation5 + $0x50] sm:$0xf]
  %v9810 = vld [vmem:[#allocation5 + $0x54] sm:$0xf]
  %v9811 = vld [vmem:[#allocation5 + $0x58] sm:$0xf]
  %v9812 = vld [vmem:[#allocation5 + $0x5c] sm:$0xf]
  %v9813 = vld [vmem:[#allocation5 + $0x60] sm:$0xf]
  %v9814 = vld [vmem:[#allocation5 + $0x64] sm:$0xf]
  %v9815 = vld [vmem:[#allocation5 + $0x68] sm:$0xf]
  %v9816 = vld [vmem:[#allocation5 + $0x6c] sm:$0xf]
  %v9817 = vld [vmem:[#allocation5 + $0x70] sm:$0xf]
  %v9818 = vld [vmem:[#allocation5 + $0x74] sm:$0xf]
  %v9819 = vld [vmem:[#allocation5 + $0x78] sm:$0xf]
  %v9820 = vld [vmem:[#allocation5 + $0x7c] sm:$0xf]
  %v9821 = vld [vmem:[%s4] sm:$0x1]
  %v9823 = vperm.slane %v9821, 0
  %v9857 = vunpack.c.l.b16 %v9789
  %v9858 = vunpack.c.l.b16 %v9790
  %v9859 = vunpack.c.l.b16 %v9791
  %v9860 = vunpack.c.l.b16 %v9792
  %v9861 = vunpack.c.l.b16 %v9793
  %v9862 = vunpack.c.l.b16 %v9794
  %v9863 = vunpack.c.l.b16 %v9795
  %v9864 = vunpack.c.l.b16 %v9796
  %v9865 = vunpack.c.l.b16 %v9797
  %v9866 = vunpack.c.l.b16 %v9798
  %v9867 = vunpack.c.l.b16 %v9799
  %v9868 = vunpack.c.l.b16 %v9800
  %v9869 = vunpack.c.l.b16 %v9801
  %v9870 = vunpack.c.l.b16 %v9802
  %v9871 = vunpack.c.l.b16 %v9803
  %v9872 = vunpack.c.l.b16 %v9804
  %v9873 = vunpack.c.l.b16 %v9805
  %v9874 = vunpack.c.l.b16 %v9806
  %v9875 = vunpack.c.l.b16 %v9807
  %v9876 = vunpack.c.l.b16 %v9808
  %v9877 = vunpack.c.l.b16 %v9809
  %v9878 = vunpack.c.l.b16 %v9810
  %v9879 = vunpack.c.l.b16 %v9811
  %v9880 = vunpack.c.l.b16 %v9812
  %v9881 = vunpack.c.l.b16 %v9813
  %v9882 = vunpack.c.l.b16 %v9814
  %v9883 = vunpack.c.l.b16 %v9815
  %v9884 = vunpack.c.l.b16 %v9816
  %v9885 = vunpack.c.l.b16 %v9817
  %v9886 = vunpack.c.l.b16 %v9818
  %v9887 = vunpack.c.l.b16 %v9819
  %v9888 = vunpack.c.l.b16 %v9820
  %v9889 = vpack.c.b16 %v9858, %v9857
  %v9890 = vpack.c.b16 %v9860, %v9859
  %v9891 = vpack.c.b16 %v9862, %v9861
  %v9892 = vpack.c.b16 %v9864, %v9863
  %v9893 = vpack.c.b16 %v9866, %v9865
  %v9894 = vpack.c.b16 %v9868, %v9867
  %v9895 = vpack.c.b16 %v9870, %v9869
  %v9896 = vpack.c.b16 %v9872, %v9871
  %v9897 = vpack.c.b16 %v9874, %v9873
  %v9898 = vpack.c.b16 %v9876, %v9875
  %v9899 = vpack.c.b16 %v9878, %v9877
  %v9900 = vpack.c.b16 %v9880, %v9879
  %v9901 = vpack.c.b16 %v9882, %v9881
  %v9902 = vpack.c.b16 %v9884, %v9883
  %v9903 = vpack.c.b16 %v9886, %v9885
  %v9904 = vpack.c.b16 %v9888, %v9887
  %9921 = vmatpush.bf16.msra.mxu0 %v9896
  %9922 = vmatpush.bf16.msra.mxu0 %v9895
  %9923 = vmatpush.bf16.msra.mxu0 %v9894
  %9924 = vmatpush.bf16.msra.mxu0 %v9893
  %9925 = vmatpush.bf16.msra.mxu0 %v9892
  %9926 = vmatpush.bf16.msra.mxu0 %v9891
  %9927 = vmatpush.bf16.msra.mxu0 %v9890
  %9928 = vmatpush.bf16.msra.mxu0 %v9889
  %9929 = vmatmul.bf16.gmra.mxu0 %v9784
  %v9930 = vpop.f32.mrf.mxu0
  %v9931 = vadd.f32 %v9823, %v9930
  %v9932 = vpop.f32.mrf.mxu0
  %9933 = vdwg.mxu0
  %9934 = vmatpush.bf16.msra.mxu0 %v9904
  %9935 = vmatpush.bf16.msra.mxu0 %v9903
  %9936 = vmatpush.bf16.msra.mxu0 %v9902
  %9937 = vmatpush.bf16.msra.mxu0 %v9901
  %9938 = vmatpush.bf16.msra.mxu0 %v9900
  %9939 = vmatpush.bf16.msra.mxu0 %v9899
  %9940 = vmatpush.bf16.msra.mxu0 %v9898
  %9941 = vmatpush.bf16.msra.mxu0 %v9897
  %9942 = vmatmul.bf16.gmra.mxu0 %v9785
  %v9943 = vpop.f32.mrf.mxu0
  %v9944 = vadd.f32 %v9931, %v9943
  %v9945 = vpop.f32.mrf.mxu0
  %9946 = vdwg.mxu0
  %v9947 = vxor.u32 %v9944, 2147483648
  %v9948 = vmul.f32 %v9947, 1.442695
  %v9949 = vpow.pop %v9948
  %v9950 = vadd.f32 %v9949, 1.0
  %v9951 = vrcp.pop %v9950
  %v9952 = vmul.f32 %v9950, %v9951
  %v9953 = vsub.f32 1.0, %v9952
  %v9954 = vmul.f32 %v9951, %v9953
  %v9955 = vadd.f32 %v9951, %v9954
  %vm9956 = vweird.f32 %v9950
  %vm9957 = vweird.f32 %v9951
  %vm9958 = vmor %vm9956, %vm9957
  %v9959 = vsel %vm9958, %v9951, %v9955
  %v9960 = vand.u32 2147483647, %v9950
  %vm9961 = vcmp.eq.f32.partialorder %v9960, 8.507059e+37
  %v9962 = vand.u32 %v9950, 2147483648
  %v9963 = vor.u32 1.1754944e-38, %v9962
  %v9964 = vsel %vm9961, %v9963, %v9959
  %v9965 = vmul.f32 1.0, %v9964
  %9966 = vst [vmem:[%s8] sm:$0xff] %v9965
  // Predicated region
  $region79: #{context_rnn_forward.1} parent=0 // pred_check
    _
  $region80: #{context_rnn_forward.1} parent=0 // pred_check_branch
    %9968 = sbr.rel (0) target = $region82
  $region81: #{context_rnn_forward.1} parent=0 // pred_region
    _
  $region82: #{context_rnn_forward.1} parent=0 // pred_fallthru
    _
  // Predicated region
  $region83: #{context_rnn_forward.1} parent=0 // pred_check
    _
  $region84: #{context_rnn_forward.1} parent=0 // pred_check_branch
    %9970 = sbr.rel (0) target = $region86
  $region85: #{context_rnn_forward.1} parent=0 // pred_region
    _
  $region86: #{context_rnn_forward.1} parent=0 // pred_fallthru
    _
  %9971 = vsyncmov [#allocation6]
  %s9972 = vpop.sfrf %9971
  %p9973 = scmp.eq.s32.totalorder %s9972, 0
  %p9974 = pneg %p9973
  %9976 = shalt.err (%p9974)
  %s9977 = scalar_lea.sflag [#allocation6], 1
  %9978 = vsyncmov %s9977
  %s9979 = vpop.sfrf %9978
  %p9980 = scmp.eq.s32.totalorder %s9979, 0
  %p9981 = pneg %p9980
  %9983 = shalt.err (%p9981)
  %s9984 = scalar_lea.sflag [#allocation6], 2
  %9985 = vsyncmov %s9984
  %s9986 = vpop.sfrf %9985
  %p9987 = scmp.eq.s32.totalorder %s9986, 0
  %p9988 = pneg %p9987
  %9990 = shalt.err (%p9988)

</llo_original>
